<compile_context>
chip_gen: v7x
topology: tpu7x:2x2x1
jax: 0.10.0
libtpu: 0.0.40
codegen_flags: <defaults>
</compile_context>

<pallas_src>
import numpy as np
import jax
import jax.numpy as jnp
from jax.experimental import pallas as pl
from jax.experimental.pallas import tpu as pltpu

CPAD = 8  # sublane-aligned column offset of the valid interior in the padded scratch


def _round_up(x, m):
    return (x + m - 1) // m * m


# ----------------------------- Fused Pallas kernel ------------------------------ #

def _mycnn_fused_kernel(x_ref, w1_ref, b1_ref, w2_ref, b2_ref, w3_ref, b3_ref,
                        o_ref, xp_ref, a1_ref, a2_ref, p1_ref, p2_ref):
    # x_ref : (BT, H, W, 3)            B_TILE images (NHWC)
    # w*_ref: (Kpad, Cout) bf16        3x3 taps flattened into the GEMM K axis
    # b*_ref: (1, Cout)    f32
    # o_ref : (BT, Ho, Wo, 3)          pooled output (NHWC)
    # xp_ref: (BT, H+2, Wp, 3)   f32   VMEM scratch: zero-haloed input
    # a1_ref: (BT, H+2, Wp, 64)  f32   VMEM scratch: zero-haloed activation 1
    # a2_ref: (BT, H+2, Wp, 64)  f32   VMEM scratch: zero-haloed activation 2
    # p1_ref: (BT*H*W, K1) bf16        im2col patch for conv1
    # p2_ref: (BT*H*W, K2) bf16        im2col patch shared by conv2 / conv3
    BT, H, W, _ = x_ref.shape
    Ho, Wo = H // 2, W // 2
    C1 = w1_ref.shape[-1]
    C2 = w2_ref.shape[-1]
    C3 = w3_ref.shape[-1]
    HW = H * W
    Wp = xp_ref.shape[2]

    # --- halo-only zeroing (review item 1/2) -------------------------------------
    # The taps only read rows [0, H+1] and cols [CPAD-1, CPAD+W]; interiors are
    # fully rewritten below, dead alignment columns are never read.  Re-done every
    # grid step so it stays correct under megacore splitting of the batch axis.
    for ref in (xp_ref, a1_ref, a2_ref):
        c = ref.shape[-1]
        zrow = jnp.zeros((1, Wp, c), jnp.float32)
        zcol = jnp.zeros((H, 1, c), jnp.float32)
        for b in range(BT):
            ref[b, 0:1, :, :] = zrow
            ref[b, H + 1:H + 2, :, :] = zrow
            ref[b, 1:H + 1, CPAD - 1:CPAD, :] = zcol
            ref[b, 1:H + 1, CPAD + W:CPAD + W + 1, :] = zcol

    # --- stage the input tile into the padded NHWC scratch (aligned interior) ----
    for b in range(BT):
        xp_ref[b, 1:H + 1, CPAD:CPAD + W, :] = x_ref[b]

    # --- one conv layer = im2col scatter + a single deep-K bf16 MXU GEMM ---------
    def conv(src_ref, patch_ref, w_ref, b_ref, relu):
        cin = src_ref.shape[-1]
        kk = 9 * cin                      # real K
        kf = patch_ref.shape[-1]          # padded K (>= kk)
        for b in range(BT):
            r0 = b * HW
            for kh in range(3):
                for kw in range(3):
                    tap = kh * 3 + kw
                    c0 = CPAD - 1 + kw    # tap window starts at (row kh, col c0)
                    win = src_ref[b, kh:kh + H, c0:c0 + W, :]          # (H, W, cin)
                    patch_ref[r0:r0 + HW, tap * cin:(tap + 1) * cin] = (
                        win.reshape(HW, cin).astype(jnp.bfloat16))
        if kf > kk:  # zero the K-padding tail (conv1: 27 -> 32)
            patch_ref[:, kk:kf] = jnp.zeros((BT * HW, kf - kk), jnp.bfloat16)
        # Single (BT*HW, Kpad) x (Kpad, Cout) bf16 GEMM, f32 accumulation.
        acc = jnp.dot(patch_ref[...], w_ref[...],
                      preferred_element_type=jnp.float32)
        acc = acc + b_ref[...]
        if relu:
            acc = jnp.maximum(acc, 0.0)
        return acc  # (BT*HW, Cout) f32

    # conv1 + ReLU, conv2 + ReLU: write back into the haloed f32 VMEM scratch.
    a1 = conv(xp_ref, p1_ref, w1_ref, b1_ref, True)
    for b in range(BT):
        a1_ref[b, 1:H + 1, CPAD:CPAD + W, :] = (
            a1[b * HW:(b + 1) * HW].reshape(H, W, C1))

    a2 = conv(a1_ref, p2_ref, w2_ref, b2_ref, True)
    for b in range(BT):
        a2_ref[b, 1:H + 1, CPAD:CPAD + W, :] = (
            a2[b * HW:(b + 1) * HW].reshape(H, W, C2))

    # conv3 (no ReLU) reuses the conv2 patch buffer (same K = 9*64).
    y = conv(a2_ref, p2_ref, w3_ref, b3_ref, False)                    # (BT*HW, 3)

    # --- fused 2x2 average pool on the VPU (no pooling matmul) -------------------
    for b in range(BT):
        yb = y[b * HW:(b + 1) * HW].reshape(Ho, 2, W, C3)
        rows = yb[:, 0] + yb[:, 1]                                     # (Ho, W, C3)
        cols = rows.reshape(Ho, Wo, 2, C3)
        o_ref[b] = (cols[:, :, 0] + cols[:, :, 1]) * jnp.float32(0.25)


# ---------------------------------- Wrapper ------------------------------------- #

def my_cnn_forward(params, x_nchw, *, b_tile=None):
    """Forward pass of MyCNN. Accepts / returns NCHW like the PyTorch module."""
    # TODO(synk): NCHW-native in/out blocks would drop these two tiny transposes;
    # kept NHWC to avoid risky C=3 channel<->lane relayout-on-store inside the kernel.
    x = jnp.transpose(x_nchw, (0, 2, 3, 1)).astype(jnp.float32)        # NHWC
    N, H, W, Cin = x.shape
    assert H % 2 == 0 and W % 2 == 0, "AvgPool2d(2, 2) needs even H, W"

    w1, b1 = params["c1"]
    w2, b2 = params["c2"]
    w3, b3 = params["c3"]
    C1, C2, C3 = w1.shape[-1], w2.shape[-1], w3.shape[-1]
    assert C1 == C2, "conv2/conv3 share one im2col patch buffer"
    Ho, Wo = H // 2, W // 2

    if b_tile is None:
        # Keep >=2 "parallel" grid steps when N > 1 (feeds both v7x TensorCores),
        # then batch up to 4 images per step to amortize fixed per-step overhead.
        b_tile = max(1, min(4, N // 2)) if N > 1 else 1
    b_tile = min(b_tile, N)

    # Interior starts at the sublane-aligned column CPAD; only cols
    # [CPAD-1, CPAD+W+1) are ever read, so no 2*CPAD over-allocation.
    Wp = _round_up(CPAD + W + 1, 8)

    K1 = _round_up(9 * Cin, 16)   # conv1 K padded 27 -> 32 for clean bf16 tiling
    K2 = 9 * C1                   # 576
    K3 = 9 * C2                   # 576

    def flat_w(w, kpad):
        # (3, 3, Cin, Cout) HWIO -> (kpad, Cout) bf16, row = (kh*3+kw)*Cin + cin
        kh, kw, ci, co = w.shape
        wf = w.reshape(kh * kw * ci, co).astype(jnp.bfloat16)
        if kpad > kh * kw * ci:
            wf = jnp.concatenate(
                [wf, jnp.zeros((kpad - kh * kw * ci, co), jnp.bfloat16)], axis=0)
        return wf

    args = (x,
            flat_w(w1, K1), b1.reshape(1, C1).astype(jnp.float32),
            flat_w(w2, K2), b2.reshape(1, C2).astype(jnp.float32),
            flat_w(w3, K3), b3.reshape(1, C3).astype(jnp.float32))

    out_nhwc = pl.pallas_call(
        _mycnn_fused_kernel,
        out_shape=jax.ShapeDtypeStruct((N, Ho, Wo, C3), jnp.float32),
        grid_spec=pltpu.PrefetchScalarGridSpec(
            num_scalar_prefetch=0,
            grid=(pl.cdiv(N, b_tile),),
            in_specs=[
                pl.BlockSpec((b_tile, H, W, Cin), lambda n: (n, 0, 0, 0)),
                pl.BlockSpec((K1, C1), lambda n: (0, 0)),
                pl.BlockSpec((1, C1), lambda n: (0, 0)),
                pl.BlockSpec((K2, C2), lambda n: (0, 0)),
                pl.BlockSpec((1, C2), lambda n: (0, 0)),
                pl.BlockSpec((K3, C3), lambda n: (0, 0)),
                pl.BlockSpec((1, C3), lambda n: (0, 0)),
            ],
            out_specs=pl.BlockSpec((b_tile, Ho, Wo, C3), lambda n: (n, 0, 0, 0)),
            scratch_shapes=[
                pltpu.VMEM((b_tile, H + 2, Wp, Cin), jnp.float32),   # haloed input
                pltpu.VMEM((b_tile, H + 2, Wp, C1), jnp.float32),    # haloed act1
                pltpu.VMEM((b_tile, H + 2, Wp, C2), jnp.float32),    # haloed act2
                pltpu.VMEM((b_tile * H * W, K1), jnp.bfloat16),      # conv1 patch
                pltpu.VMEM((b_tile * H * W, K2), jnp.bfloat16),      # conv2/3 patch
            ],
        ),
        compiler_params=pltpu.CompilerParams(
            dimension_semantics=("parallel",),
            # TODO(synk): for large H, W add an H-strip grid axis; scratch scales
            # with H*W and would outgrow v7x's 64 MiB VMEM at full resolution.
            vmem_limit_bytes=64 * 1024 * 1024,
        ),
    )(*args)

    # Tiny (N, Ho, Wo, 3) -> NCHW transpose to match the PyTorch output layout.
    return jnp.transpose(out_nhwc, (0, 3, 1, 2))


# ---------------------------- Parameters / reference ----------------------------- #

def init_params(key):
    """Deterministic init mimicking PyTorch Conv2d default (uniform +-1/sqrt(fan_in))."""
    def conv_init(k, cin, cout):
        kw_, kb = jax.random.split(k)
        bound = 1.0 / np.sqrt(cin * 9)
        w = jax.random.uniform(kw_, (3, 3, cin, cout), jnp.float32, -bound, bound)
        b = jax.random.uniform(kb, (cout,), jnp.float32, -bound, bound)
        return w, b
    k1, k2, k3 = jax.random.split(key, 3)
    return {"c1": conv_init(k1, 3, 64),
            "c2": conv_init(k2, 64, 64),
            "c3": conv_init(k3, 64, 3)}


def reference_forward(params, x_nchw):
    """Pure-JAX f32 reference (correctness check only)."""
    def conv(x, w, b):
        y = jax.lax.conv_general_dilated(
            x, w, window_strides=(1, 1), padding="SAME",
            dimension_numbers=("NCHW", "HWIO", "NCHW"))
        return y + b.reshape(1, -1, 1, 1)
    w1, b1 = params["c1"]
    w2, b2 = params["c2"]
    w3, b3 = params["c3"]
    h = jax.nn.relu(conv(x_nchw, w1, b1))
    h = jax.nn.relu(conv(h, w2, b2))
    h = conv(h, w3, b3)
    return jax.lax.reduce_window(h, 0.0, jax.lax.add,
                                 (1, 1, 2, 2), (1, 1, 2, 2), "VALID") * 0.25


if __name__ == "__main__":
    key = jax.random.PRNGKey(0)
    kp, kx = jax.random.split(key)
    params = init_params(kp)
    x = jax.random.normal(kx, (2, 3, 16, 16), jnp.float32)   # NCHW, like PyTorch

    fwd = jax.jit(my_cnn_forward)
    out = jax.block_until_ready(fwd(params, x))
    assert out.shape == (2, 3, 8, 8), out.shape

    ref = jax.block_until_ready(reference_forward(params, x))
    # bf16 MXU operands with f32 accumulation (per perf review) -> tolerance
    # slightly wider than the pure-f32 variant.
    np.testing.assert_allclose(np.asarray(out), np.asarray(ref), rtol=2e-3, atol=2e-3)

    print("KERNEL_OK")
</pallas_src>

<mosaic_0001>
module attributes {stable_mosaic.version = 11 : i64} {
  func.func @_mycnn_fused_kernel(%arg0: i32, %arg1: memref<1x16x16x3xf32, #tpu.memory_space<vmem>>, %arg2: memref<32x64xbf16, #tpu.memory_space<vmem>>, %arg3: memref<1x64xf32, #tpu.memory_space<vmem>>, %arg4: memref<576x64xbf16, #tpu.memory_space<vmem>>, %arg5: memref<1x64xf32, #tpu.memory_space<vmem>>, %arg6: memref<576x3xbf16, #tpu.memory_space<vmem>>, %arg7: memref<1x3xf32, #tpu.memory_space<vmem>>, %arg8: memref<1x8x8x3xf32, #tpu.memory_space<vmem>>, %arg9: memref<1x18x32x3xf32, #tpu.memory_space<vmem>>, %arg10: memref<1x18x32x64xf32, #tpu.memory_space<vmem>>, %arg11: memref<1x18x32x64xf32, #tpu.memory_space<vmem>>, %arg12: memref<256x32xbf16, #tpu.memory_space<vmem>>, %arg13: memref<256x576xbf16, #tpu.memory_space<vmem>>) attributes {dimension_semantics = [#tpu.dimension_semantics<parallel>], iteration_bounds = array<i64: 2>, scalar_prefetch = 0 : i64, scratch_operands = 5 : i64, tpu.core_type = #tpu.core_type<tc>, window_params = [{transform_indices = @transform_0, window_bounds = array<i64: 1, 16, 16, 3>}, {pipeline_mode = #tpu.pipeline_mode<synchronous>, transform_indices = @transform_1, window_bounds = array<i64: 32, 64>}, {pipeline_mode = #tpu.pipeline_mode<synchronous>, transform_indices = @transform_2, window_bounds = array<i64: 1, 64>}, {pipeline_mode = #tpu.pipeline_mode<synchronous>, transform_indices = @transform_3, window_bounds = array<i64: 576, 64>}, {pipeline_mode = #tpu.pipeline_mode<synchronous>, transform_indices = @transform_4, window_bounds = array<i64: 1, 64>}, {pipeline_mode = #tpu.pipeline_mode<synchronous>, transform_indices = @transform_5, window_bounds = array<i64: 576, 3>}, {pipeline_mode = #tpu.pipeline_mode<synchronous>, transform_indices = @transform_6, window_bounds = array<i64: 1, 3>}, {transform_indices = @transform_7, window_bounds = array<i64: 1, 8, 8, 3>}]} {
    %cst = arith.constant 0.000000e+00 : f32
    %0 = vector.broadcast %cst : f32 to vector<1x32x3xf32>
    %cst_0 = arith.constant 0.000000e+00 : f32
    %1 = vector.broadcast %cst_0 : f32 to vector<16x1x3xf32>
    %c0 = arith.constant 0 : index
    %c0_1 = arith.constant 0 : index
    %c0_2 = arith.constant 0 : index
    %c0_3 = arith.constant 0 : index
    %2 = vector.load %arg9[%c0, %c0_1, %c0_2, %c0_3] : memref<1x18x32x3xf32, #tpu.memory_space<vmem>>, vector<1x1x32x3xf32>
    %3 = vector.shape_cast %2 : vector<1x1x32x3xf32> to vector<1x32x3xf32>
    %4 = vector.shape_cast %0 : vector<1x32x3xf32> to vector<1x1x32x3xf32>
    tpu.vector_store %arg9[%c0, %c0_1, %c0_2, %c0_3], %4 {strides = array<i32>} : memref<1x18x32x3xf32, #tpu.memory_space<vmem>>, vector<1x1x32x3xf32>,
    %c0_4 = arith.constant 0 : index
    %c17 = arith.constant 17 : index
    %c0_5 = arith.constant 0 : index
    %c0_6 = arith.constant 0 : index
    %5 = vector.load %arg9[%c0_4, %c17, %c0_5, %c0_6] : memref<1x18x32x3xf32, #tpu.memory_space<vmem>>, vector<1x1x32x3xf32>
    %6 = vector.shape_cast %5 : vector<1x1x32x3xf32> to vector<1x32x3xf32>
    %7 = vector.shape_cast %0 : vector<1x32x3xf32> to vector<1x1x32x3xf32>
    tpu.vector_store %arg9[%c0_4, %c17, %c0_5, %c0_6], %7 {strides = array<i32>} : memref<1x18x32x3xf32, #tpu.memory_space<vmem>>, vector<1x1x32x3xf32>,
    %c0_7 = arith.constant 0 : index
    %c1 = arith.constant 1 : index
    %c7 = arith.constant 7 : index
    %c0_8 = arith.constant 0 : index
    %8 = vector.load %arg9[%c0_7, %c1, %c7, %c0_8] : memref<1x18x32x3xf32, #tpu.memory_space<vmem>>, vector<1x16x1x3xf32>
    %9 = vector.shape_cast %8 : vector<1x16x1x3xf32> to vector<16x1x3xf32>
    %10 = vector.shape_cast %1 : vector<16x1x3xf32> to vector<1x16x1x3xf32>
    tpu.vector_store %arg9[%c0_7, %c1, %c7, %c0_8], %10 {strides = array<i32>} : memref<1x18x32x3xf32, #tpu.memory_space<vmem>>, vector<1x16x1x3xf32>,
    %c0_9 = arith.constant 0 : index
    %c1_10 = arith.constant 1 : index
    %c24 = arith.constant 24 : index
    %c0_11 = arith.constant 0 : index
    %11 = vector.load %arg9[%c0_9, %c1_10, %c24, %c0_11] : memref<1x18x32x3xf32, #tpu.memory_space<vmem>>, vector<1x16x1x3xf32>
    %12 = vector.shape_cast %11 : vector<1x16x1x3xf32> to vector<16x1x3xf32>
    %13 = vector.shape_cast %1 : vector<16x1x3xf32> to vector<1x16x1x3xf32>
    tpu.vector_store %arg9[%c0_9, %c1_10, %c24, %c0_11], %13 {strides = array<i32>} : memref<1x18x32x3xf32, #tpu.memory_space<vmem>>, vector<1x16x1x3xf32>,
    %cst_12 = arith.constant 0.000000e+00 : f32
    %14 = vector.broadcast %cst_12 : f32 to vector<1x32x64xf32>
    %cst_13 = arith.constant 0.000000e+00 : f32
    %15 = vector.broadcast %cst_13 : f32 to vector<16x1x64xf32>
    %c0_14 = arith.constant 0 : index
    %c0_15 = arith.constant 0 : index
    %c0_16 = arith.constant 0 : index
    %c0_17 = arith.constant 0 : index
    %16 = vector.load %arg10[%c0_14, %c0_15, %c0_16, %c0_17] : memref<1x18x32x64xf32, #tpu.memory_space<vmem>>, vector<1x1x32x64xf32>
    %17 = vector.shape_cast %16 : vector<1x1x32x64xf32> to vector<1x32x64xf32>
    %18 = vector.shape_cast %14 : vector<1x32x64xf32> to vector<1x1x32x64xf32>
    tpu.vector_store %arg10[%c0_14, %c0_15, %c0_16, %c0_17], %18 {strides = array<i32>} : memref<1x18x32x64xf32, #tpu.memory_space<vmem>>, vector<1x1x32x64xf32>,
    %c0_18 = arith.constant 0 : index
    %c17_19 = arith.constant 17 : index
    %c0_20 = arith.constant 0 : index
    %c0_21 = arith.constant 0 : index
    %19 = vector.load %arg10[%c0_18, %c17_19, %c0_20, %c0_21] : memref<1x18x32x64xf32, #tpu.memory_space<vmem>>, vector<1x1x32x64xf32>
    %20 = vector.shape_cast %19 : vector<1x1x32x64xf32> to vector<1x32x64xf32>
    %21 = vector.shape_cast %14 : vector<1x32x64xf32> to vector<1x1x32x64xf32>
    tpu.vector_store %arg10[%c0_18, %c17_19, %c0_20, %c0_21], %21 {strides = array<i32>} : memref<1x18x32x64xf32, #tpu.memory_space<vmem>>, vector<1x1x32x64xf32>,
    %c0_22 = arith.constant 0 : index
    %c1_23 = arith.constant 1 : index
    %c7_24 = arith.constant 7 : index
    %c0_25 = arith.constant 0 : index
    %22 = vector.load %arg10[%c0_22, %c1_23, %c7_24, %c0_25] : memref<1x18x32x64xf32, #tpu.memory_space<vmem>>, vector<1x16x1x64xf32>
    %23 = vector.shape_cast %22 : vector<1x16x1x64xf32> to vector<16x1x64xf32>
    %24 = vector.shape_cast %15 : vector<16x1x64xf32> to vector<1x16x1x64xf32>
    tpu.vector_store %arg10[%c0_22, %c1_23, %c7_24, %c0_25], %24 {strides = array<i32>} : memref<1x18x32x64xf32, #tpu.memory_space<vmem>>, vector<1x16x1x64xf32>,
    %c0_26 = arith.constant 0 : index
    %c1_27 = arith.constant 1 : index
    %c24_28 = arith.constant 24 : index
    %c0_29 = arith.constant 0 : index
    %25 = vector.load %arg10[%c0_26, %c1_27, %c24_28, %c0_29] : memref<1x18x32x64xf32, #tpu.memory_space<vmem>>, vector<1x16x1x64xf32>
    %26 = vector.shape_cast %25 : vector<1x16x1x64xf32> to vector<16x1x64xf32>
    %27 = vector.shape_cast %15 : vector<16x1x64xf32> to vector<1x16x1x64xf32>
    tpu.vector_store %arg10[%c0_26, %c1_27, %c24_28, %c0_29], %27 {strides = array<i32>} : memref<1x18x32x64xf32, #tpu.memory_space<vmem>>, vector<1x16x1x64xf32>,
    %cst_30 = arith.constant 0.000000e+00 : f32
    %28 = vector.broadcast %cst_30 : f32 to vector<1x32x64xf32>
    %cst_31 = arith.constant 0.000000e+00 : f32
    %29 = vector.broadcast %cst_31 : f32 to vector<16x1x64xf32>
    %c0_32 = arith.constant 0 : index
    %c0_33 = arith.constant 0 : index
    %c0_34 = arith.constant 0 : index
    %c0_35 = arith.constant 0 : index
    %30 = vector.load %arg11[%c0_32, %c0_33, %c0_34, %c0_35] : memref<1x18x32x64xf32, #tpu.memory_space<vmem>>, vector<1x1x32x64xf32>
    %31 = vector.shape_cast %30 : vector<1x1x32x64xf32> to vector<1x32x64xf32>
    %32 = vector.shape_cast %28 : vector<1x32x64xf32> to vector<1x1x32x64xf32>
    tpu.vector_store %arg11[%c0_32, %c0_33, %c0_34, %c0_35], %32 {strides = array<i32>} : memref<1x18x32x64xf32, #tpu.memory_space<vmem>>, vector<1x1x32x64xf32>,
    %c0_36 = arith.constant 0 : index
    %c17_37 = arith.constant 17 : index
    %c0_38 = arith.constant 0 : index
    %c0_39 = arith.constant 0 : index
    %33 = vector.load %arg11[%c0_36, %c17_37, %c0_38, %c0_39] : memref<1x18x32x64xf32, #tpu.memory_space<vmem>>, vector<1x1x32x64xf32>
    %34 = vector.shape_cast %33 : vector<1x1x32x64xf32> to vector<1x32x64xf32>
    %35 = vector.shape_cast %28 : vector<1x32x64xf32> to vector<1x1x32x64xf32>
    tpu.vector_store %arg11[%c0_36, %c17_37, %c0_38, %c0_39], %35 {strides = array<i32>} : memref<1x18x32x64xf32, #tpu.memory_space<vmem>>, vector<1x1x32x64xf32>,
    %c0_40 = arith.constant 0 : index
    %c1_41 = arith.constant 1 : index
    %c7_42 = arith.constant 7 : index
    %c0_43 = arith.constant 0 : index
    %36 = vector.load %arg11[%c0_40, %c1_41, %c7_42, %c0_43] : memref<1x18x32x64xf32, #tpu.memory_space<vmem>>, vector<1x16x1x64xf32>
    %37 = vector.shape_cast %36 : vector<1x16x1x64xf32> to vector<16x1x64xf32>
    %38 = vector.shape_cast %29 : vector<16x1x64xf32> to vector<1x16x1x64xf32>
    tpu.vector_store %arg11[%c0_40, %c1_41, %c7_42, %c0_43], %38 {strides = array<i32>} : memref<1x18x32x64xf32, #tpu.memory_space<vmem>>, vector<1x16x1x64xf32>,
    %c0_44 = arith.constant 0 : index
    %c1_45 = arith.constant 1 : index
    %c24_46 = arith.constant 24 : index
    %c0_47 = arith.constant 0 : index
    %39 = vector.load %arg11[%c0_44, %c1_45, %c24_46, %c0_47] : memref<1x18x32x64xf32, #tpu.memory_space<vmem>>, vector<1x16x1x64xf32>
    %40 = vector.shape_cast %39 : vector<1x16x1x64xf32> to vector<16x1x64xf32>
    %41 = vector.shape_cast %29 : vector<16x1x64xf32> to vector<1x16x1x64xf32>
    tpu.vector_store %arg11[%c0_44, %c1_45, %c24_46, %c0_47], %41 {strides = array<i32>} : memref<1x18x32x64xf32, #tpu.memory_space<vmem>>, vector<1x16x1x64xf32>,
    %c0_48 = arith.constant 0 : index
    %c0_49 = arith.constant 0 : index
    %c0_50 = arith.constant 0 : index
    %c0_51 = arith.constant 0 : index
    %42 = vector.load %arg1[%c0_48, %c0_49, %c0_50, %c0_51] : memref<1x16x16x3xf32, #tpu.memory_space<vmem>>, vector<1x16x16x3xf32>
    %43 = vector.shape_cast %42 : vector<1x16x16x3xf32> to vector<16x16x3xf32>
    %c0_52 = arith.constant 0 : index
    %c1_53 = arith.constant 1 : index
    %c8 = arith.constant 8 : index
    %c0_54 = arith.constant 0 : index
    %44 = vector.load %arg9[%c0_52, %c1_53, %c8, %c0_54] : memref<1x18x32x3xf32, #tpu.memory_space<vmem>>, vector<1x16x16x3xf32>
    %45 = vector.shape_cast %44 : vector<1x16x16x3xf32> to vector<16x16x3xf32>
    %46 = vector.shape_cast %43 : vector<16x16x3xf32> to vector<1x16x16x3xf32>
    tpu.vector_store %arg9[%c0_52, %c1_53, %c8, %c0_54], %46 {strides = array<i32>} : memref<1x18x32x3xf32, #tpu.memory_space<vmem>>, vector<1x16x16x3xf32>,
    %c0_55 = arith.constant 0 : index
    %c0_56 = arith.constant 0 : index
    %c7_57 = arith.constant 7 : index
    %c0_58 = arith.constant 0 : index
    %47 = vector.load %arg9[%c0_55, %c0_56, %c7_57, %c0_58] : memref<1x18x32x3xf32, #tpu.memory_space<vmem>>, vector<1x16x16x3xf32>
    %48 = vector.shape_cast %47 : vector<1x16x16x3xf32> to vector<16x16x3xf32>
    %49 = vector.shape_cast %48 : vector<16x16x3xf32> to vector<256x3xf32>
    %50 = arith.truncf %49 : vector<256x3xf32> to vector<256x3xbf16>
    %c0_59 = arith.constant 0 : index
    %c0_60 = arith.constant 0 : index
    %51 = vector.load %arg12[%c0_59, %c0_60] : memref<256x32xbf16, #tpu.memory_space<vmem>>, vector<256x3xbf16>
    tpu.vector_store %arg12[%c0_59, %c0_60], %50 {strides = array<i32>} : memref<256x32xbf16, #tpu.memory_space<vmem>>, vector<256x3xbf16>,
    %c0_61 = arith.constant 0 : index
    %c0_62 = arith.constant 0 : index
    %c8_63 = arith.constant 8 : index
    %c0_64 = arith.constant 0 : index
    %52 = vector.load %arg9[%c0_61, %c0_62, %c8_63, %c0_64] : memref<1x18x32x3xf32, #tpu.memory_space<vmem>>, vector<1x16x16x3xf32>
    %53 = vector.shape_cast %52 : vector<1x16x16x3xf32> to vector<16x16x3xf32>
    %54 = vector.shape_cast %53 : vector<16x16x3xf32> to vector<256x3xf32>
    %55 = arith.truncf %54 : vector<256x3xf32> to vector<256x3xbf16>
    %c0_65 = arith.constant 0 : index
    %c3 = arith.constant 3 : index
    %56 = vector.load %arg12[%c0_65, %c3] : memref<256x32xbf16, #tpu.memory_space<vmem>>, vector<256x3xbf16>
    tpu.vector_store %arg12[%c0_65, %c3], %55 {strides = array<i32>} : memref<256x32xbf16, #tpu.memory_space<vmem>>, vector<256x3xbf16>,
    %c0_66 = arith.constant 0 : index
    %c0_67 = arith.constant 0 : index
    %c9 = arith.constant 9 : index
    %c0_68 = arith.constant 0 : index
    %57 = vector.load %arg9[%c0_66, %c0_67, %c9, %c0_68] : memref<1x18x32x3xf32, #tpu.memory_space<vmem>>, vector<1x16x16x3xf32>
    %58 = vector.shape_cast %57 : vector<1x16x16x3xf32> to vector<16x16x3xf32>
    %59 = vector.shape_cast %58 : vector<16x16x3xf32> to vector<256x3xf32>
    %60 = arith.truncf %59 : vector<256x3xf32> to vector<256x3xbf16>
    %c0_69 = arith.constant 0 : index
    %c6 = arith.constant 6 : index
    %61 = vector.load %arg12[%c0_69, %c6] : memref<256x32xbf16, #tpu.memory_space<vmem>>, vector<256x3xbf16>
    tpu.vector_store %arg12[%c0_69, %c6], %60 {strides = array<i32>} : memref<256x32xbf16, #tpu.memory_space<vmem>>, vector<256x3xbf16>,
    %c0_70 = arith.constant 0 : index
    %c1_71 = arith.constant 1 : index
    %c7_72 = arith.constant 7 : index
    %c0_73 = arith.constant 0 : index
    %62 = vector.load %arg9[%c0_70, %c1_71, %c7_72, %c0_73] : memref<1x18x32x3xf32, #tpu.memory_space<vmem>>, vector<1x16x16x3xf32>
    %63 = vector.shape_cast %62 : vector<1x16x16x3xf32> to vector<16x16x3xf32>
    %64 = vector.shape_cast %63 : vector<16x16x3xf32> to vector<256x3xf32>
    %65 = arith.truncf %64 : vector<256x3xf32> to vector<256x3xbf16>
    %c0_74 = arith.constant 0 : index
    %c9_75 = arith.constant 9 : index
    %66 = vector.load %arg12[%c0_74, %c9_75] : memref<256x32xbf16, #tpu.memory_space<vmem>>, vector<256x3xbf16>
    tpu.vector_store %arg12[%c0_74, %c9_75], %65 {strides = array<i32>} : memref<256x32xbf16, #tpu.memory_space<vmem>>, vector<256x3xbf16>,
    %c0_76 = arith.constant 0 : index
    %c1_77 = arith.constant 1 : index
    %c8_78 = arith.constant 8 : index
    %c0_79 = arith.constant 0 : index
    %67 = vector.load %arg9[%c0_76, %c1_77, %c8_78, %c0_79] : memref<1x18x32x3xf32, #tpu.memory_space<vmem>>, vector<1x16x16x3xf32>
    %68 = vector.shape_cast %67 : vector<1x16x16x3xf32> to vector<16x16x3xf32>
    %69 = vector.shape_cast %68 : vector<16x16x3xf32> to vector<256x3xf32>
    %70 = arith.truncf %69 : vector<256x3xf32> to vector<256x3xbf16>
    %c0_80 = arith.constant 0 : index
    %c12 = arith.constant 12 : index
    %71 = vector.load %arg12[%c0_80, %c12] : memref<256x32xbf16, #tpu.memory_space<vmem>>, vector<256x3xbf16>
    tpu.vector_store %arg12[%c0_80, %c12], %70 {strides = array<i32>} : memref<256x32xbf16, #tpu.memory_space<vmem>>, vector<256x3xbf16>,
    %c0_81 = arith.constant 0 : index
    %c1_82 = arith.constant 1 : index
    %c9_83 = arith.constant 9 : index
    %c0_84 = arith.constant 0 : index
    %72 = vector.load %arg9[%c0_81, %c1_82, %c9_83, %c0_84] : memref<1x18x32x3xf32, #tpu.memory_space<vmem>>, vector<1x16x16x3xf32>
    %73 = vector.shape_cast %72 : vector<1x16x16x3xf32> to vector<16x16x3xf32>
    %74 = vector.shape_cast %73 : vector<16x16x3xf32> to vector<256x3xf32>
    %75 = arith.truncf %74 : vector<256x3xf32> to vector<256x3xbf16>
    %c0_85 = arith.constant 0 : index
    %c15 = arith.constant 15 : index
    %76 = vector.load %arg12[%c0_85, %c15] : memref<256x32xbf16, #tpu.memory_space<vmem>>, vector<256x3xbf16>
    tpu.vector_store %arg12[%c0_85, %c15], %75 {strides = array<i32>} : memref<256x32xbf16, #tpu.memory_space<vmem>>, vector<256x3xbf16>,
    %c0_86 = arith.constant 0 : index
    %c2 = arith.constant 2 : index
    %c7_87 = arith.constant 7 : index
    %c0_88 = arith.constant 0 : index
    %77 = vector.load %arg9[%c0_86, %c2, %c7_87, %c0_88] : memref<1x18x32x3xf32, #tpu.memory_space<vmem>>, vector<1x16x16x3xf32>
    %78 = vector.shape_cast %77 : vector<1x16x16x3xf32> to vector<16x16x3xf32>
    %79 = vector.shape_cast %78 : vector<16x16x3xf32> to vector<256x3xf32>
    %80 = arith.truncf %79 : vector<256x3xf32> to vector<256x3xbf16>
    %c0_89 = arith.constant 0 : index
    %c18 = arith.constant 18 : index
    %81 = vector.load %arg12[%c0_89, %c18] : memref<256x32xbf16, #tpu.memory_space<vmem>>, vector<256x3xbf16>
    tpu.vector_store %arg12[%c0_89, %c18], %80 {strides = array<i32>} : memref<256x32xbf16, #tpu.memory_space<vmem>>, vector<256x3xbf16>,
    %c0_90 = arith.constant 0 : index
    %c2_91 = arith.constant 2 : index
    %c8_92 = arith.constant 8 : index
    %c0_93 = arith.constant 0 : index
    %82 = vector.load %arg9[%c0_90, %c2_91, %c8_92, %c0_93] : memref<1x18x32x3xf32, #tpu.memory_space<vmem>>, vector<1x16x16x3xf32>
    %83 = vector.shape_cast %82 : vector<1x16x16x3xf32> to vector<16x16x3xf32>
    %84 = vector.shape_cast %83 : vector<16x16x3xf32> to vector<256x3xf32>
    %85 = arith.truncf %84 : vector<256x3xf32> to vector<256x3xbf16>
    %c0_94 = arith.constant 0 : index
    %c21 = arith.constant 21 : index
    %86 = vector.load %arg12[%c0_94, %c21] : memref<256x32xbf16, #tpu.memory_space<vmem>>, vector<256x3xbf16>
    tpu.vector_store %arg12[%c0_94, %c21], %85 {strides = array<i32>} : memref<256x32xbf16, #tpu.memory_space<vmem>>, vector<256x3xbf16>,
    %c0_95 = arith.constant 0 : index
    %c2_96 = arith.constant 2 : index
    %c9_97 = arith.constant 9 : index
    %c0_98 = arith.constant 0 : index
    %87 = vector.load %arg9[%c0_95, %c2_96, %c9_97, %c0_98] : memref<1x18x32x3xf32, #tpu.memory_space<vmem>>, vector<1x16x16x3xf32>
    %88 = vector.shape_cast %87 : vector<1x16x16x3xf32> to vector<16x16x3xf32>
    %89 = vector.shape_cast %88 : vector<16x16x3xf32> to vector<256x3xf32>
    %90 = arith.truncf %89 : vector<256x3xf32> to vector<256x3xbf16>
    %c0_99 = arith.constant 0 : index
    %c24_100 = arith.constant 24 : index
    %91 = vector.load %arg12[%c0_99, %c24_100] : memref<256x32xbf16, #tpu.memory_space<vmem>>, vector<256x3xbf16>
    tpu.vector_store %arg12[%c0_99, %c24_100], %90 {strides = array<i32>} : memref<256x32xbf16, #tpu.memory_space<vmem>>, vector<256x3xbf16>,
    %cst_101 = arith.constant 0.000000e+00 : bf16
    %92 = vector.broadcast %cst_101 : bf16 to vector<256x5xbf16>
    %c0_102 = arith.constant 0 : index
    %c27 = arith.constant 27 : index
    %93 = vector.load %arg12[%c0_102, %c27] : memref<256x32xbf16, #tpu.memory_space<vmem>>, vector<256x5xbf16>
    tpu.vector_store %arg12[%c0_102, %c27], %92 {strides = array<i32>} : memref<256x32xbf16, #tpu.memory_space<vmem>>, vector<256x5xbf16>,
    %c0_103 = arith.constant 0 : index
    %c0_104 = arith.constant 0 : index
    %94 = vector.load %arg12[%c0_103, %c0_104] : memref<256x32xbf16, #tpu.memory_space<vmem>>, vector<256x32xbf16>
    %c0_105 = arith.constant 0 : index
    %c0_106 = arith.constant 0 : index
    %95 = vector.load %arg2[%c0_105, %c0_106] : memref<32x64xbf16, #tpu.memory_space<vmem>>, vector<32x64xbf16>
    %cst_107 = arith.constant dense<0.000000e+00> : vector<256x64xf32>
    %96 = tpu.matmul %94, %95, %cst_107 {dimension_numbers = #tpu.dot_dimension_numbers<[1], [0], [0], [1], [0, 0, 1, 1], [], []>} : vector<256x32xbf16>, vector<32x64xbf16>, vector<256x64xf32> -> vector<256x64xf32>
    %c0_108 = arith.constant 0 : index
    %c0_109 = arith.constant 0 : index
    %97 = vector.load %arg3[%c0_108, %c0_109] : memref<1x64xf32, #tpu.memory_space<vmem>>, vector<1x64xf32>
    %98 = vector.broadcast %97 : vector<1x64xf32> to vector<256x64xf32>
    %99 = arith.addf %96, %98 : vector<256x64xf32>
    %cst_110 = arith.constant 0.000000e+00 : f32
    %100 = vector.broadcast %cst_110 : f32 to vector<256x64xf32>
    %101 = arith.maximumf %99, %100 : vector<256x64xf32>
    %102 = vector.shape_cast %101 : vector<256x64xf32> to vector<16x16x64xf32>
    %c0_111 = arith.constant 0 : index
    %c1_112 = arith.constant 1 : index
    %c8_113 = arith.constant 8 : index
    %c0_114 = arith.constant 0 : index
    %103 = vector.load %arg10[%c0_111, %c1_112, %c8_113, %c0_114] : memref<1x18x32x64xf32, #tpu.memory_space<vmem>>, vector<1x16x16x64xf32>
    %104 = vector.shape_cast %103 : vector<1x16x16x64xf32> to vector<16x16x64xf32>
    %105 = vector.shape_cast %102 : vector<16x16x64xf32> to vector<1x16x16x64xf32>
    tpu.vector_store %arg10[%c0_111, %c1_112, %c8_113, %c0_114], %105 {strides = array<i32>} : memref<1x18x32x64xf32, #tpu.memory_space<vmem>>, vector<1x16x16x64xf32>,
    %c0_115 = arith.constant 0 : index
    %c0_116 = arith.constant 0 : index
    %c7_117 = arith.constant 7 : index
    %c0_118 = arith.constant 0 : index
    %106 = vector.load %arg10[%c0_115, %c0_116, %c7_117, %c0_118] : memref<1x18x32x64xf32, #tpu.memory_space<vmem>>, vector<1x16x16x64xf32>
    %107 = vector.shape_cast %106 : vector<1x16x16x64xf32> to vector<16x16x64xf32>
    %108 = vector.shape_cast %107 : vector<16x16x64xf32> to vector<256x64xf32>
    %109 = arith.truncf %108 : vector<256x64xf32> to vector<256x64xbf16>
    %c0_119 = arith.constant 0 : index
    %c0_120 = arith.constant 0 : index
    %110 = vector.load %arg13[%c0_119, %c0_120] : memref<256x576xbf16, #tpu.memory_space<vmem>>, vector<256x64xbf16>
    tpu.vector_store %arg13[%c0_119, %c0_120], %109 {strides = array<i32>} : memref<256x576xbf16, #tpu.memory_space<vmem>>, vector<256x64xbf16>,
    %c0_121 = arith.constant 0 : index
    %c0_122 = arith.constant 0 : index
    %c8_123 = arith.constant 8 : index
    %c0_124 = arith.constant 0 : index
    %111 = vector.load %arg10[%c0_121, %c0_122, %c8_123, %c0_124] : memref<1x18x32x64xf32, #tpu.memory_space<vmem>>, vector<1x16x16x64xf32>
    %112 = vector.shape_cast %111 : vector<1x16x16x64xf32> to vector<16x16x64xf32>
    %113 = vector.shape_cast %112 : vector<16x16x64xf32> to vector<256x64xf32>
    %114 = arith.truncf %113 : vector<256x64xf32> to vector<256x64xbf16>
    %c0_125 = arith.constant 0 : index
    %c64 = arith.constant 64 : index
    %115 = vector.load %arg13[%c0_125, %c64] : memref<256x576xbf16, #tpu.memory_space<vmem>>, vector<256x64xbf16>
    tpu.vector_store %arg13[%c0_125, %c64], %114 {strides = array<i32>} : memref<256x576xbf16, #tpu.memory_space<vmem>>, vector<256x64xbf16>,
    %c0_126 = arith.constant 0 : index
    %c0_127 = arith.constant 0 : index
    %c9_128 = arith.constant 9 : index
    %c0_129 = arith.constant 0 : index
    %116 = vector.load %arg10[%c0_126, %c0_127, %c9_128, %c0_129] : memref<1x18x32x64xf32, #tpu.memory_space<vmem>>, vector<1x16x16x64xf32>
    %117 = vector.shape_cast %116 : vector<1x16x16x64xf32> to vector<16x16x64xf32>
    %118 = vector.shape_cast %117 : vector<16x16x64xf32> to vector<256x64xf32>
    %119 = arith.truncf %118 : vector<256x64xf32> to vector<256x64xbf16>
    %c0_130 = arith.constant 0 : index
    %c128 = arith.constant 128 : index
    %120 = vector.load %arg13[%c0_130, %c128] : memref<256x576xbf16, #tpu.memory_space<vmem>>, vector<256x64xbf16>
    tpu.vector_store %arg13[%c0_130, %c128], %119 {strides = array<i32>} : memref<256x576xbf16, #tpu.memory_space<vmem>>, vector<256x64xbf16>,
    %c0_131 = arith.constant 0 : index
    %c1_132 = arith.constant 1 : index
    %c7_133 = arith.constant 7 : index
    %c0_134 = arith.constant 0 : index
    %121 = vector.load %arg10[%c0_131, %c1_132, %c7_133, %c0_134] : memref<1x18x32x64xf32, #tpu.memory_space<vmem>>, vector<1x16x16x64xf32>
    %122 = vector.shape_cast %121 : vector<1x16x16x64xf32> to vector<16x16x64xf32>
    %123 = vector.shape_cast %122 : vector<16x16x64xf32> to vector<256x64xf32>
    %124 = arith.truncf %123 : vector<256x64xf32> to vector<256x64xbf16>
    %c0_135 = arith.constant 0 : index
    %c192 = arith.constant 192 : index
    %125 = vector.load %arg13[%c0_135, %c192] : memref<256x576xbf16, #tpu.memory_space<vmem>>, vector<256x64xbf16>
    tpu.vector_store %arg13[%c0_135, %c192], %124 {strides = array<i32>} : memref<256x576xbf16, #tpu.memory_space<vmem>>, vector<256x64xbf16>,
    %c0_136 = arith.constant 0 : index
    %c1_137 = arith.constant 1 : index
    %c8_138 = arith.constant 8 : index
    %c0_139 = arith.constant 0 : index
    %126 = vector.load %arg10[%c0_136, %c1_137, %c8_138, %c0_139] : memref<1x18x32x64xf32, #tpu.memory_space<vmem>>, vector<1x16x16x64xf32>
    %127 = vector.shape_cast %126 : vector<1x16x16x64xf32> to vector<16x16x64xf32>
    %128 = vector.shape_cast %127 : vector<16x16x64xf32> to vector<256x64xf32>
    %129 = arith.truncf %128 : vector<256x64xf32> to vector<256x64xbf16>
    %c0_140 = arith.constant 0 : index
    %c256 = arith.constant 256 : index
    %130 = vector.load %arg13[%c0_140, %c256] : memref<256x576xbf16, #tpu.memory_space<vmem>>, vector<256x64xbf16>
    tpu.vector_store %arg13[%c0_140, %c256], %129 {strides = array<i32>} : memref<256x576xbf16, #tpu.memory_space<vmem>>, vector<256x64xbf16>,
    %c0_141 = arith.constant 0 : index
    %c1_142 = arith.constant 1 : index
    %c9_143 = arith.constant 9 : index
    %c0_144 = arith.constant 0 : index
    %131 = vector.load %arg10[%c0_141, %c1_142, %c9_143, %c0_144] : memref<1x18x32x64xf32, #tpu.memory_space<vmem>>, vector<1x16x16x64xf32>
    %132 = vector.shape_cast %131 : vector<1x16x16x64xf32> to vector<16x16x64xf32>
    %133 = vector.shape_cast %132 : vector<16x16x64xf32> to vector<256x64xf32>
    %134 = arith.truncf %133 : vector<256x64xf32> to vector<256x64xbf16>
    %c0_145 = arith.constant 0 : index
    %c320 = arith.constant 320 : index
    %135 = vector.load %arg13[%c0_145, %c320] : memref<256x576xbf16, #tpu.memory_space<vmem>>, vector<256x64xbf16>
    tpu.vector_store %arg13[%c0_145, %c320], %134 {strides = array<i32>} : memref<256x576xbf16, #tpu.memory_space<vmem>>, vector<256x64xbf16>,
    %c0_146 = arith.constant 0 : index
    %c2_147 = arith.constant 2 : index
    %c7_148 = arith.constant 7 : index
    %c0_149 = arith.constant 0 : index
    %136 = vector.load %arg10[%c0_146, %c2_147, %c7_148, %c0_149] : memref<1x18x32x64xf32, #tpu.memory_space<vmem>>, vector<1x16x16x64xf32>
    %137 = vector.shape_cast %136 : vector<1x16x16x64xf32> to vector<16x16x64xf32>
    %138 = vector.shape_cast %137 : vector<16x16x64xf32> to vector<256x64xf32>
    %139 = arith.truncf %138 : vector<256x64xf32> to vector<256x64xbf16>
    %c0_150 = arith.constant 0 : index
    %c384 = arith.constant 384 : index
    %140 = vector.load %arg13[%c0_150, %c384] : memref<256x576xbf16, #tpu.memory_space<vmem>>, vector<256x64xbf16>
    tpu.vector_store %arg13[%c0_150, %c384], %139 {strides = array<i32>} : memref<256x576xbf16, #tpu.memory_space<vmem>>, vector<256x64xbf16>,
    %c0_151 = arith.constant 0 : index
    %c2_152 = arith.constant 2 : index
    %c8_153 = arith.constant 8 : index
    %c0_154 = arith.constant 0 : index
    %141 = vector.load %arg10[%c0_151, %c2_152, %c8_153, %c0_154] : memref<1x18x32x64xf32, #tpu.memory_space<vmem>>, vector<1x16x16x64xf32>
    %142 = vector.shape_cast %141 : vector<1x16x16x64xf32> to vector<16x16x64xf32>
    %143 = vector.shape_cast %142 : vector<16x16x64xf32> to vector<256x64xf32>
    %144 = arith.truncf %143 : vector<256x64xf32> to vector<256x64xbf16>
    %c0_155 = arith.constant 0 : index
    %c448 = arith.constant 448 : index
    %145 = vector.load %arg13[%c0_155, %c448] : memref<256x576xbf16, #tpu.memory_space<vmem>>, vector<256x64xbf16>
    tpu.vector_store %arg13[%c0_155, %c448], %144 {strides = array<i32>} : memref<256x576xbf16, #tpu.memory_space<vmem>>, vector<256x64xbf16>,
    %c0_156 = arith.constant 0 : index
    %c2_157 = arith.constant 2 : index
    %c9_158 = arith.constant 9 : index
    %c0_159 = arith.constant 0 : index
    %146 = vector.load %arg10[%c0_156, %c2_157, %c9_158, %c0_159] : memref<1x18x32x64xf32, #tpu.memory_space<vmem>>, vector<1x16x16x64xf32>
    %147 = vector.shape_cast %146 : vector<1x16x16x64xf32> to vector<16x16x64xf32>
    %148 = vector.shape_cast %147 : vector<16x16x64xf32> to vector<256x64xf32>
    %149 = arith.truncf %148 : vector<256x64xf32> to vector<256x64xbf16>
    %c0_160 = arith.constant 0 : index
    %c512 = arith.constant 512 : index
    %150 = vector.load %arg13[%c0_160, %c512] : memref<256x576xbf16, #tpu.memory_space<vmem>>, vector<256x64xbf16>
    tpu.vector_store %arg13[%c0_160, %c512], %149 {strides = array<i32>} : memref<256x576xbf16, #tpu.memory_space<vmem>>, vector<256x64xbf16>,
    %c0_161 = arith.constant 0 : index
    %c0_162 = arith.constant 0 : index
    %151 = vector.load %arg13[%c0_161, %c0_162] : memref<256x576xbf16, #tpu.memory_space<vmem>>, vector<256x576xbf16>
    %c0_163 = arith.constant 0 : index
    %c0_164 = arith.constant 0 : index
    %152 = vector.load %arg4[%c0_163, %c0_164] : memref<576x64xbf16, #tpu.memory_space<vmem>>, vector<576x64xbf16>
    %cst_165 = arith.constant dense<0.000000e+00> : vector<256x64xf32>
    %153 = tpu.matmul %151, %152, %cst_165 {dimension_numbers = #tpu.dot_dimension_numbers<[1], [0], [0], [1], [0, 0, 1, 1], [], []>} : vector<256x576xbf16>, vector<576x64xbf16>, vector<256x64xf32> -> vector<256x64xf32>
    %c0_166 = arith.constant 0 : index
    %c0_167 = arith.constant 0 : index
    %154 = vector.load %arg5[%c0_166, %c0_167] : memref<1x64xf32, #tpu.memory_space<vmem>>, vector<1x64xf32>
    %155 = vector.broadcast %154 : vector<1x64xf32> to vector<256x64xf32>
    %156 = arith.addf %153, %155 : vector<256x64xf32>
    %cst_168 = arith.constant 0.000000e+00 : f32
    %157 = vector.broadcast %cst_168 : f32 to vector<256x64xf32>
    %158 = arith.maximumf %156, %157 : vector<256x64xf32>
    %159 = vector.shape_cast %158 : vector<256x64xf32> to vector<16x16x64xf32>
    %c0_169 = arith.constant 0 : index
    %c1_170 = arith.constant 1 : index
    %c8_171 = arith.constant 8 : index
    %c0_172 = arith.constant 0 : index
    %160 = vector.load %arg11[%c0_169, %c1_170, %c8_171, %c0_172] : memref<1x18x32x64xf32, #tpu.memory_space<vmem>>, vector<1x16x16x64xf32>
    %161 = vector.shape_cast %160 : vector<1x16x16x64xf32> to vector<16x16x64xf32>
    %162 = vector.shape_cast %159 : vector<16x16x64xf32> to vector<1x16x16x64xf32>
    tpu.vector_store %arg11[%c0_169, %c1_170, %c8_171, %c0_172], %162 {strides = array<i32>} : memref<1x18x32x64xf32, #tpu.memory_space<vmem>>, vector<1x16x16x64xf32>,
    %c0_173 = arith.constant 0 : index
    %c0_174 = arith.constant 0 : index
    %c7_175 = arith.constant 7 : index
    %c0_176 = arith.constant 0 : index
    %163 = vector.load %arg11[%c0_173, %c0_174, %c7_175, %c0_176] : memref<1x18x32x64xf32, #tpu.memory_space<vmem>>, vector<1x16x16x64xf32>
    %164 = vector.shape_cast %163 : vector<1x16x16x64xf32> to vector<16x16x64xf32>
    %165 = vector.shape_cast %164 : vector<16x16x64xf32> to vector<256x64xf32>
    %166 = arith.truncf %165 : vector<256x64xf32> to vector<256x64xbf16>
    %c0_177 = arith.constant 0 : index
    %c0_178 = arith.constant 0 : index
    %167 = vector.load %arg13[%c0_177, %c0_178] : memref<256x576xbf16, #tpu.memory_space<vmem>>, vector<256x64xbf16>
    tpu.vector_store %arg13[%c0_177, %c0_178], %166 {strides = array<i32>} : memref<256x576xbf16, #tpu.memory_space<vmem>>, vector<256x64xbf16>,
    %c0_179 = arith.constant 0 : index
    %c0_180 = arith.constant 0 : index
    %c8_181 = arith.constant 8 : index
    %c0_182 = arith.constant 0 : index
    %168 = vector.load %arg11[%c0_179, %c0_180, %c8_181, %c0_182] : memref<1x18x32x64xf32, #tpu.memory_space<vmem>>, vector<1x16x16x64xf32>
    %169 = vector.shape_cast %168 : vector<1x16x16x64xf32> to vector<16x16x64xf32>
    %170 = vector.shape_cast %169 : vector<16x16x64xf32> to vector<256x64xf32>
    %171 = arith.truncf %170 : vector<256x64xf32> to vector<256x64xbf16>
    %c0_183 = arith.constant 0 : index
    %c64_184 = arith.constant 64 : index
    %172 = vector.load %arg13[%c0_183, %c64_184] : memref<256x576xbf16, #tpu.memory_space<vmem>>, vector<256x64xbf16>
    tpu.vector_store %arg13[%c0_183, %c64_184], %171 {strides = array<i32>} : memref<256x576xbf16, #tpu.memory_space<vmem>>, vector<256x64xbf16>,
    %c0_185 = arith.constant 0 : index
    %c0_186 = arith.constant 0 : index
    %c9_187 = arith.constant 9 : index
    %c0_188 = arith.constant 0 : index
    %173 = vector.load %arg11[%c0_185, %c0_186, %c9_187, %c0_188] : memref<1x18x32x64xf32, #tpu.memory_space<vmem>>, vector<1x16x16x64xf32>
    %174 = vector.shape_cast %173 : vector<1x16x16x64xf32> to vector<16x16x64xf32>
    %175 = vector.shape_cast %174 : vector<16x16x64xf32> to vector<256x64xf32>
    %176 = arith.truncf %175 : vector<256x64xf32> to vector<256x64xbf16>
    %c0_189 = arith.constant 0 : index
    %c128_190 = arith.constant 128 : index
    %177 = vector.load %arg13[%c0_189, %c128_190] : memref<256x576xbf16, #tpu.memory_space<vmem>>, vector<256x64xbf16>
    tpu.vector_store %arg13[%c0_189, %c128_190], %176 {strides = array<i32>} : memref<256x576xbf16, #tpu.memory_space<vmem>>, vector<256x64xbf16>,
    %c0_191 = arith.constant 0 : index
    %c1_192 = arith.constant 1 : index
    %c7_193 = arith.constant 7 : index
    %c0_194 = arith.constant 0 : index
    %178 = vector.load %arg11[%c0_191, %c1_192, %c7_193, %c0_194] : memref<1x18x32x64xf32, #tpu.memory_space<vmem>>, vector<1x16x16x64xf32>
    %179 = vector.shape_cast %178 : vector<1x16x16x64xf32> to vector<16x16x64xf32>
    %180 = vector.shape_cast %179 : vector<16x16x64xf32> to vector<256x64xf32>
    %181 = arith.truncf %180 : vector<256x64xf32> to vector<256x64xbf16>
    %c0_195 = arith.constant 0 : index
    %c192_196 = arith.constant 192 : index
    %182 = vector.load %arg13[%c0_195, %c192_196] : memref<256x576xbf16, #tpu.memory_space<vmem>>, vector<256x64xbf16>
    tpu.vector_store %arg13[%c0_195, %c192_196], %181 {strides = array<i32>} : memref<256x576xbf16, #tpu.memory_space<vmem>>, vector<256x64xbf16>,
    %c0_197 = arith.constant 0 : index
    %c1_198 = arith.constant 1 : index
    %c8_199 = arith.constant 8 : index
    %c0_200 = arith.constant 0 : index
    %183 = vector.load %arg11[%c0_197, %c1_198, %c8_199, %c0_200] : memref<1x18x32x64xf32, #tpu.memory_space<vmem>>, vector<1x16x16x64xf32>
    %184 = vector.shape_cast %183 : vector<1x16x16x64xf32> to vector<16x16x64xf32>
    %185 = vector.shape_cast %184 : vector<16x16x64xf32> to vector<256x64xf32>
    %186 = arith.truncf %185 : vector<256x64xf32> to vector<256x64xbf16>
    %c0_201 = arith.constant 0 : index
    %c256_202 = arith.constant 256 : index
    %187 = vector.load %arg13[%c0_201, %c256_202] : memref<256x576xbf16, #tpu.memory_space<vmem>>, vector<256x64xbf16>
    tpu.vector_store %arg13[%c0_201, %c256_202], %186 {strides = array<i32>} : memref<256x576xbf16, #tpu.memory_space<vmem>>, vector<256x64xbf16>,
    %c0_203 = arith.constant 0 : index
    %c1_204 = arith.constant 1 : index
    %c9_205 = arith.constant 9 : index
    %c0_206 = arith.constant 0 : index
    %188 = vector.load %arg11[%c0_203, %c1_204, %c9_205, %c0_206] : memref<1x18x32x64xf32, #tpu.memory_space<vmem>>, vector<1x16x16x64xf32>
    %189 = vector.shape_cast %188 : vector<1x16x16x64xf32> to vector<16x16x64xf32>
    %190 = vector.shape_cast %189 : vector<16x16x64xf32> to vector<256x64xf32>
    %191 = arith.truncf %190 : vector<256x64xf32> to vector<256x64xbf16>
    %c0_207 = arith.constant 0 : index
    %c320_208 = arith.constant 320 : index
    %192 = vector.load %arg13[%c0_207, %c320_208] : memref<256x576xbf16, #tpu.memory_space<vmem>>, vector<256x64xbf16>
    tpu.vector_store %arg13[%c0_207, %c320_208], %191 {strides = array<i32>} : memref<256x576xbf16, #tpu.memory_space<vmem>>, vector<256x64xbf16>,
    %c0_209 = arith.constant 0 : index
    %c2_210 = arith.constant 2 : index
    %c7_211 = arith.constant 7 : index
    %c0_212 = arith.constant 0 : index
    %193 = vector.load %arg11[%c0_209, %c2_210, %c7_211, %c0_212] : memref<1x18x32x64xf32, #tpu.memory_space<vmem>>, vector<1x16x16x64xf32>
    %194 = vector.shape_cast %193 : vector<1x16x16x64xf32> to vector<16x16x64xf32>
    %195 = vector.shape_cast %194 : vector<16x16x64xf32> to vector<256x64xf32>
    %196 = arith.truncf %195 : vector<256x64xf32> to vector<256x64xbf16>
    %c0_213 = arith.constant 0 : index
    %c384_214 = arith.constant 384 : index
    %197 = vector.load %arg13[%c0_213, %c384_214] : memref<256x576xbf16, #tpu.memory_space<vmem>>, vector<256x64xbf16>
    tpu.vector_store %arg13[%c0_213, %c384_214], %196 {strides = array<i32>} : memref<256x576xbf16, #tpu.memory_space<vmem>>, vector<256x64xbf16>,
    %c0_215 = arith.constant 0 : index
    %c2_216 = arith.constant 2 : index
    %c8_217 = arith.constant 8 : index
    %c0_218 = arith.constant 0 : index
    %198 = vector.load %arg11[%c0_215, %c2_216, %c8_217, %c0_218] : memref<1x18x32x64xf32, #tpu.memory_space<vmem>>, vector<1x16x16x64xf32>
    %199 = vector.shape_cast %198 : vector<1x16x16x64xf32> to vector<16x16x64xf32>
    %200 = vector.shape_cast %199 : vector<16x16x64xf32> to vector<256x64xf32>
    %201 = arith.truncf %200 : vector<256x64xf32> to vector<256x64xbf16>
    %c0_219 = arith.constant 0 : index
    %c448_220 = arith.constant 448 : index
    %202 = vector.load %arg13[%c0_219, %c448_220] : memref<256x576xbf16, #tpu.memory_space<vmem>>, vector<256x64xbf16>
    tpu.vector_store %arg13[%c0_219, %c448_220], %201 {strides = array<i32>} : memref<256x576xbf16, #tpu.memory_space<vmem>>, vector<256x64xbf16>,
    %c0_221 = arith.constant 0 : index
    %c2_222 = arith.constant 2 : index
    %c9_223 = arith.constant 9 : index
    %c0_224 = arith.constant 0 : index
    %203 = vector.load %arg11[%c0_221, %c2_222, %c9_223, %c0_224] : memref<1x18x32x64xf32, #tpu.memory_space<vmem>>, vector<1x16x16x64xf32>
    %204 = vector.shape_cast %203 : vector<1x16x16x64xf32> to vector<16x16x64xf32>
    %205 = vector.shape_cast %204 : vector<16x16x64xf32> to vector<256x64xf32>
    %206 = arith.truncf %205 : vector<256x64xf32> to vector<256x64xbf16>
    %c0_225 = arith.constant 0 : index
    %c512_226 = arith.constant 512 : index
    %207 = vector.load %arg13[%c0_225, %c512_226] : memref<256x576xbf16, #tpu.memory_space<vmem>>, vector<256x64xbf16>
    tpu.vector_store %arg13[%c0_225, %c512_226], %206 {strides = array<i32>} : memref<256x576xbf16, #tpu.memory_space<vmem>>, vector<256x64xbf16>,
    %c0_227 = arith.constant 0 : index
    %c0_228 = arith.constant 0 : index
    %208 = vector.load %arg13[%c0_227, %c0_228] : memref<256x576xbf16, #tpu.memory_space<vmem>>, vector<256x576xbf16>
    %c0_229 = arith.constant 0 : index
    %c0_230 = arith.constant 0 : index
    %209 = vector.load %arg6[%c0_229, %c0_230] : memref<576x3xbf16, #tpu.memory_space<vmem>>, vector<576x3xbf16>
    %cst_231 = arith.constant dense<0.000000e+00> : vector<256x3xf32>
    %210 = tpu.matmul %208, %209, %cst_231 {dimension_numbers = #tpu.dot_dimension_numbers<[1], [0], [0], [1], [0, 0, 1, 1], [], []>} : vector<256x576xbf16>, vector<576x3xbf16>, vector<256x3xf32> -> vector<256x3xf32>
    %c0_232 = arith.constant 0 : index
    %c0_233 = arith.constant 0 : index
    %211 = vector.load %arg7[%c0_232, %c0_233] : memref<1x3xf32, #tpu.memory_space<vmem>>, vector<1x3xf32>
    %212 = vector.broadcast %211 : vector<1x3xf32> to vector<256x3xf32>
    %213 = arith.addf %210, %212 : vector<256x3xf32>
    %214 = vector.shape_cast %213 : vector<256x3xf32> to vector<8x2x16x3xf32>
    %215 = vector.extract_strided_slice %214 {offsets = [0, 0, 0, 0], sizes = [8, 1, 16, 3], strides = [1, 1, 1, 1]} : vector<8x2x16x3xf32> to vector<8x1x16x3xf32>
    %216 = vector.shape_cast %215 : vector<8x1x16x3xf32> to vector<8x16x3xf32>
    %217 = vector.extract_strided_slice %214 {offsets = [0, 1, 0, 0], sizes = [8, 1, 16, 3], strides = [1, 1, 1, 1]} : vector<8x2x16x3xf32> to vector<8x1x16x3xf32>
    %218 = vector.shape_cast %217 : vector<8x1x16x3xf32> to vector<8x16x3xf32>
    %219 = arith.addf %216, %218 : vector<8x16x3xf32>
    %220 = vector.shape_cast %219 : vector<8x16x3xf32> to vector<8x8x2x3xf32>
    %221 = vector.extract_strided_slice %220 {offsets = [0, 0, 0, 0], sizes = [8, 8, 1, 3], strides = [1, 1, 1, 1]} : vector<8x8x2x3xf32> to vector<8x8x1x3xf32>
    %222 = vector.shape_cast %221 : vector<8x8x1x3xf32> to vector<8x8x3xf32>
    %223 = vector.extract_strided_slice %220 {offsets = [0, 0, 1, 0], sizes = [8, 8, 1, 3], strides = [1, 1, 1, 1]} : vector<8x8x2x3xf32> to vector<8x8x1x3xf32>
    %224 = vector.shape_cast %223 : vector<8x8x1x3xf32> to vector<8x8x3xf32>
    %225 = arith.addf %222, %224 : vector<8x8x3xf32>
    %cst_234 = arith.constant 2.500000e-01 : f32
    %226 = vector.broadcast %cst_234 : f32 to vector<8x8x3xf32>
    %227 = arith.mulf %225, %226 : vector<8x8x3xf32>
    %c0_235 = arith.constant 0 : index
    %c0_236 = arith.constant 0 : index
    %c0_237 = arith.constant 0 : index
    %c0_238 = arith.constant 0 : index
    %228 = vector.load %arg8[%c0_235, %c0_236, %c0_237, %c0_238] : memref<1x8x8x3xf32, #tpu.memory_space<vmem>>, vector<1x8x8x3xf32>
    %229 = vector.shape_cast %228 : vector<1x8x8x3xf32> to vector<8x8x3xf32>
    %230 = vector.shape_cast %227 : vector<8x8x3xf32> to vector<1x8x8x3xf32>
    tpu.vector_store %arg8[%c0_235, %c0_236, %c0_237, %c0_238], %230 {strides = array<i32>} : memref<1x8x8x3xf32, #tpu.memory_space<vmem>>, vector<1x8x8x3xf32>,
    return
  }
  func.func @transform_0(%arg0: i32) -> (i32, i32, i32, i32) {
    %c0_i32 = arith.constant 0 : i32
    %c0_i32_0 = arith.constant 0 : i32
    %c0_i32_1 = arith.constant 0 : i32
    %c0_i32_2 = arith.constant 0 : i32
    return %arg0, %c0_i32, %c0_i32_0, %c0_i32_1 : i32, i32, i32, i32
  }
  func.func @transform_1(%arg0: i32) -> (i32, i32) {
    %c0_i32 = arith.constant 0 : i32
    %c0_i32_0 = arith.constant 0 : i32
    %c0_i32_1 = arith.constant 0 : i32
    return %c0_i32, %c0_i32_0 : i32, i32
  }
  func.func @transform_2(%arg0: i32) -> (i32, i32) {
    %c0_i32 = arith.constant 0 : i32
    %c0_i32_0 = arith.constant 0 : i32
    %c0_i32_1 = arith.constant 0 : i32
    return %c0_i32, %c0_i32_0 : i32, i32
  }
  func.func @transform_3(%arg0: i32) -> (i32, i32) {
    %c0_i32 = arith.constant 0 : i32
    %c0_i32_0 = arith.constant 0 : i32
    %c0_i32_1 = arith.constant 0 : i32
    return %c0_i32, %c0_i32_0 : i32, i32
  }
  func.func @transform_4(%arg0: i32) -> (i32, i32) {
    %c0_i32 = arith.constant 0 : i32
    %c0_i32_0 = arith.constant 0 : i32
    %c0_i32_1 = arith.constant 0 : i32
    return %c0_i32, %c0_i32_0 : i32, i32
  }
  func.func @transform_5(%arg0: i32) -> (i32, i32) {
    %c0_i32 = arith.constant 0 : i32
    %c0_i32_0 = arith.constant 0 : i32
    %c0_i32_1 = arith.constant 0 : i32
    return %c0_i32, %c0_i32_0 : i32, i32
  }
  func.func @transform_6(%arg0: i32) -> (i32, i32) {
    %c0_i32 = arith.constant 0 : i32
    %c0_i32_0 = arith.constant 0 : i32
    %c0_i32_1 = arith.constant 0 : i32
    return %c0_i32, %c0_i32_0 : i32, i32
  }
  func.func @transform_7(%arg0: i32) -> (i32, i32, i32, i32) {
    %c0_i32 = arith.constant 0 : i32
    %c0_i32_0 = arith.constant 0 : i32
    %c0_i32_1 = arith.constant 0 : i32
    %c0_i32_2 = arith.constant 0 : i32
    return %arg0, %c0_i32, %c0_i32_0, %c0_i32_1 : i32, i32, i32, i32
  }
}

</mosaic_0001>

<llo_original>
// kernel: my_cnn_forward.1
$region0: #{my_cnn_forward.1}
  #allocation0 [shape = 'u32[]', space=smem, size = 0x4, offset = 0x4, fixed_abs, tag = 'smem constant byte address 0x4 - core index']
  #allocation1 [shape = 'u32[144,128]{1,0:T(1,128)}', space=vmem, size = 0x12000, scoped, tag = 'internal scratch']
  #allocation2 [shape = 'f32[1,18,32,3]{3,2,1,0:T(8,128)}', space=vmem, size = 0x48000, scoped, tag = 'scratch operand']
  #allocation3 [shape = 'f32[1,18,32,64]{3,2,1,0:T(8,128)}', space=vmem, size = 0x48000, scoped, tag = 'scratch operand']
  #allocation4 [shape = 'f32[1,18,32,64]{3,2,1,0:T(8,128)}', space=vmem, size = 0x48000, scoped, tag = 'scratch operand']
  #allocation5 [shape = 'bf16[256,32]{1,0:T(16,128)(2,1)}', space=vmem, size = 0x10000, scoped, tag = 'scratch operand']
  #allocation6 [shape = 'bf16[256,576]{1,0:T(16,128)(2,1)}', space=vmem, size = 0x50000, scoped, tag = 'scratch operand']
  %s0 = inlined_call_operand.hbm [shape: f32[2,16,16,3], index: 0, kind: input, shape index: {}]
  %s1 = inlined_call_operand.hbm [shape: bf16[32,64], index: 1, kind: input, shape index: {}]
  %s2 = inlined_call_operand.hbm [shape: f32[1,64], index: 2, kind: input, shape index: {}]
  %s3 = inlined_call_operand.hbm [shape: bf16[576,64], index: 3, kind: input, shape index: {}]
  %s4 = inlined_call_operand.hbm [shape: f32[1,64], index: 4, kind: input, shape index: {}]
  %s5 = inlined_call_operand.hbm [shape: bf16[576,3], index: 5, kind: input, shape index: {}]
  %s6 = inlined_call_operand.hbm [shape: f32[1,3], index: 6, kind: input, shape index: {}]
  %s7 = inlined_call_operand.hbm [shape: f32[2,8,8,3], index: 7, kind: output, shape index: {}]
  %s8 = sld [smem:[#allocation0]]
  $region89: #{my_cnn_forward.1} parent=0
    _
  %s10 = ssub.s32 1, %s8
  %s11 = scalar_select 0, %s10, %s8
  $region1: #{my_cnn_forward.1} parent=0
    #allocation7 [shape = 'u8[262144]{0}', space=vmem, size = 0x40000, scoped, tag = 'input window, operand 0']
    #allocation8 [shape = 's32[2]{0}', space=sflag, size = 0x8, scoped, tag = 'scoped memory for my_cnn_forward.1']
    #allocation9 [shape = 's32[2]{0}', space=sflag, size = 0x8, scoped, tag = 'scoped memory for my_cnn_forward.1']
    #allocation10 [shape = 'u8[8192]{0}', space=vmem, size = 0x2000, scoped, tag = 'input window, operand 1, single buffered']
    #allocation11 [shape = 's32[1]{0}', space=sflag, size = 0x4, scoped, tag = 'scoped memory for my_cnn_forward.1']
    #allocation12 [shape = 'u8[512]{0}', space=vmem, size = 0x400, scoped, tag = 'input window, operand 2, single buffered']
    #allocation13 [shape = 'u8[147456]{0}', space=vmem, size = 0x24000, scoped, tag = 'input window, operand 3, single buffered']
    #allocation14 [shape = 's32[1]{0}', space=sflag, size = 0x4, scoped, tag = 'scoped memory for my_cnn_forward.1']
    #allocation15 [shape = 'u8[512]{0}', space=vmem, size = 0x400, scoped, tag = 'input window, operand 4, single buffered']
    #allocation16 [shape = 'u8[147456]{0}', space=vmem, size = 0x24000, scoped, tag = 'input window, operand 5, single buffered']
    #allocation17 [shape = 's32[1]{0}', space=sflag, size = 0x4, scoped, tag = 'scoped memory for my_cnn_forward.1']
    #allocation18 [shape = 'u8[512]{0}', space=vmem, size = 0x400, scoped, tag = 'input window, operand 6, single buffered']
    #allocation19 [shape = 'u8[65536]{0}', space=vmem, size = 0x10000, scoped, tag = 'output window, operand 0']
    %12 = vsyncpa [#allocation8], 0
    %s13 = scalar_lea.sflag [#allocation8], 1
    %14 = vsyncpa %s13, 0
    %15 = vsyncpa [#allocation11], 0
    %16 = vsyncpa [#allocation14], 0
    %17 = vsyncpa [#allocation17], 0
    %18 = vsyncpa [#allocation9], 0
    %s19 = scalar_lea.sflag [#allocation9], 1
    %20 = vsyncpa %s19, 0
    loop: start=0, step=1, limit=4
    $region2: #{my_cnn_forward.1} parent=1 // loop_pre_header
      _
    $region3: #{my_cnn_forward.1} parent=1 // loop_header
      %s22 = sphi 0, %s26
      %p23 = scmp.ge.s32.totalorder %s22, 4
      %s32 = sphi 0, %s34
      %s35 = sphi 0, %s32
      %s36 = sphi 0, %s35
      %s52 = sphi 0, %s36
      %s56 = sphi 0, %s56
      %s58 = sphi 0, %s56
      %s59 = sphi 0, %s58
      %s73 = sphi 0, %s59
      %s77 = sphi 0, %s77
      %s79 = sphi 0, %s77
      %s80 = sphi 0, %s79
      %s94 = sphi 0, %s80
      %s98 = sphi 0, %s98
      %s100 = sphi 0, %s98
      %s101 = sphi 0, %s100
      %s115 = sphi 0, %s101
      %s119 = sphi 0, %s119
      %s121 = sphi 0, %s119
      %s122 = sphi 0, %s121
      %s136 = sphi 0, %s122
      %s140 = sphi 0, %s140
      %s142 = sphi 0, %s140
      %s143 = sphi 0, %s142
      %s157 = sphi 0, %s143
      %s161 = sphi 0, %s161
      %s163 = sphi 0, %s161
      %s164 = sphi 0, %s163
      %s178 = sphi 0, %s164
      %s184 = sphi 0, %s186
      %s187 = sphi 0, %s184
      %s188 = sphi 0, %s187
      %s204 = sphi 0, %s188
    $region4: #{my_cnn_forward.1} parent=1 // loop_header_branch
      %25 = sbr.rel (%p23) target = $region8
    $region5: #{my_cnn_forward.1} parent=1 // loop_body
      %s27 = ssub.s32 %s22, 1
      %s28 = ssub.s32 %s22, 2
      %s29 = sadd.s32 %s22, 1
      %s30 = ssub.s32 %s22, %s29
      %p31 = scmp.eq.s32.totalorder %s30, 0
      %s33 = sadd.s32 %s32, 1
      %s34 = scalar_select %p31, %s32, %s33
      %p37 = pneg %p31
      %p38 = scmp.eq.s32.totalorder %s22, 1
      %p39 = por %p37, %p38
      %p40 = scmp.ne.s32.totalorder %s32, %s35
      %p41 = scmp.eq.s32.totalorder %s22, 0
      %p42 = por %p40, %p41
      %p43 = scmp.ne.s32.totalorder %s32, %s35
      %p44 = scmp.eq.s32.totalorder %s27, 1
      %p45 = por %p43, %p44
      %p46 = scmp.ne.s32.totalorder %s35, %s36
      %p47 = scmp.eq.s32.totalorder %s27, 0
      %p48 = por %p46, %p47
      %p49 = scmp.ne.s32.totalorder %s35, %s36
      %p50 = scmp.eq.s32.totalorder %s28, 1
      %p51 = por %p49, %p50
      %p53 = scmp.ne.s32.totalorder %s36, %s52
      %p54 = scmp.eq.s32.totalorder %s28, 0
      %p55 = por %p53, %p54
      %s57 = sadd.s32 %s56, 1
      %p60 = scmp.eq.s32.totalorder %s22, 1
      %p61 = scmp.ne.s32.totalorder %s56, %s58
      %p62 = scmp.eq.s32.totalorder %s22, 0
      %p63 = por %p61, %p62
      %p64 = scmp.ne.s32.totalorder %s56, %s58
      %p65 = scmp.eq.s32.totalorder %s27, 1
      %p66 = por %p64, %p65
      %p67 = scmp.ne.s32.totalorder %s58, %s59
      %p68 = scmp.eq.s32.totalorder %s27, 0
      %p69 = por %p67, %p68
      %p70 = scmp.ne.s32.totalorder %s58, %s59
      %p71 = scmp.eq.s32.totalorder %s28, 1
      %p72 = por %p70, %p71
      %p74 = scmp.ne.s32.totalorder %s59, %s73
      %p75 = scmp.eq.s32.totalorder %s28, 0
      %p76 = por %p74, %p75
      %s78 = sadd.s32 %s77, 1
      %p81 = scmp.eq.s32.totalorder %s22, 1
      %p82 = scmp.ne.s32.totalorder %s77, %s79
      %p83 = scmp.eq.s32.totalorder %s22, 0
      %p84 = por %p82, %p83
      %p85 = scmp.ne.s32.totalorder %s77, %s79
      %p86 = scmp.eq.s32.totalorder %s27, 1
      %p87 = por %p85, %p86
      %p88 = scmp.ne.s32.totalorder %s79, %s80
      %p89 = scmp.eq.s32.totalorder %s27, 0
      %p90 = por %p88, %p89
      %p91 = scmp.ne.s32.totalorder %s79, %s80
      %p92 = scmp.eq.s32.totalorder %s28, 1
      %p93 = por %p91, %p92
      %p95 = scmp.ne.s32.totalorder %s80, %s94
      %p96 = scmp.eq.s32.totalorder %s28, 0
      %p97 = por %p95, %p96
      %s99 = sadd.s32 %s98, 1
      %p102 = scmp.eq.s32.totalorder %s22, 1
      %p103 = scmp.ne.s32.totalorder %s98, %s100
      %p104 = scmp.eq.s32.totalorder %s22, 0
      %p105 = por %p103, %p104
      %p106 = scmp.ne.s32.totalorder %s98, %s100
      %p107 = scmp.eq.s32.totalorder %s27, 1
      %p108 = por %p106, %p107
      %p109 = scmp.ne.s32.totalorder %s100, %s101
      %p110 = scmp.eq.s32.totalorder %s27, 0
      %p111 = por %p109, %p110
      %p112 = scmp.ne.s32.totalorder %s100, %s101
      %p113 = scmp.eq.s32.totalorder %s28, 1
      %p114 = por %p112, %p113
      %p116 = scmp.ne.s32.totalorder %s101, %s115
      %p117 = scmp.eq.s32.totalorder %s28, 0
      %p118 = por %p116, %p117
      %s120 = sadd.s32 %s119, 1
      %p123 = scmp.eq.s32.totalorder %s22, 1
      %p124 = scmp.ne.s32.totalorder %s119, %s121
      %p125 = scmp.eq.s32.totalorder %s22, 0
      %p126 = por %p124, %p125
      %p127 = scmp.ne.s32.totalorder %s119, %s121
      %p128 = scmp.eq.s32.totalorder %s27, 1
      %p129 = por %p127, %p128
      %p130 = scmp.ne.s32.totalorder %s121, %s122
      %p131 = scmp.eq.s32.totalorder %s27, 0
      %p132 = por %p130, %p131
      %p133 = scmp.ne.s32.totalorder %s121, %s122
      %p134 = scmp.eq.s32.totalorder %s28, 1
      %p135 = por %p133, %p134
      %p137 = scmp.ne.s32.totalorder %s122, %s136
      %p138 = scmp.eq.s32.totalorder %s28, 0
      %p139 = por %p137, %p138
      %s141 = sadd.s32 %s140, 1
      %p144 = scmp.eq.s32.totalorder %s22, 1
      %p145 = scmp.ne.s32.totalorder %s140, %s142
      %p146 = scmp.eq.s32.totalorder %s22, 0
      %p147 = por %p145, %p146
      %p148 = scmp.ne.s32.totalorder %s140, %s142
      %p149 = scmp.eq.s32.totalorder %s27, 1
      %p150 = por %p148, %p149
      %p151 = scmp.ne.s32.totalorder %s142, %s143
      %p152 = scmp.eq.s32.totalorder %s27, 0
      %p153 = por %p151, %p152
      %p154 = scmp.ne.s32.totalorder %s142, %s143
      %p155 = scmp.eq.s32.totalorder %s28, 1
      %p156 = por %p154, %p155
      %p158 = scmp.ne.s32.totalorder %s143, %s157
      %p159 = scmp.eq.s32.totalorder %s28, 0
      %p160 = por %p158, %p159
      %s162 = sadd.s32 %s161, 1
      %p165 = scmp.eq.s32.totalorder %s22, 1
      %p166 = scmp.ne.s32.totalorder %s161, %s163
      %p167 = scmp.eq.s32.totalorder %s22, 0
      %p168 = por %p166, %p167
      %p169 = scmp.ne.s32.totalorder %s161, %s163
      %p170 = scmp.eq.s32.totalorder %s27, 1
      %p171 = por %p169, %p170
      %p172 = scmp.ne.s32.totalorder %s163, %s164
      %p173 = scmp.eq.s32.totalorder %s27, 0
      %p174 = por %p172, %p173
      %p175 = scmp.ne.s32.totalorder %s163, %s164
      %p176 = scmp.eq.s32.totalorder %s28, 1
      %p177 = por %p175, %p176
      %p179 = scmp.ne.s32.totalorder %s164, %s178
      %p180 = scmp.eq.s32.totalorder %s28, 0
      %p181 = por %p179, %p180
      %s182 = ssub.s32 %s22, %s29
      %p183 = scmp.eq.s32.totalorder %s182, 0
      %s185 = sadd.s32 %s184, 1
      %s186 = scalar_select %p183, %s184, %s185
      %p189 = pneg %p183
      %p190 = scmp.eq.s32.totalorder %s22, 1
      %p191 = por %p189, %p190
      %p192 = scmp.ne.s32.totalorder %s184, %s187
      %p193 = scmp.eq.s32.totalorder %s22, 0
      %p194 = por %p192, %p193
      %p195 = scmp.ne.s32.totalorder %s184, %s187
      %p196 = scmp.eq.s32.totalorder %s27, 1
      %p197 = por %p195, %p196
      %p198 = scmp.ne.s32.totalorder %s187, %s188
      %p199 = scmp.eq.s32.totalorder %s27, 0
      %p200 = por %p198, %p199
      %p201 = scmp.ne.s32.totalorder %s187, %s188
      %p202 = scmp.eq.s32.totalorder %s28, 1
      %p203 = por %p201, %p202
      %p205 = scmp.ne.s32.totalorder %s188, %s204
      %p206 = scmp.eq.s32.totalorder %s28, 0
      %p207 = por %p205, %p206
      %p208 = scmp.le.s32.totalorder 1, %s22
      %p209 = scmp.lt.s32.totalorder %s22, 3
      %p210 = pnand %p208, %p209
      %p211 = pneg %p210
      // Predicated region
      $region9: #{my_cnn_forward.1} parent=5 // pred_check
        _
      $region10: #{my_cnn_forward.1} parent=5 // pred_check_branch
        %213 = sbr.rel (%p210) target = $region12
      $region11: #{my_cnn_forward.1} parent=5 // pred_region
        %s214 = ssub.s32 %s22, 1
        // Predicated region
        $region13: #{my_cnn_forward.1} parent=11 // pred_check
          %p215 = pneg %p69
        $region14: #{my_cnn_forward.1} parent=11 // pred_check_branch
          %217 = sbr.rel (%p215) target = $region16
        $region15: #{my_cnn_forward.1} parent=11 // pred_region
          %s219 = ssub.s32 256, 256
          %220 = vsyncadd [#allocation11], %s219
          %s221 = sshll.u32 [#allocation10], 4
          %s222 = int_to_ptr.vmem [resolvable:$true] %s221
          %227 = dma.hbm_to_vmem [thread:$0]  %s1, 256, %s222, [#allocation11], 64, 64, 4
        $region16: #{my_cnn_forward.1} parent=11 // pred_fallthru
          _
        // Predicated region
        $region17: #{my_cnn_forward.1} parent=11 // pred_check
          %p228 = pneg %p90
        $region18: #{my_cnn_forward.1} parent=11 // pred_check_branch
          %230 = sbr.rel (%p228) target = $region20
        $region19: #{my_cnn_forward.1} parent=11 // pred_region
          %s232 = ssub.s32 16, 16
          %233 = vsyncadd [#allocation11], %s232
          %s235 = sshll.u32 [#allocation12], 4
          %s236 = int_to_ptr.vmem [resolvable:$true] %s235
          %238 = dma.hbm_to_vmem [thread:$0]  %s2, 16, %s236, [#allocation11]
        $region20: #{my_cnn_forward.1} parent=11 // pred_fallthru
          _
        // Predicated region
        $region21: #{my_cnn_forward.1} parent=11 // pred_check
          %p239 = pneg %p111
        $region22: #{my_cnn_forward.1} parent=11 // pred_check_branch
          %241 = sbr.rel (%p239) target = $region24
        $region23: #{my_cnn_forward.1} parent=11 // pred_region
          %s243 = ssub.s32 4608, 4608
          %244 = vsyncadd [#allocation14], %s243
          %s245 = sshll.u32 [#allocation13], 4
          %s246 = int_to_ptr.vmem [resolvable:$true] %s245
          %251 = dma.hbm_to_vmem [thread:$0]  %s3, 4608, %s246, [#allocation14], 64, 64, 4
        $region24: #{my_cnn_forward.1} parent=11 // pred_fallthru
          _
        // Predicated region
        $region25: #{my_cnn_forward.1} parent=11 // pred_check
          %p252 = pneg %p132
        $region26: #{my_cnn_forward.1} parent=11 // pred_check_branch
          %254 = sbr.rel (%p252) target = $region28
        $region27: #{my_cnn_forward.1} parent=11 // pred_region
          %s256 = ssub.s32 16, 16
          %257 = vsyncadd [#allocation14], %s256
          %s259 = sshll.u32 [#allocation15], 4
          %s260 = int_to_ptr.vmem [resolvable:$true] %s259
          %262 = dma.hbm_to_vmem [thread:$0]  %s4, 16, %s260, [#allocation14]
        $region28: #{my_cnn_forward.1} parent=11 // pred_fallthru
          _
        // Predicated region
        $region29: #{my_cnn_forward.1} parent=11 // pred_check
          %p263 = pneg %p153
        $region30: #{my_cnn_forward.1} parent=11 // pred_check_branch
          %265 = sbr.rel (%p263) target = $region32
        $region31: #{my_cnn_forward.1} parent=11 // pred_region
          %s267 = ssub.s32 4608, 4608
          %268 = vsyncadd [#allocation17], %s267
          %s269 = sshll.u32 [#allocation16], 4
          %s270 = int_to_ptr.vmem [resolvable:$true] %s269
          %275 = dma.hbm_to_vmem [thread:$0]  %s5, 4608, %s270, [#allocation17], 64, 64, 4
        $region32: #{my_cnn_forward.1} parent=11 // pred_fallthru
          _
        // Predicated region
        $region33: #{my_cnn_forward.1} parent=11 // pred_check
          %p276 = pneg %p174
        $region34: #{my_cnn_forward.1} parent=11 // pred_check_branch
          %278 = sbr.rel (%p276) target = $region36
        $region35: #{my_cnn_forward.1} parent=11 // pred_region
          %s280 = ssub.s32 16, 16
          %281 = vsyncadd [#allocation17], %s280
          %s283 = sshll.u32 [#allocation18], 4
          %s284 = int_to_ptr.vmem [resolvable:$true] %s283
          %286 = dma.hbm_to_vmem [thread:$0]  %s6, 16, %s284, [#allocation17]
        $region36: #{my_cnn_forward.1} parent=11 // pred_fallthru
          _
      $region12: #{my_cnn_forward.1} parent=5 // pred_fallthru
        _
      %p287 = scmp.lt.s32.totalorder %s22, 2
      // Predicated region
      $region37: #{my_cnn_forward.1} parent=5 // pred_check
        %p288 = pneg %p287
      $region38: #{my_cnn_forward.1} parent=5 // pred_check_branch
        %290 = sbr.rel (%p288) target = $region40
      $region39: #{my_cnn_forward.1} parent=5 // pred_region
        // Predicated region
        $region41: #{my_cnn_forward.1} parent=39 // pred_check
          %p291 = pneg %p42
        $region42: #{my_cnn_forward.1} parent=39 // pred_check_branch
          %293 = sbr.rel (%p291) target = $region44
        $region43: #{my_cnn_forward.1} parent=39 // pred_region
          %s294 = sand.u32 %s32, 1
          %s295 = scalar_lea.sflag [#allocation8], %s294
          %s296 = sand.u32 %s32, 1
          %s297 = smul.addr %s296, 256
          %s298 = scalar_lea.vmem [#allocation7], %s297
          %s300 = ssub.s32 4096, 4096
          %301 = vsyncadd %s295, %s300
          %s302 = smul.addr %s22, 32
          %s303 = smul.addr %s302, 128
          %s304 = scalar_lea.hbm %s0, %s303
          %s305 = sshll.u32 %s298, 4
          %s306 = int_to_ptr.vmem [resolvable:$true] %s305
          %311 = dma.hbm_to_vmem [thread:$0]  %s304, 4096, %s306, %s295, 128, 128, 8
        $region44: #{my_cnn_forward.1} parent=39 // pred_fallthru
          _
      $region40: #{my_cnn_forward.1} parent=5 // pred_fallthru
        _
      %p312 = scmp.le.s32.totalorder 1, %s22
      %p313 = scmp.lt.s32.totalorder %s22, 3
      %p314 = pnand %p312, %p313
      %p315 = pneg %p314
      // Predicated region
      $region45: #{my_cnn_forward.1} parent=5 // pred_check
        _
      $region46: #{my_cnn_forward.1} parent=5 // pred_check_branch
        %317 = sbr.rel (%p314) target = $region48
      $region47: #{my_cnn_forward.1} parent=5 // pred_region
        %s318 = ssub.s32 %s22, 1
        %s319 = sand.u32 %s35, 1
        %s320 = scalar_lea.sflag [#allocation8], %s319
        %s321 = sand.u32 %s35, 1
        %s322 = smul.addr %s321, 256
        %s323 = scalar_lea.vmem [#allocation7], %s322
        // Predicated region
        $region49: #{my_cnn_forward.1} parent=47 // pred_check
          %p324 = pneg %p48
        $region50: #{my_cnn_forward.1} parent=47 // pred_check_branch
          %326 = sbr.rel (%p324) target = $region52
        $region51: #{my_cnn_forward.1} parent=47 // pred_region
          %327 = dma.done %s320, 4096
        $region52: #{my_cnn_forward.1} parent=47 // pred_fallthru
          _
        // Predicated region
        $region53: #{my_cnn_forward.1} parent=47 // pred_check
          %p328 = pneg %p69
        $region54: #{my_cnn_forward.1} parent=47 // pred_check_branch
          %330 = sbr.rel (%p328) target = $region56
        $region55: #{my_cnn_forward.1} parent=47 // pred_region
          %331 = dma.done [#allocation11], 256
        $region56: #{my_cnn_forward.1} parent=47 // pred_fallthru
          _
        // Predicated region
        $region57: #{my_cnn_forward.1} parent=47 // pred_check
          %p332 = pneg %p90
        $region58: #{my_cnn_forward.1} parent=47 // pred_check_branch
          %334 = sbr.rel (%p332) target = $region60
        $region59: #{my_cnn_forward.1} parent=47 // pred_region
          %335 = dma.done [#allocation11], 16
        $region60: #{my_cnn_forward.1} parent=47 // pred_fallthru
          _
        // Predicated region
        $region61: #{my_cnn_forward.1} parent=47 // pred_check
          %p336 = pneg %p111
        $region62: #{my_cnn_forward.1} parent=47 // pred_check_branch
          %338 = sbr.rel (%p336) target = $region64
        $region63: #{my_cnn_forward.1} parent=47 // pred_region
          %339 = dma.done [#allocation14], 4608
        $region64: #{my_cnn_forward.1} parent=47 // pred_fallthru
          _
        // Predicated region
        $region65: #{my_cnn_forward.1} parent=47 // pred_check
          %p340 = pneg %p132
        $region66: #{my_cnn_forward.1} parent=47 // pred_check_branch
          %342 = sbr.rel (%p340) target = $region68
        $region67: #{my_cnn_forward.1} parent=47 // pred_region
          %343 = dma.done [#allocation14], 16
        $region68: #{my_cnn_forward.1} parent=47 // pred_fallthru
          _
        // Predicated region
        $region69: #{my_cnn_forward.1} parent=47 // pred_check
          %p344 = pneg %p153
        $region70: #{my_cnn_forward.1} parent=47 // pred_check_branch
          %346 = sbr.rel (%p344) target = $region72
        $region71: #{my_cnn_forward.1} parent=47 // pred_region
          %347 = dma.done [#allocation17], 4608
        $region72: #{my_cnn_forward.1} parent=47 // pred_fallthru
          _
        // Predicated region
        $region73: #{my_cnn_forward.1} parent=47 // pred_check
          %p348 = pneg %p174
        $region74: #{my_cnn_forward.1} parent=47 // pred_check_branch
          %350 = sbr.rel (%p348) target = $region76
        $region75: #{my_cnn_forward.1} parent=47 // pred_region
          %351 = dma.done [#allocation17], 16
        $region76: #{my_cnn_forward.1} parent=47 // pred_fallthru
          _
        %s352 = sand.u32 %s35, 1
        %s353 = scalar_lea.sflag [#allocation8], %s352
        %s354 = sand.u32 %s35, 1
        %s355 = smul.addr %s354, 256
        %s356 = scalar_lea.vmem [#allocation7], %s355
        %p357 = pneg %p48
        %p358 = pneg %p45
        %p359 = pneg %p69
        %p360 = pneg %p66
        %p361 = pneg %p90
        %p362 = pneg %p87
        %p363 = pneg %p111
        %p364 = pneg %p108
        %p365 = pneg %p132
        %p366 = pneg %p129
        %p367 = pneg %p153
        %p368 = pneg %p150
        %p369 = pneg %p174
        %p370 = pneg %p171
        %p371 = pneg %p200
        %p372 = pneg %p197
        %s373 = sand.u32 %s187, 1
        %s374 = scalar_lea.sflag [#allocation9], %s373
        %s375 = sand.u32 %s187, 1
        %s376 = smul.addr %s375, 64
        %s377 = scalar_lea.vmem [#allocation19], %s376
        %vm379 = vcmask 23552
        %380 = vst.msk [vmem:[#allocation2] sm:$0xff] %vm379, 0.0
        %381 = vst.msk [vmem:[#allocation2 + $0x8] sm:$0xff] %vm379, 0.0
        %382 = vst.msk [vmem:[#allocation2 + $0x10] sm:$0xff] %vm379, 0.0
        %383 = vst.msk [vmem:[#allocation2 + $0x18] sm:$0xff] %vm379, 0.0
        %s384 = scalar_lea.vmem [#allocation2], 544
        %385 = vst.msk [vmem:[%s384] sm:$0xff] %vm379, 0.0
        %386 = vst.msk [vmem:[%s384 + $0x8] sm:$0xff] %vm379, 0.0
        %387 = vst.msk [vmem:[%s384 + $0x10] sm:$0xff] %vm379, 0.0
        %388 = vst.msk [vmem:[%s384 + $0x18] sm:$0xff] %vm379, 0.0
        %s389 = scalar_lea.vmem [#allocation2], 32
        %vm390 = vcmask 16384
        %391 = vst.msk [vmem:[%s389 + $0x7] sm:$0x1] %vm390, 0.0
        %392 = vst.msk [vmem:[%s389 + $0x27] sm:$0x1] %vm390, 0.0
        %393 = vst.msk [vmem:[%s389 + $0x47] sm:$0x1] %vm390, 0.0
        %394 = vst.msk [vmem:[%s389 + $0x67] sm:$0x1] %vm390, 0.0
        %395 = vst.msk [vmem:[%s389 + $0x87] sm:$0x1] %vm390, 0.0
        %396 = vst.msk [vmem:[%s389 + $0xa7] sm:$0x1] %vm390, 0.0
        %397 = vst.msk [vmem:[%s389 + $0xc7] sm:$0x1] %vm390, 0.0
        %398 = vst.msk [vmem:[%s389 + $0xe7] sm:$0x1] %vm390, 0.0
        %399 = vst.msk [vmem:[%s389 + $0x107] sm:$0x1] %vm390, 0.0
        %400 = vst.msk [vmem:[%s389 + $0x127] sm:$0x1] %vm390, 0.0
        %401 = vst.msk [vmem:[%s389 + $0x147] sm:$0x1] %vm390, 0.0
        %402 = vst.msk [vmem:[%s389 + $0x167] sm:$0x1] %vm390, 0.0
        %403 = vst.msk [vmem:[%s389 + $0x187] sm:$0x1] %vm390, 0.0
        %404 = vst.msk [vmem:[%s389 + $0x1a7] sm:$0x1] %vm390, 0.0
        %405 = vst.msk [vmem:[%s389 + $0x1c7] sm:$0x1] %vm390, 0.0
        %406 = vst.msk [vmem:[%s389 + $0x1e7] sm:$0x1] %vm390, 0.0
        %407 = vst.msk [vmem:[%s389 + $0x18] sm:$0x1] %vm390, 0.0
        %408 = vst.msk [vmem:[%s389 + $0x38] sm:$0x1] %vm390, 0.0
        %409 = vst.msk [vmem:[%s389 + $0x58] sm:$0x1] %vm390, 0.0
        %410 = vst.msk [vmem:[%s389 + $0x78] sm:$0x1] %vm390, 0.0
        %411 = vst.msk [vmem:[%s389 + $0x98] sm:$0x1] %vm390, 0.0
        %412 = vst.msk [vmem:[%s389 + $0xb8] sm:$0x1] %vm390, 0.0
        %413 = vst.msk [vmem:[%s389 + $0xd8] sm:$0x1] %vm390, 0.0
        %414 = vst.msk [vmem:[%s389 + $0xf8] sm:$0x1] %vm390, 0.0
        %415 = vst.msk [vmem:[%s389 + $0x118] sm:$0x1] %vm390, 0.0
        %416 = vst.msk [vmem:[%s389 + $0x138] sm:$0x1] %vm390, 0.0
        %417 = vst.msk [vmem:[%s389 + $0x158] sm:$0x1] %vm390, 0.0
        %418 = vst.msk [vmem:[%s389 + $0x178] sm:$0x1] %vm390, 0.0
        %419 = vst.msk [vmem:[%s389 + $0x198] sm:$0x1] %vm390, 0.0
        %420 = vst.msk [vmem:[%s389 + $0x1b8] sm:$0x1] %vm390, 0.0
        %421 = vst.msk [vmem:[%s389 + $0x1d8] sm:$0x1] %vm390, 0.0
        %422 = vst.msk [vmem:[%s389 + $0x1f8] sm:$0x1] %vm390, 0.0
        %vm423 = vcmask 523264
        %424 = vst.msk [vmem:[#allocation3] sm:$0xff] %vm423, 0.0
        %425 = vst.msk [vmem:[#allocation3 + $0x8] sm:$0xff] %vm423, 0.0
        %426 = vst.msk [vmem:[#allocation3 + $0x10] sm:$0xff] %vm423, 0.0
        %427 = vst.msk [vmem:[#allocation3 + $0x18] sm:$0xff] %vm423, 0.0
        %s428 = scalar_lea.vmem [#allocation3], 544
        %429 = vst.msk [vmem:[%s428] sm:$0xff] %vm423, 0.0
        %430 = vst.msk [vmem:[%s428 + $0x8] sm:$0xff] %vm423, 0.0
        %431 = vst.msk [vmem:[%s428 + $0x10] sm:$0xff] %vm423, 0.0
        %432 = vst.msk [vmem:[%s428 + $0x18] sm:$0xff] %vm423, 0.0
        %s433 = scalar_lea.vmem [#allocation3], 32
        %vm434 = vcmask 516096
        %435 = vst.msk [vmem:[%s433 + $0x7] sm:$0x1] %vm434, 0.0
        %436 = vst.msk [vmem:[%s433 + $0x27] sm:$0x1] %vm434, 0.0
        %437 = vst.msk [vmem:[%s433 + $0x47] sm:$0x1] %vm434, 0.0
        %438 = vst.msk [vmem:[%s433 + $0x67] sm:$0x1] %vm434, 0.0
        %439 = vst.msk [vmem:[%s433 + $0x87] sm:$0x1] %vm434, 0.0
        %440 = vst.msk [vmem:[%s433 + $0xa7] sm:$0x1] %vm434, 0.0
        %441 = vst.msk [vmem:[%s433 + $0xc7] sm:$0x1] %vm434, 0.0
        %442 = vst.msk [vmem:[%s433 + $0xe7] sm:$0x1] %vm434, 0.0
        %443 = vst.msk [vmem:[%s433 + $0x107] sm:$0x1] %vm434, 0.0
        %444 = vst.msk [vmem:[%s433 + $0x127] sm:$0x1] %vm434, 0.0
        %445 = vst.msk [vmem:[%s433 + $0x147] sm:$0x1] %vm434, 0.0
        %446 = vst.msk [vmem:[%s433 + $0x167] sm:$0x1] %vm434, 0.0
        %447 = vst.msk [vmem:[%s433 + $0x187] sm:$0x1] %vm434, 0.0
        %448 = vst.msk [vmem:[%s433 + $0x1a7] sm:$0x1] %vm434, 0.0
        %449 = vst.msk [vmem:[%s433 + $0x1c7] sm:$0x1] %vm434, 0.0
        %450 = vst.msk [vmem:[%s433 + $0x1e7] sm:$0x1] %vm434, 0.0
        %451 = vst.msk [vmem:[%s433 + $0x18] sm:$0x1] %vm434, 0.0
        %452 = vst.msk [vmem:[%s433 + $0x38] sm:$0x1] %vm434, 0.0
        %453 = vst.msk [vmem:[%s433 + $0x58] sm:$0x1] %vm434, 0.0
        %454 = vst.msk [vmem:[%s433 + $0x78] sm:$0x1] %vm434, 0.0
        %455 = vst.msk [vmem:[%s433 + $0x98] sm:$0x1] %vm434, 0.0
        %456 = vst.msk [vmem:[%s433 + $0xb8] sm:$0x1] %vm434, 0.0
        %457 = vst.msk [vmem:[%s433 + $0xd8] sm:$0x1] %vm434, 0.0
        %458 = vst.msk [vmem:[%s433 + $0xf8] sm:$0x1] %vm434, 0.0
        %459 = vst.msk [vmem:[%s433 + $0x118] sm:$0x1] %vm434, 0.0
        %460 = vst.msk [vmem:[%s433 + $0x138] sm:$0x1] %vm434, 0.0
        %461 = vst.msk [vmem:[%s433 + $0x158] sm:$0x1] %vm434, 0.0
        %462 = vst.msk [vmem:[%s433 + $0x178] sm:$0x1] %vm434, 0.0
        %463 = vst.msk [vmem:[%s433 + $0x198] sm:$0x1] %vm434, 0.0
        %464 = vst.msk [vmem:[%s433 + $0x1b8] sm:$0x1] %vm434, 0.0
        %465 = vst.msk [vmem:[%s433 + $0x1d8] sm:$0x1] %vm434, 0.0
        %466 = vst.msk [vmem:[%s433 + $0x1f8] sm:$0x1] %vm434, 0.0
        %467 = vst.msk [vmem:[#allocation4] sm:$0xff] %vm423, 0.0
        %468 = vst.msk [vmem:[#allocation4 + $0x8] sm:$0xff] %vm423, 0.0
        %469 = vst.msk [vmem:[#allocation4 + $0x10] sm:$0xff] %vm423, 0.0
        %470 = vst.msk [vmem:[#allocation4 + $0x18] sm:$0xff] %vm423, 0.0
        %s471 = scalar_lea.vmem [#allocation4], 544
        %472 = vst.msk [vmem:[%s471] sm:$0xff] %vm423, 0.0
        %473 = vst.msk [vmem:[%s471 + $0x8] sm:$0xff] %vm423, 0.0
        %474 = vst.msk [vmem:[%s471 + $0x10] sm:$0xff] %vm423, 0.0
        %475 = vst.msk [vmem:[%s471 + $0x18] sm:$0xff] %vm423, 0.0
        %s476 = scalar_lea.vmem [#allocation4], 32
        %477 = vst.msk [vmem:[%s476 + $0x7] sm:$0x1] %vm434, 0.0
        %478 = vst.msk [vmem:[%s476 + $0x27] sm:$0x1] %vm434, 0.0
        %479 = vst.msk [vmem:[%s476 + $0x47] sm:$0x1] %vm434, 0.0
        %480 = vst.msk [vmem:[%s476 + $0x67] sm:$0x1] %vm434, 0.0
        %481 = vst.msk [vmem:[%s476 + $0x87] sm:$0x1] %vm434, 0.0
        %482 = vst.msk [vmem:[%s476 + $0xa7] sm:$0x1] %vm434, 0.0
        %483 = vst.msk [vmem:[%s476 + $0xc7] sm:$0x1] %vm434, 0.0
        %484 = vst.msk [vmem:[%s476 + $0xe7] sm:$0x1] %vm434, 0.0
        %485 = vst.msk [vmem:[%s476 + $0x107] sm:$0x1] %vm434, 0.0
        %486 = vst.msk [vmem:[%s476 + $0x127] sm:$0x1] %vm434, 0.0
        %487 = vst.msk [vmem:[%s476 + $0x147] sm:$0x1] %vm434, 0.0
        %488 = vst.msk [vmem:[%s476 + $0x167] sm:$0x1] %vm434, 0.0
        %489 = vst.msk [vmem:[%s476 + $0x187] sm:$0x1] %vm434, 0.0
        %490 = vst.msk [vmem:[%s476 + $0x1a7] sm:$0x1] %vm434, 0.0
        %491 = vst.msk [vmem:[%s476 + $0x1c7] sm:$0x1] %vm434, 0.0
        %492 = vst.msk [vmem:[%s476 + $0x1e7] sm:$0x1] %vm434, 0.0
        %493 = vst.msk [vmem:[%s476 + $0x18] sm:$0x1] %vm434, 0.0
        %494 = vst.msk [vmem:[%s476 + $0x38] sm:$0x1] %vm434, 0.0
        %495 = vst.msk [vmem:[%s476 + $0x58] sm:$0x1] %vm434, 0.0
        %496 = vst.msk [vmem:[%s476 + $0x78] sm:$0x1] %vm434, 0.0
        %497 = vst.msk [vmem:[%s476 + $0x98] sm:$0x1] %vm434, 0.0
        %498 = vst.msk [vmem:[%s476 + $0xb8] sm:$0x1] %vm434, 0.0
        %499 = vst.msk [vmem:[%s476 + $0xd8] sm:$0x1] %vm434, 0.0
        %500 = vst.msk [vmem:[%s476 + $0xf8] sm:$0x1] %vm434, 0.0
        %501 = vst.msk [vmem:[%s476 + $0x118] sm:$0x1] %vm434, 0.0
        %502 = vst.msk [vmem:[%s476 + $0x138] sm:$0x1] %vm434, 0.0
        %503 = vst.msk [vmem:[%s476 + $0x158] sm:$0x1] %vm434, 0.0
        %504 = vst.msk [vmem:[%s476 + $0x178] sm:$0x1] %vm434, 0.0
        %505 = vst.msk [vmem:[%s476 + $0x198] sm:$0x1] %vm434, 0.0
        %506 = vst.msk [vmem:[%s476 + $0x1b8] sm:$0x1] %vm434, 0.0
        %507 = vst.msk [vmem:[%s476 + $0x1d8] sm:$0x1] %vm434, 0.0
        %508 = vst.msk [vmem:[%s476 + $0x1f8] sm:$0x1] %vm434, 0.0
        %v509 = vld [vmem:[%s323] sm:$0xff]
        %v510 = vld [vmem:[%s323 + $0x8] sm:$0xff]
        %v511 = vld [vmem:[%s323 + $0x10] sm:$0xff]
        %v512 = vld [vmem:[%s323 + $0x18] sm:$0xff]
        %v513 = vld [vmem:[%s323 + $0x20] sm:$0xff]
        %v514 = vld [vmem:[%s323 + $0x28] sm:$0xff]
        %v515 = vld [vmem:[%s323 + $0x30] sm:$0xff]
        %v516 = vld [vmem:[%s323 + $0x38] sm:$0xff]
        %v517 = vld [vmem:[%s323 + $0x40] sm:$0xff]
        %v518 = vld [vmem:[%s323 + $0x48] sm:$0xff]
        %v519 = vld [vmem:[%s323 + $0x50] sm:$0xff]
        %v520 = vld [vmem:[%s323 + $0x58] sm:$0xff]
        %v521 = vld [vmem:[%s323 + $0x60] sm:$0xff]
        %v522 = vld [vmem:[%s323 + $0x68] sm:$0xff]
        %v523 = vld [vmem:[%s323 + $0x70] sm:$0xff]
        %v524 = vld [vmem:[%s323 + $0x78] sm:$0xff]
        %v525 = vld [vmem:[%s323 + $0x80] sm:$0xff]
        %v526 = vld [vmem:[%s323 + $0x88] sm:$0xff]
        %v527 = vld [vmem:[%s323 + $0x90] sm:$0xff]
        %v528 = vld [vmem:[%s323 + $0x98] sm:$0xff]
        %v529 = vld [vmem:[%s323 + $0xa0] sm:$0xff]
        %v530 = vld [vmem:[%s323 + $0xa8] sm:$0xff]
        %v531 = vld [vmem:[%s323 + $0xb0] sm:$0xff]
        %v532 = vld [vmem:[%s323 + $0xb8] sm:$0xff]
        %v533 = vld [vmem:[%s323 + $0xc0] sm:$0xff]
        %v534 = vld [vmem:[%s323 + $0xc8] sm:$0xff]
        %v535 = vld [vmem:[%s323 + $0xd0] sm:$0xff]
        %v536 = vld [vmem:[%s323 + $0xd8] sm:$0xff]
        %v537 = vld [vmem:[%s323 + $0xe0] sm:$0xff]
        %v538 = vld [vmem:[%s323 + $0xe8] sm:$0xff]
        %v539 = vld [vmem:[%s323 + $0xf0] sm:$0xff]
        %v540 = vld [vmem:[%s323 + $0xf8] sm:$0xff]
        %541 = vst.msk [vmem:[%s389 + $0x8] sm:$0xff] %vm379, %v509
        %542 = vst.msk [vmem:[%s389 + $0x10] sm:$0xff] %vm379, %v510
        %543 = vst.msk [vmem:[%s389 + $0x28] sm:$0xff] %vm379, %v511
        %544 = vst.msk [vmem:[%s389 + $0x30] sm:$0xff] %vm379, %v512
        %545 = vst.msk [vmem:[%s389 + $0x48] sm:$0xff] %vm379, %v513
        %546 = vst.msk [vmem:[%s389 + $0x50] sm:$0xff] %vm379, %v514
        %547 = vst.msk [vmem:[%s389 + $0x68] sm:$0xff] %vm379, %v515
        %548 = vst.msk [vmem:[%s389 + $0x70] sm:$0xff] %vm379, %v516
        %549 = vst.msk [vmem:[%s389 + $0x88] sm:$0xff] %vm379, %v517
        %550 = vst.msk [vmem:[%s389 + $0x90] sm:$0xff] %vm379, %v518
        %551 = vst.msk [vmem:[%s389 + $0xa8] sm:$0xff] %vm379, %v519
        %552 = vst.msk [vmem:[%s389 + $0xb0] sm:$0xff] %vm379, %v520
        %553 = vst.msk [vmem:[%s389 + $0xc8] sm:$0xff] %vm379, %v521
        %554 = vst.msk [vmem:[%s389 + $0xd0] sm:$0xff] %vm379, %v522
        %555 = vst.msk [vmem:[%s389 + $0xe8] sm:$0xff] %vm379, %v523
        %556 = vst.msk [vmem:[%s389 + $0xf0] sm:$0xff] %vm379, %v524
        %557 = vst.msk [vmem:[%s389 + $0x108] sm:$0xff] %vm379, %v525
        %558 = vst.msk [vmem:[%s389 + $0x110] sm:$0xff] %vm379, %v526
        %559 = vst.msk [vmem:[%s389 + $0x128] sm:$0xff] %vm379, %v527
        %560 = vst.msk [vmem:[%s389 + $0x130] sm:$0xff] %vm379, %v528
        %561 = vst.msk [vmem:[%s389 + $0x148] sm:$0xff] %vm379, %v529
        %562 = vst.msk [vmem:[%s389 + $0x150] sm:$0xff] %vm379, %v530
        %563 = vst.msk [vmem:[%s389 + $0x168] sm:$0xff] %vm379, %v531
        %564 = vst.msk [vmem:[%s389 + $0x170] sm:$0xff] %vm379, %v532
        %565 = vst.msk [vmem:[%s389 + $0x188] sm:$0xff] %vm379, %v533
        %566 = vst.msk [vmem:[%s389 + $0x190] sm:$0xff] %vm379, %v534
        %567 = vst.msk [vmem:[%s389 + $0x1a8] sm:$0xff] %vm379, %v535
        %568 = vst.msk [vmem:[%s389 + $0x1b0] sm:$0xff] %vm379, %v536
        %569 = vst.msk [vmem:[%s389 + $0x1c8] sm:$0xff] %vm379, %v537
        %570 = vst.msk [vmem:[%s389 + $0x1d0] sm:$0xff] %vm379, %v538
        %571 = vst.msk [vmem:[%s389 + $0x1e8] sm:$0xff] %vm379, %v539
        %572 = vst.msk [vmem:[%s389 + $0x1f0] sm:$0xff] %vm379, %v540
        %v573 = vld [vmem:[#allocation2 + $0x7] sm:$0xff]
        %v574 = vld [vmem:[#allocation2 + $0xf] sm:$0xff]
        %v575 = vld [vmem:[#allocation2 + $0x27] sm:$0xff]
        %v576 = vld [vmem:[#allocation2 + $0x2f] sm:$0xff]
        %v577 = vld [vmem:[#allocation2 + $0x47] sm:$0xff]
        %v578 = vld [vmem:[#allocation2 + $0x4f] sm:$0xff]
        %v579 = vld [vmem:[#allocation2 + $0x67] sm:$0xff]
        %v580 = vld [vmem:[#allocation2 + $0x6f] sm:$0xff]
        %v581 = vld [vmem:[#allocation2 + $0x87] sm:$0xff]
        %v582 = vld [vmem:[#allocation2 + $0x8f] sm:$0xff]
        %v583 = vld [vmem:[#allocation2 + $0xa7] sm:$0xff]
        %v584 = vld [vmem:[#allocation2 + $0xaf] sm:$0xff]
        %v585 = vld [vmem:[#allocation2 + $0xc7] sm:$0xff]
        %v586 = vld [vmem:[#allocation2 + $0xcf] sm:$0xff]
        %v587 = vld [vmem:[#allocation2 + $0xe7] sm:$0xff]
        %v588 = vld [vmem:[#allocation2 + $0xef] sm:$0xff]
        %v589 = vld [vmem:[#allocation2 + $0x107] sm:$0xff]
        %v590 = vld [vmem:[#allocation2 + $0x10f] sm:$0xff]
        %v591 = vld [vmem:[#allocation2 + $0x127] sm:$0xff]
        %v592 = vld [vmem:[#allocation2 + $0x12f] sm:$0xff]
        %v593 = vld [vmem:[#allocation2 + $0x147] sm:$0xff]
        %v594 = vld [vmem:[#allocation2 + $0x14f] sm:$0xff]
        %v595 = vld [vmem:[#allocation2 + $0x167] sm:$0xff]
        %v596 = vld [vmem:[#allocation2 + $0x16f] sm:$0xff]
        %v597 = vld [vmem:[#allocation2 + $0x187] sm:$0xff]
        %v598 = vld [vmem:[#allocation2 + $0x18f] sm:$0xff]
        %v599 = vld [vmem:[#allocation2 + $0x1a7] sm:$0xff]
        %v600 = vld [vmem:[#allocation2 + $0x1af] sm:$0xff]
        %v601 = vld [vmem:[#allocation2 + $0x1c7] sm:$0xff]
        %v602 = vld [vmem:[#allocation2 + $0x1cf] sm:$0xff]
        %v603 = vld [vmem:[#allocation2 + $0x1e7] sm:$0xff]
        %v604 = vld [vmem:[#allocation2 + $0x1ef] sm:$0xff]
        %v605 = vpack.c.bf16 %v574, %v573
        %v606 = vpack.c.bf16 %v576, %v575
        %v607 = vpack.c.bf16 %v578, %v577
        %v608 = vpack.c.bf16 %v580, %v579
        %v609 = vpack.c.bf16 %v582, %v581
        %v610 = vpack.c.bf16 %v584, %v583
        %v611 = vpack.c.bf16 %v586, %v585
        %v612 = vpack.c.bf16 %v588, %v587
        %v613 = vpack.c.bf16 %v590, %v589
        %v614 = vpack.c.bf16 %v592, %v591
        %v615 = vpack.c.bf16 %v594, %v593
        %v616 = vpack.c.bf16 %v596, %v595
        %v617 = vpack.c.bf16 %v598, %v597
        %v618 = vpack.c.bf16 %v600, %v599
        %v619 = vpack.c.bf16 %v602, %v601
        %v620 = vpack.c.bf16 %v604, %v603
        %621 = vst.msk [vmem:[#allocation5] sm:$0xff] %vm379, %v605
        %622 = vst.msk [vmem:[#allocation5 + $0x8] sm:$0xff] %vm379, %v606
        %623 = vst.msk [vmem:[#allocation5 + $0x10] sm:$0xff] %vm379, %v607
        %624 = vst.msk [vmem:[#allocation5 + $0x18] sm:$0xff] %vm379, %v608
        %625 = vst.msk [vmem:[#allocation5 + $0x20] sm:$0xff] %vm379, %v609
        %626 = vst.msk [vmem:[#allocation5 + $0x28] sm:$0xff] %vm379, %v610
        %627 = vst.msk [vmem:[#allocation5 + $0x30] sm:$0xff] %vm379, %v611
        %628 = vst.msk [vmem:[#allocation5 + $0x38] sm:$0xff] %vm379, %v612
        %629 = vst.msk [vmem:[#allocation5 + $0x40] sm:$0xff] %vm379, %v613
        %630 = vst.msk [vmem:[#allocation5 + $0x48] sm:$0xff] %vm379, %v614
        %631 = vst.msk [vmem:[#allocation5 + $0x50] sm:$0xff] %vm379, %v615
        %632 = vst.msk [vmem:[#allocation5 + $0x58] sm:$0xff] %vm379, %v616
        %633 = vst.msk [vmem:[#allocation5 + $0x60] sm:$0xff] %vm379, %v617
        %634 = vst.msk [vmem:[#allocation5 + $0x68] sm:$0xff] %vm379, %v618
        %635 = vst.msk [vmem:[#allocation5 + $0x70] sm:$0xff] %vm379, %v619
        %636 = vst.msk [vmem:[#allocation5 + $0x78] sm:$0xff] %vm379, %v620
        %v637 = vld [vmem:[#allocation2 + $0x8] sm:$0xff]
        %v638 = vld [vmem:[#allocation2 + $0x10] sm:$0xff]
        %v639 = vld [vmem:[#allocation2 + $0x28] sm:$0xff]
        %v640 = vld [vmem:[#allocation2 + $0x30] sm:$0xff]
        %v641 = vld [vmem:[#allocation2 + $0x48] sm:$0xff]
        %v642 = vld [vmem:[#allocation2 + $0x50] sm:$0xff]
        %v643 = vld [vmem:[#allocation2 + $0x68] sm:$0xff]
        %v644 = vld [vmem:[#allocation2 + $0x70] sm:$0xff]
        %v645 = vld [vmem:[#allocation2 + $0x88] sm:$0xff]
        %v646 = vld [vmem:[#allocation2 + $0x90] sm:$0xff]
        %v647 = vld [vmem:[#allocation2 + $0xa8] sm:$0xff]
        %v648 = vld [vmem:[#allocation2 + $0xb0] sm:$0xff]
        %v649 = vld [vmem:[#allocation2 + $0xc8] sm:$0xff]
        %v650 = vld [vmem:[#allocation2 + $0xd0] sm:$0xff]
        %v651 = vld [vmem:[#allocation2 + $0xe8] sm:$0xff]
        %v652 = vld [vmem:[#allocation2 + $0xf0] sm:$0xff]
        %v653 = vld [vmem:[#allocation2 + $0x108] sm:$0xff]
        %v654 = vld [vmem:[#allocation2 + $0x110] sm:$0xff]
        %v655 = vld [vmem:[#allocation2 + $0x128] sm:$0xff]
        %v656 = vld [vmem:[#allocation2 + $0x130] sm:$0xff]
        %v657 = vld [vmem:[#allocation2 + $0x148] sm:$0xff]
        %v658 = vld [vmem:[#allocation2 + $0x150] sm:$0xff]
        %v659 = vld [vmem:[#allocation2 + $0x168] sm:$0xff]
        %v660 = vld [vmem:[#allocation2 + $0x170] sm:$0xff]
        %v661 = vld [vmem:[#allocation2 + $0x188] sm:$0xff]
        %v662 = vld [vmem:[#allocation2 + $0x190] sm:$0xff]
        %v663 = vld [vmem:[#allocation2 + $0x1a8] sm:$0xff]
        %v664 = vld [vmem:[#allocation2 + $0x1b0] sm:$0xff]
        %v665 = vld [vmem:[#allocation2 + $0x1c8] sm:$0xff]
        %v666 = vld [vmem:[#allocation2 + $0x1d0] sm:$0xff]
        %v667 = vld [vmem:[#allocation2 + $0x1e8] sm:$0xff]
        %v668 = vld [vmem:[#allocation2 + $0x1f0] sm:$0xff]
        %v669 = vpack.c.bf16 %v638, %v637
        %v670 = vpack.c.bf16 %v640, %v639
        %v671 = vpack.c.bf16 %v642, %v641
        %v672 = vpack.c.bf16 %v644, %v643
        %v673 = vpack.c.bf16 %v646, %v645
        %v674 = vpack.c.bf16 %v648, %v647
        %v675 = vpack.c.bf16 %v650, %v649
        %v676 = vpack.c.bf16 %v652, %v651
        %v677 = vpack.c.bf16 %v654, %v653
        %v678 = vpack.c.bf16 %v656, %v655
        %v679 = vpack.c.bf16 %v658, %v657
        %v680 = vpack.c.bf16 %v660, %v659
        %v681 = vpack.c.bf16 %v662, %v661
        %v682 = vpack.c.bf16 %v664, %v663
        %v683 = vpack.c.bf16 %v666, %v665
        %v684 = vpack.c.bf16 %v668, %v667
        %701 = vrot.lane.b32.xlu0 %v669, 3
        %v702 = vpop.permute.xlu0 %701
        %703 = vrot.lane.b32.xlu0 %v670, 3
        %v704 = vpop.permute.xlu0 %703
        %705 = vrot.lane.b32.xlu0 %v671, 3
        %v706 = vpop.permute.xlu0 %705
        %707 = vrot.lane.b32.xlu0 %v672, 3
        %v708 = vpop.permute.xlu0 %707
        %709 = vrot.lane.b32.xlu0 %v673, 3
        %v710 = vpop.permute.xlu0 %709
        %711 = vrot.lane.b32.xlu0 %v674, 3
        %v712 = vpop.permute.xlu0 %711
        %713 = vrot.lane.b32.xlu0 %v675, 3
        %v714 = vpop.permute.xlu0 %713
        %715 = vrot.lane.b32.xlu0 %v676, 3
        %v716 = vpop.permute.xlu0 %715
        %717 = vrot.lane.b32.xlu0 %v677, 3
        %v718 = vpop.permute.xlu0 %717
        %719 = vrot.lane.b32.xlu0 %v678, 3
        %v720 = vpop.permute.xlu0 %719
        %721 = vrot.lane.b32.xlu0 %v679, 3
        %v722 = vpop.permute.xlu0 %721
        %723 = vrot.lane.b32.xlu0 %v680, 3
        %v724 = vpop.permute.xlu0 %723
        %725 = vrot.lane.b32.xlu0 %v681, 3
        %v726 = vpop.permute.xlu0 %725
        %727 = vrot.lane.b32.xlu0 %v682, 3
        %v728 = vpop.permute.xlu0 %727
        %729 = vrot.lane.b32.xlu0 %v683, 3
        %v730 = vpop.permute.xlu0 %729
        %731 = vrot.lane.b32.xlu0 %v684, 3
        %v732 = vpop.permute.xlu0 %731
        %vm749 = vcmask 48152
        %750 = vst.msk [vmem:[#allocation5] sm:$0xff] %vm749, %v702
        %751 = vst.msk [vmem:[#allocation5 + $0x8] sm:$0xff] %vm749, %v704
        %752 = vst.msk [vmem:[#allocation5 + $0x10] sm:$0xff] %vm749, %v706
        %753 = vst.msk [vmem:[#allocation5 + $0x18] sm:$0xff] %vm749, %v708
        %754 = vst.msk [vmem:[#allocation5 + $0x20] sm:$0xff] %vm749, %v710
        %755 = vst.msk [vmem:[#allocation5 + $0x28] sm:$0xff] %vm749, %v712
        %756 = vst.msk [vmem:[#allocation5 + $0x30] sm:$0xff] %vm749, %v714
        %757 = vst.msk [vmem:[#allocation5 + $0x38] sm:$0xff] %vm749, %v716
        %758 = vst.msk [vmem:[#allocation5 + $0x40] sm:$0xff] %vm749, %v718
        %759 = vst.msk [vmem:[#allocation5 + $0x48] sm:$0xff] %vm749, %v720
        %760 = vst.msk [vmem:[#allocation5 + $0x50] sm:$0xff] %vm749, %v722
        %761 = vst.msk [vmem:[#allocation5 + $0x58] sm:$0xff] %vm749, %v724
        %762 = vst.msk [vmem:[#allocation5 + $0x60] sm:$0xff] %vm749, %v726
        %763 = vst.msk [vmem:[#allocation5 + $0x68] sm:$0xff] %vm749, %v728
        %764 = vst.msk [vmem:[#allocation5 + $0x70] sm:$0xff] %vm749, %v730
        %765 = vst.msk [vmem:[#allocation5 + $0x78] sm:$0xff] %vm749, %v732
        %v766 = vld [vmem:[#allocation2 + $0x9] sm:$0xff]
        %v767 = vld [vmem:[#allocation2 + $0x11] sm:$0xff]
        %v768 = vld [vmem:[#allocation2 + $0x29] sm:$0xff]
        %v769 = vld [vmem:[#allocation2 + $0x31] sm:$0xff]
        %v770 = vld [vmem:[#allocation2 + $0x49] sm:$0xff]
        %v771 = vld [vmem:[#allocation2 + $0x51] sm:$0xff]
        %v772 = vld [vmem:[#allocation2 + $0x69] sm:$0xff]
        %v773 = vld [vmem:[#allocation2 + $0x71] sm:$0xff]
        %v774 = vld [vmem:[#allocation2 + $0x89] sm:$0xff]
        %v775 = vld [vmem:[#allocation2 + $0x91] sm:$0xff]
        %v776 = vld [vmem:[#allocation2 + $0xa9] sm:$0xff]
        %v777 = vld [vmem:[#allocation2 + $0xb1] sm:$0xff]
        %v778 = vld [vmem:[#allocation2 + $0xc9] sm:$0xff]
        %v779 = vld [vmem:[#allocation2 + $0xd1] sm:$0xff]
        %v780 = vld [vmem:[#allocation2 + $0xe9] sm:$0xff]
        %v781 = vld [vmem:[#allocation2 + $0xf1] sm:$0xff]
        %v782 = vld [vmem:[#allocation2 + $0x109] sm:$0xff]
        %v783 = vld [vmem:[#allocation2 + $0x111] sm:$0xff]
        %v784 = vld [vmem:[#allocation2 + $0x129] sm:$0xff]
        %v785 = vld [vmem:[#allocation2 + $0x131] sm:$0xff]
        %v786 = vld [vmem:[#allocation2 + $0x149] sm:$0xff]
        %v787 = vld [vmem:[#allocation2 + $0x151] sm:$0xff]
        %v788 = vld [vmem:[#allocation2 + $0x169] sm:$0xff]
        %v789 = vld [vmem:[#allocation2 + $0x171] sm:$0xff]
        %v790 = vld [vmem:[#allocation2 + $0x189] sm:$0xff]
        %v791 = vld [vmem:[#allocation2 + $0x191] sm:$0xff]
        %v792 = vld [vmem:[#allocation2 + $0x1a9] sm:$0xff]
        %v793 = vld [vmem:[#allocation2 + $0x1b1] sm:$0xff]
        %v794 = vld [vmem:[#allocation2 + $0x1c9] sm:$0xff]
        %v795 = vld [vmem:[#allocation2 + $0x1d1] sm:$0xff]
        %v796 = vld [vmem:[#allocation2 + $0x1e9] sm:$0xff]
        %v797 = vld [vmem:[#allocation2 + $0x1f1] sm:$0xff]
        %v798 = vpack.c.bf16 %v767, %v766
        %v799 = vpack.c.bf16 %v769, %v768
        %v800 = vpack.c.bf16 %v771, %v770
        %v801 = vpack.c.bf16 %v773, %v772
        %v802 = vpack.c.bf16 %v775, %v774
        %v803 = vpack.c.bf16 %v777, %v776
        %v804 = vpack.c.bf16 %v779, %v778
        %v805 = vpack.c.bf16 %v781, %v780
        %v806 = vpack.c.bf16 %v783, %v782
        %v807 = vpack.c.bf16 %v785, %v784
        %v808 = vpack.c.bf16 %v787, %v786
        %v809 = vpack.c.bf16 %v789, %v788
        %v810 = vpack.c.bf16 %v791, %v790
        %v811 = vpack.c.bf16 %v793, %v792
        %v812 = vpack.c.bf16 %v795, %v794
        %v813 = vpack.c.bf16 %v797, %v796
        %830 = vrot.lane.b32.xlu0 %v798, 6
        %v831 = vpop.permute.xlu0 %830
        %832 = vrot.lane.b32.xlu0 %v799, 6
        %v833 = vpop.permute.xlu0 %832
        %834 = vrot.lane.b32.xlu0 %v800, 6
        %v835 = vpop.permute.xlu0 %834
        %836 = vrot.lane.b32.xlu0 %v801, 6
        %v837 = vpop.permute.xlu0 %836
        %838 = vrot.lane.b32.xlu0 %v802, 6
        %v839 = vpop.permute.xlu0 %838
        %840 = vrot.lane.b32.xlu0 %v803, 6
        %v841 = vpop.permute.xlu0 %840
        %842 = vrot.lane.b32.xlu0 %v804, 6
        %v843 = vpop.permute.xlu0 %842
        %844 = vrot.lane.b32.xlu0 %v805, 6
        %v845 = vpop.permute.xlu0 %844
        %846 = vrot.lane.b32.xlu0 %v806, 6
        %v847 = vpop.permute.xlu0 %846
        %848 = vrot.lane.b32.xlu0 %v807, 6
        %v849 = vpop.permute.xlu0 %848
        %850 = vrot.lane.b32.xlu0 %v808, 6
        %v851 = vpop.permute.xlu0 %850
        %852 = vrot.lane.b32.xlu0 %v809, 6
        %v853 = vpop.permute.xlu0 %852
        %854 = vrot.lane.b32.xlu0 %v810, 6
        %v855 = vpop.permute.xlu0 %854
        %856 = vrot.lane.b32.xlu0 %v811, 6
        %v857 = vpop.permute.xlu0 %856
        %858 = vrot.lane.b32.xlu0 %v812, 6
        %v859 = vpop.permute.xlu0 %858
        %860 = vrot.lane.b32.xlu0 %v813, 6
        %v861 = vpop.permute.xlu0 %860
        %vm878 = vcmask 72752
        %879 = vst.msk [vmem:[#allocation5] sm:$0xff] %vm878, %v831
        %880 = vst.msk [vmem:[#allocation5 + $0x8] sm:$0xff] %vm878, %v833
        %881 = vst.msk [vmem:[#allocation5 + $0x10] sm:$0xff] %vm878, %v835
        %882 = vst.msk [vmem:[#allocation5 + $0x18] sm:$0xff] %vm878, %v837
        %883 = vst.msk [vmem:[#allocation5 + $0x20] sm:$0xff] %vm878, %v839
        %884 = vst.msk [vmem:[#allocation5 + $0x28] sm:$0xff] %vm878, %v841
        %885 = vst.msk [vmem:[#allocation5 + $0x30] sm:$0xff] %vm878, %v843
        %886 = vst.msk [vmem:[#allocation5 + $0x38] sm:$0xff] %vm878, %v845
        %887 = vst.msk [vmem:[#allocation5 + $0x40] sm:$0xff] %vm878, %v847
        %888 = vst.msk [vmem:[#allocation5 + $0x48] sm:$0xff] %vm878, %v849
        %889 = vst.msk [vmem:[#allocation5 + $0x50] sm:$0xff] %vm878, %v851
        %890 = vst.msk [vmem:[#allocation5 + $0x58] sm:$0xff] %vm878, %v853
        %891 = vst.msk [vmem:[#allocation5 + $0x60] sm:$0xff] %vm878, %v855
        %892 = vst.msk [vmem:[#allocation5 + $0x68] sm:$0xff] %vm878, %v857
        %893 = vst.msk [vmem:[#allocation5 + $0x70] sm:$0xff] %vm878, %v859
        %894 = vst.msk [vmem:[#allocation5 + $0x78] sm:$0xff] %vm878, %v861
        %v895 = vld [vmem:[%s389 + $0x7] sm:$0xff]
        %v896 = vld [vmem:[%s389 + $0xf] sm:$0xff]
        %v897 = vld [vmem:[%s389 + $0x27] sm:$0xff]
        %v898 = vld [vmem:[%s389 + $0x2f] sm:$0xff]
        %v899 = vld [vmem:[%s389 + $0x47] sm:$0xff]
        %v900 = vld [vmem:[%s389 + $0x4f] sm:$0xff]
        %v901 = vld [vmem:[%s389 + $0x67] sm:$0xff]
        %v902 = vld [vmem:[%s389 + $0x6f] sm:$0xff]
        %v903 = vld [vmem:[%s389 + $0x87] sm:$0xff]
        %v904 = vld [vmem:[%s389 + $0x8f] sm:$0xff]
        %v905 = vld [vmem:[%s389 + $0xa7] sm:$0xff]
        %v906 = vld [vmem:[%s389 + $0xaf] sm:$0xff]
        %v907 = vld [vmem:[%s389 + $0xc7] sm:$0xff]
        %v908 = vld [vmem:[%s389 + $0xcf] sm:$0xff]
        %v909 = vld [vmem:[%s389 + $0xe7] sm:$0xff]
        %v910 = vld [vmem:[%s389 + $0xef] sm:$0xff]
        %v911 = vld [vmem:[%s389 + $0x107] sm:$0xff]
        %v912 = vld [vmem:[%s389 + $0x10f] sm:$0xff]
        %v913 = vld [vmem:[%s389 + $0x127] sm:$0xff]
        %v914 = vld [vmem:[%s389 + $0x12f] sm:$0xff]
        %v915 = vld [vmem:[%s389 + $0x147] sm:$0xff]
        %v916 = vld [vmem:[%s389 + $0x14f] sm:$0xff]
        %v917 = vld [vmem:[%s389 + $0x167] sm:$0xff]
        %v918 = vld [vmem:[%s389 + $0x16f] sm:$0xff]
        %v919 = vld [vmem:[%s389 + $0x187] sm:$0xff]
        %v920 = vld [vmem:[%s389 + $0x18f] sm:$0xff]
        %v921 = vld [vmem:[%s389 + $0x1a7] sm:$0xff]
        %v922 = vld [vmem:[%s389 + $0x1af] sm:$0xff]
        %v923 = vld [vmem:[%s389 + $0x1c7] sm:$0xff]
        %v924 = vld [vmem:[%s389 + $0x1cf] sm:$0xff]
        %v925 = vld [vmem:[%s389 + $0x1e7] sm:$0xff]
        %v926 = vld [vmem:[%s389 + $0x1ef] sm:$0xff]
        %v927 = vpack.c.bf16 %v896, %v895
        %v928 = vpack.c.bf16 %v898, %v897
        %v929 = vpack.c.bf16 %v900, %v899
        %v930 = vpack.c.bf16 %v902, %v901
        %v931 = vpack.c.bf16 %v904, %v903
        %v932 = vpack.c.bf16 %v906, %v905
        %v933 = vpack.c.bf16 %v908, %v907
        %v934 = vpack.c.bf16 %v910, %v909
        %v935 = vpack.c.bf16 %v912, %v911
        %v936 = vpack.c.bf16 %v914, %v913
        %v937 = vpack.c.bf16 %v916, %v915
        %v938 = vpack.c.bf16 %v918, %v917
        %v939 = vpack.c.bf16 %v920, %v919
        %v940 = vpack.c.bf16 %v922, %v921
        %v941 = vpack.c.bf16 %v924, %v923
        %v942 = vpack.c.bf16 %v926, %v925
        %959 = vrot.lane.b32.xlu0 %v927, 9
        %v960 = vpop.permute.xlu0 %959
        %961 = vrot.lane.b32.xlu0 %v928, 9
        %v962 = vpop.permute.xlu0 %961
        %963 = vrot.lane.b32.xlu0 %v929, 9
        %v964 = vpop.permute.xlu0 %963
        %965 = vrot.lane.b32.xlu0 %v930, 9
        %v966 = vpop.permute.xlu0 %965
        %967 = vrot.lane.b32.xlu0 %v931, 9
        %v968 = vpop.permute.xlu0 %967
        %969 = vrot.lane.b32.xlu0 %v932, 9
        %v970 = vpop.permute.xlu0 %969
        %971 = vrot.lane.b32.xlu0 %v933, 9
        %v972 = vpop.permute.xlu0 %971
        %973 = vrot.lane.b32.xlu0 %v934, 9
        %v974 = vpop.permute.xlu0 %973
        %975 = vrot.lane.b32.xlu0 %v935, 9
        %v976 = vpop.permute.xlu0 %975
        %977 = vrot.lane.b32.xlu0 %v936, 9
        %v978 = vpop.permute.xlu0 %977
        %979 = vrot.lane.b32.xlu0 %v937, 9
        %v980 = vpop.permute.xlu0 %979
        %981 = vrot.lane.b32.xlu0 %v938, 9
        %v982 = vpop.permute.xlu0 %981
        %983 = vrot.lane.b32.xlu0 %v939, 9
        %v984 = vpop.permute.xlu0 %983
        %985 = vrot.lane.b32.xlu0 %v940, 9
        %v986 = vpop.permute.xlu0 %985
        %987 = vrot.lane.b32.xlu0 %v941, 9
        %v988 = vpop.permute.xlu0 %987
        %989 = vrot.lane.b32.xlu0 %v942, 9
        %v990 = vpop.permute.xlu0 %989
        %vm1007 = vcmask 97352
        %1008 = vst.msk [vmem:[#allocation5] sm:$0xff] %vm1007, %v960
        %1009 = vst.msk [vmem:[#allocation5 + $0x8] sm:$0xff] %vm1007, %v962
        %1010 = vst.msk [vmem:[#allocation5 + $0x10] sm:$0xff] %vm1007, %v964
        %1011 = vst.msk [vmem:[#allocation5 + $0x18] sm:$0xff] %vm1007, %v966
        %1012 = vst.msk [vmem:[#allocation5 + $0x20] sm:$0xff] %vm1007, %v968
        %1013 = vst.msk [vmem:[#allocation5 + $0x28] sm:$0xff] %vm1007, %v970
        %1014 = vst.msk [vmem:[#allocation5 + $0x30] sm:$0xff] %vm1007, %v972
        %1015 = vst.msk [vmem:[#allocation5 + $0x38] sm:$0xff] %vm1007, %v974
        %1016 = vst.msk [vmem:[#allocation5 + $0x40] sm:$0xff] %vm1007, %v976
        %1017 = vst.msk [vmem:[#allocation5 + $0x48] sm:$0xff] %vm1007, %v978
        %1018 = vst.msk [vmem:[#allocation5 + $0x50] sm:$0xff] %vm1007, %v980
        %1019 = vst.msk [vmem:[#allocation5 + $0x58] sm:$0xff] %vm1007, %v982
        %1020 = vst.msk [vmem:[#allocation5 + $0x60] sm:$0xff] %vm1007, %v984
        %1021 = vst.msk [vmem:[#allocation5 + $0x68] sm:$0xff] %vm1007, %v986
        %1022 = vst.msk [vmem:[#allocation5 + $0x70] sm:$0xff] %vm1007, %v988
        %1023 = vst.msk [vmem:[#allocation5 + $0x78] sm:$0xff] %vm1007, %v990
        %v1024 = vld [vmem:[%s389 + $0x8] sm:$0xff]
        %v1025 = vld [vmem:[%s389 + $0x10] sm:$0xff]
        %v1026 = vld [vmem:[%s389 + $0x28] sm:$0xff]
        %v1027 = vld [vmem:[%s389 + $0x30] sm:$0xff]
        %v1028 = vld [vmem:[%s389 + $0x48] sm:$0xff]
        %v1029 = vld [vmem:[%s389 + $0x50] sm:$0xff]
        %v1030 = vld [vmem:[%s389 + $0x68] sm:$0xff]
        %v1031 = vld [vmem:[%s389 + $0x70] sm:$0xff]
        %v1032 = vld [vmem:[%s389 + $0x88] sm:$0xff]
        %v1033 = vld [vmem:[%s389 + $0x90] sm:$0xff]
        %v1034 = vld [vmem:[%s389 + $0xa8] sm:$0xff]
        %v1035 = vld [vmem:[%s389 + $0xb0] sm:$0xff]
        %v1036 = vld [vmem:[%s389 + $0xc8] sm:$0xff]
        %v1037 = vld [vmem:[%s389 + $0xd0] sm:$0xff]
        %v1038 = vld [vmem:[%s389 + $0xe8] sm:$0xff]
        %v1039 = vld [vmem:[%s389 + $0xf0] sm:$0xff]
        %v1040 = vld [vmem:[%s389 + $0x108] sm:$0xff]
        %v1041 = vld [vmem:[%s389 + $0x110] sm:$0xff]
        %v1042 = vld [vmem:[%s389 + $0x128] sm:$0xff]
        %v1043 = vld [vmem:[%s389 + $0x130] sm:$0xff]
        %v1044 = vld [vmem:[%s389 + $0x148] sm:$0xff]
        %v1045 = vld [vmem:[%s389 + $0x150] sm:$0xff]
        %v1046 = vld [vmem:[%s389 + $0x168] sm:$0xff]
        %v1047 = vld [vmem:[%s389 + $0x170] sm:$0xff]
        %v1048 = vld [vmem:[%s389 + $0x188] sm:$0xff]
        %v1049 = vld [vmem:[%s389 + $0x190] sm:$0xff]
        %v1050 = vld [vmem:[%s389 + $0x1a8] sm:$0xff]
        %v1051 = vld [vmem:[%s389 + $0x1b0] sm:$0xff]
        %v1052 = vld [vmem:[%s389 + $0x1c8] sm:$0xff]
        %v1053 = vld [vmem:[%s389 + $0x1d0] sm:$0xff]
        %v1054 = vld [vmem:[%s389 + $0x1e8] sm:$0xff]
        %v1055 = vld [vmem:[%s389 + $0x1f0] sm:$0xff]
        %v1056 = vpack.c.bf16 %v1025, %v1024
        %v1057 = vpack.c.bf16 %v1027, %v1026
        %v1058 = vpack.c.bf16 %v1029, %v1028
        %v1059 = vpack.c.bf16 %v1031, %v1030
        %v1060 = vpack.c.bf16 %v1033, %v1032
        %v1061 = vpack.c.bf16 %v1035, %v1034
        %v1062 = vpack.c.bf16 %v1037, %v1036
        %v1063 = vpack.c.bf16 %v1039, %v1038
        %v1064 = vpack.c.bf16 %v1041, %v1040
        %v1065 = vpack.c.bf16 %v1043, %v1042
        %v1066 = vpack.c.bf16 %v1045, %v1044
        %v1067 = vpack.c.bf16 %v1047, %v1046
        %v1068 = vpack.c.bf16 %v1049, %v1048
        %v1069 = vpack.c.bf16 %v1051, %v1050
        %v1070 = vpack.c.bf16 %v1053, %v1052
        %v1071 = vpack.c.bf16 %v1055, %v1054
        %1088 = vrot.lane.b32.xlu0 %v1056, 12
        %v1089 = vpop.permute.xlu0 %1088
        %1090 = vrot.lane.b32.xlu0 %v1057, 12
        %v1091 = vpop.permute.xlu0 %1090
        %1092 = vrot.lane.b32.xlu0 %v1058, 12
        %v1093 = vpop.permute.xlu0 %1092
        %1094 = vrot.lane.b32.xlu0 %v1059, 12
        %v1095 = vpop.permute.xlu0 %1094
        %1096 = vrot.lane.b32.xlu0 %v1060, 12
        %v1097 = vpop.permute.xlu0 %1096
        %1098 = vrot.lane.b32.xlu0 %v1061, 12
        %v1099 = vpop.permute.xlu0 %1098
        %1100 = vrot.lane.b32.xlu0 %v1062, 12
        %v1101 = vpop.permute.xlu0 %1100
        %1102 = vrot.lane.b32.xlu0 %v1063, 12
        %v1103 = vpop.permute.xlu0 %1102
        %1104 = vrot.lane.b32.xlu0 %v1064, 12
        %v1105 = vpop.permute.xlu0 %1104
        %1106 = vrot.lane.b32.xlu0 %v1065, 12
        %v1107 = vpop.permute.xlu0 %1106
        %1108 = vrot.lane.b32.xlu0 %v1066, 12
        %v1109 = vpop.permute.xlu0 %1108
        %1110 = vrot.lane.b32.xlu0 %v1067, 12
        %v1111 = vpop.permute.xlu0 %1110
        %1112 = vrot.lane.b32.xlu0 %v1068, 12
        %v1113 = vpop.permute.xlu0 %1112
        %1114 = vrot.lane.b32.xlu0 %v1069, 12
        %v1115 = vpop.permute.xlu0 %1114
        %1116 = vrot.lane.b32.xlu0 %v1070, 12
        %v1117 = vpop.permute.xlu0 %1116
        %1118 = vrot.lane.b32.xlu0 %v1071, 12
        %v1119 = vpop.permute.xlu0 %1118
        %vm1136 = vcmask 121952
        %1137 = vst.msk [vmem:[#allocation5] sm:$0xff] %vm1136, %v1089
        %1138 = vst.msk [vmem:[#allocation5 + $0x8] sm:$0xff] %vm1136, %v1091
        %1139 = vst.msk [vmem:[#allocation5 + $0x10] sm:$0xff] %vm1136, %v1093
        %1140 = vst.msk [vmem:[#allocation5 + $0x18] sm:$0xff] %vm1136, %v1095
        %1141 = vst.msk [vmem:[#allocation5 + $0x20] sm:$0xff] %vm1136, %v1097
        %1142 = vst.msk [vmem:[#allocation5 + $0x28] sm:$0xff] %vm1136, %v1099
        %1143 = vst.msk [vmem:[#allocation5 + $0x30] sm:$0xff] %vm1136, %v1101
        %1144 = vst.msk [vmem:[#allocation5 + $0x38] sm:$0xff] %vm1136, %v1103
        %1145 = vst.msk [vmem:[#allocation5 + $0x40] sm:$0xff] %vm1136, %v1105
        %1146 = vst.msk [vmem:[#allocation5 + $0x48] sm:$0xff] %vm1136, %v1107
        %1147 = vst.msk [vmem:[#allocation5 + $0x50] sm:$0xff] %vm1136, %v1109
        %1148 = vst.msk [vmem:[#allocation5 + $0x58] sm:$0xff] %vm1136, %v1111
        %1149 = vst.msk [vmem:[#allocation5 + $0x60] sm:$0xff] %vm1136, %v1113
        %1150 = vst.msk [vmem:[#allocation5 + $0x68] sm:$0xff] %vm1136, %v1115
        %1151 = vst.msk [vmem:[#allocation5 + $0x70] sm:$0xff] %vm1136, %v1117
        %1152 = vst.msk [vmem:[#allocation5 + $0x78] sm:$0xff] %vm1136, %v1119
        %v1153 = vld [vmem:[%s389 + $0x9] sm:$0xff]
        %v1154 = vld [vmem:[%s389 + $0x11] sm:$0xff]
        %v1155 = vld [vmem:[%s389 + $0x29] sm:$0xff]
        %v1156 = vld [vmem:[%s389 + $0x31] sm:$0xff]
        %v1157 = vld [vmem:[%s389 + $0x49] sm:$0xff]
        %v1158 = vld [vmem:[%s389 + $0x51] sm:$0xff]
        %v1159 = vld [vmem:[%s389 + $0x69] sm:$0xff]
        %v1160 = vld [vmem:[%s389 + $0x71] sm:$0xff]
        %v1161 = vld [vmem:[%s389 + $0x89] sm:$0xff]
        %v1162 = vld [vmem:[%s389 + $0x91] sm:$0xff]
        %v1163 = vld [vmem:[%s389 + $0xa9] sm:$0xff]
        %v1164 = vld [vmem:[%s389 + $0xb1] sm:$0xff]
        %v1165 = vld [vmem:[%s389 + $0xc9] sm:$0xff]
        %v1166 = vld [vmem:[%s389 + $0xd1] sm:$0xff]
        %v1167 = vld [vmem:[%s389 + $0xe9] sm:$0xff]
        %v1168 = vld [vmem:[%s389 + $0xf1] sm:$0xff]
        %v1169 = vld [vmem:[%s389 + $0x109] sm:$0xff]
        %v1170 = vld [vmem:[%s389 + $0x111] sm:$0xff]
        %v1171 = vld [vmem:[%s389 + $0x129] sm:$0xff]
        %v1172 = vld [vmem:[%s389 + $0x131] sm:$0xff]
        %v1173 = vld [vmem:[%s389 + $0x149] sm:$0xff]
        %v1174 = vld [vmem:[%s389 + $0x151] sm:$0xff]
        %v1175 = vld [vmem:[%s389 + $0x169] sm:$0xff]
        %v1176 = vld [vmem:[%s389 + $0x171] sm:$0xff]
        %v1177 = vld [vmem:[%s389 + $0x189] sm:$0xff]
        %v1178 = vld [vmem:[%s389 + $0x191] sm:$0xff]
        %v1179 = vld [vmem:[%s389 + $0x1a9] sm:$0xff]
        %v1180 = vld [vmem:[%s389 + $0x1b1] sm:$0xff]
        %v1181 = vld [vmem:[%s389 + $0x1c9] sm:$0xff]
        %v1182 = vld [vmem:[%s389 + $0x1d1] sm:$0xff]
        %v1183 = vld [vmem:[%s389 + $0x1e9] sm:$0xff]
        %v1184 = vld [vmem:[%s389 + $0x1f1] sm:$0xff]
        %v1185 = vpack.c.bf16 %v1154, %v1153
        %v1186 = vpack.c.bf16 %v1156, %v1155
        %v1187 = vpack.c.bf16 %v1158, %v1157
        %v1188 = vpack.c.bf16 %v1160, %v1159
        %v1189 = vpack.c.bf16 %v1162, %v1161
        %v1190 = vpack.c.bf16 %v1164, %v1163
        %v1191 = vpack.c.bf16 %v1166, %v1165
        %v1192 = vpack.c.bf16 %v1168, %v1167
        %v1193 = vpack.c.bf16 %v1170, %v1169
        %v1194 = vpack.c.bf16 %v1172, %v1171
        %v1195 = vpack.c.bf16 %v1174, %v1173
        %v1196 = vpack.c.bf16 %v1176, %v1175
        %v1197 = vpack.c.bf16 %v1178, %v1177
        %v1198 = vpack.c.bf16 %v1180, %v1179
        %v1199 = vpack.c.bf16 %v1182, %v1181
        %v1200 = vpack.c.bf16 %v1184, %v1183
        %1217 = vrot.lane.b32.xlu0 %v1185, 15
        %v1218 = vpop.permute.xlu0 %1217
        %1219 = vrot.lane.b32.xlu0 %v1186, 15
        %v1220 = vpop.permute.xlu0 %1219
        %1221 = vrot.lane.b32.xlu0 %v1187, 15
        %v1222 = vpop.permute.xlu0 %1221
        %1223 = vrot.lane.b32.xlu0 %v1188, 15
        %v1224 = vpop.permute.xlu0 %1223
        %1225 = vrot.lane.b32.xlu0 %v1189, 15
        %v1226 = vpop.permute.xlu0 %1225
        %1227 = vrot.lane.b32.xlu0 %v1190, 15
        %v1228 = vpop.permute.xlu0 %1227
        %1229 = vrot.lane.b32.xlu0 %v1191, 15
        %v1230 = vpop.permute.xlu0 %1229
        %1231 = vrot.lane.b32.xlu0 %v1192, 15
        %v1232 = vpop.permute.xlu0 %1231
        %1233 = vrot.lane.b32.xlu0 %v1193, 15
        %v1234 = vpop.permute.xlu0 %1233
        %1235 = vrot.lane.b32.xlu0 %v1194, 15
        %v1236 = vpop.permute.xlu0 %1235
        %1237 = vrot.lane.b32.xlu0 %v1195, 15
        %v1238 = vpop.permute.xlu0 %1237
        %1239 = vrot.lane.b32.xlu0 %v1196, 15
        %v1240 = vpop.permute.xlu0 %1239
        %1241 = vrot.lane.b32.xlu0 %v1197, 15
        %v1242 = vpop.permute.xlu0 %1241
        %1243 = vrot.lane.b32.xlu0 %v1198, 15
        %v1244 = vpop.permute.xlu0 %1243
        %1245 = vrot.lane.b32.xlu0 %v1199, 15
        %v1246 = vpop.permute.xlu0 %1245
        %1247 = vrot.lane.b32.xlu0 %v1200, 15
        %v1248 = vpop.permute.xlu0 %1247
        %vm1265 = vcmask 146552
        %1266 = vst.msk [vmem:[#allocation5] sm:$0xff] %vm1265, %v1218
        %1267 = vst.msk [vmem:[#allocation5 + $0x8] sm:$0xff] %vm1265, %v1220
        %1268 = vst.msk [vmem:[#allocation5 + $0x10] sm:$0xff] %vm1265, %v1222
        %1269 = vst.msk [vmem:[#allocation5 + $0x18] sm:$0xff] %vm1265, %v1224
        %1270 = vst.msk [vmem:[#allocation5 + $0x20] sm:$0xff] %vm1265, %v1226
        %1271 = vst.msk [vmem:[#allocation5 + $0x28] sm:$0xff] %vm1265, %v1228
        %1272 = vst.msk [vmem:[#allocation5 + $0x30] sm:$0xff] %vm1265, %v1230
        %1273 = vst.msk [vmem:[#allocation5 + $0x38] sm:$0xff] %vm1265, %v1232
        %1274 = vst.msk [vmem:[#allocation5 + $0x40] sm:$0xff] %vm1265, %v1234
        %1275 = vst.msk [vmem:[#allocation5 + $0x48] sm:$0xff] %vm1265, %v1236
        %1276 = vst.msk [vmem:[#allocation5 + $0x50] sm:$0xff] %vm1265, %v1238
        %1277 = vst.msk [vmem:[#allocation5 + $0x58] sm:$0xff] %vm1265, %v1240
        %1278 = vst.msk [vmem:[#allocation5 + $0x60] sm:$0xff] %vm1265, %v1242
        %1279 = vst.msk [vmem:[#allocation5 + $0x68] sm:$0xff] %vm1265, %v1244
        %1280 = vst.msk [vmem:[#allocation5 + $0x70] sm:$0xff] %vm1265, %v1246
        %1281 = vst.msk [vmem:[#allocation5 + $0x78] sm:$0xff] %vm1265, %v1248
        %s1282 = scalar_lea.vmem [#allocation2], 64
        %v1283 = vld [vmem:[%s1282 + $0x7] sm:$0xff]
        %v1284 = vld [vmem:[%s1282 + $0xf] sm:$0xff]
        %v1285 = vld [vmem:[%s1282 + $0x27] sm:$0xff]
        %v1286 = vld [vmem:[%s1282 + $0x2f] sm:$0xff]
        %v1287 = vld [vmem:[%s1282 + $0x47] sm:$0xff]
        %v1288 = vld [vmem:[%s1282 + $0x4f] sm:$0xff]
        %v1289 = vld [vmem:[%s1282 + $0x67] sm:$0xff]
        %v1290 = vld [vmem:[%s1282 + $0x6f] sm:$0xff]
        %v1291 = vld [vmem:[%s1282 + $0x87] sm:$0xff]
        %v1292 = vld [vmem:[%s1282 + $0x8f] sm:$0xff]
        %v1293 = vld [vmem:[%s1282 + $0xa7] sm:$0xff]
        %v1294 = vld [vmem:[%s1282 + $0xaf] sm:$0xff]
        %v1295 = vld [vmem:[%s1282 + $0xc7] sm:$0xff]
        %v1296 = vld [vmem:[%s1282 + $0xcf] sm:$0xff]
        %v1297 = vld [vmem:[%s1282 + $0xe7] sm:$0xff]
        %v1298 = vld [vmem:[%s1282 + $0xef] sm:$0xff]
        %v1299 = vld [vmem:[%s1282 + $0x107] sm:$0xff]
        %v1300 = vld [vmem:[%s1282 + $0x10f] sm:$0xff]
        %v1301 = vld [vmem:[%s1282 + $0x127] sm:$0xff]
        %v1302 = vld [vmem:[%s1282 + $0x12f] sm:$0xff]
        %v1303 = vld [vmem:[%s1282 + $0x147] sm:$0xff]
        %v1304 = vld [vmem:[%s1282 + $0x14f] sm:$0xff]
        %v1305 = vld [vmem:[%s1282 + $0x167] sm:$0xff]
        %v1306 = vld [vmem:[%s1282 + $0x16f] sm:$0xff]
        %v1307 = vld [vmem:[%s1282 + $0x187] sm:$0xff]
        %v1308 = vld [vmem:[%s1282 + $0x18f] sm:$0xff]
        %v1309 = vld [vmem:[%s1282 + $0x1a7] sm:$0xff]
        %v1310 = vld [vmem:[%s1282 + $0x1af] sm:$0xff]
        %v1311 = vld [vmem:[%s1282 + $0x1c7] sm:$0xff]
        %v1312 = vld [vmem:[%s1282 + $0x1cf] sm:$0xff]
        %v1313 = vld [vmem:[%s1282 + $0x1e7] sm:$0xff]
        %v1314 = vld [vmem:[%s1282 + $0x1ef] sm:$0xff]
        %v1315 = vpack.c.bf16 %v1284, %v1283
        %v1316 = vpack.c.bf16 %v1286, %v1285
        %v1317 = vpack.c.bf16 %v1288, %v1287
        %v1318 = vpack.c.bf16 %v1290, %v1289
        %v1319 = vpack.c.bf16 %v1292, %v1291
        %v1320 = vpack.c.bf16 %v1294, %v1293
        %v1321 = vpack.c.bf16 %v1296, %v1295
        %v1322 = vpack.c.bf16 %v1298, %v1297
        %v1323 = vpack.c.bf16 %v1300, %v1299
        %v1324 = vpack.c.bf16 %v1302, %v1301
        %v1325 = vpack.c.bf16 %v1304, %v1303
        %v1326 = vpack.c.bf16 %v1306, %v1305
        %v1327 = vpack.c.bf16 %v1308, %v1307
        %v1328 = vpack.c.bf16 %v1310, %v1309
        %v1329 = vpack.c.bf16 %v1312, %v1311
        %v1330 = vpack.c.bf16 %v1314, %v1313
        %1347 = vrot.lane.b32.xlu0 %v1315, 18
        %v1348 = vpop.permute.xlu0 %1347
        %1349 = vrot.lane.b32.xlu0 %v1316, 18
        %v1350 = vpop.permute.xlu0 %1349
        %1351 = vrot.lane.b32.xlu0 %v1317, 18
        %v1352 = vpop.permute.xlu0 %1351
        %1353 = vrot.lane.b32.xlu0 %v1318, 18
        %v1354 = vpop.permute.xlu0 %1353
        %1355 = vrot.lane.b32.xlu0 %v1319, 18
        %v1356 = vpop.permute.xlu0 %1355
        %1357 = vrot.lane.b32.xlu0 %v1320, 18
        %v1358 = vpop.permute.xlu0 %1357
        %1359 = vrot.lane.b32.xlu0 %v1321, 18
        %v1360 = vpop.permute.xlu0 %1359
        %1361 = vrot.lane.b32.xlu0 %v1322, 18
        %v1362 = vpop.permute.xlu0 %1361
        %1363 = vrot.lane.b32.xlu0 %v1323, 18
        %v1364 = vpop.permute.xlu0 %1363
        %1365 = vrot.lane.b32.xlu0 %v1324, 18
        %v1366 = vpop.permute.xlu0 %1365
        %1367 = vrot.lane.b32.xlu0 %v1325, 18
        %v1368 = vpop.permute.xlu0 %1367
        %1369 = vrot.lane.b32.xlu0 %v1326, 18
        %v1370 = vpop.permute.xlu0 %1369
        %1371 = vrot.lane.b32.xlu0 %v1327, 18
        %v1372 = vpop.permute.xlu0 %1371
        %1373 = vrot.lane.b32.xlu0 %v1328, 18
        %v1374 = vpop.permute.xlu0 %1373
        %1375 = vrot.lane.b32.xlu0 %v1329, 18
        %v1376 = vpop.permute.xlu0 %1375
        %1377 = vrot.lane.b32.xlu0 %v1330, 18
        %v1378 = vpop.permute.xlu0 %1377
        %vm1395 = vcmask 171152
        %1396 = vst.msk [vmem:[#allocation5] sm:$0xff] %vm1395, %v1348
        %1397 = vst.msk [vmem:[#allocation5 + $0x8] sm:$0xff] %vm1395, %v1350
        %1398 = vst.msk [vmem:[#allocation5 + $0x10] sm:$0xff] %vm1395, %v1352
        %1399 = vst.msk [vmem:[#allocation5 + $0x18] sm:$0xff] %vm1395, %v1354
        %1400 = vst.msk [vmem:[#allocation5 + $0x20] sm:$0xff] %vm1395, %v1356
        %1401 = vst.msk [vmem:[#allocation5 + $0x28] sm:$0xff] %vm1395, %v1358
        %1402 = vst.msk [vmem:[#allocation5 + $0x30] sm:$0xff] %vm1395, %v1360
        %1403 = vst.msk [vmem:[#allocation5 + $0x38] sm:$0xff] %vm1395, %v1362
        %1404 = vst.msk [vmem:[#allocation5 + $0x40] sm:$0xff] %vm1395, %v1364
        %1405 = vst.msk [vmem:[#allocation5 + $0x48] sm:$0xff] %vm1395, %v1366
        %1406 = vst.msk [vmem:[#allocation5 + $0x50] sm:$0xff] %vm1395, %v1368
        %1407 = vst.msk [vmem:[#allocation5 + $0x58] sm:$0xff] %vm1395, %v1370
        %1408 = vst.msk [vmem:[#allocation5 + $0x60] sm:$0xff] %vm1395, %v1372
        %1409 = vst.msk [vmem:[#allocation5 + $0x68] sm:$0xff] %vm1395, %v1374
        %1410 = vst.msk [vmem:[#allocation5 + $0x70] sm:$0xff] %vm1395, %v1376
        %1411 = vst.msk [vmem:[#allocation5 + $0x78] sm:$0xff] %vm1395, %v1378
        %v1412 = vld [vmem:[%s1282 + $0x8] sm:$0xff]
        %v1413 = vld [vmem:[%s1282 + $0x10] sm:$0xff]
        %v1414 = vld [vmem:[%s1282 + $0x28] sm:$0xff]
        %v1415 = vld [vmem:[%s1282 + $0x30] sm:$0xff]
        %v1416 = vld [vmem:[%s1282 + $0x48] sm:$0xff]
        %v1417 = vld [vmem:[%s1282 + $0x50] sm:$0xff]
        %v1418 = vld [vmem:[%s1282 + $0x68] sm:$0xff]
        %v1419 = vld [vmem:[%s1282 + $0x70] sm:$0xff]
        %v1420 = vld [vmem:[%s1282 + $0x88] sm:$0xff]
        %v1421 = vld [vmem:[%s1282 + $0x90] sm:$0xff]
        %v1422 = vld [vmem:[%s1282 + $0xa8] sm:$0xff]
        %v1423 = vld [vmem:[%s1282 + $0xb0] sm:$0xff]
        %v1424 = vld [vmem:[%s1282 + $0xc8] sm:$0xff]
        %v1425 = vld [vmem:[%s1282 + $0xd0] sm:$0xff]
        %v1426 = vld [vmem:[%s1282 + $0xe8] sm:$0xff]
        %v1427 = vld [vmem:[%s1282 + $0xf0] sm:$0xff]
        %v1428 = vld [vmem:[%s1282 + $0x108] sm:$0xff]
        %v1429 = vld [vmem:[%s1282 + $0x110] sm:$0xff]
        %v1430 = vld [vmem:[%s1282 + $0x128] sm:$0xff]
        %v1431 = vld [vmem:[%s1282 + $0x130] sm:$0xff]
        %v1432 = vld [vmem:[%s1282 + $0x148] sm:$0xff]
        %v1433 = vld [vmem:[%s1282 + $0x150] sm:$0xff]
        %v1434 = vld [vmem:[%s1282 + $0x168] sm:$0xff]
        %v1435 = vld [vmem:[%s1282 + $0x170] sm:$0xff]
        %v1436 = vld [vmem:[%s1282 + $0x188] sm:$0xff]
        %v1437 = vld [vmem:[%s1282 + $0x190] sm:$0xff]
        %v1438 = vld [vmem:[%s1282 + $0x1a8] sm:$0xff]
        %v1439 = vld [vmem:[%s1282 + $0x1b0] sm:$0xff]
        %v1440 = vld [vmem:[%s1282 + $0x1c8] sm:$0xff]
        %v1441 = vld [vmem:[%s1282 + $0x1d0] sm:$0xff]
        %v1442 = vld [vmem:[%s1282 + $0x1e8] sm:$0xff]
        %v1443 = vld [vmem:[%s1282 + $0x1f0] sm:$0xff]
        %v1444 = vpack.c.bf16 %v1413, %v1412
        %v1445 = vpack.c.bf16 %v1415, %v1414
        %v1446 = vpack.c.bf16 %v1417, %v1416
        %v1447 = vpack.c.bf16 %v1419, %v1418
        %v1448 = vpack.c.bf16 %v1421, %v1420
        %v1449 = vpack.c.bf16 %v1423, %v1422
        %v1450 = vpack.c.bf16 %v1425, %v1424
        %v1451 = vpack.c.bf16 %v1427, %v1426
        %v1452 = vpack.c.bf16 %v1429, %v1428
        %v1453 = vpack.c.bf16 %v1431, %v1430
        %v1454 = vpack.c.bf16 %v1433, %v1432
        %v1455 = vpack.c.bf16 %v1435, %v1434
        %v1456 = vpack.c.bf16 %v1437, %v1436
        %v1457 = vpack.c.bf16 %v1439, %v1438
        %v1458 = vpack.c.bf16 %v1441, %v1440
        %v1459 = vpack.c.bf16 %v1443, %v1442
        %1476 = vrot.lane.b32.xlu0 %v1444, 21
        %v1477 = vpop.permute.xlu0 %1476
        %1478 = vrot.lane.b32.xlu0 %v1445, 21
        %v1479 = vpop.permute.xlu0 %1478
        %1480 = vrot.lane.b32.xlu0 %v1446, 21
        %v1481 = vpop.permute.xlu0 %1480
        %1482 = vrot.lane.b32.xlu0 %v1447, 21
        %v1483 = vpop.permute.xlu0 %1482
        %1484 = vrot.lane.b32.xlu0 %v1448, 21
        %v1485 = vpop.permute.xlu0 %1484
        %1486 = vrot.lane.b32.xlu0 %v1449, 21
        %v1487 = vpop.permute.xlu0 %1486
        %1488 = vrot.lane.b32.xlu0 %v1450, 21
        %v1489 = vpop.permute.xlu0 %1488
        %1490 = vrot.lane.b32.xlu0 %v1451, 21
        %v1491 = vpop.permute.xlu0 %1490
        %1492 = vrot.lane.b32.xlu0 %v1452, 21
        %v1493 = vpop.permute.xlu0 %1492
        %1494 = vrot.lane.b32.xlu0 %v1453, 21
        %v1495 = vpop.permute.xlu0 %1494
        %1496 = vrot.lane.b32.xlu0 %v1454, 21
        %v1497 = vpop.permute.xlu0 %1496
        %1498 = vrot.lane.b32.xlu0 %v1455, 21
        %v1499 = vpop.permute.xlu0 %1498
        %1500 = vrot.lane.b32.xlu0 %v1456, 21
        %v1501 = vpop.permute.xlu0 %1500
        %1502 = vrot.lane.b32.xlu0 %v1457, 21
        %v1503 = vpop.permute.xlu0 %1502
        %1504 = vrot.lane.b32.xlu0 %v1458, 21
        %v1505 = vpop.permute.xlu0 %1504
        %1506 = vrot.lane.b32.xlu0 %v1459, 21
        %v1507 = vpop.permute.xlu0 %1506
        %vm1524 = vcmask 195752
        %1525 = vst.msk [vmem:[#allocation5] sm:$0xff] %vm1524, %v1477
        %1526 = vst.msk [vmem:[#allocation5 + $0x8] sm:$0xff] %vm1524, %v1479
        %1527 = vst.msk [vmem:[#allocation5 + $0x10] sm:$0xff] %vm1524, %v1481
        %1528 = vst.msk [vmem:[#allocation5 + $0x18] sm:$0xff] %vm1524, %v1483
        %1529 = vst.msk [vmem:[#allocation5 + $0x20] sm:$0xff] %vm1524, %v1485
        %1530 = vst.msk [vmem:[#allocation5 + $0x28] sm:$0xff] %vm1524, %v1487
        %1531 = vst.msk [vmem:[#allocation5 + $0x30] sm:$0xff] %vm1524, %v1489
        %1532 = vst.msk [vmem:[#allocation5 + $0x38] sm:$0xff] %vm1524, %v1491
        %1533 = vst.msk [vmem:[#allocation5 + $0x40] sm:$0xff] %vm1524, %v1493
        %1534 = vst.msk [vmem:[#allocation5 + $0x48] sm:$0xff] %vm1524, %v1495
        %1535 = vst.msk [vmem:[#allocation5 + $0x50] sm:$0xff] %vm1524, %v1497
        %1536 = vst.msk [vmem:[#allocation5 + $0x58] sm:$0xff] %vm1524, %v1499
        %1537 = vst.msk [vmem:[#allocation5 + $0x60] sm:$0xff] %vm1524, %v1501
        %1538 = vst.msk [vmem:[#allocation5 + $0x68] sm:$0xff] %vm1524, %v1503
        %1539 = vst.msk [vmem:[#allocation5 + $0x70] sm:$0xff] %vm1524, %v1505
        %1540 = vst.msk [vmem:[#allocation5 + $0x78] sm:$0xff] %vm1524, %v1507
        %v1541 = vld [vmem:[%s1282 + $0x9] sm:$0xff]
        %v1542 = vld [vmem:[%s1282 + $0x11] sm:$0xff]
        %v1543 = vld [vmem:[%s1282 + $0x29] sm:$0xff]
        %v1544 = vld [vmem:[%s1282 + $0x31] sm:$0xff]
        %v1545 = vld [vmem:[%s1282 + $0x49] sm:$0xff]
        %v1546 = vld [vmem:[%s1282 + $0x51] sm:$0xff]
        %v1547 = vld [vmem:[%s1282 + $0x69] sm:$0xff]
        %v1548 = vld [vmem:[%s1282 + $0x71] sm:$0xff]
        %v1549 = vld [vmem:[%s1282 + $0x89] sm:$0xff]
        %v1550 = vld [vmem:[%s1282 + $0x91] sm:$0xff]
        %v1551 = vld [vmem:[%s1282 + $0xa9] sm:$0xff]
        %v1552 = vld [vmem:[%s1282 + $0xb1] sm:$0xff]
        %v1553 = vld [vmem:[%s1282 + $0xc9] sm:$0xff]
        %v1554 = vld [vmem:[%s1282 + $0xd1] sm:$0xff]
        %v1555 = vld [vmem:[%s1282 + $0xe9] sm:$0xff]
        %v1556 = vld [vmem:[%s1282 + $0xf1] sm:$0xff]
        %v1557 = vld [vmem:[%s1282 + $0x109] sm:$0xff]
        %v1558 = vld [vmem:[%s1282 + $0x111] sm:$0xff]
        %v1559 = vld [vmem:[%s1282 + $0x129] sm:$0xff]
        %v1560 = vld [vmem:[%s1282 + $0x131] sm:$0xff]
        %v1561 = vld [vmem:[%s1282 + $0x149] sm:$0xff]
        %v1562 = vld [vmem:[%s1282 + $0x151] sm:$0xff]
        %v1563 = vld [vmem:[%s1282 + $0x169] sm:$0xff]
        %v1564 = vld [vmem:[%s1282 + $0x171] sm:$0xff]
        %v1565 = vld [vmem:[%s1282 + $0x189] sm:$0xff]
        %v1566 = vld [vmem:[%s1282 + $0x191] sm:$0xff]
        %v1567 = vld [vmem:[%s1282 + $0x1a9] sm:$0xff]
        %v1568 = vld [vmem:[%s1282 + $0x1b1] sm:$0xff]
        %v1569 = vld [vmem:[%s1282 + $0x1c9] sm:$0xff]
        %v1570 = vld [vmem:[%s1282 + $0x1d1] sm:$0xff]
        %v1571 = vld [vmem:[%s1282 + $0x1e9] sm:$0xff]
        %v1572 = vld [vmem:[%s1282 + $0x1f1] sm:$0xff]
        %v1573 = vpack.c.bf16 %v1542, %v1541
        %v1574 = vpack.c.bf16 %v1544, %v1543
        %v1575 = vpack.c.bf16 %v1546, %v1545
        %v1576 = vpack.c.bf16 %v1548, %v1547
        %v1577 = vpack.c.bf16 %v1550, %v1549
        %v1578 = vpack.c.bf16 %v1552, %v1551
        %v1579 = vpack.c.bf16 %v1554, %v1553
        %v1580 = vpack.c.bf16 %v1556, %v1555
        %v1581 = vpack.c.bf16 %v1558, %v1557
        %v1582 = vpack.c.bf16 %v1560, %v1559
        %v1583 = vpack.c.bf16 %v1562, %v1561
        %v1584 = vpack.c.bf16 %v1564, %v1563
        %v1585 = vpack.c.bf16 %v1566, %v1565
        %v1586 = vpack.c.bf16 %v1568, %v1567
        %v1587 = vpack.c.bf16 %v1570, %v1569
        %v1588 = vpack.c.bf16 %v1572, %v1571
        %1605 = vrot.lane.b32.xlu0 %v1573, 24
        %v1606 = vpop.permute.xlu0 %1605
        %1607 = vrot.lane.b32.xlu0 %v1574, 24
        %v1608 = vpop.permute.xlu0 %1607
        %1609 = vrot.lane.b32.xlu0 %v1575, 24
        %v1610 = vpop.permute.xlu0 %1609
        %1611 = vrot.lane.b32.xlu0 %v1576, 24
        %v1612 = vpop.permute.xlu0 %1611
        %1613 = vrot.lane.b32.xlu0 %v1577, 24
        %v1614 = vpop.permute.xlu0 %1613
        %1615 = vrot.lane.b32.xlu0 %v1578, 24
        %v1616 = vpop.permute.xlu0 %1615
        %1617 = vrot.lane.b32.xlu0 %v1579, 24
        %v1618 = vpop.permute.xlu0 %1617
        %1619 = vrot.lane.b32.xlu0 %v1580, 24
        %v1620 = vpop.permute.xlu0 %1619
        %1621 = vrot.lane.b32.xlu0 %v1581, 24
        %v1622 = vpop.permute.xlu0 %1621
        %1623 = vrot.lane.b32.xlu0 %v1582, 24
        %v1624 = vpop.permute.xlu0 %1623
        %1625 = vrot.lane.b32.xlu0 %v1583, 24
        %v1626 = vpop.permute.xlu0 %1625
        %1627 = vrot.lane.b32.xlu0 %v1584, 24
        %v1628 = vpop.permute.xlu0 %1627
        %1629 = vrot.lane.b32.xlu0 %v1585, 24
        %v1630 = vpop.permute.xlu0 %1629
        %1631 = vrot.lane.b32.xlu0 %v1586, 24
        %v1632 = vpop.permute.xlu0 %1631
        %1633 = vrot.lane.b32.xlu0 %v1587, 24
        %v1634 = vpop.permute.xlu0 %1633
        %1635 = vrot.lane.b32.xlu0 %v1588, 24
        %v1636 = vpop.permute.xlu0 %1635
        %vm1653 = vcmask 220352
        %1654 = vst.msk [vmem:[#allocation5] sm:$0xff] %vm1653, %v1606
        %1655 = vst.msk [vmem:[#allocation5 + $0x8] sm:$0xff] %vm1653, %v1608
        %1656 = vst.msk [vmem:[#allocation5 + $0x10] sm:$0xff] %vm1653, %v1610
        %1657 = vst.msk [vmem:[#allocation5 + $0x18] sm:$0xff] %vm1653, %v1612
        %1658 = vst.msk [vmem:[#allocation5 + $0x20] sm:$0xff] %vm1653, %v1614
        %1659 = vst.msk [vmem:[#allocation5 + $0x28] sm:$0xff] %vm1653, %v1616
        %1660 = vst.msk [vmem:[#allocation5 + $0x30] sm:$0xff] %vm1653, %v1618
        %1661 = vst.msk [vmem:[#allocation5 + $0x38] sm:$0xff] %vm1653, %v1620
        %1662 = vst.msk [vmem:[#allocation5 + $0x40] sm:$0xff] %vm1653, %v1622
        %1663 = vst.msk [vmem:[#allocation5 + $0x48] sm:$0xff] %vm1653, %v1624
        %1664 = vst.msk [vmem:[#allocation5 + $0x50] sm:$0xff] %vm1653, %v1626
        %1665 = vst.msk [vmem:[#allocation5 + $0x58] sm:$0xff] %vm1653, %v1628
        %1666 = vst.msk [vmem:[#allocation5 + $0x60] sm:$0xff] %vm1653, %v1630
        %1667 = vst.msk [vmem:[#allocation5 + $0x68] sm:$0xff] %vm1653, %v1632
        %1668 = vst.msk [vmem:[#allocation5 + $0x70] sm:$0xff] %vm1653, %v1634
        %1669 = vst.msk [vmem:[#allocation5 + $0x78] sm:$0xff] %vm1653, %v1636
        %vm1670 = vcmask 261336
        %1671 = vst.msk [vmem:[#allocation5] sm:$0xff] %vm1670, 0
        %1672 = vst.msk [vmem:[#allocation5 + $0x8] sm:$0xff] %vm1670, 0
        %1673 = vst.msk [vmem:[#allocation5 + $0x10] sm:$0xff] %vm1670, 0
        %1674 = vst.msk [vmem:[#allocation5 + $0x18] sm:$0xff] %vm1670, 0
        %1675 = vst.msk [vmem:[#allocation5 + $0x20] sm:$0xff] %vm1670, 0
        %1676 = vst.msk [vmem:[#allocation5 + $0x28] sm:$0xff] %vm1670, 0
        %1677 = vst.msk [vmem:[#allocation5 + $0x30] sm:$0xff] %vm1670, 0
        %1678 = vst.msk [vmem:[#allocation5 + $0x38] sm:$0xff] %vm1670, 0
        %1679 = vst.msk [vmem:[#allocation5 + $0x40] sm:$0xff] %vm1670, 0
        %1680 = vst.msk [vmem:[#allocation5 + $0x48] sm:$0xff] %vm1670, 0
        %1681 = vst.msk [vmem:[#allocation5 + $0x50] sm:$0xff] %vm1670, 0
        %1682 = vst.msk [vmem:[#allocation5 + $0x58] sm:$0xff] %vm1670, 0
        %1683 = vst.msk [vmem:[#allocation5 + $0x60] sm:$0xff] %vm1670, 0
        %1684 = vst.msk [vmem:[#allocation5 + $0x68] sm:$0xff] %vm1670, 0
        %1685 = vst.msk [vmem:[#allocation5 + $0x70] sm:$0xff] %vm1670, 0
        %1686 = vst.msk [vmem:[#allocation5 + $0x78] sm:$0xff] %vm1670, 0
        %v1687 = vld [vmem:[#allocation5] sm:$0xff]
        %v1688 = vld [vmem:[#allocation5 + $0x8] sm:$0xff]
        %v1689 = vld [vmem:[#allocation5 + $0x10] sm:$0xff]
        %v1690 = vld [vmem:[#allocation5 + $0x18] sm:$0xff]
        %v1691 = vld [vmem:[#allocation5 + $0x20] sm:$0xff]
        %v1692 = vld [vmem:[#allocation5 + $0x28] sm:$0xff]
        %v1693 = vld [vmem:[#allocation5 + $0x30] sm:$0xff]
        %v1694 = vld [vmem:[#allocation5 + $0x38] sm:$0xff]
        %v1695 = vld [vmem:[#allocation5 + $0x40] sm:$0xff]
        %v1696 = vld [vmem:[#allocation5 + $0x48] sm:$0xff]
        %v1697 = vld [vmem:[#allocation5 + $0x50] sm:$0xff]
        %v1698 = vld [vmem:[#allocation5 + $0x58] sm:$0xff]
        %v1699 = vld [vmem:[#allocation5 + $0x60] sm:$0xff]
        %v1700 = vld [vmem:[#allocation5 + $0x68] sm:$0xff]
        %v1701 = vld [vmem:[#allocation5 + $0x70] sm:$0xff]
        %v1702 = vld [vmem:[#allocation5 + $0x78] sm:$0xff]
        %v1703 = vld [vmem:[#allocation10] sm:$0xf]
        %v1704 = vld [vmem:[#allocation10 + $0x4] sm:$0xf]
        %v1705 = vld [vmem:[#allocation10 + $0x8] sm:$0xf]
        %v1706 = vld [vmem:[#allocation10 + $0xc] sm:$0xf]
        %v1707 = vld [vmem:[#allocation12] sm:$0x1]
        %v1709 = vlaneseq
        %v1710 = vshrl.u32 %v1709, 7
        %v1711 = vsub.s32 0, %v1710
        %v1712 = vrot.slane %v1707, %v1711
        %v1718 = vunpack.c.l.b16 %v1703
        %v1719 = vunpack.c.l.b16 %v1704
        %v1720 = vunpack.c.l.b16 %v1705
        %v1721 = vunpack.c.l.b16 %v1706
        %v1722 = vpack.c.b16 %v1719, %v1718
        %v1723 = vpack.c.b16 %v1721, %v1720
        %vm1726 = vcmask 261120
        %v1728 = vsel %vm1726, %v1687, 0
        %v1731 = vsel %vm1726, %v1688, 0
        %v1734 = vsel %vm1726, %v1689, 0
        %v1737 = vsel %vm1726, %v1690, 0
        %v1740 = vsel %vm1726, %v1691, 0
        %v1743 = vsel %vm1726, %v1692, 0
        %v1746 = vsel %vm1726, %v1693, 0
        %v1749 = vsel %vm1726, %v1694, 0
        %v1752 = vsel %vm1726, %v1695, 0
        %v1755 = vsel %vm1726, %v1696, 0
        %v1758 = vsel %vm1726, %v1697, 0
        %v1761 = vsel %vm1726, %v1698, 0
        %v1764 = vsel %vm1726, %v1699, 0
        %v1767 = vsel %vm1726, %v1700, 0
        %v1770 = vsel %vm1726, %v1701, 0
        %v1773 = vsel %vm1726, %v1702, 0
        %1775 = vmatprep.subr.bf16.mxu0 0
        %1776 = vmatpush1.bf16.msra.mxu0 %v1722
        %1777 = vmatprep.subr.bf16.mxu0 0
        %1778 = vmatpush1.bf16.msra.mxu0 %v1723
        %1779 = vmatprep.subr.bf16.mxu0 0
        %1780 = vmatpush1.bf16.msra.mxu0 0
        %1781 = vmatprep.subr.bf16.mxu0 0
        %1782 = vmatpush1.bf16.msra.mxu0 0
        %1783 = vmatprep.subr.bf16.mxu0 0
        %1784 = vmatpush1.bf16.msra.mxu0 0
        %1785 = vmatprep.subr.bf16.mxu0 0
        %1786 = vmatpush1.bf16.msra.mxu0 0
        %1787 = vmatprep.subr.bf16.mxu0 0
        %1788 = vmatpush1.bf16.msra.mxu0 0
        %1789 = vmatprep.subr.bf16.mxu0 0
        %1790 = vmatpush1.bf16.msra.mxu0 0
        %1791 = vmatprep.subr.bf16.mxu0 0
        %1792 = vmatpush1.bf16.msra.mxu0 0
        %1793 = vmatprep.subr.bf16.mxu0 0
        %1794 = vmatpush1.bf16.msra.mxu0 0
        %1795 = vmatprep.subr.bf16.mxu0 0
        %1796 = vmatpush1.bf16.msra.mxu0 0
        %1797 = vmatprep.subr.bf16.mxu0 0
        %1798 = vmatpush1.bf16.msra.mxu0 0
        %1799 = vmatprep.subr.bf16.mxu0 0
        %1800 = vmatpush1.bf16.msra.mxu0 0
        %1801 = vmatprep.subr.bf16.mxu0 0
        %1802 = vmatpush1.bf16.msra.mxu0 0
        %1803 = vmatprep.subr.bf16.mxu0 0
        %1804 = vmatpush1.bf16.msra.mxu0 0
        %1805 = vmatprep.subr.bf16.mxu0 0
        %1806 = vmatpush1.bf16.msra.mxu0 0
        %1807 = vmatprep.mubr.bf16.mxu0 0
        %1808 = vmatmul.mubr.bf16.gmra.mrb[0].mxu0 %v1728
        %v1809 = vpop.f32.mrb[0].mxu0
        %v1810 = vadd.f32 %v1712, %v1809
        %v1811 = vpop.f32.mrb[0].mxu0
        %v1812 = vpop.f32.mrb[0].mxu0
        %v1813 = vadd.f32 %v1712, %v1812
        %v1814 = vpop.f32.mrb[0].mxu0
        %1815 = vmatprep.mubr.bf16.mxu0 0
        %1816 = vmatmul.mubr.bf16.gmra.mrb[0].mxu0 %v1731
        %v1817 = vpop.f32.mrb[0].mxu0
        %v1818 = vadd.f32 %v1712, %v1817
        %v1819 = vpop.f32.mrb[0].mxu0
        %v1820 = vpop.f32.mrb[0].mxu0
        %v1821 = vadd.f32 %v1712, %v1820
        %v1822 = vpop.f32.mrb[0].mxu0
        %1823 = vmatprep.mubr.bf16.mxu0 0
        %1824 = vmatmul.mubr.bf16.gmra.mrb[0].mxu0 %v1734
        %v1825 = vpop.f32.mrb[0].mxu0
        %v1826 = vadd.f32 %v1712, %v1825
        %v1827 = vpop.f32.mrb[0].mxu0
        %v1828 = vpop.f32.mrb[0].mxu0
        %v1829 = vadd.f32 %v1712, %v1828
        %v1830 = vpop.f32.mrb[0].mxu0
        %1831 = vmatprep.mubr.bf16.mxu0 0
        %1832 = vmatmul.mubr.bf16.gmra.mrb[0].mxu0 %v1737
        %v1833 = vpop.f32.mrb[0].mxu0
        %v1834 = vadd.f32 %v1712, %v1833
        %v1835 = vpop.f32.mrb[0].mxu0
        %v1836 = vpop.f32.mrb[0].mxu0
        %v1837 = vadd.f32 %v1712, %v1836
        %v1838 = vpop.f32.mrb[0].mxu0
        %1839 = vmatprep.mubr.bf16.mxu0 0
        %1840 = vmatmul.mubr.bf16.gmra.mrb[0].mxu0 %v1740
        %v1841 = vpop.f32.mrb[0].mxu0
        %v1842 = vadd.f32 %v1712, %v1841
        %v1843 = vpop.f32.mrb[0].mxu0
        %v1844 = vpop.f32.mrb[0].mxu0
        %v1845 = vadd.f32 %v1712, %v1844
        %v1846 = vpop.f32.mrb[0].mxu0
        %1847 = vmatprep.mubr.bf16.mxu0 0
        %1848 = vmatmul.mubr.bf16.gmra.mrb[0].mxu0 %v1743
        %v1849 = vpop.f32.mrb[0].mxu0
        %v1850 = vadd.f32 %v1712, %v1849
        %v1851 = vpop.f32.mrb[0].mxu0
        %v1852 = vpop.f32.mrb[0].mxu0
        %v1853 = vadd.f32 %v1712, %v1852
        %v1854 = vpop.f32.mrb[0].mxu0
        %1855 = vmatprep.mubr.bf16.mxu0 0
        %1856 = vmatmul.mubr.bf16.gmra.mrb[0].mxu0 %v1746
        %v1857 = vpop.f32.mrb[0].mxu0
        %v1858 = vadd.f32 %v1712, %v1857
        %v1859 = vpop.f32.mrb[0].mxu0
        %v1860 = vpop.f32.mrb[0].mxu0
        %v1861 = vadd.f32 %v1712, %v1860
        %v1862 = vpop.f32.mrb[0].mxu0
        %1863 = vmatprep.mubr.bf16.mxu0 0
        %1864 = vmatmul.mubr.bf16.gmra.mrb[0].mxu0 %v1749
        %v1865 = vpop.f32.mrb[0].mxu0
        %v1866 = vadd.f32 %v1712, %v1865
        %v1867 = vpop.f32.mrb[0].mxu0
        %v1868 = vpop.f32.mrb[0].mxu0
        %v1869 = vadd.f32 %v1712, %v1868
        %v1870 = vpop.f32.mrb[0].mxu0
        %1871 = vmatprep.mubr.bf16.mxu0 0
        %1872 = vmatmul.mubr.bf16.gmra.mrb[0].mxu0 %v1752
        %v1873 = vpop.f32.mrb[0].mxu0
        %v1874 = vadd.f32 %v1712, %v1873
        %v1875 = vpop.f32.mrb[0].mxu0
        %v1876 = vpop.f32.mrb[0].mxu0
        %v1877 = vadd.f32 %v1712, %v1876
        %v1878 = vpop.f32.mrb[0].mxu0
        %1879 = vmatprep.mubr.bf16.mxu0 0
        %1880 = vmatmul.mubr.bf16.gmra.mrb[0].mxu0 %v1755
        %v1881 = vpop.f32.mrb[0].mxu0
        %v1882 = vadd.f32 %v1712, %v1881
        %v1883 = vpop.f32.mrb[0].mxu0
        %v1884 = vpop.f32.mrb[0].mxu0
        %v1885 = vadd.f32 %v1712, %v1884
        %v1886 = vpop.f32.mrb[0].mxu0
        %1887 = vmatprep.mubr.bf16.mxu0 0
        %1888 = vmatmul.mubr.bf16.gmra.mrb[0].mxu0 %v1758
        %v1889 = vpop.f32.mrb[0].mxu0
        %v1890 = vadd.f32 %v1712, %v1889
        %v1891 = vpop.f32.mrb[0].mxu0
        %v1892 = vpop.f32.mrb[0].mxu0
        %v1893 = vadd.f32 %v1712, %v1892
        %v1894 = vpop.f32.mrb[0].mxu0
        %1895 = vmatprep.mubr.bf16.mxu0 0
        %1896 = vmatmul.mubr.bf16.gmra.mrb[0].mxu0 %v1761
        %v1897 = vpop.f32.mrb[0].mxu0
        %v1898 = vadd.f32 %v1712, %v1897
        %v1899 = vpop.f32.mrb[0].mxu0
        %v1900 = vpop.f32.mrb[0].mxu0
        %v1901 = vadd.f32 %v1712, %v1900
        %v1902 = vpop.f32.mrb[0].mxu0
        %1903 = vmatprep.mubr.bf16.mxu0 0
        %1904 = vmatmul.mubr.bf16.gmra.mrb[0].mxu0 %v1764
        %v1905 = vpop.f32.mrb[0].mxu0
        %v1906 = vadd.f32 %v1712, %v1905
        %v1907 = vpop.f32.mrb[0].mxu0
        %v1908 = vpop.f32.mrb[0].mxu0
        %v1909 = vadd.f32 %v1712, %v1908
        %v1910 = vpop.f32.mrb[0].mxu0
        %1911 = vmatprep.mubr.bf16.mxu0 0
        %1912 = vmatmul.mubr.bf16.gmra.mrb[0].mxu0 %v1767
        %v1913 = vpop.f32.mrb[0].mxu0
        %v1914 = vadd.f32 %v1712, %v1913
        %v1915 = vpop.f32.mrb[0].mxu0
        %v1916 = vpop.f32.mrb[0].mxu0
        %v1917 = vadd.f32 %v1712, %v1916
        %v1918 = vpop.f32.mrb[0].mxu0
        %1919 = vmatprep.mubr.bf16.mxu0 0
        %1920 = vmatmul.mubr.bf16.gmra.mrb[0].mxu0 %v1770
        %v1921 = vpop.f32.mrb[0].mxu0
        %v1922 = vadd.f32 %v1712, %v1921
        %v1923 = vpop.f32.mrb[0].mxu0
        %v1924 = vpop.f32.mrb[0].mxu0
        %v1925 = vadd.f32 %v1712, %v1924
        %v1926 = vpop.f32.mrb[0].mxu0
        %1927 = vmatprep.mubr.bf16.mxu0 0
        %1928 = vmatmul.mubr.bf16.gmra.mrb[0].mxu0 %v1773
        %v1929 = vpop.f32.mrb[0].mxu0
        %v1930 = vadd.f32 %v1712, %v1929
        %v1931 = vpop.f32.mrb[0].mxu0
        %v1932 = vpop.f32.mrb[0].mxu0
        %v1933 = vadd.f32 %v1712, %v1932
        %v1934 = vpop.f32.mrb[0].mxu0
        %1935 = vdwg.mxu0
        %v1936 = vmax.f32 %v1810, 0.0
        %v1937 = vmax.f32 %v1813, 0.0
        %v1938 = vmax.f32 %v1818, 0.0
        %v1939 = vmax.f32 %v1821, 0.0
        %v1940 = vmax.f32 %v1826, 0.0
        %v1941 = vmax.f32 %v1829, 0.0
        %v1942 = vmax.f32 %v1834, 0.0
        %v1943 = vmax.f32 %v1837, 0.0
        %v1944 = vmax.f32 %v1842, 0.0
        %v1945 = vmax.f32 %v1845, 0.0
        %v1946 = vmax.f32 %v1850, 0.0
        %v1947 = vmax.f32 %v1853, 0.0
        %v1948 = vmax.f32 %v1858, 0.0
        %v1949 = vmax.f32 %v1861, 0.0
        %v1950 = vmax.f32 %v1866, 0.0
        %v1951 = vmax.f32 %v1869, 0.0
        %v1952 = vmax.f32 %v1874, 0.0
        %v1953 = vmax.f32 %v1877, 0.0
        %v1954 = vmax.f32 %v1882, 0.0
        %v1955 = vmax.f32 %v1885, 0.0
        %v1956 = vmax.f32 %v1890, 0.0
        %v1957 = vmax.f32 %v1893, 0.0
        %v1958 = vmax.f32 %v1898, 0.0
        %v1959 = vmax.f32 %v1901, 0.0
        %v1960 = vmax.f32 %v1906, 0.0
        %v1961 = vmax.f32 %v1909, 0.0
        %v1962 = vmax.f32 %v1914, 0.0
        %v1963 = vmax.f32 %v1917, 0.0
        %v1964 = vmax.f32 %v1922, 0.0
        %v1965 = vmax.f32 %v1925, 0.0
        %v1966 = vmax.f32 %v1930, 0.0
        %v1967 = vmax.f32 %v1933, 0.0
        %1968 = vst.msk [vmem:[%s433 + $0x8] sm:$0xff] %vm423, %v1936
        %1969 = vst.msk [vmem:[%s433 + $0x10] sm:$0xff] %vm423, %v1937
        %1970 = vst.msk [vmem:[%s433 + $0x28] sm:$0xff] %vm423, %v1938
        %1971 = vst.msk [vmem:[%s433 + $0x30] sm:$0xff] %vm423, %v1939
        %1972 = vst.msk [vmem:[%s433 + $0x48] sm:$0xff] %vm423, %v1940
        %1973 = vst.msk [vmem:[%s433 + $0x50] sm:$0xff] %vm423, %v1941
        %1974 = vst.msk [vmem:[%s433 + $0x68] sm:$0xff] %vm423, %v1942
        %1975 = vst.msk [vmem:[%s433 + $0x70] sm:$0xff] %vm423, %v1943
        %1976 = vst.msk [vmem:[%s433 + $0x88] sm:$0xff] %vm423, %v1944
        %1977 = vst.msk [vmem:[%s433 + $0x90] sm:$0xff] %vm423, %v1945
        %1978 = vst.msk [vmem:[%s433 + $0xa8] sm:$0xff] %vm423, %v1946
        %1979 = vst.msk [vmem:[%s433 + $0xb0] sm:$0xff] %vm423, %v1947
        %1980 = vst.msk [vmem:[%s433 + $0xc8] sm:$0xff] %vm423, %v1948
        %1981 = vst.msk [vmem:[%s433 + $0xd0] sm:$0xff] %vm423, %v1949
        %1982 = vst.msk [vmem:[%s433 + $0xe8] sm:$0xff] %vm423, %v1950
        %1983 = vst.msk [vmem:[%s433 + $0xf0] sm:$0xff] %vm423, %v1951
        %1984 = vst.msk [vmem:[%s433 + $0x108] sm:$0xff] %vm423, %v1952
        %1985 = vst.msk [vmem:[%s433 + $0x110] sm:$0xff] %vm423, %v1953
        %1986 = vst.msk [vmem:[%s433 + $0x128] sm:$0xff] %vm423, %v1954
        %1987 = vst.msk [vmem:[%s433 + $0x130] sm:$0xff] %vm423, %v1955
        %1988 = vst.msk [vmem:[%s433 + $0x148] sm:$0xff] %vm423, %v1956
        %1989 = vst.msk [vmem:[%s433 + $0x150] sm:$0xff] %vm423, %v1957
        %1990 = vst.msk [vmem:[%s433 + $0x168] sm:$0xff] %vm423, %v1958
        %1991 = vst.msk [vmem:[%s433 + $0x170] sm:$0xff] %vm423, %v1959
        %1992 = vst.msk [vmem:[%s433 + $0x188] sm:$0xff] %vm423, %v1960
        %1993 = vst.msk [vmem:[%s433 + $0x190] sm:$0xff] %vm423, %v1961
        %1994 = vst.msk [vmem:[%s433 + $0x1a8] sm:$0xff] %vm423, %v1962
        %1995 = vst.msk [vmem:[%s433 + $0x1b0] sm:$0xff] %vm423, %v1963
        %1996 = vst.msk [vmem:[%s433 + $0x1c8] sm:$0xff] %vm423, %v1964
        %1997 = vst.msk [vmem:[%s433 + $0x1d0] sm:$0xff] %vm423, %v1965
        %1998 = vst.msk [vmem:[%s433 + $0x1e8] sm:$0xff] %vm423, %v1966
        %1999 = vst.msk [vmem:[%s433 + $0x1f0] sm:$0xff] %vm423, %v1967
        %v2000 = vld [vmem:[#allocation3 + $0x7] sm:$0xff]
        %v2001 = vld [vmem:[#allocation3 + $0xf] sm:$0xff]
        %v2002 = vld [vmem:[#allocation3 + $0x27] sm:$0xff]
        %v2003 = vld [vmem:[#allocation3 + $0x2f] sm:$0xff]
        %v2004 = vld [vmem:[#allocation3 + $0x47] sm:$0xff]
        %v2005 = vld [vmem:[#allocation3 + $0x4f] sm:$0xff]
        %v2006 = vld [vmem:[#allocation3 + $0x67] sm:$0xff]
        %v2007 = vld [vmem:[#allocation3 + $0x6f] sm:$0xff]
        %v2008 = vld [vmem:[#allocation3 + $0x87] sm:$0xff]
        %v2009 = vld [vmem:[#allocation3 + $0x8f] sm:$0xff]
        %v2010 = vld [vmem:[#allocation3 + $0xa7] sm:$0xff]
        %v2011 = vld [vmem:[#allocation3 + $0xaf] sm:$0xff]
        %v2012 = vld [vmem:[#allocation3 + $0xc7] sm:$0xff]
        %v2013 = vld [vmem:[#allocation3 + $0xcf] sm:$0xff]
        %v2014 = vld [vmem:[#allocation3 + $0xe7] sm:$0xff]
        %v2015 = vld [vmem:[#allocation3 + $0xef] sm:$0xff]
        %v2016 = vld [vmem:[#allocation3 + $0x107] sm:$0xff]
        %v2017 = vld [vmem:[#allocation3 + $0x10f] sm:$0xff]
        %v2018 = vld [vmem:[#allocation3 + $0x127] sm:$0xff]
        %v2019 = vld [vmem:[#allocation3 + $0x12f] sm:$0xff]
        %v2020 = vld [vmem:[#allocation3 + $0x147] sm:$0xff]
        %v2021 = vld [vmem:[#allocation3 + $0x14f] sm:$0xff]
        %v2022 = vld [vmem:[#allocation3 + $0x167] sm:$0xff]
        %v2023 = vld [vmem:[#allocation3 + $0x16f] sm:$0xff]
        %v2024 = vld [vmem:[#allocation3 + $0x187] sm:$0xff]
        %v2025 = vld [vmem:[#allocation3 + $0x18f] sm:$0xff]
        %v2026 = vld [vmem:[#allocation3 + $0x1a7] sm:$0xff]
        %v2027 = vld [vmem:[#allocation3 + $0x1af] sm:$0xff]
        %v2028 = vld [vmem:[#allocation3 + $0x1c7] sm:$0xff]
        %v2029 = vld [vmem:[#allocation3 + $0x1cf] sm:$0xff]
        %v2030 = vld [vmem:[#allocation3 + $0x1e7] sm:$0xff]
        %v2031 = vld [vmem:[#allocation3 + $0x1ef] sm:$0xff]
        %v2032 = vpack.c.bf16 %v2001, %v2000
        %v2033 = vpack.c.bf16 %v2003, %v2002
        %v2034 = vpack.c.bf16 %v2005, %v2004
        %v2035 = vpack.c.bf16 %v2007, %v2006
        %v2036 = vpack.c.bf16 %v2009, %v2008
        %v2037 = vpack.c.bf16 %v2011, %v2010
        %v2038 = vpack.c.bf16 %v2013, %v2012
        %v2039 = vpack.c.bf16 %v2015, %v2014
        %v2040 = vpack.c.bf16 %v2017, %v2016
        %v2041 = vpack.c.bf16 %v2019, %v2018
        %v2042 = vpack.c.bf16 %v2021, %v2020
        %v2043 = vpack.c.bf16 %v2023, %v2022
        %v2044 = vpack.c.bf16 %v2025, %v2024
        %v2045 = vpack.c.bf16 %v2027, %v2026
        %v2046 = vpack.c.bf16 %v2029, %v2028
        %v2047 = vpack.c.bf16 %v2031, %v2030
        %2048 = vst.msk [vmem:[#allocation6] sm:$0xff] %vm423, %v2032
        %2049 = vst.msk [vmem:[#allocation6 + $0x28] sm:$0xff] %vm423, %v2033
        %2050 = vst.msk [vmem:[#allocation6 + $0x50] sm:$0xff] %vm423, %v2034
        %2051 = vst.msk [vmem:[#allocation6 + $0x78] sm:$0xff] %vm423, %v2035
        %2052 = vst.msk [vmem:[#allocation6 + $0xa0] sm:$0xff] %vm423, %v2036
        %2053 = vst.msk [vmem:[#allocation6 + $0xc8] sm:$0xff] %vm423, %v2037
        %2054 = vst.msk [vmem:[#allocation6 + $0xf0] sm:$0xff] %vm423, %v2038
        %2055 = vst.msk [vmem:[#allocation6 + $0x118] sm:$0xff] %vm423, %v2039
        %2056 = vst.msk [vmem:[#allocation6 + $0x140] sm:$0xff] %vm423, %v2040
        %2057 = vst.msk [vmem:[#allocation6 + $0x168] sm:$0xff] %vm423, %v2041
        %2058 = vst.msk [vmem:[#allocation6 + $0x190] sm:$0xff] %vm423, %v2042
        %2059 = vst.msk [vmem:[#allocation6 + $0x1b8] sm:$0xff] %vm423, %v2043
        %2060 = vst.msk [vmem:[#allocation6 + $0x1e0] sm:$0xff] %vm423, %v2044
        %2061 = vst.msk [vmem:[#allocation6 + $0x208] sm:$0xff] %vm423, %v2045
        %2062 = vst.msk [vmem:[#allocation6 + $0x230] sm:$0xff] %vm423, %v2046
        %2063 = vst.msk [vmem:[#allocation6 + $0x258] sm:$0xff] %vm423, %v2047
        %v2064 = vld [vmem:[#allocation3 + $0x8] sm:$0xff]
        %v2065 = vld [vmem:[#allocation3 + $0x10] sm:$0xff]
        %v2066 = vld [vmem:[#allocation3 + $0x28] sm:$0xff]
        %v2067 = vld [vmem:[#allocation3 + $0x30] sm:$0xff]
        %v2068 = vld [vmem:[#allocation3 + $0x48] sm:$0xff]
        %v2069 = vld [vmem:[#allocation3 + $0x50] sm:$0xff]
        %v2070 = vld [vmem:[#allocation3 + $0x68] sm:$0xff]
        %v2071 = vld [vmem:[#allocation3 + $0x70] sm:$0xff]
        %v2072 = vld [vmem:[#allocation3 + $0x88] sm:$0xff]
        %v2073 = vld [vmem:[#allocation3 + $0x90] sm:$0xff]
        %v2074 = vld [vmem:[#allocation3 + $0xa8] sm:$0xff]
        %v2075 = vld [vmem:[#allocation3 + $0xb0] sm:$0xff]
        %v2076 = vld [vmem:[#allocation3 + $0xc8] sm:$0xff]
        %v2077 = vld [vmem:[#allocation3 + $0xd0] sm:$0xff]
        %v2078 = vld [vmem:[#allocation3 + $0xe8] sm:$0xff]
        %v2079 = vld [vmem:[#allocation3 + $0xf0] sm:$0xff]
        %v2080 = vld [vmem:[#allocation3 + $0x108] sm:$0xff]
        %v2081 = vld [vmem:[#allocation3 + $0x110] sm:$0xff]
        %v2082 = vld [vmem:[#allocation3 + $0x128] sm:$0xff]
        %v2083 = vld [vmem:[#allocation3 + $0x130] sm:$0xff]
        %v2084 = vld [vmem:[#allocation3 + $0x148] sm:$0xff]
        %v2085 = vld [vmem:[#allocation3 + $0x150] sm:$0xff]
        %v2086 = vld [vmem:[#allocation3 + $0x168] sm:$0xff]
        %v2087 = vld [vmem:[#allocation3 + $0x170] sm:$0xff]
        %v2088 = vld [vmem:[#allocation3 + $0x188] sm:$0xff]
        %v2089 = vld [vmem:[#allocation3 + $0x190] sm:$0xff]
        %v2090 = vld [vmem:[#allocation3 + $0x1a8] sm:$0xff]
        %v2091 = vld [vmem:[#allocation3 + $0x1b0] sm:$0xff]
        %v2092 = vld [vmem:[#allocation3 + $0x1c8] sm:$0xff]
        %v2093 = vld [vmem:[#allocation3 + $0x1d0] sm:$0xff]
        %v2094 = vld [vmem:[#allocation3 + $0x1e8] sm:$0xff]
        %v2095 = vld [vmem:[#allocation3 + $0x1f0] sm:$0xff]
        %v2096 = vpack.c.bf16 %v2065, %v2064
        %v2097 = vpack.c.bf16 %v2067, %v2066
        %v2098 = vpack.c.bf16 %v2069, %v2068
        %v2099 = vpack.c.bf16 %v2071, %v2070
        %v2100 = vpack.c.bf16 %v2073, %v2072
        %v2101 = vpack.c.bf16 %v2075, %v2074
        %v2102 = vpack.c.bf16 %v2077, %v2076
        %v2103 = vpack.c.bf16 %v2079, %v2078
        %v2104 = vpack.c.bf16 %v2081, %v2080
        %v2105 = vpack.c.bf16 %v2083, %v2082
        %v2106 = vpack.c.bf16 %v2085, %v2084
        %v2107 = vpack.c.bf16 %v2087, %v2086
        %v2108 = vpack.c.bf16 %v2089, %v2088
        %v2109 = vpack.c.bf16 %v2091, %v2090
        %v2110 = vpack.c.bf16 %v2093, %v2092
        %v2111 = vpack.c.bf16 %v2095, %v2094
        %2128 = vrot.lane.b32.xlu0 %v2096, 64
        %v2129 = vpop.permute.xlu0 %2128
        %2130 = vrot.lane.b32.xlu0 %v2097, 64
        %v2131 = vpop.permute.xlu0 %2130
        %2132 = vrot.lane.b32.xlu0 %v2098, 64
        %v2133 = vpop.permute.xlu0 %2132
        %2134 = vrot.lane.b32.xlu0 %v2099, 64
        %v2135 = vpop.permute.xlu0 %2134
        %2136 = vrot.lane.b32.xlu0 %v2100, 64
        %v2137 = vpop.permute.xlu0 %2136
        %2138 = vrot.lane.b32.xlu0 %v2101, 64
        %v2139 = vpop.permute.xlu0 %2138
        %2140 = vrot.lane.b32.xlu0 %v2102, 64
        %v2141 = vpop.permute.xlu0 %2140
        %2142 = vrot.lane.b32.xlu0 %v2103, 64
        %v2143 = vpop.permute.xlu0 %2142
        %2144 = vrot.lane.b32.xlu0 %v2104, 64
        %v2145 = vpop.permute.xlu0 %2144
        %2146 = vrot.lane.b32.xlu0 %v2105, 64
        %v2147 = vpop.permute.xlu0 %2146
        %2148 = vrot.lane.b32.xlu0 %v2106, 64
        %v2149 = vpop.permute.xlu0 %2148
        %2150 = vrot.lane.b32.xlu0 %v2107, 64
        %v2151 = vpop.permute.xlu0 %2150
        %2152 = vrot.lane.b32.xlu0 %v2108, 64
        %v2153 = vpop.permute.xlu0 %2152
        %2154 = vrot.lane.b32.xlu0 %v2109, 64
        %v2155 = vpop.permute.xlu0 %2154
        %2156 = vrot.lane.b32.xlu0 %v2110, 64
        %v2157 = vpop.permute.xlu0 %2156
        %2158 = vrot.lane.b32.xlu0 %v2111, 64
        %v2159 = vpop.permute.xlu0 %2158
        %vm2176 = vcmask 1048064
        %2177 = vst.msk [vmem:[#allocation6] sm:$0xff] %vm2176, %v2129
        %2178 = vst.msk [vmem:[#allocation6 + $0x28] sm:$0xff] %vm2176, %v2131
        %2179 = vst.msk [vmem:[#allocation6 + $0x50] sm:$0xff] %vm2176, %v2133
        %2180 = vst.msk [vmem:[#allocation6 + $0x78] sm:$0xff] %vm2176, %v2135
        %2181 = vst.msk [vmem:[#allocation6 + $0xa0] sm:$0xff] %vm2176, %v2137
        %2182 = vst.msk [vmem:[#allocation6 + $0xc8] sm:$0xff] %vm2176, %v2139
        %2183 = vst.msk [vmem:[#allocation6 + $0xf0] sm:$0xff] %vm2176, %v2141
        %2184 = vst.msk [vmem:[#allocation6 + $0x118] sm:$0xff] %vm2176, %v2143
        %2185 = vst.msk [vmem:[#allocation6 + $0x140] sm:$0xff] %vm2176, %v2145
        %2186 = vst.msk [vmem:[#allocation6 + $0x168] sm:$0xff] %vm2176, %v2147
        %2187 = vst.msk [vmem:[#allocation6 + $0x190] sm:$0xff] %vm2176, %v2149
        %2188 = vst.msk [vmem:[#allocation6 + $0x1b8] sm:$0xff] %vm2176, %v2151
        %2189 = vst.msk [vmem:[#allocation6 + $0x1e0] sm:$0xff] %vm2176, %v2153
        %2190 = vst.msk [vmem:[#allocation6 + $0x208] sm:$0xff] %vm2176, %v2155
        %2191 = vst.msk [vmem:[#allocation6 + $0x230] sm:$0xff] %vm2176, %v2157
        %2192 = vst.msk [vmem:[#allocation6 + $0x258] sm:$0xff] %vm2176, %v2159
        %v2193 = vld [vmem:[#allocation3 + $0x9] sm:$0xff]
        %v2194 = vld [vmem:[#allocation3 + $0x11] sm:$0xff]
        %v2195 = vld [vmem:[#allocation3 + $0x29] sm:$0xff]
        %v2196 = vld [vmem:[#allocation3 + $0x31] sm:$0xff]
        %v2197 = vld [vmem:[#allocation3 + $0x49] sm:$0xff]
        %v2198 = vld [vmem:[#allocation3 + $0x51] sm:$0xff]
        %v2199 = vld [vmem:[#allocation3 + $0x69] sm:$0xff]
        %v2200 = vld [vmem:[#allocation3 + $0x71] sm:$0xff]
        %v2201 = vld [vmem:[#allocation3 + $0x89] sm:$0xff]
        %v2202 = vld [vmem:[#allocation3 + $0x91] sm:$0xff]
        %v2203 = vld [vmem:[#allocation3 + $0xa9] sm:$0xff]
        %v2204 = vld [vmem:[#allocation3 + $0xb1] sm:$0xff]
        %v2205 = vld [vmem:[#allocation3 + $0xc9] sm:$0xff]
        %v2206 = vld [vmem:[#allocation3 + $0xd1] sm:$0xff]
        %v2207 = vld [vmem:[#allocation3 + $0xe9] sm:$0xff]
        %v2208 = vld [vmem:[#allocation3 + $0xf1] sm:$0xff]
        %v2209 = vld [vmem:[#allocation3 + $0x109] sm:$0xff]
        %v2210 = vld [vmem:[#allocation3 + $0x111] sm:$0xff]
        %v2211 = vld [vmem:[#allocation3 + $0x129] sm:$0xff]
        %v2212 = vld [vmem:[#allocation3 + $0x131] sm:$0xff]
        %v2213 = vld [vmem:[#allocation3 + $0x149] sm:$0xff]
        %v2214 = vld [vmem:[#allocation3 + $0x151] sm:$0xff]
        %v2215 = vld [vmem:[#allocation3 + $0x169] sm:$0xff]
        %v2216 = vld [vmem:[#allocation3 + $0x171] sm:$0xff]
        %v2217 = vld [vmem:[#allocation3 + $0x189] sm:$0xff]
        %v2218 = vld [vmem:[#allocation3 + $0x191] sm:$0xff]
        %v2219 = vld [vmem:[#allocation3 + $0x1a9] sm:$0xff]
        %v2220 = vld [vmem:[#allocation3 + $0x1b1] sm:$0xff]
        %v2221 = vld [vmem:[#allocation3 + $0x1c9] sm:$0xff]
        %v2222 = vld [vmem:[#allocation3 + $0x1d1] sm:$0xff]
        %v2223 = vld [vmem:[#allocation3 + $0x1e9] sm:$0xff]
        %v2224 = vld [vmem:[#allocation3 + $0x1f1] sm:$0xff]
        %v2225 = vpack.c.bf16 %v2194, %v2193
        %v2226 = vpack.c.bf16 %v2196, %v2195
        %v2227 = vpack.c.bf16 %v2198, %v2197
        %v2228 = vpack.c.bf16 %v2200, %v2199
        %v2229 = vpack.c.bf16 %v2202, %v2201
        %v2230 = vpack.c.bf16 %v2204, %v2203
        %v2231 = vpack.c.bf16 %v2206, %v2205
        %v2232 = vpack.c.bf16 %v2208, %v2207
        %v2233 = vpack.c.bf16 %v2210, %v2209
        %v2234 = vpack.c.bf16 %v2212, %v2211
        %v2235 = vpack.c.bf16 %v2214, %v2213
        %v2236 = vpack.c.bf16 %v2216, %v2215
        %v2237 = vpack.c.bf16 %v2218, %v2217
        %v2238 = vpack.c.bf16 %v2220, %v2219
        %v2239 = vpack.c.bf16 %v2222, %v2221
        %v2240 = vpack.c.bf16 %v2224, %v2223
        %2241 = vst.msk [vmem:[#allocation6 + $0x8] sm:$0xff] %vm423, %v2225
        %2242 = vst.msk [vmem:[#allocation6 + $0x30] sm:$0xff] %vm423, %v2226
        %2243 = vst.msk [vmem:[#allocation6 + $0x58] sm:$0xff] %vm423, %v2227
        %2244 = vst.msk [vmem:[#allocation6 + $0x80] sm:$0xff] %vm423, %v2228
        %2245 = vst.msk [vmem:[#allocation6 + $0xa8] sm:$0xff] %vm423, %v2229
        %2246 = vst.msk [vmem:[#allocation6 + $0xd0] sm:$0xff] %vm423, %v2230
        %2247 = vst.msk [vmem:[#allocation6 + $0xf8] sm:$0xff] %vm423, %v2231
        %2248 = vst.msk [vmem:[#allocation6 + $0x120] sm:$0xff] %vm423, %v2232
        %2249 = vst.msk [vmem:[#allocation6 + $0x148] sm:$0xff] %vm423, %v2233
        %2250 = vst.msk [vmem:[#allocation6 + $0x170] sm:$0xff] %vm423, %v2234
        %2251 = vst.msk [vmem:[#allocation6 + $0x198] sm:$0xff] %vm423, %v2235
        %2252 = vst.msk [vmem:[#allocation6 + $0x1c0] sm:$0xff] %vm423, %v2236
        %2253 = vst.msk [vmem:[#allocation6 + $0x1e8] sm:$0xff] %vm423, %v2237
        %2254 = vst.msk [vmem:[#allocation6 + $0x210] sm:$0xff] %vm423, %v2238
        %2255 = vst.msk [vmem:[#allocation6 + $0x238] sm:$0xff] %vm423, %v2239
        %2256 = vst.msk [vmem:[#allocation6 + $0x260] sm:$0xff] %vm423, %v2240
        %v2257 = vld [vmem:[%s433 + $0x7] sm:$0xff]
        %v2258 = vld [vmem:[%s433 + $0xf] sm:$0xff]
        %v2259 = vld [vmem:[%s433 + $0x27] sm:$0xff]
        %v2260 = vld [vmem:[%s433 + $0x2f] sm:$0xff]
        %v2261 = vld [vmem:[%s433 + $0x47] sm:$0xff]
        %v2262 = vld [vmem:[%s433 + $0x4f] sm:$0xff]
        %v2263 = vld [vmem:[%s433 + $0x67] sm:$0xff]
        %v2264 = vld [vmem:[%s433 + $0x6f] sm:$0xff]
        %v2265 = vld [vmem:[%s433 + $0x87] sm:$0xff]
        %v2266 = vld [vmem:[%s433 + $0x8f] sm:$0xff]
        %v2267 = vld [vmem:[%s433 + $0xa7] sm:$0xff]
        %v2268 = vld [vmem:[%s433 + $0xaf] sm:$0xff]
        %v2269 = vld [vmem:[%s433 + $0xc7] sm:$0xff]
        %v2270 = vld [vmem:[%s433 + $0xcf] sm:$0xff]
        %v2271 = vld [vmem:[%s433 + $0xe7] sm:$0xff]
        %v2272 = vld [vmem:[%s433 + $0xef] sm:$0xff]
        %v2273 = vld [vmem:[%s433 + $0x107] sm:$0xff]
        %v2274 = vld [vmem:[%s433 + $0x10f] sm:$0xff]
        %v2275 = vld [vmem:[%s433 + $0x127] sm:$0xff]
        %v2276 = vld [vmem:[%s433 + $0x12f] sm:$0xff]
        %v2277 = vld [vmem:[%s433 + $0x147] sm:$0xff]
        %v2278 = vld [vmem:[%s433 + $0x14f] sm:$0xff]
        %v2279 = vld [vmem:[%s433 + $0x167] sm:$0xff]
        %v2280 = vld [vmem:[%s433 + $0x16f] sm:$0xff]
        %v2281 = vld [vmem:[%s433 + $0x187] sm:$0xff]
        %v2282 = vld [vmem:[%s433 + $0x18f] sm:$0xff]
        %v2283 = vld [vmem:[%s433 + $0x1a7] sm:$0xff]
        %v2284 = vld [vmem:[%s433 + $0x1af] sm:$0xff]
        %v2285 = vld [vmem:[%s433 + $0x1c7] sm:$0xff]
        %v2286 = vld [vmem:[%s433 + $0x1cf] sm:$0xff]
        %v2287 = vld [vmem:[%s433 + $0x1e7] sm:$0xff]
        %v2288 = vld [vmem:[%s433 + $0x1ef] sm:$0xff]
        %v2289 = vpack.c.bf16 %v2258, %v2257
        %v2290 = vpack.c.bf16 %v2260, %v2259
        %v2291 = vpack.c.bf16 %v2262, %v2261
        %v2292 = vpack.c.bf16 %v2264, %v2263
        %v2293 = vpack.c.bf16 %v2266, %v2265
        %v2294 = vpack.c.bf16 %v2268, %v2267
        %v2295 = vpack.c.bf16 %v2270, %v2269
        %v2296 = vpack.c.bf16 %v2272, %v2271
        %v2297 = vpack.c.bf16 %v2274, %v2273
        %v2298 = vpack.c.bf16 %v2276, %v2275
        %v2299 = vpack.c.bf16 %v2278, %v2277
        %v2300 = vpack.c.bf16 %v2280, %v2279
        %v2301 = vpack.c.bf16 %v2282, %v2281
        %v2302 = vpack.c.bf16 %v2284, %v2283
        %v2303 = vpack.c.bf16 %v2286, %v2285
        %v2304 = vpack.c.bf16 %v2288, %v2287
        %2321 = vrot.lane.b32.xlu0 %v2289, 64
        %v2322 = vpop.permute.xlu0 %2321
        %2323 = vrot.lane.b32.xlu0 %v2290, 64
        %v2324 = vpop.permute.xlu0 %2323
        %2325 = vrot.lane.b32.xlu0 %v2291, 64
        %v2326 = vpop.permute.xlu0 %2325
        %2327 = vrot.lane.b32.xlu0 %v2292, 64
        %v2328 = vpop.permute.xlu0 %2327
        %2329 = vrot.lane.b32.xlu0 %v2293, 64
        %v2330 = vpop.permute.xlu0 %2329
        %2331 = vrot.lane.b32.xlu0 %v2294, 64
        %v2332 = vpop.permute.xlu0 %2331
        %2333 = vrot.lane.b32.xlu0 %v2295, 64
        %v2334 = vpop.permute.xlu0 %2333
        %2335 = vrot.lane.b32.xlu0 %v2296, 64
        %v2336 = vpop.permute.xlu0 %2335
        %2337 = vrot.lane.b32.xlu0 %v2297, 64
        %v2338 = vpop.permute.xlu0 %2337
        %2339 = vrot.lane.b32.xlu0 %v2298, 64
        %v2340 = vpop.permute.xlu0 %2339
        %2341 = vrot.lane.b32.xlu0 %v2299, 64
        %v2342 = vpop.permute.xlu0 %2341
        %2343 = vrot.lane.b32.xlu0 %v2300, 64
        %v2344 = vpop.permute.xlu0 %2343
        %2345 = vrot.lane.b32.xlu0 %v2301, 64
        %v2346 = vpop.permute.xlu0 %2345
        %2347 = vrot.lane.b32.xlu0 %v2302, 64
        %v2348 = vpop.permute.xlu0 %2347
        %2349 = vrot.lane.b32.xlu0 %v2303, 64
        %v2350 = vpop.permute.xlu0 %2349
        %2351 = vrot.lane.b32.xlu0 %v2304, 64
        %v2352 = vpop.permute.xlu0 %2351
        %2369 = vst.msk [vmem:[#allocation6 + $0x8] sm:$0xff] %vm2176, %v2322
        %2370 = vst.msk [vmem:[#allocation6 + $0x30] sm:$0xff] %vm2176, %v2324
        %2371 = vst.msk [vmem:[#allocation6 + $0x58] sm:$0xff] %vm2176, %v2326
        %2372 = vst.msk [vmem:[#allocation6 + $0x80] sm:$0xff] %vm2176, %v2328
        %2373 = vst.msk [vmem:[#allocation6 + $0xa8] sm:$0xff] %vm2176, %v2330
        %2374 = vst.msk [vmem:[#allocation6 + $0xd0] sm:$0xff] %vm2176, %v2332
        %2375 = vst.msk [vmem:[#allocation6 + $0xf8] sm:$0xff] %vm2176, %v2334
        %2376 = vst.msk [vmem:[#allocation6 + $0x120] sm:$0xff] %vm2176, %v2336
        %2377 = vst.msk [vmem:[#allocation6 + $0x148] sm:$0xff] %vm2176, %v2338
        %2378 = vst.msk [vmem:[#allocation6 + $0x170] sm:$0xff] %vm2176, %v2340
        %2379 = vst.msk [vmem:[#allocation6 + $0x198] sm:$0xff] %vm2176, %v2342
        %2380 = vst.msk [vmem:[#allocation6 + $0x1c0] sm:$0xff] %vm2176, %v2344
        %2381 = vst.msk [vmem:[#allocation6 + $0x1e8] sm:$0xff] %vm2176, %v2346
        %2382 = vst.msk [vmem:[#allocation6 + $0x210] sm:$0xff] %vm2176, %v2348
        %2383 = vst.msk [vmem:[#allocation6 + $0x238] sm:$0xff] %vm2176, %v2350
        %2384 = vst.msk [vmem:[#allocation6 + $0x260] sm:$0xff] %vm2176, %v2352
        %v2385 = vld [vmem:[%s433 + $0x8] sm:$0xff]
        %v2386 = vld [vmem:[%s433 + $0x10] sm:$0xff]
        %v2387 = vld [vmem:[%s433 + $0x28] sm:$0xff]
        %v2388 = vld [vmem:[%s433 + $0x30] sm:$0xff]
        %v2389 = vld [vmem:[%s433 + $0x48] sm:$0xff]
        %v2390 = vld [vmem:[%s433 + $0x50] sm:$0xff]
        %v2391 = vld [vmem:[%s433 + $0x68] sm:$0xff]
        %v2392 = vld [vmem:[%s433 + $0x70] sm:$0xff]
        %v2393 = vld [vmem:[%s433 + $0x88] sm:$0xff]
        %v2394 = vld [vmem:[%s433 + $0x90] sm:$0xff]
        %v2395 = vld [vmem:[%s433 + $0xa8] sm:$0xff]
        %v2396 = vld [vmem:[%s433 + $0xb0] sm:$0xff]
        %v2397 = vld [vmem:[%s433 + $0xc8] sm:$0xff]
        %v2398 = vld [vmem:[%s433 + $0xd0] sm:$0xff]
        %v2399 = vld [vmem:[%s433 + $0xe8] sm:$0xff]
        %v2400 = vld [vmem:[%s433 + $0xf0] sm:$0xff]
        %v2401 = vld [vmem:[%s433 + $0x108] sm:$0xff]
        %v2402 = vld [vmem:[%s433 + $0x110] sm:$0xff]
        %v2403 = vld [vmem:[%s433 + $0x128] sm:$0xff]
        %v2404 = vld [vmem:[%s433 + $0x130] sm:$0xff]
        %v2405 = vld [vmem:[%s433 + $0x148] sm:$0xff]
        %v2406 = vld [vmem:[%s433 + $0x150] sm:$0xff]
        %v2407 = vld [vmem:[%s433 + $0x168] sm:$0xff]
        %v2408 = vld [vmem:[%s433 + $0x170] sm:$0xff]
        %v2409 = vld [vmem:[%s433 + $0x188] sm:$0xff]
        %v2410 = vld [vmem:[%s433 + $0x190] sm:$0xff]
        %v2411 = vld [vmem:[%s433 + $0x1a8] sm:$0xff]
        %v2412 = vld [vmem:[%s433 + $0x1b0] sm:$0xff]
        %v2413 = vld [vmem:[%s433 + $0x1c8] sm:$0xff]
        %v2414 = vld [vmem:[%s433 + $0x1d0] sm:$0xff]
        %v2415 = vld [vmem:[%s433 + $0x1e8] sm:$0xff]
        %v2416 = vld [vmem:[%s433 + $0x1f0] sm:$0xff]
        %v2417 = vpack.c.bf16 %v2386, %v2385
        %v2418 = vpack.c.bf16 %v2388, %v2387
        %v2419 = vpack.c.bf16 %v2390, %v2389
        %v2420 = vpack.c.bf16 %v2392, %v2391
        %v2421 = vpack.c.bf16 %v2394, %v2393
        %v2422 = vpack.c.bf16 %v2396, %v2395
        %v2423 = vpack.c.bf16 %v2398, %v2397
        %v2424 = vpack.c.bf16 %v2400, %v2399
        %v2425 = vpack.c.bf16 %v2402, %v2401
        %v2426 = vpack.c.bf16 %v2404, %v2403
        %v2427 = vpack.c.bf16 %v2406, %v2405
        %v2428 = vpack.c.bf16 %v2408, %v2407
        %v2429 = vpack.c.bf16 %v2410, %v2409
        %v2430 = vpack.c.bf16 %v2412, %v2411
        %v2431 = vpack.c.bf16 %v2414, %v2413
        %v2432 = vpack.c.bf16 %v2416, %v2415
        %2433 = vst.msk [vmem:[#allocation6 + $0x10] sm:$0xff] %vm423, %v2417
        %2434 = vst.msk [vmem:[#allocation6 + $0x38] sm:$0xff] %vm423, %v2418
        %2435 = vst.msk [vmem:[#allocation6 + $0x60] sm:$0xff] %vm423, %v2419
        %2436 = vst.msk [vmem:[#allocation6 + $0x88] sm:$0xff] %vm423, %v2420
        %2437 = vst.msk [vmem:[#allocation6 + $0xb0] sm:$0xff] %vm423, %v2421
        %2438 = vst.msk [vmem:[#allocation6 + $0xd8] sm:$0xff] %vm423, %v2422
        %2439 = vst.msk [vmem:[#allocation6 + $0x100] sm:$0xff] %vm423, %v2423
        %2440 = vst.msk [vmem:[#allocation6 + $0x128] sm:$0xff] %vm423, %v2424
        %2441 = vst.msk [vmem:[#allocation6 + $0x150] sm:$0xff] %vm423, %v2425
        %2442 = vst.msk [vmem:[#allocation6 + $0x178] sm:$0xff] %vm423, %v2426
        %2443 = vst.msk [vmem:[#allocation6 + $0x1a0] sm:$0xff] %vm423, %v2427
        %2444 = vst.msk [vmem:[#allocation6 + $0x1c8] sm:$0xff] %vm423, %v2428
        %2445 = vst.msk [vmem:[#allocation6 + $0x1f0] sm:$0xff] %vm423, %v2429
        %2446 = vst.msk [vmem:[#allocation6 + $0x218] sm:$0xff] %vm423, %v2430
        %2447 = vst.msk [vmem:[#allocation6 + $0x240] sm:$0xff] %vm423, %v2431
        %2448 = vst.msk [vmem:[#allocation6 + $0x268] sm:$0xff] %vm423, %v2432
        %v2449 = vld [vmem:[%s433 + $0x9] sm:$0xff]
        %v2450 = vld [vmem:[%s433 + $0x11] sm:$0xff]
        %v2451 = vld [vmem:[%s433 + $0x29] sm:$0xff]
        %v2452 = vld [vmem:[%s433 + $0x31] sm:$0xff]
        %v2453 = vld [vmem:[%s433 + $0x49] sm:$0xff]
        %v2454 = vld [vmem:[%s433 + $0x51] sm:$0xff]
        %v2455 = vld [vmem:[%s433 + $0x69] sm:$0xff]
        %v2456 = vld [vmem:[%s433 + $0x71] sm:$0xff]
        %v2457 = vld [vmem:[%s433 + $0x89] sm:$0xff]
        %v2458 = vld [vmem:[%s433 + $0x91] sm:$0xff]
        %v2459 = vld [vmem:[%s433 + $0xa9] sm:$0xff]
        %v2460 = vld [vmem:[%s433 + $0xb1] sm:$0xff]
        %v2461 = vld [vmem:[%s433 + $0xc9] sm:$0xff]
        %v2462 = vld [vmem:[%s433 + $0xd1] sm:$0xff]
        %v2463 = vld [vmem:[%s433 + $0xe9] sm:$0xff]
        %v2464 = vld [vmem:[%s433 + $0xf1] sm:$0xff]
        %v2465 = vld [vmem:[%s433 + $0x109] sm:$0xff]
        %v2466 = vld [vmem:[%s433 + $0x111] sm:$0xff]
        %v2467 = vld [vmem:[%s433 + $0x129] sm:$0xff]
        %v2468 = vld [vmem:[%s433 + $0x131] sm:$0xff]
        %v2469 = vld [vmem:[%s433 + $0x149] sm:$0xff]
        %v2470 = vld [vmem:[%s433 + $0x151] sm:$0xff]
        %v2471 = vld [vmem:[%s433 + $0x169] sm:$0xff]
        %v2472 = vld [vmem:[%s433 + $0x171] sm:$0xff]
        %v2473 = vld [vmem:[%s433 + $0x189] sm:$0xff]
        %v2474 = vld [vmem:[%s433 + $0x191] sm:$0xff]
        %v2475 = vld [vmem:[%s433 + $0x1a9] sm:$0xff]
        %v2476 = vld [vmem:[%s433 + $0x1b1] sm:$0xff]
        %v2477 = vld [vmem:[%s433 + $0x1c9] sm:$0xff]
        %v2478 = vld [vmem:[%s433 + $0x1d1] sm:$0xff]
        %v2479 = vld [vmem:[%s433 + $0x1e9] sm:$0xff]
        %v2480 = vld [vmem:[%s433 + $0x1f1] sm:$0xff]
        %v2481 = vpack.c.bf16 %v2450, %v2449
        %v2482 = vpack.c.bf16 %v2452, %v2451
        %v2483 = vpack.c.bf16 %v2454, %v2453
        %v2484 = vpack.c.bf16 %v2456, %v2455
        %v2485 = vpack.c.bf16 %v2458, %v2457
        %v2486 = vpack.c.bf16 %v2460, %v2459
        %v2487 = vpack.c.bf16 %v2462, %v2461
        %v2488 = vpack.c.bf16 %v2464, %v2463
        %v2489 = vpack.c.bf16 %v2466, %v2465
        %v2490 = vpack.c.bf16 %v2468, %v2467
        %v2491 = vpack.c.bf16 %v2470, %v2469
        %v2492 = vpack.c.bf16 %v2472, %v2471
        %v2493 = vpack.c.bf16 %v2474, %v2473
        %v2494 = vpack.c.bf16 %v2476, %v2475
        %v2495 = vpack.c.bf16 %v2478, %v2477
        %v2496 = vpack.c.bf16 %v2480, %v2479
        %2513 = vrot.lane.b32.xlu0 %v2481, 64
        %v2514 = vpop.permute.xlu0 %2513
        %2515 = vrot.lane.b32.xlu0 %v2482, 64
        %v2516 = vpop.permute.xlu0 %2515
        %2517 = vrot.lane.b32.xlu0 %v2483, 64
        %v2518 = vpop.permute.xlu0 %2517
        %2519 = vrot.lane.b32.xlu0 %v2484, 64
        %v2520 = vpop.permute.xlu0 %2519
        %2521 = vrot.lane.b32.xlu0 %v2485, 64
        %v2522 = vpop.permute.xlu0 %2521
        %2523 = vrot.lane.b32.xlu0 %v2486, 64
        %v2524 = vpop.permute.xlu0 %2523
        %2525 = vrot.lane.b32.xlu0 %v2487, 64
        %v2526 = vpop.permute.xlu0 %2525
        %2527 = vrot.lane.b32.xlu0 %v2488, 64
        %v2528 = vpop.permute.xlu0 %2527
        %2529 = vrot.lane.b32.xlu0 %v2489, 64
        %v2530 = vpop.permute.xlu0 %2529
        %2531 = vrot.lane.b32.xlu0 %v2490, 64
        %v2532 = vpop.permute.xlu0 %2531
        %2533 = vrot.lane.b32.xlu0 %v2491, 64
        %v2534 = vpop.permute.xlu0 %2533
        %2535 = vrot.lane.b32.xlu0 %v2492, 64
        %v2536 = vpop.permute.xlu0 %2535
        %2537 = vrot.lane.b32.xlu0 %v2493, 64
        %v2538 = vpop.permute.xlu0 %2537
        %2539 = vrot.lane.b32.xlu0 %v2494, 64
        %v2540 = vpop.permute.xlu0 %2539
        %2541 = vrot.lane.b32.xlu0 %v2495, 64
        %v2542 = vpop.permute.xlu0 %2541
        %2543 = vrot.lane.b32.xlu0 %v2496, 64
        %v2544 = vpop.permute.xlu0 %2543
        %2561 = vst.msk [vmem:[#allocation6 + $0x10] sm:$0xff] %vm2176, %v2514
        %2562 = vst.msk [vmem:[#allocation6 + $0x38] sm:$0xff] %vm2176, %v2516
        %2563 = vst.msk [vmem:[#allocation6 + $0x60] sm:$0xff] %vm2176, %v2518
        %2564 = vst.msk [vmem:[#allocation6 + $0x88] sm:$0xff] %vm2176, %v2520
        %2565 = vst.msk [vmem:[#allocation6 + $0xb0] sm:$0xff] %vm2176, %v2522
        %2566 = vst.msk [vmem:[#allocation6 + $0xd8] sm:$0xff] %vm2176, %v2524
        %2567 = vst.msk [vmem:[#allocation6 + $0x100] sm:$0xff] %vm2176, %v2526
        %2568 = vst.msk [vmem:[#allocation6 + $0x128] sm:$0xff] %vm2176, %v2528
        %2569 = vst.msk [vmem:[#allocation6 + $0x150] sm:$0xff] %vm2176, %v2530
        %2570 = vst.msk [vmem:[#allocation6 + $0x178] sm:$0xff] %vm2176, %v2532
        %2571 = vst.msk [vmem:[#allocation6 + $0x1a0] sm:$0xff] %vm2176, %v2534
        %2572 = vst.msk [vmem:[#allocation6 + $0x1c8] sm:$0xff] %vm2176, %v2536
        %2573 = vst.msk [vmem:[#allocation6 + $0x1f0] sm:$0xff] %vm2176, %v2538
        %2574 = vst.msk [vmem:[#allocation6 + $0x218] sm:$0xff] %vm2176, %v2540
        %2575 = vst.msk [vmem:[#allocation6 + $0x240] sm:$0xff] %vm2176, %v2542
        %2576 = vst.msk [vmem:[#allocation6 + $0x268] sm:$0xff] %vm2176, %v2544
        %s2577 = scalar_lea.vmem [#allocation3], 64
        %v2578 = vld [vmem:[%s2577 + $0x7] sm:$0xff]
        %v2579 = vld [vmem:[%s2577 + $0xf] sm:$0xff]
        %v2580 = vld [vmem:[%s2577 + $0x27] sm:$0xff]
        %v2581 = vld [vmem:[%s2577 + $0x2f] sm:$0xff]
        %v2582 = vld [vmem:[%s2577 + $0x47] sm:$0xff]
        %v2583 = vld [vmem:[%s2577 + $0x4f] sm:$0xff]
        %v2584 = vld [vmem:[%s2577 + $0x67] sm:$0xff]
        %v2585 = vld [vmem:[%s2577 + $0x6f] sm:$0xff]
        %v2586 = vld [vmem:[%s2577 + $0x87] sm:$0xff]
        %v2587 = vld [vmem:[%s2577 + $0x8f] sm:$0xff]
        %v2588 = vld [vmem:[%s2577 + $0xa7] sm:$0xff]
        %v2589 = vld [vmem:[%s2577 + $0xaf] sm:$0xff]
        %v2590 = vld [vmem:[%s2577 + $0xc7] sm:$0xff]
        %v2591 = vld [vmem:[%s2577 + $0xcf] sm:$0xff]
        %v2592 = vld [vmem:[%s2577 + $0xe7] sm:$0xff]
        %v2593 = vld [vmem:[%s2577 + $0xef] sm:$0xff]
        %v2594 = vld [vmem:[%s2577 + $0x107] sm:$0xff]
        %v2595 = vld [vmem:[%s2577 + $0x10f] sm:$0xff]
        %v2596 = vld [vmem:[%s2577 + $0x127] sm:$0xff]
        %v2597 = vld [vmem:[%s2577 + $0x12f] sm:$0xff]
        %v2598 = vld [vmem:[%s2577 + $0x147] sm:$0xff]
        %v2599 = vld [vmem:[%s2577 + $0x14f] sm:$0xff]
        %v2600 = vld [vmem:[%s2577 + $0x167] sm:$0xff]
        %v2601 = vld [vmem:[%s2577 + $0x16f] sm:$0xff]
        %v2602 = vld [vmem:[%s2577 + $0x187] sm:$0xff]
        %v2603 = vld [vmem:[%s2577 + $0x18f] sm:$0xff]
        %v2604 = vld [vmem:[%s2577 + $0x1a7] sm:$0xff]
        %v2605 = vld [vmem:[%s2577 + $0x1af] sm:$0xff]
        %v2606 = vld [vmem:[%s2577 + $0x1c7] sm:$0xff]
        %v2607 = vld [vmem:[%s2577 + $0x1cf] sm:$0xff]
        %v2608 = vld [vmem:[%s2577 + $0x1e7] sm:$0xff]
        %v2609 = vld [vmem:[%s2577 + $0x1ef] sm:$0xff]
        %v2610 = vpack.c.bf16 %v2579, %v2578
        %v2611 = vpack.c.bf16 %v2581, %v2580
        %v2612 = vpack.c.bf16 %v2583, %v2582
        %v2613 = vpack.c.bf16 %v2585, %v2584
        %v2614 = vpack.c.bf16 %v2587, %v2586
        %v2615 = vpack.c.bf16 %v2589, %v2588
        %v2616 = vpack.c.bf16 %v2591, %v2590
        %v2617 = vpack.c.bf16 %v2593, %v2592
        %v2618 = vpack.c.bf16 %v2595, %v2594
        %v2619 = vpack.c.bf16 %v2597, %v2596
        %v2620 = vpack.c.bf16 %v2599, %v2598
        %v2621 = vpack.c.bf16 %v2601, %v2600
        %v2622 = vpack.c.bf16 %v2603, %v2602
        %v2623 = vpack.c.bf16 %v2605, %v2604
        %v2624 = vpack.c.bf16 %v2607, %v2606
        %v2625 = vpack.c.bf16 %v2609, %v2608
        %2626 = vst.msk [vmem:[#allocation6 + $0x18] sm:$0xff] %vm423, %v2610
        %2627 = vst.msk [vmem:[#allocation6 + $0x40] sm:$0xff] %vm423, %v2611
        %2628 = vst.msk [vmem:[#allocation6 + $0x68] sm:$0xff] %vm423, %v2612
        %2629 = vst.msk [vmem:[#allocation6 + $0x90] sm:$0xff] %vm423, %v2613
        %2630 = vst.msk [vmem:[#allocation6 + $0xb8] sm:$0xff] %vm423, %v2614
        %2631 = vst.msk [vmem:[#allocation6 + $0xe0] sm:$0xff] %vm423, %v2615
        %2632 = vst.msk [vmem:[#allocation6 + $0x108] sm:$0xff] %vm423, %v2616
        %2633 = vst.msk [vmem:[#allocation6 + $0x130] sm:$0xff] %vm423, %v2617
        %2634 = vst.msk [vmem:[#allocation6 + $0x158] sm:$0xff] %vm423, %v2618
        %2635 = vst.msk [vmem:[#allocation6 + $0x180] sm:$0xff] %vm423, %v2619
        %2636 = vst.msk [vmem:[#allocation6 + $0x1a8] sm:$0xff] %vm423, %v2620
        %2637 = vst.msk [vmem:[#allocation6 + $0x1d0] sm:$0xff] %vm423, %v2621
        %2638 = vst.msk [vmem:[#allocation6 + $0x1f8] sm:$0xff] %vm423, %v2622
        %2639 = vst.msk [vmem:[#allocation6 + $0x220] sm:$0xff] %vm423, %v2623
        %2640 = vst.msk [vmem:[#allocation6 + $0x248] sm:$0xff] %vm423, %v2624
        %2641 = vst.msk [vmem:[#allocation6 + $0x270] sm:$0xff] %vm423, %v2625
        %v2642 = vld [vmem:[%s2577 + $0x8] sm:$0xff]
        %v2643 = vld [vmem:[%s2577 + $0x10] sm:$0xff]
        %v2644 = vld [vmem:[%s2577 + $0x28] sm:$0xff]
        %v2645 = vld [vmem:[%s2577 + $0x30] sm:$0xff]
        %v2646 = vld [vmem:[%s2577 + $0x48] sm:$0xff]
        %v2647 = vld [vmem:[%s2577 + $0x50] sm:$0xff]
        %v2648 = vld [vmem:[%s2577 + $0x68] sm:$0xff]
        %v2649 = vld [vmem:[%s2577 + $0x70] sm:$0xff]
        %v2650 = vld [vmem:[%s2577 + $0x88] sm:$0xff]
        %v2651 = vld [vmem:[%s2577 + $0x90] sm:$0xff]
        %v2652 = vld [vmem:[%s2577 + $0xa8] sm:$0xff]
        %v2653 = vld [vmem:[%s2577 + $0xb0] sm:$0xff]
        %v2654 = vld [vmem:[%s2577 + $0xc8] sm:$0xff]
        %v2655 = vld [vmem:[%s2577 + $0xd0] sm:$0xff]
        %v2656 = vld [vmem:[%s2577 + $0xe8] sm:$0xff]
        %v2657 = vld [vmem:[%s2577 + $0xf0] sm:$0xff]
        %v2658 = vld [vmem:[%s2577 + $0x108] sm:$0xff]
        %v2659 = vld [vmem:[%s2577 + $0x110] sm:$0xff]
        %v2660 = vld [vmem:[%s2577 + $0x128] sm:$0xff]
        %v2661 = vld [vmem:[%s2577 + $0x130] sm:$0xff]
        %v2662 = vld [vmem:[%s2577 + $0x148] sm:$0xff]
        %v2663 = vld [vmem:[%s2577 + $0x150] sm:$0xff]
        %v2664 = vld [vmem:[%s2577 + $0x168] sm:$0xff]
        %v2665 = vld [vmem:[%s2577 + $0x170] sm:$0xff]
        %v2666 = vld [vmem:[%s2577 + $0x188] sm:$0xff]
        %v2667 = vld [vmem:[%s2577 + $0x190] sm:$0xff]
        %v2668 = vld [vmem:[%s2577 + $0x1a8] sm:$0xff]
        %v2669 = vld [vmem:[%s2577 + $0x1b0] sm:$0xff]
        %v2670 = vld [vmem:[%s2577 + $0x1c8] sm:$0xff]
        %v2671 = vld [vmem:[%s2577 + $0x1d0] sm:$0xff]
        %v2672 = vld [vmem:[%s2577 + $0x1e8] sm:$0xff]
        %v2673 = vld [vmem:[%s2577 + $0x1f0] sm:$0xff]
        %v2674 = vpack.c.bf16 %v2643, %v2642
        %v2675 = vpack.c.bf16 %v2645, %v2644
        %v2676 = vpack.c.bf16 %v2647, %v2646
        %v2677 = vpack.c.bf16 %v2649, %v2648
        %v2678 = vpack.c.bf16 %v2651, %v2650
        %v2679 = vpack.c.bf16 %v2653, %v2652
        %v2680 = vpack.c.bf16 %v2655, %v2654
        %v2681 = vpack.c.bf16 %v2657, %v2656
        %v2682 = vpack.c.bf16 %v2659, %v2658
        %v2683 = vpack.c.bf16 %v2661, %v2660
        %v2684 = vpack.c.bf16 %v2663, %v2662
        %v2685 = vpack.c.bf16 %v2665, %v2664
        %v2686 = vpack.c.bf16 %v2667, %v2666
        %v2687 = vpack.c.bf16 %v2669, %v2668
        %v2688 = vpack.c.bf16 %v2671, %v2670
        %v2689 = vpack.c.bf16 %v2673, %v2672
        %2706 = vrot.lane.b32.xlu0 %v2674, 64
        %v2707 = vpop.permute.xlu0 %2706
        %2708 = vrot.lane.b32.xlu0 %v2675, 64
        %v2709 = vpop.permute.xlu0 %2708
        %2710 = vrot.lane.b32.xlu0 %v2676, 64
        %v2711 = vpop.permute.xlu0 %2710
        %2712 = vrot.lane.b32.xlu0 %v2677, 64
        %v2713 = vpop.permute.xlu0 %2712
        %2714 = vrot.lane.b32.xlu0 %v2678, 64
        %v2715 = vpop.permute.xlu0 %2714
        %2716 = vrot.lane.b32.xlu0 %v2679, 64
        %v2717 = vpop.permute.xlu0 %2716
        %2718 = vrot.lane.b32.xlu0 %v2680, 64
        %v2719 = vpop.permute.xlu0 %2718
        %2720 = vrot.lane.b32.xlu0 %v2681, 64
        %v2721 = vpop.permute.xlu0 %2720
        %2722 = vrot.lane.b32.xlu0 %v2682, 64
        %v2723 = vpop.permute.xlu0 %2722
        %2724 = vrot.lane.b32.xlu0 %v2683, 64
        %v2725 = vpop.permute.xlu0 %2724
        %2726 = vrot.lane.b32.xlu0 %v2684, 64
        %v2727 = vpop.permute.xlu0 %2726
        %2728 = vrot.lane.b32.xlu0 %v2685, 64
        %v2729 = vpop.permute.xlu0 %2728
        %2730 = vrot.lane.b32.xlu0 %v2686, 64
        %v2731 = vpop.permute.xlu0 %2730
        %2732 = vrot.lane.b32.xlu0 %v2687, 64
        %v2733 = vpop.permute.xlu0 %2732
        %2734 = vrot.lane.b32.xlu0 %v2688, 64
        %v2735 = vpop.permute.xlu0 %2734
        %2736 = vrot.lane.b32.xlu0 %v2689, 64
        %v2737 = vpop.permute.xlu0 %2736
        %2754 = vst.msk [vmem:[#allocation6 + $0x18] sm:$0xff] %vm2176, %v2707
        %2755 = vst.msk [vmem:[#allocation6 + $0x40] sm:$0xff] %vm2176, %v2709
        %2756 = vst.msk [vmem:[#allocation6 + $0x68] sm:$0xff] %vm2176, %v2711
        %2757 = vst.msk [vmem:[#allocation6 + $0x90] sm:$0xff] %vm2176, %v2713
        %2758 = vst.msk [vmem:[#allocation6 + $0xb8] sm:$0xff] %vm2176, %v2715
        %2759 = vst.msk [vmem:[#allocation6 + $0xe0] sm:$0xff] %vm2176, %v2717
        %2760 = vst.msk [vmem:[#allocation6 + $0x108] sm:$0xff] %vm2176, %v2719
        %2761 = vst.msk [vmem:[#allocation6 + $0x130] sm:$0xff] %vm2176, %v2721
        %2762 = vst.msk [vmem:[#allocation6 + $0x158] sm:$0xff] %vm2176, %v2723
        %2763 = vst.msk [vmem:[#allocation6 + $0x180] sm:$0xff] %vm2176, %v2725
        %2764 = vst.msk [vmem:[#allocation6 + $0x1a8] sm:$0xff] %vm2176, %v2727
        %2765 = vst.msk [vmem:[#allocation6 + $0x1d0] sm:$0xff] %vm2176, %v2729
        %2766 = vst.msk [vmem:[#allocation6 + $0x1f8] sm:$0xff] %vm2176, %v2731
        %2767 = vst.msk [vmem:[#allocation6 + $0x220] sm:$0xff] %vm2176, %v2733
        %2768 = vst.msk [vmem:[#allocation6 + $0x248] sm:$0xff] %vm2176, %v2735
        %2769 = vst.msk [vmem:[#allocation6 + $0x270] sm:$0xff] %vm2176, %v2737
        %v2770 = vld [vmem:[%s2577 + $0x9] sm:$0xff]
        %v2771 = vld [vmem:[%s2577 + $0x11] sm:$0xff]
        %v2772 = vld [vmem:[%s2577 + $0x29] sm:$0xff]
        %v2773 = vld [vmem:[%s2577 + $0x31] sm:$0xff]
        %v2774 = vld [vmem:[%s2577 + $0x49] sm:$0xff]
        %v2775 = vld [vmem:[%s2577 + $0x51] sm:$0xff]
        %v2776 = vld [vmem:[%s2577 + $0x69] sm:$0xff]
        %v2777 = vld [vmem:[%s2577 + $0x71] sm:$0xff]
        %v2778 = vld [vmem:[%s2577 + $0x89] sm:$0xff]
        %v2779 = vld [vmem:[%s2577 + $0x91] sm:$0xff]
        %v2780 = vld [vmem:[%s2577 + $0xa9] sm:$0xff]
        %v2781 = vld [vmem:[%s2577 + $0xb1] sm:$0xff]
        %v2782 = vld [vmem:[%s2577 + $0xc9] sm:$0xff]
        %v2783 = vld [vmem:[%s2577 + $0xd1] sm:$0xff]
        %v2784 = vld [vmem:[%s2577 + $0xe9] sm:$0xff]
        %v2785 = vld [vmem:[%s2577 + $0xf1] sm:$0xff]
        %v2786 = vld [vmem:[%s2577 + $0x109] sm:$0xff]
        %v2787 = vld [vmem:[%s2577 + $0x111] sm:$0xff]
        %v2788 = vld [vmem:[%s2577 + $0x129] sm:$0xff]
        %v2789 = vld [vmem:[%s2577 + $0x131] sm:$0xff]
        %v2790 = vld [vmem:[%s2577 + $0x149] sm:$0xff]
        %v2791 = vld [vmem:[%s2577 + $0x151] sm:$0xff]
        %v2792 = vld [vmem:[%s2577 + $0x169] sm:$0xff]
        %v2793 = vld [vmem:[%s2577 + $0x171] sm:$0xff]
        %v2794 = vld [vmem:[%s2577 + $0x189] sm:$0xff]
        %v2795 = vld [vmem:[%s2577 + $0x191] sm:$0xff]
        %v2796 = vld [vmem:[%s2577 + $0x1a9] sm:$0xff]
        %v2797 = vld [vmem:[%s2577 + $0x1b1] sm:$0xff]
        %v2798 = vld [vmem:[%s2577 + $0x1c9] sm:$0xff]
        %v2799 = vld [vmem:[%s2577 + $0x1d1] sm:$0xff]
        %v2800 = vld [vmem:[%s2577 + $0x1e9] sm:$0xff]
        %v2801 = vld [vmem:[%s2577 + $0x1f1] sm:$0xff]
        %v2802 = vpack.c.bf16 %v2771, %v2770
        %v2803 = vpack.c.bf16 %v2773, %v2772
        %v2804 = vpack.c.bf16 %v2775, %v2774
        %v2805 = vpack.c.bf16 %v2777, %v2776
        %v2806 = vpack.c.bf16 %v2779, %v2778
        %v2807 = vpack.c.bf16 %v2781, %v2780
        %v2808 = vpack.c.bf16 %v2783, %v2782
        %v2809 = vpack.c.bf16 %v2785, %v2784
        %v2810 = vpack.c.bf16 %v2787, %v2786
        %v2811 = vpack.c.bf16 %v2789, %v2788
        %v2812 = vpack.c.bf16 %v2791, %v2790
        %v2813 = vpack.c.bf16 %v2793, %v2792
        %v2814 = vpack.c.bf16 %v2795, %v2794
        %v2815 = vpack.c.bf16 %v2797, %v2796
        %v2816 = vpack.c.bf16 %v2799, %v2798
        %v2817 = vpack.c.bf16 %v2801, %v2800
        %2818 = vst.msk [vmem:[#allocation6 + $0x20] sm:$0xff] %vm423, %v2802
        %2819 = vst.msk [vmem:[#allocation6 + $0x48] sm:$0xff] %vm423, %v2803
        %2820 = vst.msk [vmem:[#allocation6 + $0x70] sm:$0xff] %vm423, %v2804
        %2821 = vst.msk [vmem:[#allocation6 + $0x98] sm:$0xff] %vm423, %v2805
        %2822 = vst.msk [vmem:[#allocation6 + $0xc0] sm:$0xff] %vm423, %v2806
        %2823 = vst.msk [vmem:[#allocation6 + $0xe8] sm:$0xff] %vm423, %v2807
        %2824 = vst.msk [vmem:[#allocation6 + $0x110] sm:$0xff] %vm423, %v2808
        %2825 = vst.msk [vmem:[#allocation6 + $0x138] sm:$0xff] %vm423, %v2809
        %2826 = vst.msk [vmem:[#allocation6 + $0x160] sm:$0xff] %vm423, %v2810
        %2827 = vst.msk [vmem:[#allocation6 + $0x188] sm:$0xff] %vm423, %v2811
        %2828 = vst.msk [vmem:[#allocation6 + $0x1b0] sm:$0xff] %vm423, %v2812
        %2829 = vst.msk [vmem:[#allocation6 + $0x1d8] sm:$0xff] %vm423, %v2813
        %2830 = vst.msk [vmem:[#allocation6 + $0x200] sm:$0xff] %vm423, %v2814
        %2831 = vst.msk [vmem:[#allocation6 + $0x228] sm:$0xff] %vm423, %v2815
        %2832 = vst.msk [vmem:[#allocation6 + $0x250] sm:$0xff] %vm423, %v2816
        %2833 = vst.msk [vmem:[#allocation6 + $0x278] sm:$0xff] %vm423, %v2817
        %v2834 = vld [vmem:[#allocation6] sm:$0xff]
        %v2835 = vld [vmem:[#allocation6 + $0x8] sm:$0xff]
        %v2836 = vld [vmem:[#allocation6 + $0x10] sm:$0xff]
        %v2837 = vld [vmem:[#allocation6 + $0x18] sm:$0xff]
        %v2838 = vld [vmem:[#allocation6 + $0x20] sm:$0xff]
        %v2839 = vld [vmem:[#allocation6 + $0x28] sm:$0xff]
        %v2840 = vld [vmem:[#allocation6 + $0x30] sm:$0xff]
        %v2841 = vld [vmem:[#allocation6 + $0x38] sm:$0xff]
        %v2842 = vld [vmem:[#allocation6 + $0x40] sm:$0xff]
        %v2843 = vld [vmem:[#allocation6 + $0x48] sm:$0xff]
        %v2844 = vld [vmem:[#allocation6 + $0x50] sm:$0xff]
        %v2845 = vld [vmem:[#allocation6 + $0x58] sm:$0xff]
        %v2846 = vld [vmem:[#allocation6 + $0x60] sm:$0xff]
        %v2847 = vld [vmem:[#allocation6 + $0x68] sm:$0xff]
        %v2848 = vld [vmem:[#allocation6 + $0x70] sm:$0xff]
        %v2849 = vld [vmem:[#allocation6 + $0x78] sm:$0xff]
        %v2850 = vld [vmem:[#allocation6 + $0x80] sm:$0xff]
        %v2851 = vld [vmem:[#allocation6 + $0x88] sm:$0xff]
        %v2852 = vld [vmem:[#allocation6 + $0x90] sm:$0xff]
        %v2853 = vld [vmem:[#allocation6 + $0x98] sm:$0xff]
        %v2854 = vld [vmem:[#allocation6 + $0xa0] sm:$0xff]
        %v2855 = vld [vmem:[#allocation6 + $0xa8] sm:$0xff]
        %v2856 = vld [vmem:[#allocation6 + $0xb0] sm:$0xff]
        %v2857 = vld [vmem:[#allocation6 + $0xb8] sm:$0xff]
        %v2858 = vld [vmem:[#allocation6 + $0xc0] sm:$0xff]
        %v2859 = vld [vmem:[#allocation6 + $0xc8] sm:$0xff]
        %v2860 = vld [vmem:[#allocation6 + $0xd0] sm:$0xff]
        %v2861 = vld [vmem:[#allocation6 + $0xd8] sm:$0xff]
        %v2862 = vld [vmem:[#allocation6 + $0xe0] sm:$0xff]
        %v2863 = vld [vmem:[#allocation6 + $0xe8] sm:$0xff]
        %v2864 = vld [vmem:[#allocation6 + $0xf0] sm:$0xff]
        %v2865 = vld [vmem:[#allocation6 + $0xf8] sm:$0xff]
        %v2866 = vld [vmem:[#allocation6 + $0x100] sm:$0xff]
        %v2867 = vld [vmem:[#allocation6 + $0x108] sm:$0xff]
        %v2868 = vld [vmem:[#allocation6 + $0x110] sm:$0xff]
        %v2869 = vld [vmem:[#allocation6 + $0x118] sm:$0xff]
        %v2870 = vld [vmem:[#allocation6 + $0x120] sm:$0xff]
        %v2871 = vld [vmem:[#allocation6 + $0x128] sm:$0xff]
        %v2872 = vld [vmem:[#allocation6 + $0x130] sm:$0xff]
        %v2873 = vld [vmem:[#allocation6 + $0x138] sm:$0xff]
        %v2874 = vld [vmem:[#allocation6 + $0x140] sm:$0xff]
        %v2875 = vld [vmem:[#allocation6 + $0x148] sm:$0xff]
        %v2876 = vld [vmem:[#allocation6 + $0x150] sm:$0xff]
        %v2877 = vld [vmem:[#allocation6 + $0x158] sm:$0xff]
        %v2878 = vld [vmem:[#allocation6 + $0x160] sm:$0xff]
        %v2879 = vld [vmem:[#allocation6 + $0x168] sm:$0xff]
        %v2880 = vld [vmem:[#allocation6 + $0x170] sm:$0xff]
        %v2881 = vld [vmem:[#allocation6 + $0x178] sm:$0xff]
        %v2882 = vld [vmem:[#allocation6 + $0x180] sm:$0xff]
        %v2883 = vld [vmem:[#allocation6 + $0x188] sm:$0xff]
        %v2884 = vld [vmem:[#allocation6 + $0x190] sm:$0xff]
        %v2885 = vld [vmem:[#allocation6 + $0x198] sm:$0xff]
        %v2886 = vld [vmem:[#allocation6 + $0x1a0] sm:$0xff]
        %v2887 = vld [vmem:[#allocation6 + $0x1a8] sm:$0xff]
        %v2888 = vld [vmem:[#allocation6 + $0x1b0] sm:$0xff]
        %v2889 = vld [vmem:[#allocation6 + $0x1b8] sm:$0xff]
        %v2890 = vld [vmem:[#allocation6 + $0x1c0] sm:$0xff]
        %v2891 = vld [vmem:[#allocation6 + $0x1c8] sm:$0xff]
        %v2892 = vld [vmem:[#allocation6 + $0x1d0] sm:$0xff]
        %v2893 = vld [vmem:[#allocation6 + $0x1d8] sm:$0xff]
        %v2894 = vld [vmem:[#allocation6 + $0x1e0] sm:$0xff]
        %v2895 = vld [vmem:[#allocation6 + $0x1e8] sm:$0xff]
        %v2896 = vld [vmem:[#allocation6 + $0x1f0] sm:$0xff]
        %v2897 = vld [vmem:[#allocation6 + $0x1f8] sm:$0xff]
        %v2898 = vld [vmem:[#allocation6 + $0x200] sm:$0xff]
        %v2899 = vld [vmem:[#allocation6 + $0x208] sm:$0xff]
        %v2900 = vld [vmem:[#allocation6 + $0x210] sm:$0xff]
        %v2901 = vld [vmem:[#allocation6 + $0x218] sm:$0xff]
        %v2902 = vld [vmem:[#allocation6 + $0x220] sm:$0xff]
        %v2903 = vld [vmem:[#allocation6 + $0x228] sm:$0xff]
        %v2904 = vld [vmem:[#allocation6 + $0x230] sm:$0xff]
        %v2905 = vld [vmem:[#allocation6 + $0x238] sm:$0xff]
        %v2906 = vld [vmem:[#allocation6 + $0x240] sm:$0xff]
        %v2907 = vld [vmem:[#allocation6 + $0x248] sm:$0xff]
        %v2908 = vld [vmem:[#allocation6 + $0x250] sm:$0xff]
        %v2909 = vld [vmem:[#allocation6 + $0x258] sm:$0xff]
        %v2910 = vld [vmem:[#allocation6 + $0x260] sm:$0xff]
        %v2911 = vld [vmem:[#allocation6 + $0x268] sm:$0xff]
        %v2912 = vld [vmem:[#allocation6 + $0x270] sm:$0xff]
        %v2913 = vld [vmem:[#allocation6 + $0x278] sm:$0xff]
        %v2914 = vld [vmem:[#allocation13] sm:$0xf]
        %v2915 = vld [vmem:[#allocation13 + $0x4] sm:$0xf]
        %v2916 = vld [vmem:[#allocation13 + $0x8] sm:$0xf]
        %v2917 = vld [vmem:[#allocation13 + $0xc] sm:$0xf]
        %v2918 = vld [vmem:[#allocation13 + $0x10] sm:$0xf]
        %v2919 = vld [vmem:[#allocation13 + $0x14] sm:$0xf]
        %v2920 = vld [vmem:[#allocation13 + $0x18] sm:$0xf]
        %v2921 = vld [vmem:[#allocation13 + $0x1c] sm:$0xf]
        %v2922 = vld [vmem:[#allocation13 + $0x20] sm:$0xf]
        %v2923 = vld [vmem:[#allocation13 + $0x24] sm:$0xf]
        %v2924 = vld [vmem:[#allocation13 + $0x28] sm:$0xf]
        %v2925 = vld [vmem:[#allocation13 + $0x2c] sm:$0xf]
        %v2926 = vld [vmem:[#allocation13 + $0x30] sm:$0xf]
        %v2927 = vld [vmem:[#allocation13 + $0x34] sm:$0xf]
        %v2928 = vld [vmem:[#allocation13 + $0x38] sm:$0xf]
        %v2929 = vld [vmem:[#allocation13 + $0x3c] sm:$0xf]
        %v2930 = vld [vmem:[#allocation13 + $0x40] sm:$0xf]
        %v2931 = vld [vmem:[#allocation13 + $0x44] sm:$0xf]
        %v2932 = vld [vmem:[#allocation13 + $0x48] sm:$0xf]
        %v2933 = vld [vmem:[#allocation13 + $0x4c] sm:$0xf]
        %v2934 = vld [vmem:[#allocation13 + $0x50] sm:$0xf]
        %v2935 = vld [vmem:[#allocation13 + $0x54] sm:$0xf]
        %v2936 = vld [vmem:[#allocation13 + $0x58] sm:$0xf]
        %v2937 = vld [vmem:[#allocation13 + $0x5c] sm:$0xf]
        %v2938 = vld [vmem:[#allocation13 + $0x60] sm:$0xf]
        %v2939 = vld [vmem:[#allocation13 + $0x64] sm:$0xf]
        %v2940 = vld [vmem:[#allocation13 + $0x68] sm:$0xf]
        %v2941 = vld [vmem:[#allocation13 + $0x6c] sm:$0xf]
        %v2942 = vld [vmem:[#allocation13 + $0x70] sm:$0xf]
        %v2943 = vld [vmem:[#allocation13 + $0x74] sm:$0xf]
        %v2944 = vld [vmem:[#allocation13 + $0x78] sm:$0xf]
        %v2945 = vld [vmem:[#allocation13 + $0x7c] sm:$0xf]
        %v2946 = vld [vmem:[#allocation13 + $0x80] sm:$0xf]
        %v2947 = vld [vmem:[#allocation13 + $0x84] sm:$0xf]
        %v2948 = vld [vmem:[#allocation13 + $0x88] sm:$0xf]
        %v2949 = vld [vmem:[#allocation13 + $0x8c] sm:$0xf]
        %v2950 = vld [vmem:[#allocation13 + $0x90] sm:$0xf]
        %v2951 = vld [vmem:[#allocation13 + $0x94] sm:$0xf]
        %v2952 = vld [vmem:[#allocation13 + $0x98] sm:$0xf]
        %v2953 = vld [vmem:[#allocation13 + $0x9c] sm:$0xf]
        %v2954 = vld [vmem:[#allocation13 + $0xa0] sm:$0xf]
        %v2955 = vld [vmem:[#allocation13 + $0xa4] sm:$0xf]
        %v2956 = vld [vmem:[#allocation13 + $0xa8] sm:$0xf]
        %v2957 = vld [vmem:[#allocation13 + $0xac] sm:$0xf]
        %v2958 = vld [vmem:[#allocation13 + $0xb0] sm:$0xf]
        %v2959 = vld [vmem:[#allocation13 + $0xb4] sm:$0xf]
        %v2960 = vld [vmem:[#allocation13 + $0xb8] sm:$0xf]
        %v2961 = vld [vmem:[#allocation13 + $0xbc] sm:$0xf]
        %v2962 = vld [vmem:[#allocation13 + $0xc0] sm:$0xf]
        %v2963 = vld [vmem:[#allocation13 + $0xc4] sm:$0xf]
        %v2964 = vld [vmem:[#allocation13 + $0xc8] sm:$0xf]
        %v2965 = vld [vmem:[#allocation13 + $0xcc] sm:$0xf]
        %v2966 = vld [vmem:[#allocation13 + $0xd0] sm:$0xf]
        %v2967 = vld [vmem:[#allocation13 + $0xd4] sm:$0xf]
        %v2968 = vld [vmem:[#allocation13 + $0xd8] sm:$0xf]
        %v2969 = vld [vmem:[#allocation13 + $0xdc] sm:$0xf]
        %v2970 = vld [vmem:[#allocation13 + $0xe0] sm:$0xf]
        %v2971 = vld [vmem:[#allocation13 + $0xe4] sm:$0xf]
        %v2972 = vld [vmem:[#allocation13 + $0xe8] sm:$0xf]
        %v2973 = vld [vmem:[#allocation13 + $0xec] sm:$0xf]
        %v2974 = vld [vmem:[#allocation13 + $0xf0] sm:$0xf]
        %v2975 = vld [vmem:[#allocation13 + $0xf4] sm:$0xf]
        %v2976 = vld [vmem:[#allocation13 + $0xf8] sm:$0xf]
        %v2977 = vld [vmem:[#allocation13 + $0xfc] sm:$0xf]
        %v2978 = vld [vmem:[#allocation13 + $0x100] sm:$0xf]
        %v2979 = vld [vmem:[#allocation13 + $0x104] sm:$0xf]
        %v2980 = vld [vmem:[#allocation13 + $0x108] sm:$0xf]
        %v2981 = vld [vmem:[#allocation13 + $0x10c] sm:$0xf]
        %v2982 = vld [vmem:[#allocation13 + $0x110] sm:$0xf]
        %v2983 = vld [vmem:[#allocation13 + $0x114] sm:$0xf]
        %v2984 = vld [vmem:[#allocation13 + $0x118] sm:$0xf]
        %v2985 = vld [vmem:[#allocation13 + $0x11c] sm:$0xf]
        %v2986 = vld [vmem:[#allocation15] sm:$0x1]
        %v2988 = vlaneseq
        %v2989 = vshrl.u32 %v2988, 7
        %v2990 = vsub.s32 0, %v2989
        %v2991 = vrot.slane %v2986, %v2990
        %v3065 = vunpack.c.l.b16 %v2914
        %v3066 = vunpack.c.l.b16 %v2915
        %v3067 = vunpack.c.l.b16 %v2916
        %v3068 = vunpack.c.l.b16 %v2917
        %v3069 = vunpack.c.l.b16 %v2918
        %v3070 = vunpack.c.l.b16 %v2919
        %v3071 = vunpack.c.l.b16 %v2920
        %v3072 = vunpack.c.l.b16 %v2921
        %v3073 = vunpack.c.l.b16 %v2922
        %v3074 = vunpack.c.l.b16 %v2923
        %v3075 = vunpack.c.l.b16 %v2924
        %v3076 = vunpack.c.l.b16 %v2925
        %v3077 = vunpack.c.l.b16 %v2926
        %v3078 = vunpack.c.l.b16 %v2927
        %v3079 = vunpack.c.l.b16 %v2928
        %v3080 = vunpack.c.l.b16 %v2929
        %v3081 = vunpack.c.l.b16 %v2930
        %v3082 = vunpack.c.l.b16 %v2931
        %v3083 = vunpack.c.l.b16 %v2932
        %v3084 = vunpack.c.l.b16 %v2933
        %v3085 = vunpack.c.l.b16 %v2934
        %v3086 = vunpack.c.l.b16 %v2935
        %v3087 = vunpack.c.l.b16 %v2936
        %v3088 = vunpack.c.l.b16 %v2937
        %v3089 = vunpack.c.l.b16 %v2938
        %v3090 = vunpack.c.l.b16 %v2939
        %v3091 = vunpack.c.l.b16 %v2940
        %v3092 = vunpack.c.l.b16 %v2941
        %v3093 = vunpack.c.l.b16 %v2942
        %v3094 = vunpack.c.l.b16 %v2943
        %v3095 = vunpack.c.l.b16 %v2944
        %v3096 = vunpack.c.l.b16 %v2945
        %v3097 = vunpack.c.l.b16 %v2946
        %v3098 = vunpack.c.l.b16 %v2947
        %v3099 = vunpack.c.l.b16 %v2948
        %v3100 = vunpack.c.l.b16 %v2949
        %v3101 = vunpack.c.l.b16 %v2950
        %v3102 = vunpack.c.l.b16 %v2951
        %v3103 = vunpack.c.l.b16 %v2952
        %v3104 = vunpack.c.l.b16 %v2953
        %v3105 = vunpack.c.l.b16 %v2954
        %v3106 = vunpack.c.l.b16 %v2955
        %v3107 = vunpack.c.l.b16 %v2956
        %v3108 = vunpack.c.l.b16 %v2957
        %v3109 = vunpack.c.l.b16 %v2958
        %v3110 = vunpack.c.l.b16 %v2959
        %v3111 = vunpack.c.l.b16 %v2960
        %v3112 = vunpack.c.l.b16 %v2961
        %v3113 = vunpack.c.l.b16 %v2962
        %v3114 = vunpack.c.l.b16 %v2963
        %v3115 = vunpack.c.l.b16 %v2964
        %v3116 = vunpack.c.l.b16 %v2965
        %v3117 = vunpack.c.l.b16 %v2966
        %v3118 = vunpack.c.l.b16 %v2967
        %v3119 = vunpack.c.l.b16 %v2968
        %v3120 = vunpack.c.l.b16 %v2969
        %v3121 = vunpack.c.l.b16 %v2970
        %v3122 = vunpack.c.l.b16 %v2971
        %v3123 = vunpack.c.l.b16 %v2972
        %v3124 = vunpack.c.l.b16 %v2973
        %v3125 = vunpack.c.l.b16 %v2974
        %v3126 = vunpack.c.l.b16 %v2975
        %v3127 = vunpack.c.l.b16 %v2976
        %v3128 = vunpack.c.l.b16 %v2977
        %v3129 = vunpack.c.l.b16 %v2978
        %v3130 = vunpack.c.l.b16 %v2979
        %v3131 = vunpack.c.l.b16 %v2980
        %v3132 = vunpack.c.l.b16 %v2981
        %v3133 = vunpack.c.l.b16 %v2982
        %v3134 = vunpack.c.l.b16 %v2983
        %v3135 = vunpack.c.l.b16 %v2984
        %v3136 = vunpack.c.l.b16 %v2985
        %v3137 = vpack.c.b16 %v3066, %v3065
        %v3138 = vpack.c.b16 %v3068, %v3067
        %v3139 = vpack.c.b16 %v3070, %v3069
        %v3140 = vpack.c.b16 %v3072, %v3071
        %v3141 = vpack.c.b16 %v3074, %v3073
        %v3142 = vpack.c.b16 %v3076, %v3075
        %v3143 = vpack.c.b16 %v3078, %v3077
        %v3144 = vpack.c.b16 %v3080, %v3079
        %v3145 = vpack.c.b16 %v3082, %v3081
        %v3146 = vpack.c.b16 %v3084, %v3083
        %v3147 = vpack.c.b16 %v3086, %v3085
        %v3148 = vpack.c.b16 %v3088, %v3087
        %v3149 = vpack.c.b16 %v3090, %v3089
        %v3150 = vpack.c.b16 %v3092, %v3091
        %v3151 = vpack.c.b16 %v3094, %v3093
        %v3152 = vpack.c.b16 %v3096, %v3095
        %v3153 = vpack.c.b16 %v3098, %v3097
        %v3154 = vpack.c.b16 %v3100, %v3099
        %v3155 = vpack.c.b16 %v3102, %v3101
        %v3156 = vpack.c.b16 %v3104, %v3103
        %v3157 = vpack.c.b16 %v3106, %v3105
        %v3158 = vpack.c.b16 %v3108, %v3107
        %v3159 = vpack.c.b16 %v3110, %v3109
        %v3160 = vpack.c.b16 %v3112, %v3111
        %v3161 = vpack.c.b16 %v3114, %v3113
        %v3162 = vpack.c.b16 %v3116, %v3115
        %v3163 = vpack.c.b16 %v3118, %v3117
        %v3164 = vpack.c.b16 %v3120, %v3119
        %v3165 = vpack.c.b16 %v3122, %v3121
        %v3166 = vpack.c.b16 %v3124, %v3123
        %v3167 = vpack.c.b16 %v3126, %v3125
        %v3168 = vpack.c.b16 %v3128, %v3127
        %v3169 = vpack.c.b16 %v3130, %v3129
        %v3170 = vpack.c.b16 %v3132, %v3131
        %v3171 = vpack.c.b16 %v3134, %v3133
        %v3172 = vpack.c.b16 %v3136, %v3135
        %v3210 = vsel %vm423, %v2838, 0
        %v3213 = vsel %vm423, %v2843, 0
        %v3216 = vsel %vm423, %v2848, 0
        %v3219 = vsel %vm423, %v2853, 0
        %v3222 = vsel %vm423, %v2858, 0
        %v3225 = vsel %vm423, %v2863, 0
        %v3228 = vsel %vm423, %v2868, 0
        %v3231 = vsel %vm423, %v2873, 0
        %v3234 = vsel %vm423, %v2878, 0
        %v3237 = vsel %vm423, %v2883, 0
        %v3240 = vsel %vm423, %v2888, 0
        %v3243 = vsel %vm423, %v2893, 0
        %v3246 = vsel %vm423, %v2898, 0
        %v3249 = vsel %vm423, %v2903, 0
        %v3252 = vsel %vm423, %v2908, 0
        %v3255 = vsel %vm423, %v2913, 0
        %3257 = vmatprep.subr.bf16.mxu0 0
        %3258 = vmatpush1.bf16.msra.mxu0 %v3137
        %3259 = vmatprep.subr.bf16.mxu0 0
        %3260 = vmatpush1.bf16.msra.mxu0 %v3138
        %3261 = vmatprep.subr.bf16.mxu0 0
        %3262 = vmatpush1.bf16.msra.mxu0 %v3139
        %3263 = vmatprep.subr.bf16.mxu0 0
        %3264 = vmatpush1.bf16.msra.mxu0 %v3140
        %3265 = vmatprep.subr.bf16.mxu0 0
        %3266 = vmatpush1.bf16.msra.mxu0 %v3141
        %3267 = vmatprep.subr.bf16.mxu0 0
        %3268 = vmatpush1.bf16.msra.mxu0 %v3142
        %3269 = vmatprep.subr.bf16.mxu0 0
        %3270 = vmatpush1.bf16.msra.mxu0 %v3143
        %3271 = vmatprep.subr.bf16.mxu0 0
        %3272 = vmatpush1.bf16.msra.mxu0 %v3144
        %3273 = vmatprep.subr.bf16.mxu0 0
        %3274 = vmatpush1.bf16.msra.mxu0 %v3145
        %3275 = vmatprep.subr.bf16.mxu0 0
        %3276 = vmatpush1.bf16.msra.mxu0 %v3146
        %3277 = vmatprep.subr.bf16.mxu0 0
        %3278 = vmatpush1.bf16.msra.mxu0 %v3147
        %3279 = vmatprep.subr.bf16.mxu0 0
        %3280 = vmatpush1.bf16.msra.mxu0 %v3148
        %3281 = vmatprep.subr.bf16.mxu0 0
        %3282 = vmatpush1.bf16.msra.mxu0 %v3149
        %3283 = vmatprep.subr.bf16.mxu0 0
        %3284 = vmatpush1.bf16.msra.mxu0 %v3150
        %3285 = vmatprep.subr.bf16.mxu0 0
        %3286 = vmatpush1.bf16.msra.mxu0 %v3151
        %3287 = vmatprep.subr.bf16.mxu0 0
        %3288 = vmatpush1.bf16.msra.mxu0 %v3152
        %3289 = vmatprep.mubr.bf16.mxu0 %v2835
        %3290 = vmatmul.mubr.bf16.gmra.mrb[0].mxu0 %v2834
        %v3291 = vpop.f32.mrb[0].mxu0
        %v3292 = vadd.f32 %v2991, %v3291
        %v3293 = vpop.f32.mrb[0].mxu0
        %v3294 = vpop.f32.mrb[0].mxu0
        %v3295 = vadd.f32 %v2991, %v3294
        %v3296 = vpop.f32.mrb[0].mxu0
        %3297 = vmatprep.mubr.bf16.mxu0 %v2840
        %3298 = vmatmul.mubr.bf16.gmra.mrb[0].mxu0 %v2839
        %v3299 = vpop.f32.mrb[0].mxu0
        %v3300 = vadd.f32 %v2991, %v3299
        %v3301 = vpop.f32.mrb[0].mxu0
        %v3302 = vpop.f32.mrb[0].mxu0
        %v3303 = vadd.f32 %v2991, %v3302
        %v3304 = vpop.f32.mrb[0].mxu0
        %3305 = vmatprep.mubr.bf16.mxu0 %v2845
        %3306 = vmatmul.mubr.bf16.gmra.mrb[0].mxu0 %v2844
        %v3307 = vpop.f32.mrb[0].mxu0
        %v3308 = vadd.f32 %v2991, %v3307
        %v3309 = vpop.f32.mrb[0].mxu0
        %v3310 = vpop.f32.mrb[0].mxu0
        %v3311 = vadd.f32 %v2991, %v3310
        %v3312 = vpop.f32.mrb[0].mxu0
        %3313 = vmatprep.mubr.bf16.mxu0 %v2850
        %3314 = vmatmul.mubr.bf16.gmra.mrb[0].mxu0 %v2849
        %v3315 = vpop.f32.mrb[0].mxu0
        %v3316 = vadd.f32 %v2991, %v3315
        %v3317 = vpop.f32.mrb[0].mxu0
        %v3318 = vpop.f32.mrb[0].mxu0
        %v3319 = vadd.f32 %v2991, %v3318
        %v3320 = vpop.f32.mrb[0].mxu0
        %3321 = vmatprep.mubr.bf16.mxu0 %v2855
        %3322 = vmatmul.mubr.bf16.gmra.mrb[0].mxu0 %v2854
        %v3323 = vpop.f32.mrb[0].mxu0
        %v3324 = vadd.f32 %v2991, %v3323
        %v3325 = vpop.f32.mrb[0].mxu0
        %v3326 = vpop.f32.mrb[0].mxu0
        %v3327 = vadd.f32 %v2991, %v3326
        %v3328 = vpop.f32.mrb[0].mxu0
        %3329 = vmatprep.mubr.bf16.mxu0 %v2860
        %3330 = vmatmul.mubr.bf16.gmra.mrb[0].mxu0 %v2859
        %v3331 = vpop.f32.mrb[0].mxu0
        %v3332 = vadd.f32 %v2991, %v3331
        %v3333 = vpop.f32.mrb[0].mxu0
        %v3334 = vpop.f32.mrb[0].mxu0
        %v3335 = vadd.f32 %v2991, %v3334
        %v3336 = vpop.f32.mrb[0].mxu0
        %3337 = vmatprep.mubr.bf16.mxu0 %v2865
        %3338 = vmatmul.mubr.bf16.gmra.mrb[0].mxu0 %v2864
        %v3339 = vpop.f32.mrb[0].mxu0
        %v3340 = vadd.f32 %v2991, %v3339
        %v3341 = vpop.f32.mrb[0].mxu0
        %v3342 = vpop.f32.mrb[0].mxu0
        %v3343 = vadd.f32 %v2991, %v3342
        %v3344 = vpop.f32.mrb[0].mxu0
        %3345 = vmatprep.mubr.bf16.mxu0 %v2870
        %3346 = vmatmul.mubr.bf16.gmra.mrb[0].mxu0 %v2869
        %v3347 = vpop.f32.mrb[0].mxu0
        %v3348 = vadd.f32 %v2991, %v3347
        %v3349 = vpop.f32.mrb[0].mxu0
        %v3350 = vpop.f32.mrb[0].mxu0
        %v3351 = vadd.f32 %v2991, %v3350
        %v3352 = vpop.f32.mrb[0].mxu0
        %3353 = vmatprep.mubr.bf16.mxu0 %v2875
        %3354 = vmatmul.mubr.bf16.gmra.mrb[0].mxu0 %v2874
        %v3355 = vpop.f32.mrb[0].mxu0
        %v3356 = vadd.f32 %v2991, %v3355
        %v3357 = vpop.f32.mrb[0].mxu0
        %v3358 = vpop.f32.mrb[0].mxu0
        %v3359 = vadd.f32 %v2991, %v3358
        %v3360 = vpop.f32.mrb[0].mxu0
        %3361 = vmatprep.mubr.bf16.mxu0 %v2880
        %3362 = vmatmul.mubr.bf16.gmra.mrb[0].mxu0 %v2879
        %v3363 = vpop.f32.mrb[0].mxu0
        %v3364 = vadd.f32 %v2991, %v3363
        %v3365 = vpop.f32.mrb[0].mxu0
        %v3366 = vpop.f32.mrb[0].mxu0
        %v3367 = vadd.f32 %v2991, %v3366
        %v3368 = vpop.f32.mrb[0].mxu0
        %3369 = vmatprep.mubr.bf16.mxu0 %v2885
        %3370 = vmatmul.mubr.bf16.gmra.mrb[0].mxu0 %v2884
        %v3371 = vpop.f32.mrb[0].mxu0
        %v3372 = vadd.f32 %v2991, %v3371
        %v3373 = vpop.f32.mrb[0].mxu0
        %v3374 = vpop.f32.mrb[0].mxu0
        %v3375 = vadd.f32 %v2991, %v3374
        %v3376 = vpop.f32.mrb[0].mxu0
        %3377 = vmatprep.mubr.bf16.mxu0 %v2890
        %3378 = vmatmul.mubr.bf16.gmra.mrb[0].mxu0 %v2889
        %v3379 = vpop.f32.mrb[0].mxu0
        %v3380 = vadd.f32 %v2991, %v3379
        %v3381 = vpop.f32.mrb[0].mxu0
        %v3382 = vpop.f32.mrb[0].mxu0
        %v3383 = vadd.f32 %v2991, %v3382
        %v3384 = vpop.f32.mrb[0].mxu0
        %3385 = vmatprep.mubr.bf16.mxu0 %v2895
        %3386 = vmatmul.mubr.bf16.gmra.mrb[0].mxu0 %v2894
        %v3387 = vpop.f32.mrb[0].mxu0
        %v3388 = vadd.f32 %v2991, %v3387
        %v3389 = vpop.f32.mrb[0].mxu0
        %v3390 = vpop.f32.mrb[0].mxu0
        %v3391 = vadd.f32 %v2991, %v3390
        %v3392 = vpop.f32.mrb[0].mxu0
        %3393 = vmatprep.mubr.bf16.mxu0 %v2900
        %3394 = vmatmul.mubr.bf16.gmra.mrb[0].mxu0 %v2899
        %v3395 = vpop.f32.mrb[0].mxu0
        %v3396 = vadd.f32 %v2991, %v3395
        %v3397 = vpop.f32.mrb[0].mxu0
        %v3398 = vpop.f32.mrb[0].mxu0
        %v3399 = vadd.f32 %v2991, %v3398
        %v3400 = vpop.f32.mrb[0].mxu0
        %3401 = vmatprep.mubr.bf16.mxu0 %v2905
        %3402 = vmatmul.mubr.bf16.gmra.mrb[0].mxu0 %v2904
        %v3403 = vpop.f32.mrb[0].mxu0
        %v3404 = vadd.f32 %v2991, %v3403
        %v3405 = vpop.f32.mrb[0].mxu0
        %v3406 = vpop.f32.mrb[0].mxu0
        %v3407 = vadd.f32 %v2991, %v3406
        %v3408 = vpop.f32.mrb[0].mxu0
        %3409 = vmatprep.mubr.bf16.mxu0 %v2910
        %3410 = vmatmul.mubr.bf16.gmra.mrb[0].mxu0 %v2909
        %v3411 = vpop.f32.mrb[0].mxu0
        %v3412 = vadd.f32 %v2991, %v3411
        %v3413 = vpop.f32.mrb[0].mxu0
        %v3414 = vpop.f32.mrb[0].mxu0
        %v3415 = vadd.f32 %v2991, %v3414
        %v3416 = vpop.f32.mrb[0].mxu0
        %3417 = vdwg.mxu0
        %3418 = vmatprep.subr.bf16.mxu0 0
        %3419 = vmatpush1.bf16.msra.mxu0 %v3153
        %3420 = vmatprep.subr.bf16.mxu0 0
        %3421 = vmatpush1.bf16.msra.mxu0 %v3154
        %3422 = vmatprep.subr.bf16.mxu0 0
        %3423 = vmatpush1.bf16.msra.mxu0 %v3155
        %3424 = vmatprep.subr.bf16.mxu0 0
        %3425 = vmatpush1.bf16.msra.mxu0 %v3156
        %3426 = vmatprep.subr.bf16.mxu0 0
        %3427 = vmatpush1.bf16.msra.mxu0 %v3157
        %3428 = vmatprep.subr.bf16.mxu0 0
        %3429 = vmatpush1.bf16.msra.mxu0 %v3158
        %3430 = vmatprep.subr.bf16.mxu0 0
        %3431 = vmatpush1.bf16.msra.mxu0 %v3159
        %3432 = vmatprep.subr.bf16.mxu0 0
        %3433 = vmatpush1.bf16.msra.mxu0 %v3160
        %3434 = vmatprep.subr.bf16.mxu0 0
        %3435 = vmatpush1.bf16.msra.mxu0 %v3161
        %3436 = vmatprep.subr.bf16.mxu0 0
        %3437 = vmatpush1.bf16.msra.mxu0 %v3162
        %3438 = vmatprep.subr.bf16.mxu0 0
        %3439 = vmatpush1.bf16.msra.mxu0 %v3163
        %3440 = vmatprep.subr.bf16.mxu0 0
        %3441 = vmatpush1.bf16.msra.mxu0 %v3164
        %3442 = vmatprep.subr.bf16.mxu0 0
        %3443 = vmatpush1.bf16.msra.mxu0 %v3165
        %3444 = vmatprep.subr.bf16.mxu0 0
        %3445 = vmatpush1.bf16.msra.mxu0 %v3166
        %3446 = vmatprep.subr.bf16.mxu0 0
        %3447 = vmatpush1.bf16.msra.mxu0 %v3167
        %3448 = vmatprep.subr.bf16.mxu0 0
        %3449 = vmatpush1.bf16.msra.mxu0 %v3168
        %3450 = vmatprep.mubr.bf16.mxu0 %v2837
        %3451 = vmatmul.mubr.bf16.gmra.mrb[0].mxu0 %v2836
        %v3452 = vpop.f32.mrb[0].mxu0
        %v3453 = vadd.f32 %v3292, %v3452
        %v3454 = vpop.f32.mrb[0].mxu0
        %v3455 = vpop.f32.mrb[0].mxu0
        %v3456 = vadd.f32 %v3295, %v3455
        %v3457 = vpop.f32.mrb[0].mxu0
        %3458 = vmatprep.mubr.bf16.mxu0 %v2842
        %3459 = vmatmul.mubr.bf16.gmra.mrb[0].mxu0 %v2841
        %v3460 = vpop.f32.mrb[0].mxu0
        %v3461 = vadd.f32 %v3300, %v3460
        %v3462 = vpop.f32.mrb[0].mxu0
        %v3463 = vpop.f32.mrb[0].mxu0
        %v3464 = vadd.f32 %v3303, %v3463
        %v3465 = vpop.f32.mrb[0].mxu0
        %3466 = vmatprep.mubr.bf16.mxu0 %v2847
        %3467 = vmatmul.mubr.bf16.gmra.mrb[0].mxu0 %v2846
        %v3468 = vpop.f32.mrb[0].mxu0
        %v3469 = vadd.f32 %v3308, %v3468
        %v3470 = vpop.f32.mrb[0].mxu0
        %v3471 = vpop.f32.mrb[0].mxu0
        %v3472 = vadd.f32 %v3311, %v3471
        %v3473 = vpop.f32.mrb[0].mxu0
        %3474 = vmatprep.mubr.bf16.mxu0 %v2852
        %3475 = vmatmul.mubr.bf16.gmra.mrb[0].mxu0 %v2851
        %v3476 = vpop.f32.mrb[0].mxu0
        %v3477 = vadd.f32 %v3316, %v3476
        %v3478 = vpop.f32.mrb[0].mxu0
        %v3479 = vpop.f32.mrb[0].mxu0
        %v3480 = vadd.f32 %v3319, %v3479
        %v3481 = vpop.f32.mrb[0].mxu0
        %3482 = vmatprep.mubr.bf16.mxu0 %v2857
        %3483 = vmatmul.mubr.bf16.gmra.mrb[0].mxu0 %v2856
        %v3484 = vpop.f32.mrb[0].mxu0
        %v3485 = vadd.f32 %v3324, %v3484
        %v3486 = vpop.f32.mrb[0].mxu0
        %v3487 = vpop.f32.mrb[0].mxu0
        %v3488 = vadd.f32 %v3327, %v3487
        %v3489 = vpop.f32.mrb[0].mxu0
        %3490 = vmatprep.mubr.bf16.mxu0 %v2862
        %3491 = vmatmul.mubr.bf16.gmra.mrb[0].mxu0 %v2861
        %v3492 = vpop.f32.mrb[0].mxu0
        %v3493 = vadd.f32 %v3332, %v3492
        %v3494 = vpop.f32.mrb[0].mxu0
        %v3495 = vpop.f32.mrb[0].mxu0
        %v3496 = vadd.f32 %v3335, %v3495
        %v3497 = vpop.f32.mrb[0].mxu0
        %3498 = vmatprep.mubr.bf16.mxu0 %v2867
        %3499 = vmatmul.mubr.bf16.gmra.mrb[0].mxu0 %v2866
        %v3500 = vpop.f32.mrb[0].mxu0
        %v3501 = vadd.f32 %v3340, %v3500
        %v3502 = vpop.f32.mrb[0].mxu0
        %v3503 = vpop.f32.mrb[0].mxu0
        %v3504 = vadd.f32 %v3343, %v3503
        %v3505 = vpop.f32.mrb[0].mxu0
        %3506 = vmatprep.mubr.bf16.mxu0 %v2872
        %3507 = vmatmul.mubr.bf16.gmra.mrb[0].mxu0 %v2871
        %v3508 = vpop.f32.mrb[0].mxu0
        %v3509 = vadd.f32 %v3348, %v3508
        %v3510 = vpop.f32.mrb[0].mxu0
        %v3511 = vpop.f32.mrb[0].mxu0
        %v3512 = vadd.f32 %v3351, %v3511
        %v3513 = vpop.f32.mrb[0].mxu0
        %3514 = vmatprep.mubr.bf16.mxu0 %v2877
        %3515 = vmatmul.mubr.bf16.gmra.mrb[0].mxu0 %v2876
        %v3516 = vpop.f32.mrb[0].mxu0
        %v3517 = vadd.f32 %v3356, %v3516
        %v3518 = vpop.f32.mrb[0].mxu0
        %v3519 = vpop.f32.mrb[0].mxu0
        %v3520 = vadd.f32 %v3359, %v3519
        %v3521 = vpop.f32.mrb[0].mxu0
        %3522 = vmatprep.mubr.bf16.mxu0 %v2882
        %3523 = vmatmul.mubr.bf16.gmra.mrb[0].mxu0 %v2881
        %v3524 = vpop.f32.mrb[0].mxu0
        %v3525 = vadd.f32 %v3364, %v3524
        %v3526 = vpop.f32.mrb[0].mxu0
        %v3527 = vpop.f32.mrb[0].mxu0
        %v3528 = vadd.f32 %v3367, %v3527
        %v3529 = vpop.f32.mrb[0].mxu0
        %3530 = vmatprep.mubr.bf16.mxu0 %v2887
        %3531 = vmatmul.mubr.bf16.gmra.mrb[0].mxu0 %v2886
        %v3532 = vpop.f32.mrb[0].mxu0
        %v3533 = vadd.f32 %v3372, %v3532
        %v3534 = vpop.f32.mrb[0].mxu0
        %v3535 = vpop.f32.mrb[0].mxu0
        %v3536 = vadd.f32 %v3375, %v3535
        %v3537 = vpop.f32.mrb[0].mxu0
        %3538 = vmatprep.mubr.bf16.mxu0 %v2892
        %3539 = vmatmul.mubr.bf16.gmra.mrb[0].mxu0 %v2891
        %v3540 = vpop.f32.mrb[0].mxu0
        %v3541 = vadd.f32 %v3380, %v3540
        %v3542 = vpop.f32.mrb[0].mxu0
        %v3543 = vpop.f32.mrb[0].mxu0
        %v3544 = vadd.f32 %v3383, %v3543
        %v3545 = vpop.f32.mrb[0].mxu0
        %3546 = vmatprep.mubr.bf16.mxu0 %v2897
        %3547 = vmatmul.mubr.bf16.gmra.mrb[0].mxu0 %v2896
        %v3548 = vpop.f32.mrb[0].mxu0
        %v3549 = vadd.f32 %v3388, %v3548
        %v3550 = vpop.f32.mrb[0].mxu0
        %v3551 = vpop.f32.mrb[0].mxu0
        %v3552 = vadd.f32 %v3391, %v3551
        %v3553 = vpop.f32.mrb[0].mxu0
        %3554 = vmatprep.mubr.bf16.mxu0 %v2902
        %3555 = vmatmul.mubr.bf16.gmra.mrb[0].mxu0 %v2901
        %v3556 = vpop.f32.mrb[0].mxu0
        %v3557 = vadd.f32 %v3396, %v3556
        %v3558 = vpop.f32.mrb[0].mxu0
        %v3559 = vpop.f32.mrb[0].mxu0
        %v3560 = vadd.f32 %v3399, %v3559
        %v3561 = vpop.f32.mrb[0].mxu0
        %3562 = vmatprep.mubr.bf16.mxu0 %v2907
        %3563 = vmatmul.mubr.bf16.gmra.mrb[0].mxu0 %v2906
        %v3564 = vpop.f32.mrb[0].mxu0
        %v3565 = vadd.f32 %v3404, %v3564
        %v3566 = vpop.f32.mrb[0].mxu0
        %v3567 = vpop.f32.mrb[0].mxu0
        %v3568 = vadd.f32 %v3407, %v3567
        %v3569 = vpop.f32.mrb[0].mxu0
        %3570 = vmatprep.mubr.bf16.mxu0 %v2912
        %3571 = vmatmul.mubr.bf16.gmra.mrb[0].mxu0 %v2911
        %v3572 = vpop.f32.mrb[0].mxu0
        %v3573 = vadd.f32 %v3412, %v3572
        %v3574 = vpop.f32.mrb[0].mxu0
        %v3575 = vpop.f32.mrb[0].mxu0
        %v3576 = vadd.f32 %v3415, %v3575
        %v3577 = vpop.f32.mrb[0].mxu0
        %3578 = vdwg.mxu0
        %3579 = vmatprep.subr.bf16.mxu0 0
        %3580 = vmatpush1.bf16.msra.mxu0 %v3169
        %3581 = vmatprep.subr.bf16.mxu0 0
        %3582 = vmatpush1.bf16.msra.mxu0 %v3170
        %3583 = vmatprep.subr.bf16.mxu0 0
        %3584 = vmatpush1.bf16.msra.mxu0 %v3171
        %3585 = vmatprep.subr.bf16.mxu0 0
        %3586 = vmatpush1.bf16.msra.mxu0 %v3172
        %3587 = vmatprep.subr.bf16.mxu0 0
        %3588 = vmatpush1.bf16.msra.mxu0 0
        %3589 = vmatprep.subr.bf16.mxu0 0
        %3590 = vmatpush1.bf16.msra.mxu0 0
        %3591 = vmatprep.subr.bf16.mxu0 0
        %3592 = vmatpush1.bf16.msra.mxu0 0
        %3593 = vmatprep.subr.bf16.mxu0 0
        %3594 = vmatpush1.bf16.msra.mxu0 0
        %3595 = vmatprep.subr.bf16.mxu0 0
        %3596 = vmatpush1.bf16.msra.mxu0 0
        %3597 = vmatprep.subr.bf16.mxu0 0
        %3598 = vmatpush1.bf16.msra.mxu0 0
        %3599 = vmatprep.subr.bf16.mxu0 0
        %3600 = vmatpush1.bf16.msra.mxu0 0
        %3601 = vmatprep.subr.bf16.mxu0 0
        %3602 = vmatpush1.bf16.msra.mxu0 0
        %3603 = vmatprep.subr.bf16.mxu0 0
        %3604 = vmatpush1.bf16.msra.mxu0 0
        %3605 = vmatprep.subr.bf16.mxu0 0
        %3606 = vmatpush1.bf16.msra.mxu0 0
        %3607 = vmatprep.subr.bf16.mxu0 0
        %3608 = vmatpush1.bf16.msra.mxu0 0
        %3609 = vmatprep.subr.bf16.mxu0 0
        %3610 = vmatpush1.bf16.msra.mxu0 0
        %3611 = vmatprep.mubr.bf16.mxu0 0
        %3612 = vmatmul.mubr.bf16.gmra.mrb[0].mxu0 %v3210
        %v3613 = vpop.f32.mrb[0].mxu0
        %v3614 = vadd.f32 %v3453, %v3613
        %v3615 = vpop.f32.mrb[0].mxu0
        %v3616 = vpop.f32.mrb[0].mxu0
        %v3617 = vadd.f32 %v3456, %v3616
        %v3618 = vpop.f32.mrb[0].mxu0
        %3619 = vmatprep.mubr.bf16.mxu0 0
        %3620 = vmatmul.mubr.bf16.gmra.mrb[0].mxu0 %v3213
        %v3621 = vpop.f32.mrb[0].mxu0
        %v3622 = vadd.f32 %v3461, %v3621
        %v3623 = vpop.f32.mrb[0].mxu0
        %v3624 = vpop.f32.mrb[0].mxu0
        %v3625 = vadd.f32 %v3464, %v3624
        %v3626 = vpop.f32.mrb[0].mxu0
        %3627 = vmatprep.mubr.bf16.mxu0 0
        %3628 = vmatmul.mubr.bf16.gmra.mrb[0].mxu0 %v3216
        %v3629 = vpop.f32.mrb[0].mxu0
        %v3630 = vadd.f32 %v3469, %v3629
        %v3631 = vpop.f32.mrb[0].mxu0
        %v3632 = vpop.f32.mrb[0].mxu0
        %v3633 = vadd.f32 %v3472, %v3632
        %v3634 = vpop.f32.mrb[0].mxu0
        %3635 = vmatprep.mubr.bf16.mxu0 0
        %3636 = vmatmul.mubr.bf16.gmra.mrb[0].mxu0 %v3219
        %v3637 = vpop.f32.mrb[0].mxu0
        %v3638 = vadd.f32 %v3477, %v3637
        %v3639 = vpop.f32.mrb[0].mxu0
        %v3640 = vpop.f32.mrb[0].mxu0
        %v3641 = vadd.f32 %v3480, %v3640
        %v3642 = vpop.f32.mrb[0].mxu0
        %3643 = vmatprep.mubr.bf16.mxu0 0
        %3644 = vmatmul.mubr.bf16.gmra.mrb[0].mxu0 %v3222
        %v3645 = vpop.f32.mrb[0].mxu0
        %v3646 = vadd.f32 %v3485, %v3645
        %v3647 = vpop.f32.mrb[0].mxu0
        %v3648 = vpop.f32.mrb[0].mxu0
        %v3649 = vadd.f32 %v3488, %v3648
        %v3650 = vpop.f32.mrb[0].mxu0
        %3651 = vmatprep.mubr.bf16.mxu0 0
        %3652 = vmatmul.mubr.bf16.gmra.mrb[0].mxu0 %v3225
        %v3653 = vpop.f32.mrb[0].mxu0
        %v3654 = vadd.f32 %v3493, %v3653
        %v3655 = vpop.f32.mrb[0].mxu0
        %v3656 = vpop.f32.mrb[0].mxu0
        %v3657 = vadd.f32 %v3496, %v3656
        %v3658 = vpop.f32.mrb[0].mxu0
        %3659 = vmatprep.mubr.bf16.mxu0 0
        %3660 = vmatmul.mubr.bf16.gmra.mrb[0].mxu0 %v3228
        %v3661 = vpop.f32.mrb[0].mxu0
        %v3662 = vadd.f32 %v3501, %v3661
        %v3663 = vpop.f32.mrb[0].mxu0
        %v3664 = vpop.f32.mrb[0].mxu0
        %v3665 = vadd.f32 %v3504, %v3664
        %v3666 = vpop.f32.mrb[0].mxu0
        %3667 = vmatprep.mubr.bf16.mxu0 0
        %3668 = vmatmul.mubr.bf16.gmra.mrb[0].mxu0 %v3231
        %v3669 = vpop.f32.mrb[0].mxu0
        %v3670 = vadd.f32 %v3509, %v3669
        %v3671 = vpop.f32.mrb[0].mxu0
        %v3672 = vpop.f32.mrb[0].mxu0
        %v3673 = vadd.f32 %v3512, %v3672
        %v3674 = vpop.f32.mrb[0].mxu0
        %3675 = vmatprep.mubr.bf16.mxu0 0
        %3676 = vmatmul.mubr.bf16.gmra.mrb[0].mxu0 %v3234
        %v3677 = vpop.f32.mrb[0].mxu0
        %v3678 = vadd.f32 %v3517, %v3677
        %v3679 = vpop.f32.mrb[0].mxu0
        %v3680 = vpop.f32.mrb[0].mxu0
        %v3681 = vadd.f32 %v3520, %v3680
        %v3682 = vpop.f32.mrb[0].mxu0
        %3683 = vmatprep.mubr.bf16.mxu0 0
        %3684 = vmatmul.mubr.bf16.gmra.mrb[0].mxu0 %v3237
        %v3685 = vpop.f32.mrb[0].mxu0
        %v3686 = vadd.f32 %v3525, %v3685
        %v3687 = vpop.f32.mrb[0].mxu0
        %v3688 = vpop.f32.mrb[0].mxu0
        %v3689 = vadd.f32 %v3528, %v3688
        %v3690 = vpop.f32.mrb[0].mxu0
        %3691 = vmatprep.mubr.bf16.mxu0 0
        %3692 = vmatmul.mubr.bf16.gmra.mrb[0].mxu0 %v3240
        %v3693 = vpop.f32.mrb[0].mxu0
        %v3694 = vadd.f32 %v3533, %v3693
        %v3695 = vpop.f32.mrb[0].mxu0
        %v3696 = vpop.f32.mrb[0].mxu0
        %v3697 = vadd.f32 %v3536, %v3696
        %v3698 = vpop.f32.mrb[0].mxu0
        %3699 = vmatprep.mubr.bf16.mxu0 0
        %3700 = vmatmul.mubr.bf16.gmra.mrb[0].mxu0 %v3243
        %v3701 = vpop.f32.mrb[0].mxu0
        %v3702 = vadd.f32 %v3541, %v3701
        %v3703 = vpop.f32.mrb[0].mxu0
        %v3704 = vpop.f32.mrb[0].mxu0
        %v3705 = vadd.f32 %v3544, %v3704
        %v3706 = vpop.f32.mrb[0].mxu0
        %3707 = vmatprep.mubr.bf16.mxu0 0
        %3708 = vmatmul.mubr.bf16.gmra.mrb[0].mxu0 %v3246
        %v3709 = vpop.f32.mrb[0].mxu0
        %v3710 = vadd.f32 %v3549, %v3709
        %v3711 = vpop.f32.mrb[0].mxu0
        %v3712 = vpop.f32.mrb[0].mxu0
        %v3713 = vadd.f32 %v3552, %v3712
        %v3714 = vpop.f32.mrb[0].mxu0
        %3715 = vmatprep.mubr.bf16.mxu0 0
        %3716 = vmatmul.mubr.bf16.gmra.mrb[0].mxu0 %v3249
        %v3717 = vpop.f32.mrb[0].mxu0
        %v3718 = vadd.f32 %v3557, %v3717
        %v3719 = vpop.f32.mrb[0].mxu0
        %v3720 = vpop.f32.mrb[0].mxu0
        %v3721 = vadd.f32 %v3560, %v3720
        %v3722 = vpop.f32.mrb[0].mxu0
        %3723 = vmatprep.mubr.bf16.mxu0 0
        %3724 = vmatmul.mubr.bf16.gmra.mrb[0].mxu0 %v3252
        %v3725 = vpop.f32.mrb[0].mxu0
        %v3726 = vadd.f32 %v3565, %v3725
        %v3727 = vpop.f32.mrb[0].mxu0
        %v3728 = vpop.f32.mrb[0].mxu0
        %v3729 = vadd.f32 %v3568, %v3728
        %v3730 = vpop.f32.mrb[0].mxu0
        %3731 = vmatprep.mubr.bf16.mxu0 0
        %3732 = vmatmul.mubr.bf16.gmra.mrb[0].mxu0 %v3255
        %v3733 = vpop.f32.mrb[0].mxu0
        %v3734 = vadd.f32 %v3573, %v3733
        %v3735 = vpop.f32.mrb[0].mxu0
        %v3736 = vpop.f32.mrb[0].mxu0
        %v3737 = vadd.f32 %v3576, %v3736
        %v3738 = vpop.f32.mrb[0].mxu0
        %3739 = vdwg.mxu0
        %v3740 = vmax.f32 %v3614, 0.0
        %v3741 = vmax.f32 %v3617, 0.0
        %v3742 = vmax.f32 %v3622, 0.0
        %v3743 = vmax.f32 %v3625, 0.0
        %v3744 = vmax.f32 %v3630, 0.0
        %v3745 = vmax.f32 %v3633, 0.0
        %v3746 = vmax.f32 %v3638, 0.0
        %v3747 = vmax.f32 %v3641, 0.0
        %v3748 = vmax.f32 %v3646, 0.0
        %v3749 = vmax.f32 %v3649, 0.0
        %v3750 = vmax.f32 %v3654, 0.0
        %v3751 = vmax.f32 %v3657, 0.0
        %v3752 = vmax.f32 %v3662, 0.0
        %v3753 = vmax.f32 %v3665, 0.0
        %v3754 = vmax.f32 %v3670, 0.0
        %v3755 = vmax.f32 %v3673, 0.0
        %v3756 = vmax.f32 %v3678, 0.0
        %v3757 = vmax.f32 %v3681, 0.0
        %v3758 = vmax.f32 %v3686, 0.0
        %v3759 = vmax.f32 %v3689, 0.0
        %v3760 = vmax.f32 %v3694, 0.0
        %v3761 = vmax.f32 %v3697, 0.0
        %v3762 = vmax.f32 %v3702, 0.0
        %v3763 = vmax.f32 %v3705, 0.0
        %v3764 = vmax.f32 %v3710, 0.0
        %v3765 = vmax.f32 %v3713, 0.0
        %v3766 = vmax.f32 %v3718, 0.0
        %v3767 = vmax.f32 %v3721, 0.0
        %v3768 = vmax.f32 %v3726, 0.0
        %v3769 = vmax.f32 %v3729, 0.0
        %v3770 = vmax.f32 %v3734, 0.0
        %v3771 = vmax.f32 %v3737, 0.0
        %3772 = vst.msk [vmem:[%s476 + $0x8] sm:$0xff] %vm423, %v3740
        %3773 = vst.msk [vmem:[%s476 + $0x10] sm:$0xff] %vm423, %v3741
        %3774 = vst.msk [vmem:[%s476 + $0x28] sm:$0xff] %vm423, %v3742
        %3775 = vst.msk [vmem:[%s476 + $0x30] sm:$0xff] %vm423, %v3743
        %3776 = vst.msk [vmem:[%s476 + $0x48] sm:$0xff] %vm423, %v3744
        %3777 = vst.msk [vmem:[%s476 + $0x50] sm:$0xff] %vm423, %v3745
        %3778 = vst.msk [vmem:[%s476 + $0x68] sm:$0xff] %vm423, %v3746
        %3779 = vst.msk [vmem:[%s476 + $0x70] sm:$0xff] %vm423, %v3747
        %3780 = vst.msk [vmem:[%s476 + $0x88] sm:$0xff] %vm423, %v3748
        %3781 = vst.msk [vmem:[%s476 + $0x90] sm:$0xff] %vm423, %v3749
        %3782 = vst.msk [vmem:[%s476 + $0xa8] sm:$0xff] %vm423, %v3750
        %3783 = vst.msk [vmem:[%s476 + $0xb0] sm:$0xff] %vm423, %v3751
        %3784 = vst.msk [vmem:[%s476 + $0xc8] sm:$0xff] %vm423, %v3752
        %3785 = vst.msk [vmem:[%s476 + $0xd0] sm:$0xff] %vm423, %v3753
        %3786 = vst.msk [vmem:[%s476 + $0xe8] sm:$0xff] %vm423, %v3754
        %3787 = vst.msk [vmem:[%s476 + $0xf0] sm:$0xff] %vm423, %v3755
        %3788 = vst.msk [vmem:[%s476 + $0x108] sm:$0xff] %vm423, %v3756
        %3789 = vst.msk [vmem:[%s476 + $0x110] sm:$0xff] %vm423, %v3757
        %3790 = vst.msk [vmem:[%s476 + $0x128] sm:$0xff] %vm423, %v3758
        %3791 = vst.msk [vmem:[%s476 + $0x130] sm:$0xff] %vm423, %v3759
        %3792 = vst.msk [vmem:[%s476 + $0x148] sm:$0xff] %vm423, %v3760
        %3793 = vst.msk [vmem:[%s476 + $0x150] sm:$0xff] %vm423, %v3761
        %3794 = vst.msk [vmem:[%s476 + $0x168] sm:$0xff] %vm423, %v3762
        %3795 = vst.msk [vmem:[%s476 + $0x170] sm:$0xff] %vm423, %v3763
        %3796 = vst.msk [vmem:[%s476 + $0x188] sm:$0xff] %vm423, %v3764
        %3797 = vst.msk [vmem:[%s476 + $0x190] sm:$0xff] %vm423, %v3765
        %3798 = vst.msk [vmem:[%s476 + $0x1a8] sm:$0xff] %vm423, %v3766
        %3799 = vst.msk [vmem:[%s476 + $0x1b0] sm:$0xff] %vm423, %v3767
        %3800 = vst.msk [vmem:[%s476 + $0x1c8] sm:$0xff] %vm423, %v3768
        %3801 = vst.msk [vmem:[%s476 + $0x1d0] sm:$0xff] %vm423, %v3769
        %3802 = vst.msk [vmem:[%s476 + $0x1e8] sm:$0xff] %vm423, %v3770
        %3803 = vst.msk [vmem:[%s476 + $0x1f0] sm:$0xff] %vm423, %v3771
        %v3804 = vld [vmem:[#allocation4 + $0x7] sm:$0xff]
        %v3805 = vld [vmem:[#allocation4 + $0xf] sm:$0xff]
        %v3806 = vld [vmem:[#allocation4 + $0x27] sm:$0xff]
        %v3807 = vld [vmem:[#allocation4 + $0x2f] sm:$0xff]
        %v3808 = vld [vmem:[#allocation4 + $0x47] sm:$0xff]
        %v3809 = vld [vmem:[#allocation4 + $0x4f] sm:$0xff]
        %v3810 = vld [vmem:[#allocation4 + $0x67] sm:$0xff]
        %v3811 = vld [vmem:[#allocation4 + $0x6f] sm:$0xff]
        %v3812 = vld [vmem:[#allocation4 + $0x87] sm:$0xff]
        %v3813 = vld [vmem:[#allocation4 + $0x8f] sm:$0xff]
        %v3814 = vld [vmem:[#allocation4 + $0xa7] sm:$0xff]
        %v3815 = vld [vmem:[#allocation4 + $0xaf] sm:$0xff]
        %v3816 = vld [vmem:[#allocation4 + $0xc7] sm:$0xff]
        %v3817 = vld [vmem:[#allocation4 + $0xcf] sm:$0xff]
        %v3818 = vld [vmem:[#allocation4 + $0xe7] sm:$0xff]
        %v3819 = vld [vmem:[#allocation4 + $0xef] sm:$0xff]
        %v3820 = vld [vmem:[#allocation4 + $0x107] sm:$0xff]
        %v3821 = vld [vmem:[#allocation4 + $0x10f] sm:$0xff]
        %v3822 = vld [vmem:[#allocation4 + $0x127] sm:$0xff]
        %v3823 = vld [vmem:[#allocation4 + $0x12f] sm:$0xff]
        %v3824 = vld [vmem:[#allocation4 + $0x147] sm:$0xff]
        %v3825 = vld [vmem:[#allocation4 + $0x14f] sm:$0xff]
        %v3826 = vld [vmem:[#allocation4 + $0x167] sm:$0xff]
        %v3827 = vld [vmem:[#allocation4 + $0x16f] sm:$0xff]
        %v3828 = vld [vmem:[#allocation4 + $0x187] sm:$0xff]
        %v3829 = vld [vmem:[#allocation4 + $0x18f] sm:$0xff]
        %v3830 = vld [vmem:[#allocation4 + $0x1a7] sm:$0xff]
        %v3831 = vld [vmem:[#allocation4 + $0x1af] sm:$0xff]
        %v3832 = vld [vmem:[#allocation4 + $0x1c7] sm:$0xff]
        %v3833 = vld [vmem:[#allocation4 + $0x1cf] sm:$0xff]
        %v3834 = vld [vmem:[#allocation4 + $0x1e7] sm:$0xff]
        %v3835 = vld [vmem:[#allocation4 + $0x1ef] sm:$0xff]
        %v3836 = vpack.c.bf16 %v3805, %v3804
        %v3837 = vpack.c.bf16 %v3807, %v3806
        %v3838 = vpack.c.bf16 %v3809, %v3808
        %v3839 = vpack.c.bf16 %v3811, %v3810
        %v3840 = vpack.c.bf16 %v3813, %v3812
        %v3841 = vpack.c.bf16 %v3815, %v3814
        %v3842 = vpack.c.bf16 %v3817, %v3816
        %v3843 = vpack.c.bf16 %v3819, %v3818
        %v3844 = vpack.c.bf16 %v3821, %v3820
        %v3845 = vpack.c.bf16 %v3823, %v3822
        %v3846 = vpack.c.bf16 %v3825, %v3824
        %v3847 = vpack.c.bf16 %v3827, %v3826
        %v3848 = vpack.c.bf16 %v3829, %v3828
        %v3849 = vpack.c.bf16 %v3831, %v3830
        %v3850 = vpack.c.bf16 %v3833, %v3832
        %v3851 = vpack.c.bf16 %v3835, %v3834
        %3852 = vst.msk [vmem:[#allocation6] sm:$0xff] %vm423, %v3836
        %3853 = vst.msk [vmem:[#allocation6 + $0x28] sm:$0xff] %vm423, %v3837
        %3854 = vst.msk [vmem:[#allocation6 + $0x50] sm:$0xff] %vm423, %v3838
        %3855 = vst.msk [vmem:[#allocation6 + $0x78] sm:$0xff] %vm423, %v3839
        %3856 = vst.msk [vmem:[#allocation6 + $0xa0] sm:$0xff] %vm423, %v3840
        %3857 = vst.msk [vmem:[#allocation6 + $0xc8] sm:$0xff] %vm423, %v3841
        %3858 = vst.msk [vmem:[#allocation6 + $0xf0] sm:$0xff] %vm423, %v3842
        %3859 = vst.msk [vmem:[#allocation6 + $0x118] sm:$0xff] %vm423, %v3843
        %3860 = vst.msk [vmem:[#allocation6 + $0x140] sm:$0xff] %vm423, %v3844
        %3861 = vst.msk [vmem:[#allocation6 + $0x168] sm:$0xff] %vm423, %v3845
        %3862 = vst.msk [vmem:[#allocation6 + $0x190] sm:$0xff] %vm423, %v3846
        %3863 = vst.msk [vmem:[#allocation6 + $0x1b8] sm:$0xff] %vm423, %v3847
        %3864 = vst.msk [vmem:[#allocation6 + $0x1e0] sm:$0xff] %vm423, %v3848
        %3865 = vst.msk [vmem:[#allocation6 + $0x208] sm:$0xff] %vm423, %v3849
        %3866 = vst.msk [vmem:[#allocation6 + $0x230] sm:$0xff] %vm423, %v3850
        %3867 = vst.msk [vmem:[#allocation6 + $0x258] sm:$0xff] %vm423, %v3851
        %v3868 = vld [vmem:[#allocation4 + $0x8] sm:$0xff]
        %v3869 = vld [vmem:[#allocation4 + $0x10] sm:$0xff]
        %v3870 = vld [vmem:[#allocation4 + $0x28] sm:$0xff]
        %v3871 = vld [vmem:[#allocation4 + $0x30] sm:$0xff]
        %v3872 = vld [vmem:[#allocation4 + $0x48] sm:$0xff]
        %v3873 = vld [vmem:[#allocation4 + $0x50] sm:$0xff]
        %v3874 = vld [vmem:[#allocation4 + $0x68] sm:$0xff]
        %v3875 = vld [vmem:[#allocation4 + $0x70] sm:$0xff]
        %v3876 = vld [vmem:[#allocation4 + $0x88] sm:$0xff]
        %v3877 = vld [vmem:[#allocation4 + $0x90] sm:$0xff]
        %v3878 = vld [vmem:[#allocation4 + $0xa8] sm:$0xff]
        %v3879 = vld [vmem:[#allocation4 + $0xb0] sm:$0xff]
        %v3880 = vld [vmem:[#allocation4 + $0xc8] sm:$0xff]
        %v3881 = vld [vmem:[#allocation4 + $0xd0] sm:$0xff]
        %v3882 = vld [vmem:[#allocation4 + $0xe8] sm:$0xff]
        %v3883 = vld [vmem:[#allocation4 + $0xf0] sm:$0xff]
        %v3884 = vld [vmem:[#allocation4 + $0x108] sm:$0xff]
        %v3885 = vld [vmem:[#allocation4 + $0x110] sm:$0xff]
        %v3886 = vld [vmem:[#allocation4 + $0x128] sm:$0xff]
        %v3887 = vld [vmem:[#allocation4 + $0x130] sm:$0xff]
        %v3888 = vld [vmem:[#allocation4 + $0x148] sm:$0xff]
        %v3889 = vld [vmem:[#allocation4 + $0x150] sm:$0xff]
        %v3890 = vld [vmem:[#allocation4 + $0x168] sm:$0xff]
        %v3891 = vld [vmem:[#allocation4 + $0x170] sm:$0xff]
        %v3892 = vld [vmem:[#allocation4 + $0x188] sm:$0xff]
        %v3893 = vld [vmem:[#allocation4 + $0x190] sm:$0xff]
        %v3894 = vld [vmem:[#allocation4 + $0x1a8] sm:$0xff]
        %v3895 = vld [vmem:[#allocation4 + $0x1b0] sm:$0xff]
        %v3896 = vld [vmem:[#allocation4 + $0x1c8] sm:$0xff]
        %v3897 = vld [vmem:[#allocation4 + $0x1d0] sm:$0xff]
        %v3898 = vld [vmem:[#allocation4 + $0x1e8] sm:$0xff]
        %v3899 = vld [vmem:[#allocation4 + $0x1f0] sm:$0xff]
        %v3900 = vpack.c.bf16 %v3869, %v3868
        %v3901 = vpack.c.bf16 %v3871, %v3870
        %v3902 = vpack.c.bf16 %v3873, %v3872
        %v3903 = vpack.c.bf16 %v3875, %v3874
        %v3904 = vpack.c.bf16 %v3877, %v3876
        %v3905 = vpack.c.bf16 %v3879, %v3878
        %v3906 = vpack.c.bf16 %v3881, %v3880
        %v3907 = vpack.c.bf16 %v3883, %v3882
        %v3908 = vpack.c.bf16 %v3885, %v3884
        %v3909 = vpack.c.bf16 %v3887, %v3886
        %v3910 = vpack.c.bf16 %v3889, %v3888
        %v3911 = vpack.c.bf16 %v3891, %v3890
        %v3912 = vpack.c.bf16 %v3893, %v3892
        %v3913 = vpack.c.bf16 %v3895, %v3894
        %v3914 = vpack.c.bf16 %v3897, %v3896
        %v3915 = vpack.c.bf16 %v3899, %v3898
        %3932 = vrot.lane.b32.xlu0 %v3900, 64
        %v3933 = vpop.permute.xlu0 %3932
        %3934 = vrot.lane.b32.xlu0 %v3901, 64
        %v3935 = vpop.permute.xlu0 %3934
        %3936 = vrot.lane.b32.xlu0 %v3902, 64
        %v3937 = vpop.permute.xlu0 %3936
        %3938 = vrot.lane.b32.xlu0 %v3903, 64
        %v3939 = vpop.permute.xlu0 %3938
        %3940 = vrot.lane.b32.xlu0 %v3904, 64
        %v3941 = vpop.permute.xlu0 %3940
        %3942 = vrot.lane.b32.xlu0 %v3905, 64
        %v3943 = vpop.permute.xlu0 %3942
        %3944 = vrot.lane.b32.xlu0 %v3906, 64
        %v3945 = vpop.permute.xlu0 %3944
        %3946 = vrot.lane.b32.xlu0 %v3907, 64
        %v3947 = vpop.permute.xlu0 %3946
        %3948 = vrot.lane.b32.xlu0 %v3908, 64
        %v3949 = vpop.permute.xlu0 %3948
        %3950 = vrot.lane.b32.xlu0 %v3909, 64
        %v3951 = vpop.permute.xlu0 %3950
        %3952 = vrot.lane.b32.xlu0 %v3910, 64
        %v3953 = vpop.permute.xlu0 %3952
        %3954 = vrot.lane.b32.xlu0 %v3911, 64
        %v3955 = vpop.permute.xlu0 %3954
        %3956 = vrot.lane.b32.xlu0 %v3912, 64
        %v3957 = vpop.permute.xlu0 %3956
        %3958 = vrot.lane.b32.xlu0 %v3913, 64
        %v3959 = vpop.permute.xlu0 %3958
        %3960 = vrot.lane.b32.xlu0 %v3914, 64
        %v3961 = vpop.permute.xlu0 %3960
        %3962 = vrot.lane.b32.xlu0 %v3915, 64
        %v3963 = vpop.permute.xlu0 %3962
        %3980 = vst.msk [vmem:[#allocation6] sm:$0xff] %vm2176, %v3933
        %3981 = vst.msk [vmem:[#allocation6 + $0x28] sm:$0xff] %vm2176, %v3935
        %3982 = vst.msk [vmem:[#allocation6 + $0x50] sm:$0xff] %vm2176, %v3937
        %3983 = vst.msk [vmem:[#allocation6 + $0x78] sm:$0xff] %vm2176, %v3939
        %3984 = vst.msk [vmem:[#allocation6 + $0xa0] sm:$0xff] %vm2176, %v3941
        %3985 = vst.msk [vmem:[#allocation6 + $0xc8] sm:$0xff] %vm2176, %v3943
        %3986 = vst.msk [vmem:[#allocation6 + $0xf0] sm:$0xff] %vm2176, %v3945
        %3987 = vst.msk [vmem:[#allocation6 + $0x118] sm:$0xff] %vm2176, %v3947
        %3988 = vst.msk [vmem:[#allocation6 + $0x140] sm:$0xff] %vm2176, %v3949
        %3989 = vst.msk [vmem:[#allocation6 + $0x168] sm:$0xff] %vm2176, %v3951
        %3990 = vst.msk [vmem:[#allocation6 + $0x190] sm:$0xff] %vm2176, %v3953
        %3991 = vst.msk [vmem:[#allocation6 + $0x1b8] sm:$0xff] %vm2176, %v3955
        %3992 = vst.msk [vmem:[#allocation6 + $0x1e0] sm:$0xff] %vm2176, %v3957
        %3993 = vst.msk [vmem:[#allocation6 + $0x208] sm:$0xff] %vm2176, %v3959
        %3994 = vst.msk [vmem:[#allocation6 + $0x230] sm:$0xff] %vm2176, %v3961
        %3995 = vst.msk [vmem:[#allocation6 + $0x258] sm:$0xff] %vm2176, %v3963
        %v3996 = vld [vmem:[#allocation4 + $0x9] sm:$0xff]
        %v3997 = vld [vmem:[#allocation4 + $0x11] sm:$0xff]
        %v3998 = vld [vmem:[#allocation4 + $0x29] sm:$0xff]
        %v3999 = vld [vmem:[#allocation4 + $0x31] sm:$0xff]
        %v4000 = vld [vmem:[#allocation4 + $0x49] sm:$0xff]
        %v4001 = vld [vmem:[#allocation4 + $0x51] sm:$0xff]
        %v4002 = vld [vmem:[#allocation4 + $0x69] sm:$0xff]
        %v4003 = vld [vmem:[#allocation4 + $0x71] sm:$0xff]
        %v4004 = vld [vmem:[#allocation4 + $0x89] sm:$0xff]
        %v4005 = vld [vmem:[#allocation4 + $0x91] sm:$0xff]
        %v4006 = vld [vmem:[#allocation4 + $0xa9] sm:$0xff]
        %v4007 = vld [vmem:[#allocation4 + $0xb1] sm:$0xff]
        %v4008 = vld [vmem:[#allocation4 + $0xc9] sm:$0xff]
        %v4009 = vld [vmem:[#allocation4 + $0xd1] sm:$0xff]
        %v4010 = vld [vmem:[#allocation4 + $0xe9] sm:$0xff]
        %v4011 = vld [vmem:[#allocation4 + $0xf1] sm:$0xff]
        %v4012 = vld [vmem:[#allocation4 + $0x109] sm:$0xff]
        %v4013 = vld [vmem:[#allocation4 + $0x111] sm:$0xff]
        %v4014 = vld [vmem:[#allocation4 + $0x129] sm:$0xff]
        %v4015 = vld [vmem:[#allocation4 + $0x131] sm:$0xff]
        %v4016 = vld [vmem:[#allocation4 + $0x149] sm:$0xff]
        %v4017 = vld [vmem:[#allocation4 + $0x151] sm:$0xff]
        %v4018 = vld [vmem:[#allocation4 + $0x169] sm:$0xff]
        %v4019 = vld [vmem:[#allocation4 + $0x171] sm:$0xff]
        %v4020 = vld [vmem:[#allocation4 + $0x189] sm:$0xff]
        %v4021 = vld [vmem:[#allocation4 + $0x191] sm:$0xff]
        %v4022 = vld [vmem:[#allocation4 + $0x1a9] sm:$0xff]
        %v4023 = vld [vmem:[#allocation4 + $0x1b1] sm:$0xff]
        %v4024 = vld [vmem:[#allocation4 + $0x1c9] sm:$0xff]
        %v4025 = vld [vmem:[#allocation4 + $0x1d1] sm:$0xff]
        %v4026 = vld [vmem:[#allocation4 + $0x1e9] sm:$0xff]
        %v4027 = vld [vmem:[#allocation4 + $0x1f1] sm:$0xff]
        %v4028 = vpack.c.bf16 %v3997, %v3996
        %v4029 = vpack.c.bf16 %v3999, %v3998
        %v4030 = vpack.c.bf16 %v4001, %v4000
        %v4031 = vpack.c.bf16 %v4003, %v4002
        %v4032 = vpack.c.bf16 %v4005, %v4004
        %v4033 = vpack.c.bf16 %v4007, %v4006
        %v4034 = vpack.c.bf16 %v4009, %v4008
        %v4035 = vpack.c.bf16 %v4011, %v4010
        %v4036 = vpack.c.bf16 %v4013, %v4012
        %v4037 = vpack.c.bf16 %v4015, %v4014
        %v4038 = vpack.c.bf16 %v4017, %v4016
        %v4039 = vpack.c.bf16 %v4019, %v4018
        %v4040 = vpack.c.bf16 %v4021, %v4020
        %v4041 = vpack.c.bf16 %v4023, %v4022
        %v4042 = vpack.c.bf16 %v4025, %v4024
        %v4043 = vpack.c.bf16 %v4027, %v4026
        %4044 = vst.msk [vmem:[#allocation6 + $0x8] sm:$0xff] %vm423, %v4028
        %4045 = vst.msk [vmem:[#allocation6 + $0x30] sm:$0xff] %vm423, %v4029
        %4046 = vst.msk [vmem:[#allocation6 + $0x58] sm:$0xff] %vm423, %v4030
        %4047 = vst.msk [vmem:[#allocation6 + $0x80] sm:$0xff] %vm423, %v4031
        %4048 = vst.msk [vmem:[#allocation6 + $0xa8] sm:$0xff] %vm423, %v4032
        %4049 = vst.msk [vmem:[#allocation6 + $0xd0] sm:$0xff] %vm423, %v4033
        %4050 = vst.msk [vmem:[#allocation6 + $0xf8] sm:$0xff] %vm423, %v4034
        %4051 = vst.msk [vmem:[#allocation6 + $0x120] sm:$0xff] %vm423, %v4035
        %4052 = vst.msk [vmem:[#allocation6 + $0x148] sm:$0xff] %vm423, %v4036
        %4053 = vst.msk [vmem:[#allocation6 + $0x170] sm:$0xff] %vm423, %v4037
        %4054 = vst.msk [vmem:[#allocation6 + $0x198] sm:$0xff] %vm423, %v4038
        %4055 = vst.msk [vmem:[#allocation6 + $0x1c0] sm:$0xff] %vm423, %v4039
        %4056 = vst.msk [vmem:[#allocation6 + $0x1e8] sm:$0xff] %vm423, %v4040
        %4057 = vst.msk [vmem:[#allocation6 + $0x210] sm:$0xff] %vm423, %v4041
        %4058 = vst.msk [vmem:[#allocation6 + $0x238] sm:$0xff] %vm423, %v4042
        %4059 = vst.msk [vmem:[#allocation6 + $0x260] sm:$0xff] %vm423, %v4043
        %v4060 = vld [vmem:[%s476 + $0x7] sm:$0xff]
        %v4061 = vld [vmem:[%s476 + $0xf] sm:$0xff]
        %v4062 = vld [vmem:[%s476 + $0x27] sm:$0xff]
        %v4063 = vld [vmem:[%s476 + $0x2f] sm:$0xff]
        %v4064 = vld [vmem:[%s476 + $0x47] sm:$0xff]
        %v4065 = vld [vmem:[%s476 + $0x4f] sm:$0xff]
        %v4066 = vld [vmem:[%s476 + $0x67] sm:$0xff]
        %v4067 = vld [vmem:[%s476 + $0x6f] sm:$0xff]
        %v4068 = vld [vmem:[%s476 + $0x87] sm:$0xff]
        %v4069 = vld [vmem:[%s476 + $0x8f] sm:$0xff]
        %v4070 = vld [vmem:[%s476 + $0xa7] sm:$0xff]
        %v4071 = vld [vmem:[%s476 + $0xaf] sm:$0xff]
        %v4072 = vld [vmem:[%s476 + $0xc7] sm:$0xff]
        %v4073 = vld [vmem:[%s476 + $0xcf] sm:$0xff]
        %v4074 = vld [vmem:[%s476 + $0xe7] sm:$0xff]
        %v4075 = vld [vmem:[%s476 + $0xef] sm:$0xff]
        %v4076 = vld [vmem:[%s476 + $0x107] sm:$0xff]
        %v4077 = vld [vmem:[%s476 + $0x10f] sm:$0xff]
        %v4078 = vld [vmem:[%s476 + $0x127] sm:$0xff]
        %v4079 = vld [vmem:[%s476 + $0x12f] sm:$0xff]
        %v4080 = vld [vmem:[%s476 + $0x147] sm:$0xff]
        %v4081 = vld [vmem:[%s476 + $0x14f] sm:$0xff]
        %v4082 = vld [vmem:[%s476 + $0x167] sm:$0xff]
        %v4083 = vld [vmem:[%s476 + $0x16f] sm:$0xff]
        %v4084 = vld [vmem:[%s476 + $0x187] sm:$0xff]
        %v4085 = vld [vmem:[%s476 + $0x18f] sm:$0xff]
        %v4086 = vld [vmem:[%s476 + $0x1a7] sm:$0xff]
        %v4087 = vld [vmem:[%s476 + $0x1af] sm:$0xff]
        %v4088 = vld [vmem:[%s476 + $0x1c7] sm:$0xff]
        %v4089 = vld [vmem:[%s476 + $0x1cf] sm:$0xff]
        %v4090 = vld [vmem:[%s476 + $0x1e7] sm:$0xff]
        %v4091 = vld [vmem:[%s476 + $0x1ef] sm:$0xff]
        %v4092 = vpack.c.bf16 %v4061, %v4060
        %v4093 = vpack.c.bf16 %v4063, %v4062
        %v4094 = vpack.c.bf16 %v4065, %v4064
        %v4095 = vpack.c.bf16 %v4067, %v4066
        %v4096 = vpack.c.bf16 %v4069, %v4068
        %v4097 = vpack.c.bf16 %v4071, %v4070
        %v4098 = vpack.c.bf16 %v4073, %v4072
        %v4099 = vpack.c.bf16 %v4075, %v4074
        %v4100 = vpack.c.bf16 %v4077, %v4076
        %v4101 = vpack.c.bf16 %v4079, %v4078
        %v4102 = vpack.c.bf16 %v4081, %v4080
        %v4103 = vpack.c.bf16 %v4083, %v4082
        %v4104 = vpack.c.bf16 %v4085, %v4084
        %v4105 = vpack.c.bf16 %v4087, %v4086
        %v4106 = vpack.c.bf16 %v4089, %v4088
        %v4107 = vpack.c.bf16 %v4091, %v4090
        %4124 = vrot.lane.b32.xlu0 %v4092, 64
        %v4125 = vpop.permute.xlu0 %4124
        %4126 = vrot.lane.b32.xlu0 %v4093, 64
        %v4127 = vpop.permute.xlu0 %4126
        %4128 = vrot.lane.b32.xlu0 %v4094, 64
        %v4129 = vpop.permute.xlu0 %4128
        %4130 = vrot.lane.b32.xlu0 %v4095, 64
        %v4131 = vpop.permute.xlu0 %4130
        %4132 = vrot.lane.b32.xlu0 %v4096, 64
        %v4133 = vpop.permute.xlu0 %4132
        %4134 = vrot.lane.b32.xlu0 %v4097, 64
        %v4135 = vpop.permute.xlu0 %4134
        %4136 = vrot.lane.b32.xlu0 %v4098, 64
        %v4137 = vpop.permute.xlu0 %4136
        %4138 = vrot.lane.b32.xlu0 %v4099, 64
        %v4139 = vpop.permute.xlu0 %4138
        %4140 = vrot.lane.b32.xlu0 %v4100, 64
        %v4141 = vpop.permute.xlu0 %4140
        %4142 = vrot.lane.b32.xlu0 %v4101, 64
        %v4143 = vpop.permute.xlu0 %4142
        %4144 = vrot.lane.b32.xlu0 %v4102, 64
        %v4145 = vpop.permute.xlu0 %4144
        %4146 = vrot.lane.b32.xlu0 %v4103, 64
        %v4147 = vpop.permute.xlu0 %4146
        %4148 = vrot.lane.b32.xlu0 %v4104, 64
        %v4149 = vpop.permute.xlu0 %4148
        %4150 = vrot.lane.b32.xlu0 %v4105, 64
        %v4151 = vpop.permute.xlu0 %4150
        %4152 = vrot.lane.b32.xlu0 %v4106, 64
        %v4153 = vpop.permute.xlu0 %4152
        %4154 = vrot.lane.b32.xlu0 %v4107, 64
        %v4155 = vpop.permute.xlu0 %4154
        %4172 = vst.msk [vmem:[#allocation6 + $0x8] sm:$0xff] %vm2176, %v4125
        %4173 = vst.msk [vmem:[#allocation6 + $0x30] sm:$0xff] %vm2176, %v4127
        %4174 = vst.msk [vmem:[#allocation6 + $0x58] sm:$0xff] %vm2176, %v4129
        %4175 = vst.msk [vmem:[#allocation6 + $0x80] sm:$0xff] %vm2176, %v4131
        %4176 = vst.msk [vmem:[#allocation6 + $0xa8] sm:$0xff] %vm2176, %v4133
        %4177 = vst.msk [vmem:[#allocation6 + $0xd0] sm:$0xff] %vm2176, %v4135
        %4178 = vst.msk [vmem:[#allocation6 + $0xf8] sm:$0xff] %vm2176, %v4137
        %4179 = vst.msk [vmem:[#allocation6 + $0x120] sm:$0xff] %vm2176, %v4139
        %4180 = vst.msk [vmem:[#allocation6 + $0x148] sm:$0xff] %vm2176, %v4141
        %4181 = vst.msk [vmem:[#allocation6 + $0x170] sm:$0xff] %vm2176, %v4143
        %4182 = vst.msk [vmem:[#allocation6 + $0x198] sm:$0xff] %vm2176, %v4145
        %4183 = vst.msk [vmem:[#allocation6 + $0x1c0] sm:$0xff] %vm2176, %v4147
        %4184 = vst.msk [vmem:[#allocation6 + $0x1e8] sm:$0xff] %vm2176, %v4149
        %4185 = vst.msk [vmem:[#allocation6 + $0x210] sm:$0xff] %vm2176, %v4151
        %4186 = vst.msk [vmem:[#allocation6 + $0x238] sm:$0xff] %vm2176, %v4153
        %4187 = vst.msk [vmem:[#allocation6 + $0x260] sm:$0xff] %vm2176, %v4155
        %v4188 = vld [vmem:[%s476 + $0x8] sm:$0xff]
        %v4189 = vld [vmem:[%s476 + $0x10] sm:$0xff]
        %v4190 = vld [vmem:[%s476 + $0x28] sm:$0xff]
        %v4191 = vld [vmem:[%s476 + $0x30] sm:$0xff]
        %v4192 = vld [vmem:[%s476 + $0x48] sm:$0xff]
        %v4193 = vld [vmem:[%s476 + $0x50] sm:$0xff]
        %v4194 = vld [vmem:[%s476 + $0x68] sm:$0xff]
        %v4195 = vld [vmem:[%s476 + $0x70] sm:$0xff]
        %v4196 = vld [vmem:[%s476 + $0x88] sm:$0xff]
        %v4197 = vld [vmem:[%s476 + $0x90] sm:$0xff]
        %v4198 = vld [vmem:[%s476 + $0xa8] sm:$0xff]
        %v4199 = vld [vmem:[%s476 + $0xb0] sm:$0xff]
        %v4200 = vld [vmem:[%s476 + $0xc8] sm:$0xff]
        %v4201 = vld [vmem:[%s476 + $0xd0] sm:$0xff]
        %v4202 = vld [vmem:[%s476 + $0xe8] sm:$0xff]
        %v4203 = vld [vmem:[%s476 + $0xf0] sm:$0xff]
        %v4204 = vld [vmem:[%s476 + $0x108] sm:$0xff]
        %v4205 = vld [vmem:[%s476 + $0x110] sm:$0xff]
        %v4206 = vld [vmem:[%s476 + $0x128] sm:$0xff]
        %v4207 = vld [vmem:[%s476 + $0x130] sm:$0xff]
        %v4208 = vld [vmem:[%s476 + $0x148] sm:$0xff]
        %v4209 = vld [vmem:[%s476 + $0x150] sm:$0xff]
        %v4210 = vld [vmem:[%s476 + $0x168] sm:$0xff]
        %v4211 = vld [vmem:[%s476 + $0x170] sm:$0xff]
        %v4212 = vld [vmem:[%s476 + $0x188] sm:$0xff]
        %v4213 = vld [vmem:[%s476 + $0x190] sm:$0xff]
        %v4214 = vld [vmem:[%s476 + $0x1a8] sm:$0xff]
        %v4215 = vld [vmem:[%s476 + $0x1b0] sm:$0xff]
        %v4216 = vld [vmem:[%s476 + $0x1c8] sm:$0xff]
        %v4217 = vld [vmem:[%s476 + $0x1d0] sm:$0xff]
        %v4218 = vld [vmem:[%s476 + $0x1e8] sm:$0xff]
        %v4219 = vld [vmem:[%s476 + $0x1f0] sm:$0xff]
        %v4220 = vpack.c.bf16 %v4189, %v4188
        %v4221 = vpack.c.bf16 %v4191, %v4190
        %v4222 = vpack.c.bf16 %v4193, %v4192
        %v4223 = vpack.c.bf16 %v4195, %v4194
        %v4224 = vpack.c.bf16 %v4197, %v4196
        %v4225 = vpack.c.bf16 %v4199, %v4198
        %v4226 = vpack.c.bf16 %v4201, %v4200
        %v4227 = vpack.c.bf16 %v4203, %v4202
        %v4228 = vpack.c.bf16 %v4205, %v4204
        %v4229 = vpack.c.bf16 %v4207, %v4206
        %v4230 = vpack.c.bf16 %v4209, %v4208
        %v4231 = vpack.c.bf16 %v4211, %v4210
        %v4232 = vpack.c.bf16 %v4213, %v4212
        %v4233 = vpack.c.bf16 %v4215, %v4214
        %v4234 = vpack.c.bf16 %v4217, %v4216
        %v4235 = vpack.c.bf16 %v4219, %v4218
        %4236 = vst.msk [vmem:[#allocation6 + $0x10] sm:$0xff] %vm423, %v4220
        %4237 = vst.msk [vmem:[#allocation6 + $0x38] sm:$0xff] %vm423, %v4221
        %4238 = vst.msk [vmem:[#allocation6 + $0x60] sm:$0xff] %vm423, %v4222
        %4239 = vst.msk [vmem:[#allocation6 + $0x88] sm:$0xff] %vm423, %v4223
        %4240 = vst.msk [vmem:[#allocation6 + $0xb0] sm:$0xff] %vm423, %v4224
        %4241 = vst.msk [vmem:[#allocation6 + $0xd8] sm:$0xff] %vm423, %v4225
        %4242 = vst.msk [vmem:[#allocation6 + $0x100] sm:$0xff] %vm423, %v4226
        %4243 = vst.msk [vmem:[#allocation6 + $0x128] sm:$0xff] %vm423, %v4227
        %4244 = vst.msk [vmem:[#allocation6 + $0x150] sm:$0xff] %vm423, %v4228
        %4245 = vst.msk [vmem:[#allocation6 + $0x178] sm:$0xff] %vm423, %v4229
        %4246 = vst.msk [vmem:[#allocation6 + $0x1a0] sm:$0xff] %vm423, %v4230
        %4247 = vst.msk [vmem:[#allocation6 + $0x1c8] sm:$0xff] %vm423, %v4231
        %4248 = vst.msk [vmem:[#allocation6 + $0x1f0] sm:$0xff] %vm423, %v4232
        %4249 = vst.msk [vmem:[#allocation6 + $0x218] sm:$0xff] %vm423, %v4233
        %4250 = vst.msk [vmem:[#allocation6 + $0x240] sm:$0xff] %vm423, %v4234
        %4251 = vst.msk [vmem:[#allocation6 + $0x268] sm:$0xff] %vm423, %v4235
        %v4252 = vld [vmem:[%s476 + $0x9] sm:$0xff]
        %v4253 = vld [vmem:[%s476 + $0x11] sm:$0xff]
        %v4254 = vld [vmem:[%s476 + $0x29] sm:$0xff]
        %v4255 = vld [vmem:[%s476 + $0x31] sm:$0xff]
        %v4256 = vld [vmem:[%s476 + $0x49] sm:$0xff]
        %v4257 = vld [vmem:[%s476 + $0x51] sm:$0xff]
        %v4258 = vld [vmem:[%s476 + $0x69] sm:$0xff]
        %v4259 = vld [vmem:[%s476 + $0x71] sm:$0xff]
        %v4260 = vld [vmem:[%s476 + $0x89] sm:$0xff]
        %v4261 = vld [vmem:[%s476 + $0x91] sm:$0xff]
        %v4262 = vld [vmem:[%s476 + $0xa9] sm:$0xff]
        %v4263 = vld [vmem:[%s476 + $0xb1] sm:$0xff]
        %v4264 = vld [vmem:[%s476 + $0xc9] sm:$0xff]
        %v4265 = vld [vmem:[%s476 + $0xd1] sm:$0xff]
        %v4266 = vld [vmem:[%s476 + $0xe9] sm:$0xff]
        %v4267 = vld [vmem:[%s476 + $0xf1] sm:$0xff]
        %v4268 = vld [vmem:[%s476 + $0x109] sm:$0xff]
        %v4269 = vld [vmem:[%s476 + $0x111] sm:$0xff]
        %v4270 = vld [vmem:[%s476 + $0x129] sm:$0xff]
        %v4271 = vld [vmem:[%s476 + $0x131] sm:$0xff]
        %v4272 = vld [vmem:[%s476 + $0x149] sm:$0xff]
        %v4273 = vld [vmem:[%s476 + $0x151] sm:$0xff]
        %v4274 = vld [vmem:[%s476 + $0x169] sm:$0xff]
        %v4275 = vld [vmem:[%s476 + $0x171] sm:$0xff]
        %v4276 = vld [vmem:[%s476 + $0x189] sm:$0xff]
        %v4277 = vld [vmem:[%s476 + $0x191] sm:$0xff]
        %v4278 = vld [vmem:[%s476 + $0x1a9] sm:$0xff]
        %v4279 = vld [vmem:[%s476 + $0x1b1] sm:$0xff]
        %v4280 = vld [vmem:[%s476 + $0x1c9] sm:$0xff]
        %v4281 = vld [vmem:[%s476 + $0x1d1] sm:$0xff]
        %v4282 = vld [vmem:[%s476 + $0x1e9] sm:$0xff]
        %v4283 = vld [vmem:[%s476 + $0x1f1] sm:$0xff]
        %v4284 = vpack.c.bf16 %v4253, %v4252
        %v4285 = vpack.c.bf16 %v4255, %v4254
        %v4286 = vpack.c.bf16 %v4257, %v4256
        %v4287 = vpack.c.bf16 %v4259, %v4258
        %v4288 = vpack.c.bf16 %v4261, %v4260
        %v4289 = vpack.c.bf16 %v4263, %v4262
        %v4290 = vpack.c.bf16 %v4265, %v4264
        %v4291 = vpack.c.bf16 %v4267, %v4266
        %v4292 = vpack.c.bf16 %v4269, %v4268
        %v4293 = vpack.c.bf16 %v4271, %v4270
        %v4294 = vpack.c.bf16 %v4273, %v4272
        %v4295 = vpack.c.bf16 %v4275, %v4274
        %v4296 = vpack.c.bf16 %v4277, %v4276
        %v4297 = vpack.c.bf16 %v4279, %v4278
        %v4298 = vpack.c.bf16 %v4281, %v4280
        %v4299 = vpack.c.bf16 %v4283, %v4282
        %4316 = vrot.lane.b32.xlu0 %v4284, 64
        %v4317 = vpop.permute.xlu0 %4316
        %4318 = vrot.lane.b32.xlu0 %v4285, 64
        %v4319 = vpop.permute.xlu0 %4318
        %4320 = vrot.lane.b32.xlu0 %v4286, 64
        %v4321 = vpop.permute.xlu0 %4320
        %4322 = vrot.lane.b32.xlu0 %v4287, 64
        %v4323 = vpop.permute.xlu0 %4322
        %4324 = vrot.lane.b32.xlu0 %v4288, 64
        %v4325 = vpop.permute.xlu0 %4324
        %4326 = vrot.lane.b32.xlu0 %v4289, 64
        %v4327 = vpop.permute.xlu0 %4326
        %4328 = vrot.lane.b32.xlu0 %v4290, 64
        %v4329 = vpop.permute.xlu0 %4328
        %4330 = vrot.lane.b32.xlu0 %v4291, 64
        %v4331 = vpop.permute.xlu0 %4330
        %4332 = vrot.lane.b32.xlu0 %v4292, 64
        %v4333 = vpop.permute.xlu0 %4332
        %4334 = vrot.lane.b32.xlu0 %v4293, 64
        %v4335 = vpop.permute.xlu0 %4334
        %4336 = vrot.lane.b32.xlu0 %v4294, 64
        %v4337 = vpop.permute.xlu0 %4336
        %4338 = vrot.lane.b32.xlu0 %v4295, 64
        %v4339 = vpop.permute.xlu0 %4338
        %4340 = vrot.lane.b32.xlu0 %v4296, 64
        %v4341 = vpop.permute.xlu0 %4340
        %4342 = vrot.lane.b32.xlu0 %v4297, 64
        %v4343 = vpop.permute.xlu0 %4342
        %4344 = vrot.lane.b32.xlu0 %v4298, 64
        %v4345 = vpop.permute.xlu0 %4344
        %4346 = vrot.lane.b32.xlu0 %v4299, 64
        %v4347 = vpop.permute.xlu0 %4346
        %4364 = vst.msk [vmem:[#allocation6 + $0x10] sm:$0xff] %vm2176, %v4317
        %4365 = vst.msk [vmem:[#allocation6 + $0x38] sm:$0xff] %vm2176, %v4319
        %4366 = vst.msk [vmem:[#allocation6 + $0x60] sm:$0xff] %vm2176, %v4321
        %4367 = vst.msk [vmem:[#allocation6 + $0x88] sm:$0xff] %vm2176, %v4323
        %4368 = vst.msk [vmem:[#allocation6 + $0xb0] sm:$0xff] %vm2176, %v4325
        %4369 = vst.msk [vmem:[#allocation6 + $0xd8] sm:$0xff] %vm2176, %v4327
        %4370 = vst.msk [vmem:[#allocation6 + $0x100] sm:$0xff] %vm2176, %v4329
        %4371 = vst.msk [vmem:[#allocation6 + $0x128] sm:$0xff] %vm2176, %v4331
        %4372 = vst.msk [vmem:[#allocation6 + $0x150] sm:$0xff] %vm2176, %v4333
        %4373 = vst.msk [vmem:[#allocation6 + $0x178] sm:$0xff] %vm2176, %v4335
        %4374 = vst.msk [vmem:[#allocation6 + $0x1a0] sm:$0xff] %vm2176, %v4337
        %4375 = vst.msk [vmem:[#allocation6 + $0x1c8] sm:$0xff] %vm2176, %v4339
        %4376 = vst.msk [vmem:[#allocation6 + $0x1f0] sm:$0xff] %vm2176, %v4341
        %4377 = vst.msk [vmem:[#allocation6 + $0x218] sm:$0xff] %vm2176, %v4343
        %4378 = vst.msk [vmem:[#allocation6 + $0x240] sm:$0xff] %vm2176, %v4345
        %4379 = vst.msk [vmem:[#allocation6 + $0x268] sm:$0xff] %vm2176, %v4347
        %s4380 = scalar_lea.vmem [#allocation4], 64
        %v4381 = vld [vmem:[%s4380 + $0x7] sm:$0xff]
        %v4382 = vld [vmem:[%s4380 + $0xf] sm:$0xff]
        %v4383 = vld [vmem:[%s4380 + $0x27] sm:$0xff]
        %v4384 = vld [vmem:[%s4380 + $0x2f] sm:$0xff]
        %v4385 = vld [vmem:[%s4380 + $0x47] sm:$0xff]
        %v4386 = vld [vmem:[%s4380 + $0x4f] sm:$0xff]
        %v4387 = vld [vmem:[%s4380 + $0x67] sm:$0xff]
        %v4388 = vld [vmem:[%s4380 + $0x6f] sm:$0xff]
        %v4389 = vld [vmem:[%s4380 + $0x87] sm:$0xff]
        %v4390 = vld [vmem:[%s4380 + $0x8f] sm:$0xff]
        %v4391 = vld [vmem:[%s4380 + $0xa7] sm:$0xff]
        %v4392 = vld [vmem:[%s4380 + $0xaf] sm:$0xff]
        %v4393 = vld [vmem:[%s4380 + $0xc7] sm:$0xff]
        %v4394 = vld [vmem:[%s4380 + $0xcf] sm:$0xff]
        %v4395 = vld [vmem:[%s4380 + $0xe7] sm:$0xff]
        %v4396 = vld [vmem:[%s4380 + $0xef] sm:$0xff]
        %v4397 = vld [vmem:[%s4380 + $0x107] sm:$0xff]
        %v4398 = vld [vmem:[%s4380 + $0x10f] sm:$0xff]
        %v4399 = vld [vmem:[%s4380 + $0x127] sm:$0xff]
        %v4400 = vld [vmem:[%s4380 + $0x12f] sm:$0xff]
        %v4401 = vld [vmem:[%s4380 + $0x147] sm:$0xff]
        %v4402 = vld [vmem:[%s4380 + $0x14f] sm:$0xff]
        %v4403 = vld [vmem:[%s4380 + $0x167] sm:$0xff]
        %v4404 = vld [vmem:[%s4380 + $0x16f] sm:$0xff]
        %v4405 = vld [vmem:[%s4380 + $0x187] sm:$0xff]
        %v4406 = vld [vmem:[%s4380 + $0x18f] sm:$0xff]
        %v4407 = vld [vmem:[%s4380 + $0x1a7] sm:$0xff]
        %v4408 = vld [vmem:[%s4380 + $0x1af] sm:$0xff]
        %v4409 = vld [vmem:[%s4380 + $0x1c7] sm:$0xff]
        %v4410 = vld [vmem:[%s4380 + $0x1cf] sm:$0xff]
        %v4411 = vld [vmem:[%s4380 + $0x1e7] sm:$0xff]
        %v4412 = vld [vmem:[%s4380 + $0x1ef] sm:$0xff]
        %v4413 = vpack.c.bf16 %v4382, %v4381
        %v4414 = vpack.c.bf16 %v4384, %v4383
        %v4415 = vpack.c.bf16 %v4386, %v4385
        %v4416 = vpack.c.bf16 %v4388, %v4387
        %v4417 = vpack.c.bf16 %v4390, %v4389
        %v4418 = vpack.c.bf16 %v4392, %v4391
        %v4419 = vpack.c.bf16 %v4394, %v4393
        %v4420 = vpack.c.bf16 %v4396, %v4395
        %v4421 = vpack.c.bf16 %v4398, %v4397
        %v4422 = vpack.c.bf16 %v4400, %v4399
        %v4423 = vpack.c.bf16 %v4402, %v4401
        %v4424 = vpack.c.bf16 %v4404, %v4403
        %v4425 = vpack.c.bf16 %v4406, %v4405
        %v4426 = vpack.c.bf16 %v4408, %v4407
        %v4427 = vpack.c.bf16 %v4410, %v4409
        %v4428 = vpack.c.bf16 %v4412, %v4411
        %4429 = vst.msk [vmem:[#allocation6 + $0x18] sm:$0xff] %vm423, %v4413
        %4430 = vst.msk [vmem:[#allocation6 + $0x40] sm:$0xff] %vm423, %v4414
        %4431 = vst.msk [vmem:[#allocation6 + $0x68] sm:$0xff] %vm423, %v4415
        %4432 = vst.msk [vmem:[#allocation6 + $0x90] sm:$0xff] %vm423, %v4416
        %4433 = vst.msk [vmem:[#allocation6 + $0xb8] sm:$0xff] %vm423, %v4417
        %4434 = vst.msk [vmem:[#allocation6 + $0xe0] sm:$0xff] %vm423, %v4418
        %4435 = vst.msk [vmem:[#allocation6 + $0x108] sm:$0xff] %vm423, %v4419
        %4436 = vst.msk [vmem:[#allocation6 + $0x130] sm:$0xff] %vm423, %v4420
        %4437 = vst.msk [vmem:[#allocation6 + $0x158] sm:$0xff] %vm423, %v4421
        %4438 = vst.msk [vmem:[#allocation6 + $0x180] sm:$0xff] %vm423, %v4422
        %4439 = vst.msk [vmem:[#allocation6 + $0x1a8] sm:$0xff] %vm423, %v4423
        %4440 = vst.msk [vmem:[#allocation6 + $0x1d0] sm:$0xff] %vm423, %v4424
        %4441 = vst.msk [vmem:[#allocation6 + $0x1f8] sm:$0xff] %vm423, %v4425
        %4442 = vst.msk [vmem:[#allocation6 + $0x220] sm:$0xff] %vm423, %v4426
        %4443 = vst.msk [vmem:[#allocation6 + $0x248] sm:$0xff] %vm423, %v4427
        %4444 = vst.msk [vmem:[#allocation6 + $0x270] sm:$0xff] %vm423, %v4428
        %v4445 = vld [vmem:[%s4380 + $0x8] sm:$0xff]
        %v4446 = vld [vmem:[%s4380 + $0x10] sm:$0xff]
        %v4447 = vld [vmem:[%s4380 + $0x28] sm:$0xff]
        %v4448 = vld [vmem:[%s4380 + $0x30] sm:$0xff]
        %v4449 = vld [vmem:[%s4380 + $0x48] sm:$0xff]
        %v4450 = vld [vmem:[%s4380 + $0x50] sm:$0xff]
        %v4451 = vld [vmem:[%s4380 + $0x68] sm:$0xff]
        %v4452 = vld [vmem:[%s4380 + $0x70] sm:$0xff]
        %v4453 = vld [vmem:[%s4380 + $0x88] sm:$0xff]
        %v4454 = vld [vmem:[%s4380 + $0x90] sm:$0xff]
        %v4455 = vld [vmem:[%s4380 + $0xa8] sm:$0xff]
        %v4456 = vld [vmem:[%s4380 + $0xb0] sm:$0xff]
        %v4457 = vld [vmem:[%s4380 + $0xc8] sm:$0xff]
        %v4458 = vld [vmem:[%s4380 + $0xd0] sm:$0xff]
        %v4459 = vld [vmem:[%s4380 + $0xe8] sm:$0xff]
        %v4460 = vld [vmem:[%s4380 + $0xf0] sm:$0xff]
        %v4461 = vld [vmem:[%s4380 + $0x108] sm:$0xff]
        %v4462 = vld [vmem:[%s4380 + $0x110] sm:$0xff]
        %v4463 = vld [vmem:[%s4380 + $0x128] sm:$0xff]
        %v4464 = vld [vmem:[%s4380 + $0x130] sm:$0xff]
        %v4465 = vld [vmem:[%s4380 + $0x148] sm:$0xff]
        %v4466 = vld [vmem:[%s4380 + $0x150] sm:$0xff]
        %v4467 = vld [vmem:[%s4380 + $0x168] sm:$0xff]
        %v4468 = vld [vmem:[%s4380 + $0x170] sm:$0xff]
        %v4469 = vld [vmem:[%s4380 + $0x188] sm:$0xff]
        %v4470 = vld [vmem:[%s4380 + $0x190] sm:$0xff]
        %v4471 = vld [vmem:[%s4380 + $0x1a8] sm:$0xff]
        %v4472 = vld [vmem:[%s4380 + $0x1b0] sm:$0xff]
        %v4473 = vld [vmem:[%s4380 + $0x1c8] sm:$0xff]
        %v4474 = vld [vmem:[%s4380 + $0x1d0] sm:$0xff]
        %v4475 = vld [vmem:[%s4380 + $0x1e8] sm:$0xff]
        %v4476 = vld [vmem:[%s4380 + $0x1f0] sm:$0xff]
        %v4477 = vpack.c.bf16 %v4446, %v4445
        %v4478 = vpack.c.bf16 %v4448, %v4447
        %v4479 = vpack.c.bf16 %v4450, %v4449
        %v4480 = vpack.c.bf16 %v4452, %v4451
        %v4481 = vpack.c.bf16 %v4454, %v4453
        %v4482 = vpack.c.bf16 %v4456, %v4455
        %v4483 = vpack.c.bf16 %v4458, %v4457
        %v4484 = vpack.c.bf16 %v4460, %v4459
        %v4485 = vpack.c.bf16 %v4462, %v4461
        %v4486 = vpack.c.bf16 %v4464, %v4463
        %v4487 = vpack.c.bf16 %v4466, %v4465
        %v4488 = vpack.c.bf16 %v4468, %v4467
        %v4489 = vpack.c.bf16 %v4470, %v4469
        %v4490 = vpack.c.bf16 %v4472, %v4471
        %v4491 = vpack.c.bf16 %v4474, %v4473
        %v4492 = vpack.c.bf16 %v4476, %v4475
        %4509 = vrot.lane.b32.xlu0 %v4477, 64
        %v4510 = vpop.permute.xlu0 %4509
        %4511 = vrot.lane.b32.xlu0 %v4478, 64
        %v4512 = vpop.permute.xlu0 %4511
        %4513 = vrot.lane.b32.xlu0 %v4479, 64
        %v4514 = vpop.permute.xlu0 %4513
        %4515 = vrot.lane.b32.xlu0 %v4480, 64
        %v4516 = vpop.permute.xlu0 %4515
        %4517 = vrot.lane.b32.xlu0 %v4481, 64
        %v4518 = vpop.permute.xlu0 %4517
        %4519 = vrot.lane.b32.xlu0 %v4482, 64
        %v4520 = vpop.permute.xlu0 %4519
        %4521 = vrot.lane.b32.xlu0 %v4483, 64
        %v4522 = vpop.permute.xlu0 %4521
        %4523 = vrot.lane.b32.xlu0 %v4484, 64
        %v4524 = vpop.permute.xlu0 %4523
        %4525 = vrot.lane.b32.xlu0 %v4485, 64
        %v4526 = vpop.permute.xlu0 %4525
        %4527 = vrot.lane.b32.xlu0 %v4486, 64
        %v4528 = vpop.permute.xlu0 %4527
        %4529 = vrot.lane.b32.xlu0 %v4487, 64
        %v4530 = vpop.permute.xlu0 %4529
        %4531 = vrot.lane.b32.xlu0 %v4488, 64
        %v4532 = vpop.permute.xlu0 %4531
        %4533 = vrot.lane.b32.xlu0 %v4489, 64
        %v4534 = vpop.permute.xlu0 %4533
        %4535 = vrot.lane.b32.xlu0 %v4490, 64
        %v4536 = vpop.permute.xlu0 %4535
        %4537 = vrot.lane.b32.xlu0 %v4491, 64
        %v4538 = vpop.permute.xlu0 %4537
        %4539 = vrot.lane.b32.xlu0 %v4492, 64
        %v4540 = vpop.permute.xlu0 %4539
        %4557 = vst.msk [vmem:[#allocation6 + $0x18] sm:$0xff] %vm2176, %v4510
        %4558 = vst.msk [vmem:[#allocation6 + $0x40] sm:$0xff] %vm2176, %v4512
        %4559 = vst.msk [vmem:[#allocation6 + $0x68] sm:$0xff] %vm2176, %v4514
        %4560 = vst.msk [vmem:[#allocation6 + $0x90] sm:$0xff] %vm2176, %v4516
        %4561 = vst.msk [vmem:[#allocation6 + $0xb8] sm:$0xff] %vm2176, %v4518
        %4562 = vst.msk [vmem:[#allocation6 + $0xe0] sm:$0xff] %vm2176, %v4520
        %4563 = vst.msk [vmem:[#allocation6 + $0x108] sm:$0xff] %vm2176, %v4522
        %4564 = vst.msk [vmem:[#allocation6 + $0x130] sm:$0xff] %vm2176, %v4524
        %4565 = vst.msk [vmem:[#allocation6 + $0x158] sm:$0xff] %vm2176, %v4526
        %4566 = vst.msk [vmem:[#allocation6 + $0x180] sm:$0xff] %vm2176, %v4528
        %4567 = vst.msk [vmem:[#allocation6 + $0x1a8] sm:$0xff] %vm2176, %v4530
        %4568 = vst.msk [vmem:[#allocation6 + $0x1d0] sm:$0xff] %vm2176, %v4532
        %4569 = vst.msk [vmem:[#allocation6 + $0x1f8] sm:$0xff] %vm2176, %v4534
        %4570 = vst.msk [vmem:[#allocation6 + $0x220] sm:$0xff] %vm2176, %v4536
        %4571 = vst.msk [vmem:[#allocation6 + $0x248] sm:$0xff] %vm2176, %v4538
        %4572 = vst.msk [vmem:[#allocation6 + $0x270] sm:$0xff] %vm2176, %v4540
        %v4573 = vld [vmem:[%s4380 + $0x9] sm:$0xff]
        %v4574 = vld [vmem:[%s4380 + $0x11] sm:$0xff]
        %v4575 = vld [vmem:[%s4380 + $0x29] sm:$0xff]
        %v4576 = vld [vmem:[%s4380 + $0x31] sm:$0xff]
        %v4577 = vld [vmem:[%s4380 + $0x49] sm:$0xff]
        %v4578 = vld [vmem:[%s4380 + $0x51] sm:$0xff]
        %v4579 = vld [vmem:[%s4380 + $0x69] sm:$0xff]
        %v4580 = vld [vmem:[%s4380 + $0x71] sm:$0xff]
        %v4581 = vld [vmem:[%s4380 + $0x89] sm:$0xff]
        %v4582 = vld [vmem:[%s4380 + $0x91] sm:$0xff]
        %v4583 = vld [vmem:[%s4380 + $0xa9] sm:$0xff]
        %v4584 = vld [vmem:[%s4380 + $0xb1] sm:$0xff]
        %v4585 = vld [vmem:[%s4380 + $0xc9] sm:$0xff]
        %v4586 = vld [vmem:[%s4380 + $0xd1] sm:$0xff]
        %v4587 = vld [vmem:[%s4380 + $0xe9] sm:$0xff]
        %v4588 = vld [vmem:[%s4380 + $0xf1] sm:$0xff]
        %v4589 = vld [vmem:[%s4380 + $0x109] sm:$0xff]
        %v4590 = vld [vmem:[%s4380 + $0x111] sm:$0xff]
        %v4591 = vld [vmem:[%s4380 + $0x129] sm:$0xff]
        %v4592 = vld [vmem:[%s4380 + $0x131] sm:$0xff]
        %v4593 = vld [vmem:[%s4380 + $0x149] sm:$0xff]
        %v4594 = vld [vmem:[%s4380 + $0x151] sm:$0xff]
        %v4595 = vld [vmem:[%s4380 + $0x169] sm:$0xff]
        %v4596 = vld [vmem:[%s4380 + $0x171] sm:$0xff]
        %v4597 = vld [vmem:[%s4380 + $0x189] sm:$0xff]
        %v4598 = vld [vmem:[%s4380 + $0x191] sm:$0xff]
        %v4599 = vld [vmem:[%s4380 + $0x1a9] sm:$0xff]
        %v4600 = vld [vmem:[%s4380 + $0x1b1] sm:$0xff]
        %v4601 = vld [vmem:[%s4380 + $0x1c9] sm:$0xff]
        %v4602 = vld [vmem:[%s4380 + $0x1d1] sm:$0xff]
        %v4603 = vld [vmem:[%s4380 + $0x1e9] sm:$0xff]
        %v4604 = vld [vmem:[%s4380 + $0x1f1] sm:$0xff]
        %v4605 = vpack.c.bf16 %v4574, %v4573
        %v4606 = vpack.c.bf16 %v4576, %v4575
        %v4607 = vpack.c.bf16 %v4578, %v4577
        %v4608 = vpack.c.bf16 %v4580, %v4579
        %v4609 = vpack.c.bf16 %v4582, %v4581
        %v4610 = vpack.c.bf16 %v4584, %v4583
        %v4611 = vpack.c.bf16 %v4586, %v4585
        %v4612 = vpack.c.bf16 %v4588, %v4587
        %v4613 = vpack.c.bf16 %v4590, %v4589
        %v4614 = vpack.c.bf16 %v4592, %v4591
        %v4615 = vpack.c.bf16 %v4594, %v4593
        %v4616 = vpack.c.bf16 %v4596, %v4595
        %v4617 = vpack.c.bf16 %v4598, %v4597
        %v4618 = vpack.c.bf16 %v4600, %v4599
        %v4619 = vpack.c.bf16 %v4602, %v4601
        %v4620 = vpack.c.bf16 %v4604, %v4603
        %4621 = vst.msk [vmem:[#allocation6 + $0x20] sm:$0xff] %vm423, %v4605
        %4622 = vst.msk [vmem:[#allocation6 + $0x48] sm:$0xff] %vm423, %v4606
        %4623 = vst.msk [vmem:[#allocation6 + $0x70] sm:$0xff] %vm423, %v4607
        %4624 = vst.msk [vmem:[#allocation6 + $0x98] sm:$0xff] %vm423, %v4608
        %4625 = vst.msk [vmem:[#allocation6 + $0xc0] sm:$0xff] %vm423, %v4609
        %4626 = vst.msk [vmem:[#allocation6 + $0xe8] sm:$0xff] %vm423, %v4610
        %4627 = vst.msk [vmem:[#allocation6 + $0x110] sm:$0xff] %vm423, %v4611
        %4628 = vst.msk [vmem:[#allocation6 + $0x138] sm:$0xff] %vm423, %v4612
        %4629 = vst.msk [vmem:[#allocation6 + $0x160] sm:$0xff] %vm423, %v4613
        %4630 = vst.msk [vmem:[#allocation6 + $0x188] sm:$0xff] %vm423, %v4614
        %4631 = vst.msk [vmem:[#allocation6 + $0x1b0] sm:$0xff] %vm423, %v4615
        %4632 = vst.msk [vmem:[#allocation6 + $0x1d8] sm:$0xff] %vm423, %v4616
        %4633 = vst.msk [vmem:[#allocation6 + $0x200] sm:$0xff] %vm423, %v4617
        %4634 = vst.msk [vmem:[#allocation6 + $0x228] sm:$0xff] %vm423, %v4618
        %4635 = vst.msk [vmem:[#allocation6 + $0x250] sm:$0xff] %vm423, %v4619
        %4636 = vst.msk [vmem:[#allocation6 + $0x278] sm:$0xff] %vm423, %v4620
        %v4637 = vld [vmem:[#allocation6] sm:$0xff]
        %v4638 = vld [vmem:[#allocation6 + $0x8] sm:$0xff]
        %v4639 = vld [vmem:[#allocation6 + $0x10] sm:$0xff]
        %v4640 = vld [vmem:[#allocation6 + $0x18] sm:$0xff]
        %v4641 = vld [vmem:[#allocation6 + $0x20] sm:$0xff]
        %v4642 = vld [vmem:[#allocation6 + $0x28] sm:$0xff]
        %v4643 = vld [vmem:[#allocation6 + $0x30] sm:$0xff]
        %v4644 = vld [vmem:[#allocation6 + $0x38] sm:$0xff]
        %v4645 = vld [vmem:[#allocation6 + $0x40] sm:$0xff]
        %v4646 = vld [vmem:[#allocation6 + $0x48] sm:$0xff]
        %v4647 = vld [vmem:[#allocation6 + $0x50] sm:$0xff]
        %v4648 = vld [vmem:[#allocation6 + $0x58] sm:$0xff]
        %v4649 = vld [vmem:[#allocation6 + $0x60] sm:$0xff]
        %v4650 = vld [vmem:[#allocation6 + $0x68] sm:$0xff]
        %v4651 = vld [vmem:[#allocation6 + $0x70] sm:$0xff]
        %v4652 = vld [vmem:[#allocation6 + $0x78] sm:$0xff]
        %v4653 = vld [vmem:[#allocation6 + $0x80] sm:$0xff]
        %v4654 = vld [vmem:[#allocation6 + $0x88] sm:$0xff]
        %v4655 = vld [vmem:[#allocation6 + $0x90] sm:$0xff]
        %v4656 = vld [vmem:[#allocation6 + $0x98] sm:$0xff]
        %v4657 = vld [vmem:[#allocation6 + $0xa0] sm:$0xff]
        %v4658 = vld [vmem:[#allocation6 + $0xa8] sm:$0xff]
        %v4659 = vld [vmem:[#allocation6 + $0xb0] sm:$0xff]
        %v4660 = vld [vmem:[#allocation6 + $0xb8] sm:$0xff]
        %v4661 = vld [vmem:[#allocation6 + $0xc0] sm:$0xff]
        %v4662 = vld [vmem:[#allocation6 + $0xc8] sm:$0xff]
        %v4663 = vld [vmem:[#allocation6 + $0xd0] sm:$0xff]
        %v4664 = vld [vmem:[#allocation6 + $0xd8] sm:$0xff]
        %v4665 = vld [vmem:[#allocation6 + $0xe0] sm:$0xff]
        %v4666 = vld [vmem:[#allocation6 + $0xe8] sm:$0xff]
        %v4667 = vld [vmem:[#allocation6 + $0xf0] sm:$0xff]
        %v4668 = vld [vmem:[#allocation6 + $0xf8] sm:$0xff]
        %v4669 = vld [vmem:[#allocation6 + $0x100] sm:$0xff]
        %v4670 = vld [vmem:[#allocation6 + $0x108] sm:$0xff]
        %v4671 = vld [vmem:[#allocation6 + $0x110] sm:$0xff]
        %v4672 = vld [vmem:[#allocation6 + $0x118] sm:$0xff]
        %v4673 = vld [vmem:[#allocation6 + $0x120] sm:$0xff]
        %v4674 = vld [vmem:[#allocation6 + $0x128] sm:$0xff]
        %v4675 = vld [vmem:[#allocation6 + $0x130] sm:$0xff]
        %v4676 = vld [vmem:[#allocation6 + $0x138] sm:$0xff]
        %v4677 = vld [vmem:[#allocation6 + $0x140] sm:$0xff]
        %v4678 = vld [vmem:[#allocation6 + $0x148] sm:$0xff]
        %v4679 = vld [vmem:[#allocation6 + $0x150] sm:$0xff]
        %v4680 = vld [vmem:[#allocation6 + $0x158] sm:$0xff]
        %v4681 = vld [vmem:[#allocation6 + $0x160] sm:$0xff]
        %v4682 = vld [vmem:[#allocation6 + $0x168] sm:$0xff]
        %v4683 = vld [vmem:[#allocation6 + $0x170] sm:$0xff]
        %v4684 = vld [vmem:[#allocation6 + $0x178] sm:$0xff]
        %v4685 = vld [vmem:[#allocation6 + $0x180] sm:$0xff]
        %v4686 = vld [vmem:[#allocation6 + $0x188] sm:$0xff]
        %v4687 = vld [vmem:[#allocation6 + $0x190] sm:$0xff]
        %v4688 = vld [vmem:[#allocation6 + $0x198] sm:$0xff]
        %v4689 = vld [vmem:[#allocation6 + $0x1a0] sm:$0xff]
        %v4690 = vld [vmem:[#allocation6 + $0x1a8] sm:$0xff]
        %v4691 = vld [vmem:[#allocation6 + $0x1b0] sm:$0xff]
        %v4692 = vld [vmem:[#allocation6 + $0x1b8] sm:$0xff]
        %v4693 = vld [vmem:[#allocation6 + $0x1c0] sm:$0xff]
        %v4694 = vld [vmem:[#allocation6 + $0x1c8] sm:$0xff]
        %v4695 = vld [vmem:[#allocation6 + $0x1d0] sm:$0xff]
        %v4696 = vld [vmem:[#allocation6 + $0x1d8] sm:$0xff]
        %v4697 = vld [vmem:[#allocation6 + $0x1e0] sm:$0xff]
        %v4698 = vld [vmem:[#allocation6 + $0x1e8] sm:$0xff]
        %v4699 = vld [vmem:[#allocation6 + $0x1f0] sm:$0xff]
        %v4700 = vld [vmem:[#allocation6 + $0x1f8] sm:$0xff]
        %v4701 = vld [vmem:[#allocation6 + $0x200] sm:$0xff]
        %v4702 = vld [vmem:[#allocation6 + $0x208] sm:$0xff]
        %v4703 = vld [vmem:[#allocation6 + $0x210] sm:$0xff]
        %v4704 = vld [vmem:[#allocation6 + $0x218] sm:$0xff]
        %v4705 = vld [vmem:[#allocation6 + $0x220] sm:$0xff]
        %v4706 = vld [vmem:[#allocation6 + $0x228] sm:$0xff]
        %v4707 = vld [vmem:[#allocation6 + $0x230] sm:$0xff]
        %v4708 = vld [vmem:[#allocation6 + $0x238] sm:$0xff]
        %v4709 = vld [vmem:[#allocation6 + $0x240] sm:$0xff]
        %v4710 = vld [vmem:[#allocation6 + $0x248] sm:$0xff]
        %v4711 = vld [vmem:[#allocation6 + $0x250] sm:$0xff]
        %v4712 = vld [vmem:[#allocation6 + $0x258] sm:$0xff]
        %v4713 = vld [vmem:[#allocation6 + $0x260] sm:$0xff]
        %v4714 = vld [vmem:[#allocation6 + $0x268] sm:$0xff]
        %v4715 = vld [vmem:[#allocation6 + $0x270] sm:$0xff]
        %v4716 = vld [vmem:[#allocation6 + $0x278] sm:$0xff]
        %v4717 = vld [vmem:[#allocation16] sm:$0xf]
        %v4718 = vld [vmem:[#allocation16 + $0x4] sm:$0xf]
        %v4719 = vld [vmem:[#allocation16 + $0x8] sm:$0xf]
        %v4720 = vld [vmem:[#allocation16 + $0xc] sm:$0xf]
        %v4721 = vld [vmem:[#allocation16 + $0x10] sm:$0xf]
        %v4722 = vld [vmem:[#allocation16 + $0x14] sm:$0xf]
        %v4723 = vld [vmem:[#allocation16 + $0x18] sm:$0xf]
        %v4724 = vld [vmem:[#allocation16 + $0x1c] sm:$0xf]
        %v4725 = vld [vmem:[#allocation16 + $0x20] sm:$0xf]
        %v4726 = vld [vmem:[#allocation16 + $0x24] sm:$0xf]
        %v4727 = vld [vmem:[#allocation16 + $0x28] sm:$0xf]
        %v4728 = vld [vmem:[#allocation16 + $0x2c] sm:$0xf]
        %v4729 = vld [vmem:[#allocation16 + $0x30] sm:$0xf]
        %v4730 = vld [vmem:[#allocation16 + $0x34] sm:$0xf]
        %v4731 = vld [vmem:[#allocation16 + $0x38] sm:$0xf]
        %v4732 = vld [vmem:[#allocation16 + $0x3c] sm:$0xf]
        %v4733 = vld [vmem:[#allocation16 + $0x40] sm:$0xf]
        %v4734 = vld [vmem:[#allocation16 + $0x44] sm:$0xf]
        %v4735 = vld [vmem:[#allocation16 + $0x48] sm:$0xf]
        %v4736 = vld [vmem:[#allocation16 + $0x4c] sm:$0xf]
        %v4737 = vld [vmem:[#allocation16 + $0x50] sm:$0xf]
        %v4738 = vld [vmem:[#allocation16 + $0x54] sm:$0xf]
        %v4739 = vld [vmem:[#allocation16 + $0x58] sm:$0xf]
        %v4740 = vld [vmem:[#allocation16 + $0x5c] sm:$0xf]
        %v4741 = vld [vmem:[#allocation16 + $0x60] sm:$0xf]
        %v4742 = vld [vmem:[#allocation16 + $0x64] sm:$0xf]
        %v4743 = vld [vmem:[#allocation16 + $0x68] sm:$0xf]
        %v4744 = vld [vmem:[#allocation16 + $0x6c] sm:$0xf]
        %v4745 = vld [vmem:[#allocation16 + $0x70] sm:$0xf]
        %v4746 = vld [vmem:[#allocation16 + $0x74] sm:$0xf]
        %v4747 = vld [vmem:[#allocation16 + $0x78] sm:$0xf]
        %v4748 = vld [vmem:[#allocation16 + $0x7c] sm:$0xf]
        %v4749 = vld [vmem:[#allocation16 + $0x80] sm:$0xf]
        %v4750 = vld [vmem:[#allocation16 + $0x84] sm:$0xf]
        %v4751 = vld [vmem:[#allocation16 + $0x88] sm:$0xf]
        %v4752 = vld [vmem:[#allocation16 + $0x8c] sm:$0xf]
        %v4753 = vld [vmem:[#allocation16 + $0x90] sm:$0xf]
        %v4754 = vld [vmem:[#allocation16 + $0x94] sm:$0xf]
        %v4755 = vld [vmem:[#allocation16 + $0x98] sm:$0xf]
        %v4756 = vld [vmem:[#allocation16 + $0x9c] sm:$0xf]
        %v4757 = vld [vmem:[#allocation16 + $0xa0] sm:$0xf]
        %v4758 = vld [vmem:[#allocation16 + $0xa4] sm:$0xf]
        %v4759 = vld [vmem:[#allocation16 + $0xa8] sm:$0xf]
        %v4760 = vld [vmem:[#allocation16 + $0xac] sm:$0xf]
        %v4761 = vld [vmem:[#allocation16 + $0xb0] sm:$0xf]
        %v4762 = vld [vmem:[#allocation16 + $0xb4] sm:$0xf]
        %v4763 = vld [vmem:[#allocation16 + $0xb8] sm:$0xf]
        %v4764 = vld [vmem:[#allocation16 + $0xbc] sm:$0xf]
        %v4765 = vld [vmem:[#allocation16 + $0xc0] sm:$0xf]
        %v4766 = vld [vmem:[#allocation16 + $0xc4] sm:$0xf]
        %v4767 = vld [vmem:[#allocation16 + $0xc8] sm:$0xf]
        %v4768 = vld [vmem:[#allocation16 + $0xcc] sm:$0xf]
        %v4769 = vld [vmem:[#allocation16 + $0xd0] sm:$0xf]
        %v4770 = vld [vmem:[#allocation16 + $0xd4] sm:$0xf]
        %v4771 = vld [vmem:[#allocation16 + $0xd8] sm:$0xf]
        %v4772 = vld [vmem:[#allocation16 + $0xdc] sm:$0xf]
        %v4773 = vld [vmem:[#allocation16 + $0xe0] sm:$0xf]
        %v4774 = vld [vmem:[#allocation16 + $0xe4] sm:$0xf]
        %v4775 = vld [vmem:[#allocation16 + $0xe8] sm:$0xf]
        %v4776 = vld [vmem:[#allocation16 + $0xec] sm:$0xf]
        %v4777 = vld [vmem:[#allocation16 + $0xf0] sm:$0xf]
        %v4778 = vld [vmem:[#allocation16 + $0xf4] sm:$0xf]
        %v4779 = vld [vmem:[#allocation16 + $0xf8] sm:$0xf]
        %v4780 = vld [vmem:[#allocation16 + $0xfc] sm:$0xf]
        %v4781 = vld [vmem:[#allocation16 + $0x100] sm:$0xf]
        %v4782 = vld [vmem:[#allocation16 + $0x104] sm:$0xf]
        %v4783 = vld [vmem:[#allocation16 + $0x108] sm:$0xf]
        %v4784 = vld [vmem:[#allocation16 + $0x10c] sm:$0xf]
        %v4785 = vld [vmem:[#allocation16 + $0x110] sm:$0xf]
        %v4786 = vld [vmem:[#allocation16 + $0x114] sm:$0xf]
        %v4787 = vld [vmem:[#allocation16 + $0x118] sm:$0xf]
        %v4788 = vld [vmem:[#allocation16 + $0x11c] sm:$0xf]
        %v4789 = vld [vmem:[#allocation18] sm:$0x1]
        %v4791 = vlaneseq
        %v4792 = vshrl.u32 %v4791, 7
        %v4793 = vsub.s32 0, %v4792
        %v4794 = vrot.slane %v4789, %v4793
        %v4868 = vunpack.c.l.b16 %v4717
        %v4869 = vunpack.c.l.b16 %v4718
        %v4870 = vunpack.c.l.b16 %v4719
        %v4871 = vunpack.c.l.b16 %v4720
        %v4872 = vunpack.c.l.b16 %v4721
        %v4873 = vunpack.c.l.b16 %v4722
        %v4874 = vunpack.c.l.b16 %v4723
        %v4875 = vunpack.c.l.b16 %v4724
        %v4876 = vunpack.c.l.b16 %v4725
        %v4877 = vunpack.c.l.b16 %v4726
        %v4878 = vunpack.c.l.b16 %v4727
        %v4879 = vunpack.c.l.b16 %v4728
        %v4880 = vunpack.c.l.b16 %v4729
        %v4881 = vunpack.c.l.b16 %v4730
        %v4882 = vunpack.c.l.b16 %v4731
        %v4883 = vunpack.c.l.b16 %v4732
        %v4884 = vunpack.c.l.b16 %v4733
        %v4885 = vunpack.c.l.b16 %v4734
        %v4886 = vunpack.c.l.b16 %v4735
        %v4887 = vunpack.c.l.b16 %v4736
        %v4888 = vunpack.c.l.b16 %v4737
        %v4889 = vunpack.c.l.b16 %v4738
        %v4890 = vunpack.c.l.b16 %v4739
        %v4891 = vunpack.c.l.b16 %v4740
        %v4892 = vunpack.c.l.b16 %v4741
        %v4893 = vunpack.c.l.b16 %v4742
        %v4894 = vunpack.c.l.b16 %v4743
        %v4895 = vunpack.c.l.b16 %v4744
        %v4896 = vunpack.c.l.b16 %v4745
        %v4897 = vunpack.c.l.b16 %v4746
        %v4898 = vunpack.c.l.b16 %v4747
        %v4899 = vunpack.c.l.b16 %v4748
        %v4900 = vunpack.c.l.b16 %v4749
        %v4901 = vunpack.c.l.b16 %v4750
        %v4902 = vunpack.c.l.b16 %v4751
        %v4903 = vunpack.c.l.b16 %v4752
        %v4904 = vunpack.c.l.b16 %v4753
        %v4905 = vunpack.c.l.b16 %v4754
        %v4906 = vunpack.c.l.b16 %v4755
        %v4907 = vunpack.c.l.b16 %v4756
        %v4908 = vunpack.c.l.b16 %v4757
        %v4909 = vunpack.c.l.b16 %v4758
        %v4910 = vunpack.c.l.b16 %v4759
        %v4911 = vunpack.c.l.b16 %v4760
        %v4912 = vunpack.c.l.b16 %v4761
        %v4913 = vunpack.c.l.b16 %v4762
        %v4914 = vunpack.c.l.b16 %v4763
        %v4915 = vunpack.c.l.b16 %v4764
        %v4916 = vunpack.c.l.b16 %v4765
        %v4917 = vunpack.c.l.b16 %v4766
        %v4918 = vunpack.c.l.b16 %v4767
        %v4919 = vunpack.c.l.b16 %v4768
        %v4920 = vunpack.c.l.b16 %v4769
        %v4921 = vunpack.c.l.b16 %v4770
        %v4922 = vunpack.c.l.b16 %v4771
        %v4923 = vunpack.c.l.b16 %v4772
        %v4924 = vunpack.c.l.b16 %v4773
        %v4925 = vunpack.c.l.b16 %v4774
        %v4926 = vunpack.c.l.b16 %v4775
        %v4927 = vunpack.c.l.b16 %v4776
        %v4928 = vunpack.c.l.b16 %v4777
        %v4929 = vunpack.c.l.b16 %v4778
        %v4930 = vunpack.c.l.b16 %v4779
        %v4931 = vunpack.c.l.b16 %v4780
        %v4932 = vunpack.c.l.b16 %v4781
        %v4933 = vunpack.c.l.b16 %v4782
        %v4934 = vunpack.c.l.b16 %v4783
        %v4935 = vunpack.c.l.b16 %v4784
        %v4936 = vunpack.c.l.b16 %v4785
        %v4937 = vunpack.c.l.b16 %v4786
        %v4938 = vunpack.c.l.b16 %v4787
        %v4939 = vunpack.c.l.b16 %v4788
        %v4940 = vpack.c.b16 %v4869, %v4868
        %v4941 = vpack.c.b16 %v4871, %v4870
        %v4942 = vpack.c.b16 %v4873, %v4872
        %v4943 = vpack.c.b16 %v4875, %v4874
        %v4944 = vpack.c.b16 %v4877, %v4876
        %v4945 = vpack.c.b16 %v4879, %v4878
        %v4946 = vpack.c.b16 %v4881, %v4880
        %v4947 = vpack.c.b16 %v4883, %v4882
        %v4948 = vpack.c.b16 %v4885, %v4884
        %v4949 = vpack.c.b16 %v4887, %v4886
        %v4950 = vpack.c.b16 %v4889, %v4888
        %v4951 = vpack.c.b16 %v4891, %v4890
        %v4952 = vpack.c.b16 %v4893, %v4892
        %v4953 = vpack.c.b16 %v4895, %v4894
        %v4954 = vpack.c.b16 %v4897, %v4896
        %v4955 = vpack.c.b16 %v4899, %v4898
        %v4956 = vpack.c.b16 %v4901, %v4900
        %v4957 = vpack.c.b16 %v4903, %v4902
        %v4958 = vpack.c.b16 %v4905, %v4904
        %v4959 = vpack.c.b16 %v4907, %v4906
        %v4960 = vpack.c.b16 %v4909, %v4908
        %v4961 = vpack.c.b16 %v4911, %v4910
        %v4962 = vpack.c.b16 %v4913, %v4912
        %v4963 = vpack.c.b16 %v4915, %v4914
        %v4964 = vpack.c.b16 %v4917, %v4916
        %v4965 = vpack.c.b16 %v4919, %v4918
        %v4966 = vpack.c.b16 %v4921, %v4920
        %v4967 = vpack.c.b16 %v4923, %v4922
        %v4968 = vpack.c.b16 %v4925, %v4924
        %v4969 = vpack.c.b16 %v4927, %v4926
        %v4970 = vpack.c.b16 %v4929, %v4928
        %v4971 = vpack.c.b16 %v4931, %v4930
        %v4972 = vpack.c.b16 %v4933, %v4932
        %v4973 = vpack.c.b16 %v4935, %v4934
        %v4974 = vpack.c.b16 %v4937, %v4936
        %v4975 = vpack.c.b16 %v4939, %v4938
        %v5013 = vsel %vm423, %v4641, 0
        %v5016 = vsel %vm423, %v4646, 0
        %v5019 = vsel %vm423, %v4651, 0
        %v5022 = vsel %vm423, %v4656, 0
        %v5025 = vsel %vm423, %v4661, 0
        %v5028 = vsel %vm423, %v4666, 0
        %v5031 = vsel %vm423, %v4671, 0
        %v5034 = vsel %vm423, %v4676, 0
        %v5037 = vsel %vm423, %v4681, 0
        %v5040 = vsel %vm423, %v4686, 0
        %v5043 = vsel %vm423, %v4691, 0
        %v5046 = vsel %vm423, %v4696, 0
        %v5049 = vsel %vm423, %v4701, 0
        %v5052 = vsel %vm423, %v4706, 0
        %v5055 = vsel %vm423, %v4711, 0
        %v5058 = vsel %vm423, %v4716, 0
        %5060 = vmatprep.subr.bf16.mxu0 0
        %5061 = vmatpush1.bf16.msra.mxu0 %v4940
        %5062 = vmatprep.subr.bf16.mxu0 0
        %5063 = vmatpush1.bf16.msra.mxu0 %v4941
        %5064 = vmatprep.subr.bf16.mxu0 0
        %5065 = vmatpush1.bf16.msra.mxu0 %v4942
        %5066 = vmatprep.subr.bf16.mxu0 0
        %5067 = vmatpush1.bf16.msra.mxu0 %v4943
        %5068 = vmatprep.subr.bf16.mxu0 0
        %5069 = vmatpush1.bf16.msra.mxu0 %v4944
        %5070 = vmatprep.subr.bf16.mxu0 0
        %5071 = vmatpush1.bf16.msra.mxu0 %v4945
        %5072 = vmatprep.subr.bf16.mxu0 0
        %5073 = vmatpush1.bf16.msra.mxu0 %v4946
        %5074 = vmatprep.subr.bf16.mxu0 0
        %5075 = vmatpush1.bf16.msra.mxu0 %v4947
        %5076 = vmatprep.subr.bf16.mxu0 0
        %5077 = vmatpush1.bf16.msra.mxu0 %v4948
        %5078 = vmatprep.subr.bf16.mxu0 0
        %5079 = vmatpush1.bf16.msra.mxu0 %v4949
        %5080 = vmatprep.subr.bf16.mxu0 0
        %5081 = vmatpush1.bf16.msra.mxu0 %v4950
        %5082 = vmatprep.subr.bf16.mxu0 0
        %5083 = vmatpush1.bf16.msra.mxu0 %v4951
        %5084 = vmatprep.subr.bf16.mxu0 0
        %5085 = vmatpush1.bf16.msra.mxu0 %v4952
        %5086 = vmatprep.subr.bf16.mxu0 0
        %5087 = vmatpush1.bf16.msra.mxu0 %v4953
        %5088 = vmatprep.subr.bf16.mxu0 0
        %5089 = vmatpush1.bf16.msra.mxu0 %v4954
        %5090 = vmatprep.subr.bf16.mxu0 0
        %5091 = vmatpush1.bf16.msra.mxu0 %v4955
        %5092 = vmatprep.mubr.bf16.mxu0 %v4638
        %5093 = vmatmul.mubr.bf16.gmra.mrb[0].mxu0 %v4637
        %v5094 = vpop.f32.mrb[0].mxu0
        %v5095 = vadd.f32 %v4794, %v5094
        %v5096 = vpop.f32.mrb[0].mxu0
        %v5097 = vpop.f32.mrb[0].mxu0
        %v5098 = vadd.f32 %v4794, %v5097
        %v5099 = vpop.f32.mrb[0].mxu0
        %5100 = vmatprep.mubr.bf16.mxu0 %v4643
        %5101 = vmatmul.mubr.bf16.gmra.mrb[0].mxu0 %v4642
        %v5102 = vpop.f32.mrb[0].mxu0
        %v5103 = vadd.f32 %v4794, %v5102
        %v5104 = vpop.f32.mrb[0].mxu0
        %v5105 = vpop.f32.mrb[0].mxu0
        %v5106 = vadd.f32 %v4794, %v5105
        %v5107 = vpop.f32.mrb[0].mxu0
        %5108 = vmatprep.mubr.bf16.mxu0 %v4648
        %5109 = vmatmul.mubr.bf16.gmra.mrb[0].mxu0 %v4647
        %v5110 = vpop.f32.mrb[0].mxu0
        %v5111 = vadd.f32 %v4794, %v5110
        %v5112 = vpop.f32.mrb[0].mxu0
        %v5113 = vpop.f32.mrb[0].mxu0
        %v5114 = vadd.f32 %v4794, %v5113
        %v5115 = vpop.f32.mrb[0].mxu0
        %5116 = vmatprep.mubr.bf16.mxu0 %v4653
        %5117 = vmatmul.mubr.bf16.gmra.mrb[0].mxu0 %v4652
        %v5118 = vpop.f32.mrb[0].mxu0
        %v5119 = vadd.f32 %v4794, %v5118
        %v5120 = vpop.f32.mrb[0].mxu0
        %v5121 = vpop.f32.mrb[0].mxu0
        %v5122 = vadd.f32 %v4794, %v5121
        %v5123 = vpop.f32.mrb[0].mxu0
        %5124 = vmatprep.mubr.bf16.mxu0 %v4658
        %5125 = vmatmul.mubr.bf16.gmra.mrb[0].mxu0 %v4657
        %v5126 = vpop.f32.mrb[0].mxu0
        %v5127 = vadd.f32 %v4794, %v5126
        %v5128 = vpop.f32.mrb[0].mxu0
        %v5129 = vpop.f32.mrb[0].mxu0
        %v5130 = vadd.f32 %v4794, %v5129
        %v5131 = vpop.f32.mrb[0].mxu0
        %5132 = vmatprep.mubr.bf16.mxu0 %v4663
        %5133 = vmatmul.mubr.bf16.gmra.mrb[0].mxu0 %v4662
        %v5134 = vpop.f32.mrb[0].mxu0
        %v5135 = vadd.f32 %v4794, %v5134
        %v5136 = vpop.f32.mrb[0].mxu0
        %v5137 = vpop.f32.mrb[0].mxu0
        %v5138 = vadd.f32 %v4794, %v5137
        %v5139 = vpop.f32.mrb[0].mxu0
        %5140 = vmatprep.mubr.bf16.mxu0 %v4668
        %5141 = vmatmul.mubr.bf16.gmra.mrb[0].mxu0 %v4667
        %v5142 = vpop.f32.mrb[0].mxu0
        %v5143 = vadd.f32 %v4794, %v5142
        %v5144 = vpop.f32.mrb[0].mxu0
        %v5145 = vpop.f32.mrb[0].mxu0
        %v5146 = vadd.f32 %v4794, %v5145
        %v5147 = vpop.f32.mrb[0].mxu0
        %5148 = vmatprep.mubr.bf16.mxu0 %v4673
        %5149 = vmatmul.mubr.bf16.gmra.mrb[0].mxu0 %v4672
        %v5150 = vpop.f32.mrb[0].mxu0
        %v5151 = vadd.f32 %v4794, %v5150
        %v5152 = vpop.f32.mrb[0].mxu0
        %v5153 = vpop.f32.mrb[0].mxu0
        %v5154 = vadd.f32 %v4794, %v5153
        %v5155 = vpop.f32.mrb[0].mxu0
        %5156 = vmatprep.mubr.bf16.mxu0 %v4678
        %5157 = vmatmul.mubr.bf16.gmra.mrb[0].mxu0 %v4677
        %v5158 = vpop.f32.mrb[0].mxu0
        %v5159 = vadd.f32 %v4794, %v5158
        %v5160 = vpop.f32.mrb[0].mxu0
        %v5161 = vpop.f32.mrb[0].mxu0
        %v5162 = vadd.f32 %v4794, %v5161
        %v5163 = vpop.f32.mrb[0].mxu0
        %5164 = vmatprep.mubr.bf16.mxu0 %v4683
        %5165 = vmatmul.mubr.bf16.gmra.mrb[0].mxu0 %v4682
        %v5166 = vpop.f32.mrb[0].mxu0
        %v5167 = vadd.f32 %v4794, %v5166
        %v5168 = vpop.f32.mrb[0].mxu0
        %v5169 = vpop.f32.mrb[0].mxu0
        %v5170 = vadd.f32 %v4794, %v5169
        %v5171 = vpop.f32.mrb[0].mxu0
        %5172 = vmatprep.mubr.bf16.mxu0 %v4688
        %5173 = vmatmul.mubr.bf16.gmra.mrb[0].mxu0 %v4687
        %v5174 = vpop.f32.mrb[0].mxu0
        %v5175 = vadd.f32 %v4794, %v5174
        %v5176 = vpop.f32.mrb[0].mxu0
        %v5177 = vpop.f32.mrb[0].mxu0
        %v5178 = vadd.f32 %v4794, %v5177
        %v5179 = vpop.f32.mrb[0].mxu0
        %5180 = vmatprep.mubr.bf16.mxu0 %v4693
        %5181 = vmatmul.mubr.bf16.gmra.mrb[0].mxu0 %v4692
        %v5182 = vpop.f32.mrb[0].mxu0
        %v5183 = vadd.f32 %v4794, %v5182
        %v5184 = vpop.f32.mrb[0].mxu0
        %v5185 = vpop.f32.mrb[0].mxu0
        %v5186 = vadd.f32 %v4794, %v5185
        %v5187 = vpop.f32.mrb[0].mxu0
        %5188 = vmatprep.mubr.bf16.mxu0 %v4698
        %5189 = vmatmul.mubr.bf16.gmra.mrb[0].mxu0 %v4697
        %v5190 = vpop.f32.mrb[0].mxu0
        %v5191 = vadd.f32 %v4794, %v5190
        %v5192 = vpop.f32.mrb[0].mxu0
        %v5193 = vpop.f32.mrb[0].mxu0
        %v5194 = vadd.f32 %v4794, %v5193
        %v5195 = vpop.f32.mrb[0].mxu0
        %5196 = vmatprep.mubr.bf16.mxu0 %v4703
        %5197 = vmatmul.mubr.bf16.gmra.mrb[0].mxu0 %v4702
        %v5198 = vpop.f32.mrb[0].mxu0
        %v5199 = vadd.f32 %v4794, %v5198
        %v5200 = vpop.f32.mrb[0].mxu0
        %v5201 = vpop.f32.mrb[0].mxu0
        %v5202 = vadd.f32 %v4794, %v5201
        %v5203 = vpop.f32.mrb[0].mxu0
        %5204 = vmatprep.mubr.bf16.mxu0 %v4708
        %5205 = vmatmul.mubr.bf16.gmra.mrb[0].mxu0 %v4707
        %v5206 = vpop.f32.mrb[0].mxu0
        %v5207 = vadd.f32 %v4794, %v5206
        %v5208 = vpop.f32.mrb[0].mxu0
        %v5209 = vpop.f32.mrb[0].mxu0
        %v5210 = vadd.f32 %v4794, %v5209
        %v5211 = vpop.f32.mrb[0].mxu0
        %5212 = vmatprep.mubr.bf16.mxu0 %v4713
        %5213 = vmatmul.mubr.bf16.gmra.mrb[0].mxu0 %v4712
        %v5214 = vpop.f32.mrb[0].mxu0
        %v5215 = vadd.f32 %v4794, %v5214
        %v5216 = vpop.f32.mrb[0].mxu0
        %v5217 = vpop.f32.mrb[0].mxu0
        %v5218 = vadd.f32 %v4794, %v5217
        %v5219 = vpop.f32.mrb[0].mxu0
        %5220 = vdwg.mxu0
        %5221 = vmatprep.subr.bf16.mxu0 0
        %5222 = vmatpush1.bf16.msra.mxu0 %v4956
        %5223 = vmatprep.subr.bf16.mxu0 0
        %5224 = vmatpush1.bf16.msra.mxu0 %v4957
        %5225 = vmatprep.subr.bf16.mxu0 0
        %5226 = vmatpush1.bf16.msra.mxu0 %v4958
        %5227 = vmatprep.subr.bf16.mxu0 0
        %5228 = vmatpush1.bf16.msra.mxu0 %v4959
        %5229 = vmatprep.subr.bf16.mxu0 0
        %5230 = vmatpush1.bf16.msra.mxu0 %v4960
        %5231 = vmatprep.subr.bf16.mxu0 0
        %5232 = vmatpush1.bf16.msra.mxu0 %v4961
        %5233 = vmatprep.subr.bf16.mxu0 0
        %5234 = vmatpush1.bf16.msra.mxu0 %v4962
        %5235 = vmatprep.subr.bf16.mxu0 0
        %5236 = vmatpush1.bf16.msra.mxu0 %v4963
        %5237 = vmatprep.subr.bf16.mxu0 0
        %5238 = vmatpush1.bf16.msra.mxu0 %v4964
        %5239 = vmatprep.subr.bf16.mxu0 0
        %5240 = vmatpush1.bf16.msra.mxu0 %v4965
        %5241 = vmatprep.subr.bf16.mxu0 0
        %5242 = vmatpush1.bf16.msra.mxu0 %v4966
        %5243 = vmatprep.subr.bf16.mxu0 0
        %5244 = vmatpush1.bf16.msra.mxu0 %v4967
        %5245 = vmatprep.subr.bf16.mxu0 0
        %5246 = vmatpush1.bf16.msra.mxu0 %v4968
        %5247 = vmatprep.subr.bf16.mxu0 0
        %5248 = vmatpush1.bf16.msra.mxu0 %v4969
        %5249 = vmatprep.subr.bf16.mxu0 0
        %5250 = vmatpush1.bf16.msra.mxu0 %v4970
        %5251 = vmatprep.subr.bf16.mxu0 0
        %5252 = vmatpush1.bf16.msra.mxu0 %v4971
        %5253 = vmatprep.mubr.bf16.mxu0 %v4640
        %5254 = vmatmul.mubr.bf16.gmra.mrb[0].mxu0 %v4639
        %v5255 = vpop.f32.mrb[0].mxu0
        %v5256 = vadd.f32 %v5095, %v5255
        %v5257 = vpop.f32.mrb[0].mxu0
        %v5258 = vpop.f32.mrb[0].mxu0
        %v5259 = vadd.f32 %v5098, %v5258
        %v5260 = vpop.f32.mrb[0].mxu0
        %5261 = vmatprep.mubr.bf16.mxu0 %v4645
        %5262 = vmatmul.mubr.bf16.gmra.mrb[0].mxu0 %v4644
        %v5263 = vpop.f32.mrb[0].mxu0
        %v5264 = vadd.f32 %v5103, %v5263
        %v5265 = vpop.f32.mrb[0].mxu0
        %v5266 = vpop.f32.mrb[0].mxu0
        %v5267 = vadd.f32 %v5106, %v5266
        %v5268 = vpop.f32.mrb[0].mxu0
        %5269 = vmatprep.mubr.bf16.mxu0 %v4650
        %5270 = vmatmul.mubr.bf16.gmra.mrb[0].mxu0 %v4649
        %v5271 = vpop.f32.mrb[0].mxu0
        %v5272 = vadd.f32 %v5111, %v5271
        %v5273 = vpop.f32.mrb[0].mxu0
        %v5274 = vpop.f32.mrb[0].mxu0
        %v5275 = vadd.f32 %v5114, %v5274
        %v5276 = vpop.f32.mrb[0].mxu0
        %5277 = vmatprep.mubr.bf16.mxu0 %v4655
        %5278 = vmatmul.mubr.bf16.gmra.mrb[0].mxu0 %v4654
        %v5279 = vpop.f32.mrb[0].mxu0
        %v5280 = vadd.f32 %v5119, %v5279
        %v5281 = vpop.f32.mrb[0].mxu0
        %v5282 = vpop.f32.mrb[0].mxu0
        %v5283 = vadd.f32 %v5122, %v5282
        %v5284 = vpop.f32.mrb[0].mxu0
        %5285 = vmatprep.mubr.bf16.mxu0 %v4660
        %5286 = vmatmul.mubr.bf16.gmra.mrb[0].mxu0 %v4659
        %v5287 = vpop.f32.mrb[0].mxu0
        %v5288 = vadd.f32 %v5127, %v5287
        %v5289 = vpop.f32.mrb[0].mxu0
        %v5290 = vpop.f32.mrb[0].mxu0
        %v5291 = vadd.f32 %v5130, %v5290
        %v5292 = vpop.f32.mrb[0].mxu0
        %5293 = vmatprep.mubr.bf16.mxu0 %v4665
        %5294 = vmatmul.mubr.bf16.gmra.mrb[0].mxu0 %v4664
        %v5295 = vpop.f32.mrb[0].mxu0
        %v5296 = vadd.f32 %v5135, %v5295
        %v5297 = vpop.f32.mrb[0].mxu0
        %v5298 = vpop.f32.mrb[0].mxu0
        %v5299 = vadd.f32 %v5138, %v5298
        %v5300 = vpop.f32.mrb[0].mxu0
        %5301 = vmatprep.mubr.bf16.mxu0 %v4670
        %5302 = vmatmul.mubr.bf16.gmra.mrb[0].mxu0 %v4669
        %v5303 = vpop.f32.mrb[0].mxu0
        %v5304 = vadd.f32 %v5143, %v5303
        %v5305 = vpop.f32.mrb[0].mxu0
        %v5306 = vpop.f32.mrb[0].mxu0
        %v5307 = vadd.f32 %v5146, %v5306
        %v5308 = vpop.f32.mrb[0].mxu0
        %5309 = vmatprep.mubr.bf16.mxu0 %v4675
        %5310 = vmatmul.mubr.bf16.gmra.mrb[0].mxu0 %v4674
        %v5311 = vpop.f32.mrb[0].mxu0
        %v5312 = vadd.f32 %v5151, %v5311
        %v5313 = vpop.f32.mrb[0].mxu0
        %v5314 = vpop.f32.mrb[0].mxu0
        %v5315 = vadd.f32 %v5154, %v5314
        %v5316 = vpop.f32.mrb[0].mxu0
        %5317 = vmatprep.mubr.bf16.mxu0 %v4680
        %5318 = vmatmul.mubr.bf16.gmra.mrb[0].mxu0 %v4679
        %v5319 = vpop.f32.mrb[0].mxu0
        %v5320 = vadd.f32 %v5159, %v5319
        %v5321 = vpop.f32.mrb[0].mxu0
        %v5322 = vpop.f32.mrb[0].mxu0
        %v5323 = vadd.f32 %v5162, %v5322
        %v5324 = vpop.f32.mrb[0].mxu0
        %5325 = vmatprep.mubr.bf16.mxu0 %v4685
        %5326 = vmatmul.mubr.bf16.gmra.mrb[0].mxu0 %v4684
        %v5327 = vpop.f32.mrb[0].mxu0
        %v5328 = vadd.f32 %v5167, %v5327
        %v5329 = vpop.f32.mrb[0].mxu0
        %v5330 = vpop.f32.mrb[0].mxu0
        %v5331 = vadd.f32 %v5170, %v5330
        %v5332 = vpop.f32.mrb[0].mxu0
        %5333 = vmatprep.mubr.bf16.mxu0 %v4690
        %5334 = vmatmul.mubr.bf16.gmra.mrb[0].mxu0 %v4689
        %v5335 = vpop.f32.mrb[0].mxu0
        %v5336 = vadd.f32 %v5175, %v5335
        %v5337 = vpop.f32.mrb[0].mxu0
        %v5338 = vpop.f32.mrb[0].mxu0
        %v5339 = vadd.f32 %v5178, %v5338
        %v5340 = vpop.f32.mrb[0].mxu0
        %5341 = vmatprep.mubr.bf16.mxu0 %v4695
        %5342 = vmatmul.mubr.bf16.gmra.mrb[0].mxu0 %v4694
        %v5343 = vpop.f32.mrb[0].mxu0
        %v5344 = vadd.f32 %v5183, %v5343
        %v5345 = vpop.f32.mrb[0].mxu0
        %v5346 = vpop.f32.mrb[0].mxu0
        %v5347 = vadd.f32 %v5186, %v5346
        %v5348 = vpop.f32.mrb[0].mxu0
        %5349 = vmatprep.mubr.bf16.mxu0 %v4700
        %5350 = vmatmul.mubr.bf16.gmra.mrb[0].mxu0 %v4699
        %v5351 = vpop.f32.mrb[0].mxu0
        %v5352 = vadd.f32 %v5191, %v5351
        %v5353 = vpop.f32.mrb[0].mxu0
        %v5354 = vpop.f32.mrb[0].mxu0
        %v5355 = vadd.f32 %v5194, %v5354
        %v5356 = vpop.f32.mrb[0].mxu0
        %5357 = vmatprep.mubr.bf16.mxu0 %v4705
        %5358 = vmatmul.mubr.bf16.gmra.mrb[0].mxu0 %v4704
        %v5359 = vpop.f32.mrb[0].mxu0
        %v5360 = vadd.f32 %v5199, %v5359
        %v5361 = vpop.f32.mrb[0].mxu0
        %v5362 = vpop.f32.mrb[0].mxu0
        %v5363 = vadd.f32 %v5202, %v5362
        %v5364 = vpop.f32.mrb[0].mxu0
        %5365 = vmatprep.mubr.bf16.mxu0 %v4710
        %5366 = vmatmul.mubr.bf16.gmra.mrb[0].mxu0 %v4709
        %v5367 = vpop.f32.mrb[0].mxu0
        %v5368 = vadd.f32 %v5207, %v5367
        %v5369 = vpop.f32.mrb[0].mxu0
        %v5370 = vpop.f32.mrb[0].mxu0
        %v5371 = vadd.f32 %v5210, %v5370
        %v5372 = vpop.f32.mrb[0].mxu0
        %5373 = vmatprep.mubr.bf16.mxu0 %v4715
        %5374 = vmatmul.mubr.bf16.gmra.mrb[0].mxu0 %v4714
        %v5375 = vpop.f32.mrb[0].mxu0
        %v5376 = vadd.f32 %v5215, %v5375
        %v5377 = vpop.f32.mrb[0].mxu0
        %v5378 = vpop.f32.mrb[0].mxu0
        %v5379 = vadd.f32 %v5218, %v5378
        %v5380 = vpop.f32.mrb[0].mxu0
        %5381 = vdwg.mxu0
        %5382 = vmatprep.subr.bf16.mxu0 0
        %5383 = vmatpush1.bf16.msra.mxu0 %v4972
        %5384 = vmatprep.subr.bf16.mxu0 0
        %5385 = vmatpush1.bf16.msra.mxu0 %v4973
        %5386 = vmatprep.subr.bf16.mxu0 0
        %5387 = vmatpush1.bf16.msra.mxu0 %v4974
        %5388 = vmatprep.subr.bf16.mxu0 0
        %5389 = vmatpush1.bf16.msra.mxu0 %v4975
        %5390 = vmatprep.subr.bf16.mxu0 0
        %5391 = vmatpush1.bf16.msra.mxu0 0
        %5392 = vmatprep.subr.bf16.mxu0 0
        %5393 = vmatpush1.bf16.msra.mxu0 0
        %5394 = vmatprep.subr.bf16.mxu0 0
        %5395 = vmatpush1.bf16.msra.mxu0 0
        %5396 = vmatprep.subr.bf16.mxu0 0
        %5397 = vmatpush1.bf16.msra.mxu0 0
        %5398 = vmatprep.subr.bf16.mxu0 0
        %5399 = vmatpush1.bf16.msra.mxu0 0
        %5400 = vmatprep.subr.bf16.mxu0 0
        %5401 = vmatpush1.bf16.msra.mxu0 0
        %5402 = vmatprep.subr.bf16.mxu0 0
        %5403 = vmatpush1.bf16.msra.mxu0 0
        %5404 = vmatprep.subr.bf16.mxu0 0
        %5405 = vmatpush1.bf16.msra.mxu0 0
        %5406 = vmatprep.subr.bf16.mxu0 0
        %5407 = vmatpush1.bf16.msra.mxu0 0
        %5408 = vmatprep.subr.bf16.mxu0 0
        %5409 = vmatpush1.bf16.msra.mxu0 0
        %5410 = vmatprep.subr.bf16.mxu0 0
        %5411 = vmatpush1.bf16.msra.mxu0 0
        %5412 = vmatprep.subr.bf16.mxu0 0
        %5413 = vmatpush1.bf16.msra.mxu0 0
        %5414 = vmatprep.mubr.bf16.mxu0 0
        %5415 = vmatmul.mubr.bf16.gmra.mrb[0].mxu0 %v5013
        %v5416 = vpop.f32.mrb[0].mxu0
        %v5417 = vadd.f32 %v5256, %v5416
        %v5418 = vpop.f32.mrb[0].mxu0
        %v5419 = vpop.f32.mrb[0].mxu0
        %v5420 = vadd.f32 %v5259, %v5419
        %v5421 = vpop.f32.mrb[0].mxu0
        %5422 = vmatprep.mubr.bf16.mxu0 0
        %5423 = vmatmul.mubr.bf16.gmra.mrb[0].mxu0 %v5016
        %v5424 = vpop.f32.mrb[0].mxu0
        %v5425 = vadd.f32 %v5264, %v5424
        %v5426 = vpop.f32.mrb[0].mxu0
        %v5427 = vpop.f32.mrb[0].mxu0
        %v5428 = vadd.f32 %v5267, %v5427
        %v5429 = vpop.f32.mrb[0].mxu0
        %5430 = vmatprep.mubr.bf16.mxu0 0
        %5431 = vmatmul.mubr.bf16.gmra.mrb[0].mxu0 %v5019
        %v5432 = vpop.f32.mrb[0].mxu0
        %v5433 = vadd.f32 %v5272, %v5432
        %v5434 = vpop.f32.mrb[0].mxu0
        %v5435 = vpop.f32.mrb[0].mxu0
        %v5436 = vadd.f32 %v5275, %v5435
        %v5437 = vpop.f32.mrb[0].mxu0
        %5438 = vmatprep.mubr.bf16.mxu0 0
        %5439 = vmatmul.mubr.bf16.gmra.mrb[0].mxu0 %v5022
        %v5440 = vpop.f32.mrb[0].mxu0
        %v5441 = vadd.f32 %v5280, %v5440
        %v5442 = vpop.f32.mrb[0].mxu0
        %v5443 = vpop.f32.mrb[0].mxu0
        %v5444 = vadd.f32 %v5283, %v5443
        %v5445 = vpop.f32.mrb[0].mxu0
        %5446 = vmatprep.mubr.bf16.mxu0 0
        %5447 = vmatmul.mubr.bf16.gmra.mrb[0].mxu0 %v5025
        %v5448 = vpop.f32.mrb[0].mxu0
        %v5449 = vadd.f32 %v5288, %v5448
        %v5450 = vpop.f32.mrb[0].mxu0
        %v5451 = vpop.f32.mrb[0].mxu0
        %v5452 = vadd.f32 %v5291, %v5451
        %v5453 = vpop.f32.mrb[0].mxu0
        %5454 = vmatprep.mubr.bf16.mxu0 0
        %5455 = vmatmul.mubr.bf16.gmra.mrb[0].mxu0 %v5028
        %v5456 = vpop.f32.mrb[0].mxu0
        %v5457 = vadd.f32 %v5296, %v5456
        %v5458 = vpop.f32.mrb[0].mxu0
        %v5459 = vpop.f32.mrb[0].mxu0
        %v5460 = vadd.f32 %v5299, %v5459
        %v5461 = vpop.f32.mrb[0].mxu0
        %5462 = vmatprep.mubr.bf16.mxu0 0
        %5463 = vmatmul.mubr.bf16.gmra.mrb[0].mxu0 %v5031
        %v5464 = vpop.f32.mrb[0].mxu0
        %v5465 = vadd.f32 %v5304, %v5464
        %v5466 = vpop.f32.mrb[0].mxu0
        %v5467 = vpop.f32.mrb[0].mxu0
        %v5468 = vadd.f32 %v5307, %v5467
        %v5469 = vpop.f32.mrb[0].mxu0
        %5470 = vmatprep.mubr.bf16.mxu0 0
        %5471 = vmatmul.mubr.bf16.gmra.mrb[0].mxu0 %v5034
        %v5472 = vpop.f32.mrb[0].mxu0
        %v5473 = vadd.f32 %v5312, %v5472
        %v5474 = vpop.f32.mrb[0].mxu0
        %v5475 = vpop.f32.mrb[0].mxu0
        %v5476 = vadd.f32 %v5315, %v5475
        %v5477 = vpop.f32.mrb[0].mxu0
        %5478 = vmatprep.mubr.bf16.mxu0 0
        %5479 = vmatmul.mubr.bf16.gmra.mrb[0].mxu0 %v5037
        %v5480 = vpop.f32.mrb[0].mxu0
        %v5481 = vadd.f32 %v5320, %v5480
        %v5482 = vpop.f32.mrb[0].mxu0
        %v5483 = vpop.f32.mrb[0].mxu0
        %v5484 = vadd.f32 %v5323, %v5483
        %v5485 = vpop.f32.mrb[0].mxu0
        %5486 = vmatprep.mubr.bf16.mxu0 0
        %5487 = vmatmul.mubr.bf16.gmra.mrb[0].mxu0 %v5040
        %v5488 = vpop.f32.mrb[0].mxu0
        %v5489 = vadd.f32 %v5328, %v5488
        %v5490 = vpop.f32.mrb[0].mxu0
        %v5491 = vpop.f32.mrb[0].mxu0
        %v5492 = vadd.f32 %v5331, %v5491
        %v5493 = vpop.f32.mrb[0].mxu0
        %5494 = vmatprep.mubr.bf16.mxu0 0
        %5495 = vmatmul.mubr.bf16.gmra.mrb[0].mxu0 %v5043
        %v5496 = vpop.f32.mrb[0].mxu0
        %v5497 = vadd.f32 %v5336, %v5496
        %v5498 = vpop.f32.mrb[0].mxu0
        %v5499 = vpop.f32.mrb[0].mxu0
        %v5500 = vadd.f32 %v5339, %v5499
        %v5501 = vpop.f32.mrb[0].mxu0
        %5502 = vmatprep.mubr.bf16.mxu0 0
        %5503 = vmatmul.mubr.bf16.gmra.mrb[0].mxu0 %v5046
        %v5504 = vpop.f32.mrb[0].mxu0
        %v5505 = vadd.f32 %v5344, %v5504
        %v5506 = vpop.f32.mrb[0].mxu0
        %v5507 = vpop.f32.mrb[0].mxu0
        %v5508 = vadd.f32 %v5347, %v5507
        %v5509 = vpop.f32.mrb[0].mxu0
        %5510 = vmatprep.mubr.bf16.mxu0 0
        %5511 = vmatmul.mubr.bf16.gmra.mrb[0].mxu0 %v5049
        %v5512 = vpop.f32.mrb[0].mxu0
        %v5513 = vadd.f32 %v5352, %v5512
        %v5514 = vpop.f32.mrb[0].mxu0
        %v5515 = vpop.f32.mrb[0].mxu0
        %v5516 = vadd.f32 %v5355, %v5515
        %v5517 = vpop.f32.mrb[0].mxu0
        %5518 = vmatprep.mubr.bf16.mxu0 0
        %5519 = vmatmul.mubr.bf16.gmra.mrb[0].mxu0 %v5052
        %v5520 = vpop.f32.mrb[0].mxu0
        %v5521 = vadd.f32 %v5360, %v5520
        %v5522 = vpop.f32.mrb[0].mxu0
        %v5523 = vpop.f32.mrb[0].mxu0
        %v5524 = vadd.f32 %v5363, %v5523
        %v5525 = vpop.f32.mrb[0].mxu0
        %5526 = vmatprep.mubr.bf16.mxu0 0
        %5527 = vmatmul.mubr.bf16.gmra.mrb[0].mxu0 %v5055
        %v5528 = vpop.f32.mrb[0].mxu0
        %v5529 = vadd.f32 %v5368, %v5528
        %v5530 = vpop.f32.mrb[0].mxu0
        %v5531 = vpop.f32.mrb[0].mxu0
        %v5532 = vadd.f32 %v5371, %v5531
        %v5533 = vpop.f32.mrb[0].mxu0
        %5534 = vmatprep.mubr.bf16.mxu0 0
        %5535 = vmatmul.mubr.bf16.gmra.mrb[0].mxu0 %v5058
        %v5536 = vpop.f32.mrb[0].mxu0
        %v5537 = vadd.f32 %v5376, %v5536
        %v5538 = vpop.f32.mrb[0].mxu0
        %v5539 = vpop.f32.mrb[0].mxu0
        %v5540 = vadd.f32 %v5379, %v5539
        %v5541 = vpop.f32.mrb[0].mxu0
        %5542 = vdwg.mxu0
        %v5543 = vadd.f32 %v5417, %v5425
        %v5544 = vadd.f32 %v5420, %v5428
        %v5545 = vadd.f32 %v5433, %v5441
        %v5546 = vadd.f32 %v5436, %v5444
        %v5547 = vadd.f32 %v5449, %v5457
        %v5548 = vadd.f32 %v5452, %v5460
        %v5549 = vadd.f32 %v5465, %v5473
        %v5550 = vadd.f32 %v5468, %v5476
        %v5551 = vadd.f32 %v5481, %v5489
        %v5552 = vadd.f32 %v5484, %v5492
        %v5553 = vadd.f32 %v5497, %v5505
        %v5554 = vadd.f32 %v5500, %v5508
        %v5555 = vadd.f32 %v5513, %v5521
        %v5556 = vadd.f32 %v5516, %v5524
        %v5557 = vadd.f32 %v5529, %v5537
        %v5558 = vadd.f32 %v5532, %v5540
        %v5575 = vcombine.high %v5543, %v5543
        %v5577 = vunpack.c.l.s4 1983009808
        %v5578 = vunpack.c.0.s8 %v5577
        %v5579 = vlaneseq
        %v5580 = vshrl.u32 %v5579, 7
        %v5581 = vsub.s32 %v5578, %v5580
        %v5582 = vrot.slane %v5543, %v5581
        %v5584 = vunpack.c.l.s4 1983009808
        %v5585 = vunpack.c.0.s8 %v5584
        %v5586 = vlaneseq
        %v5587 = vshrl.u32 %v5586, 7
        %v5588 = vsub.s32 %v5585, %v5587
        %v5589 = vrot.slane %v5575, %v5588
        %v5590 = vcombine.high %v5582, %v5582
        %v5591 = vcombine.high %v5589, %v5589
        %v5592 = vcombine.high %v5544, %v5544
        %v5594 = vunpack.c.l.s4 1983009808
        %v5595 = vunpack.c.0.s8 %v5594
        %v5596 = vlaneseq
        %v5597 = vshrl.u32 %v5596, 7
        %v5598 = vsub.s32 %v5595, %v5597
        %v5599 = vrot.slane %v5544, %v5598
        %v5601 = vunpack.c.l.s4 1983009808
        %v5602 = vunpack.c.0.s8 %v5601
        %v5603 = vlaneseq
        %v5604 = vshrl.u32 %v5603, 7
        %v5605 = vsub.s32 %v5602, %v5604
        %v5606 = vrot.slane %v5592, %v5605
        %v5607 = vcombine.high %v5599, %v5599
        %v5608 = vcombine.high %v5606, %v5606
        %v5609 = vcombine.high %v5545, %v5545
        %v5611 = vunpack.c.l.s4 1983009808
        %v5612 = vunpack.c.0.s8 %v5611
        %v5613 = vlaneseq
        %v5614 = vshrl.u32 %v5613, 7
        %v5615 = vsub.s32 %v5612, %v5614
        %v5616 = vrot.slane %v5545, %v5615
        %v5618 = vunpack.c.l.s4 1983009808
        %v5619 = vunpack.c.0.s8 %v5618
        %v5620 = vlaneseq
        %v5621 = vshrl.u32 %v5620, 7
        %v5622 = vsub.s32 %v5619, %v5621
        %v5623 = vrot.slane %v5609, %v5622
        %v5624 = vcombine.high %v5616, %v5616
        %v5625 = vcombine.high %v5623, %v5623
        %v5626 = vcombine.high %v5546, %v5546
        %v5628 = vunpack.c.l.s4 1983009808
        %v5629 = vunpack.c.0.s8 %v5628
        %v5630 = vlaneseq
        %v5631 = vshrl.u32 %v5630, 7
        %v5632 = vsub.s32 %v5629, %v5631
        %v5633 = vrot.slane %v5546, %v5632
        %v5635 = vunpack.c.l.s4 1983009808
        %v5636 = vunpack.c.0.s8 %v5635
        %v5637 = vlaneseq
        %v5638 = vshrl.u32 %v5637, 7
        %v5639 = vsub.s32 %v5636, %v5638
        %v5640 = vrot.slane %v5626, %v5639
        %v5641 = vcombine.high %v5633, %v5633
        %v5642 = vcombine.high %v5640, %v5640
        %v5643 = vcombine.high %v5547, %v5547
        %v5645 = vunpack.c.l.s4 1983009808
        %v5646 = vunpack.c.0.s8 %v5645
        %v5647 = vlaneseq
        %v5648 = vshrl.u32 %v5647, 7
        %v5649 = vsub.s32 %v5646, %v5648
        %v5650 = vrot.slane %v5547, %v5649
        %v5652 = vunpack.c.l.s4 1983009808
        %v5653 = vunpack.c.0.s8 %v5652
        %v5654 = vlaneseq
        %v5655 = vshrl.u32 %v5654, 7
        %v5656 = vsub.s32 %v5653, %v5655
        %v5657 = vrot.slane %v5643, %v5656
        %v5658 = vcombine.high %v5650, %v5650
        %v5659 = vcombine.high %v5657, %v5657
        %v5660 = vcombine.high %v5548, %v5548
        %v5662 = vunpack.c.l.s4 1983009808
        %v5663 = vunpack.c.0.s8 %v5662
        %v5664 = vlaneseq
        %v5665 = vshrl.u32 %v5664, 7
        %v5666 = vsub.s32 %v5663, %v5665
        %v5667 = vrot.slane %v5548, %v5666
        %v5669 = vunpack.c.l.s4 1983009808
        %v5670 = vunpack.c.0.s8 %v5669
        %v5671 = vlaneseq
        %v5672 = vshrl.u32 %v5671, 7
        %v5673 = vsub.s32 %v5670, %v5672
        %v5674 = vrot.slane %v5660, %v5673
        %v5675 = vcombine.high %v5667, %v5667
        %v5676 = vcombine.high %v5674, %v5674
        %v5677 = vcombine.high %v5549, %v5549
        %v5679 = vunpack.c.l.s4 1983009808
        %v5680 = vunpack.c.0.s8 %v5679
        %v5681 = vlaneseq
        %v5682 = vshrl.u32 %v5681, 7
        %v5683 = vsub.s32 %v5680, %v5682
        %v5684 = vrot.slane %v5549, %v5683
        %v5686 = vunpack.c.l.s4 1983009808
        %v5687 = vunpack.c.0.s8 %v5686
        %v5688 = vlaneseq
        %v5689 = vshrl.u32 %v5688, 7
        %v5690 = vsub.s32 %v5687, %v5689
        %v5691 = vrot.slane %v5677, %v5690
        %v5692 = vcombine.high %v5684, %v5684
        %v5693 = vcombine.high %v5691, %v5691
        %v5694 = vcombine.high %v5550, %v5550
        %v5696 = vunpack.c.l.s4 1983009808
        %v5697 = vunpack.c.0.s8 %v5696
        %v5698 = vlaneseq
        %v5699 = vshrl.u32 %v5698, 7
        %v5700 = vsub.s32 %v5697, %v5699
        %v5701 = vrot.slane %v5550, %v5700
        %v5703 = vunpack.c.l.s4 1983009808
        %v5704 = vunpack.c.0.s8 %v5703
        %v5705 = vlaneseq
        %v5706 = vshrl.u32 %v5705, 7
        %v5707 = vsub.s32 %v5704, %v5706
        %v5708 = vrot.slane %v5694, %v5707
        %v5709 = vcombine.high %v5701, %v5701
        %v5710 = vcombine.high %v5708, %v5708
        %v5711 = vcombine.high %v5551, %v5551
        %v5713 = vunpack.c.l.s4 1983009808
        %v5714 = vunpack.c.0.s8 %v5713
        %v5715 = vlaneseq
        %v5716 = vshrl.u32 %v5715, 7
        %v5717 = vsub.s32 %v5714, %v5716
        %v5718 = vrot.slane %v5551, %v5717
        %v5720 = vunpack.c.l.s4 1983009808
        %v5721 = vunpack.c.0.s8 %v5720
        %v5722 = vlaneseq
        %v5723 = vshrl.u32 %v5722, 7
        %v5724 = vsub.s32 %v5721, %v5723
        %v5725 = vrot.slane %v5711, %v5724
        %v5726 = vcombine.high %v5718, %v5718
        %v5727 = vcombine.high %v5725, %v5725
        %v5728 = vcombine.high %v5552, %v5552
        %v5730 = vunpack.c.l.s4 1983009808
        %v5731 = vunpack.c.0.s8 %v5730
        %v5732 = vlaneseq
        %v5733 = vshrl.u32 %v5732, 7
        %v5734 = vsub.s32 %v5731, %v5733
        %v5735 = vrot.slane %v5552, %v5734
        %v5737 = vunpack.c.l.s4 1983009808
        %v5738 = vunpack.c.0.s8 %v5737
        %v5739 = vlaneseq
        %v5740 = vshrl.u32 %v5739, 7
        %v5741 = vsub.s32 %v5738, %v5740
        %v5742 = vrot.slane %v5728, %v5741
        %v5743 = vcombine.high %v5735, %v5735
        %v5744 = vcombine.high %v5742, %v5742
        %v5745 = vcombine.high %v5553, %v5553
        %v5747 = vunpack.c.l.s4 1983009808
        %v5748 = vunpack.c.0.s8 %v5747
        %v5749 = vlaneseq
        %v5750 = vshrl.u32 %v5749, 7
        %v5751 = vsub.s32 %v5748, %v5750
        %v5752 = vrot.slane %v5553, %v5751
        %v5754 = vunpack.c.l.s4 1983009808
        %v5755 = vunpack.c.0.s8 %v5754
        %v5756 = vlaneseq
        %v5757 = vshrl.u32 %v5756, 7
        %v5758 = vsub.s32 %v5755, %v5757
        %v5759 = vrot.slane %v5745, %v5758
        %v5760 = vcombine.high %v5752, %v5752
        %v5761 = vcombine.high %v5759, %v5759
        %v5762 = vcombine.high %v5554, %v5554
        %v5764 = vunpack.c.l.s4 1983009808
        %v5765 = vunpack.c.0.s8 %v5764
        %v5766 = vlaneseq
        %v5767 = vshrl.u32 %v5766, 7
        %v5768 = vsub.s32 %v5765, %v5767
        %v5769 = vrot.slane %v5554, %v5768
        %v5771 = vunpack.c.l.s4 1983009808
        %v5772 = vunpack.c.0.s8 %v5771
        %v5773 = vlaneseq
        %v5774 = vshrl.u32 %v5773, 7
        %v5775 = vsub.s32 %v5772, %v5774
        %v5776 = vrot.slane %v5762, %v5775
        %v5777 = vcombine.high %v5769, %v5769
        %v5778 = vcombine.high %v5776, %v5776
        %v5779 = vcombine.high %v5555, %v5555
        %v5781 = vunpack.c.l.s4 1983009808
        %v5782 = vunpack.c.0.s8 %v5781
        %v5783 = vlaneseq
        %v5784 = vshrl.u32 %v5783, 7
        %v5785 = vsub.s32 %v5782, %v5784
        %v5786 = vrot.slane %v5555, %v5785
        %v5788 = vunpack.c.l.s4 1983009808
        %v5789 = vunpack.c.0.s8 %v5788
        %v5790 = vlaneseq
        %v5791 = vshrl.u32 %v5790, 7
        %v5792 = vsub.s32 %v5789, %v5791
        %v5793 = vrot.slane %v5779, %v5792
        %v5794 = vcombine.high %v5786, %v5786
        %v5795 = vcombine.high %v5793, %v5793
        %v5796 = vcombine.high %v5556, %v5556
        %v5798 = vunpack.c.l.s4 1983009808
        %v5799 = vunpack.c.0.s8 %v5798
        %v5800 = vlaneseq
        %v5801 = vshrl.u32 %v5800, 7
        %v5802 = vsub.s32 %v5799, %v5801
        %v5803 = vrot.slane %v5556, %v5802
        %v5805 = vunpack.c.l.s4 1983009808
        %v5806 = vunpack.c.0.s8 %v5805
        %v5807 = vlaneseq
        %v5808 = vshrl.u32 %v5807, 7
        %v5809 = vsub.s32 %v5806, %v5808
        %v5810 = vrot.slane %v5796, %v5809
        %v5811 = vcombine.high %v5803, %v5803
        %v5812 = vcombine.high %v5810, %v5810
        %v5813 = vcombine.high %v5557, %v5557
        %v5815 = vunpack.c.l.s4 1983009808
        %v5816 = vunpack.c.0.s8 %v5815
        %v5817 = vlaneseq
        %v5818 = vshrl.u32 %v5817, 7
        %v5819 = vsub.s32 %v5816, %v5818
        %v5820 = vrot.slane %v5557, %v5819
        %v5822 = vunpack.c.l.s4 1983009808
        %v5823 = vunpack.c.0.s8 %v5822
        %v5824 = vlaneseq
        %v5825 = vshrl.u32 %v5824, 7
        %v5826 = vsub.s32 %v5823, %v5825
        %v5827 = vrot.slane %v5813, %v5826
        %v5828 = vcombine.high %v5820, %v5820
        %v5829 = vcombine.high %v5827, %v5827
        %v5830 = vcombine.high %v5558, %v5558
        %v5832 = vunpack.c.l.s4 1983009808
        %v5833 = vunpack.c.0.s8 %v5832
        %v5834 = vlaneseq
        %v5835 = vshrl.u32 %v5834, 7
        %v5836 = vsub.s32 %v5833, %v5835
        %v5837 = vrot.slane %v5558, %v5836
        %v5839 = vunpack.c.l.s4 1983009808
        %v5840 = vunpack.c.0.s8 %v5839
        %v5841 = vlaneseq
        %v5842 = vshrl.u32 %v5841, 7
        %v5843 = vsub.s32 %v5840, %v5842
        %v5844 = vrot.slane %v5830, %v5843
        %v5845 = vcombine.high %v5837, %v5837
        %v5846 = vcombine.high %v5844, %v5844
        %v5911 = vrot.slane %v5582, 7
        %v5912 = vrot.slane %v5911, 2
        %v5913 = vrot.slane %v5590, 7
        %v5914 = vrot.slane %v5913, 2
        %v5915 = vrot.slane %v5589, 7
        %v5916 = vrot.slane %v5915, 2
        %v5917 = vrot.slane %v5591, 7
        %v5918 = vrot.slane %v5917, 2
        %v5919 = vrot.slane %v5599, 7
        %v5920 = vrot.slane %v5919, 2
        %v5921 = vrot.slane %v5607, 7
        %v5922 = vrot.slane %v5921, 2
        %v5923 = vrot.slane %v5606, 7
        %v5924 = vrot.slane %v5923, 2
        %v5925 = vrot.slane %v5608, 7
        %v5926 = vrot.slane %v5925, 2
        %v5927 = vrot.slane %v5616, 7
        %v5928 = vrot.slane %v5927, 2
        %v5929 = vrot.slane %v5624, 7
        %v5930 = vrot.slane %v5929, 2
        %v5931 = vrot.slane %v5623, 7
        %v5932 = vrot.slane %v5931, 2
        %v5933 = vrot.slane %v5625, 7
        %v5934 = vrot.slane %v5933, 2
        %v5935 = vrot.slane %v5633, 7
        %v5936 = vrot.slane %v5935, 2
        %v5937 = vrot.slane %v5641, 7
        %v5938 = vrot.slane %v5937, 2
        %v5939 = vrot.slane %v5640, 7
        %v5940 = vrot.slane %v5939, 2
        %v5941 = vrot.slane %v5642, 7
        %v5942 = vrot.slane %v5941, 2
        %v5943 = vrot.slane %v5650, 7
        %v5944 = vrot.slane %v5943, 2
        %v5945 = vrot.slane %v5658, 7
        %v5946 = vrot.slane %v5945, 2
        %v5947 = vrot.slane %v5657, 7
        %v5948 = vrot.slane %v5947, 2
        %v5949 = vrot.slane %v5659, 7
        %v5950 = vrot.slane %v5949, 2
        %v5951 = vrot.slane %v5667, 7
        %v5952 = vrot.slane %v5951, 2
        %v5953 = vrot.slane %v5675, 7
        %v5954 = vrot.slane %v5953, 2
        %v5955 = vrot.slane %v5674, 7
        %v5956 = vrot.slane %v5955, 2
        %v5957 = vrot.slane %v5676, 7
        %v5958 = vrot.slane %v5957, 2
        %v5959 = vrot.slane %v5684, 7
        %v5960 = vrot.slane %v5959, 2
        %v5961 = vrot.slane %v5692, 7
        %v5962 = vrot.slane %v5961, 2
        %v5963 = vrot.slane %v5691, 7
        %v5964 = vrot.slane %v5963, 2
        %v5965 = vrot.slane %v5693, 7
        %v5966 = vrot.slane %v5965, 2
        %v5967 = vrot.slane %v5701, 7
        %v5968 = vrot.slane %v5967, 2
        %v5969 = vrot.slane %v5709, 7
        %v5970 = vrot.slane %v5969, 2
        %v5971 = vrot.slane %v5708, 7
        %v5972 = vrot.slane %v5971, 2
        %v5973 = vrot.slane %v5710, 7
        %v5974 = vrot.slane %v5973, 2
        %v5975 = vrot.slane %v5718, 7
        %v5976 = vrot.slane %v5975, 2
        %v5977 = vrot.slane %v5726, 7
        %v5978 = vrot.slane %v5977, 2
        %v5979 = vrot.slane %v5725, 7
        %v5980 = vrot.slane %v5979, 2
        %v5981 = vrot.slane %v5727, 7
        %v5982 = vrot.slane %v5981, 2
        %v5983 = vrot.slane %v5735, 7
        %v5984 = vrot.slane %v5983, 2
        %v5985 = vrot.slane %v5743, 7
        %v5986 = vrot.slane %v5985, 2
        %v5987 = vrot.slane %v5742, 7
        %v5988 = vrot.slane %v5987, 2
        %v5989 = vrot.slane %v5744, 7
        %v5990 = vrot.slane %v5989, 2
        %v5991 = vrot.slane %v5752, 7
        %v5992 = vrot.slane %v5991, 2
        %v5993 = vrot.slane %v5760, 7
        %v5994 = vrot.slane %v5993, 2
        %v5995 = vrot.slane %v5759, 7
        %v5996 = vrot.slane %v5995, 2
        %v5997 = vrot.slane %v5761, 7
        %v5998 = vrot.slane %v5997, 2
        %v5999 = vrot.slane %v5769, 7
        %v6000 = vrot.slane %v5999, 2
        %v6001 = vrot.slane %v5777, 7
        %v6002 = vrot.slane %v6001, 2
        %v6003 = vrot.slane %v5776, 7
        %v6004 = vrot.slane %v6003, 2
        %v6005 = vrot.slane %v5778, 7
        %v6006 = vrot.slane %v6005, 2
        %v6007 = vrot.slane %v5786, 7
        %v6008 = vrot.slane %v6007, 2
        %v6009 = vrot.slane %v5794, 7
        %v6010 = vrot.slane %v6009, 2
        %v6011 = vrot.slane %v5793, 7
        %v6012 = vrot.slane %v6011, 2
        %v6013 = vrot.slane %v5795, 7
        %v6014 = vrot.slane %v6013, 2
        %v6015 = vrot.slane %v5803, 7
        %v6016 = vrot.slane %v6015, 2
        %v6017 = vrot.slane %v5811, 7
        %v6018 = vrot.slane %v6017, 2
        %v6019 = vrot.slane %v5810, 7
        %v6020 = vrot.slane %v6019, 2
        %v6021 = vrot.slane %v5812, 7
        %v6022 = vrot.slane %v6021, 2
        %v6023 = vrot.slane %v5820, 7
        %v6024 = vrot.slane %v6023, 2
        %v6025 = vrot.slane %v5828, 7
        %v6026 = vrot.slane %v6025, 2
        %v6027 = vrot.slane %v5827, 7
        %v6028 = vrot.slane %v6027, 2
        %v6029 = vrot.slane %v5829, 7
        %v6030 = vrot.slane %v6029, 2
        %v6031 = vrot.slane %v5837, 7
        %v6032 = vrot.slane %v6031, 2
        %v6033 = vrot.slane %v5845, 7
        %v6034 = vrot.slane %v6033, 2
        %v6035 = vrot.slane %v5844, 7
        %v6036 = vrot.slane %v6035, 2
        %v6037 = vrot.slane %v5846, 7
        %v6038 = vrot.slane %v6037, 2
        %v6103 = vadd.f32 %v5582, %v5912
        %v6104 = vadd.f32 %v5590, %v5914
        %v6105 = vadd.f32 %v5589, %v5916
        %v6106 = vadd.f32 %v5591, %v5918
        %v6107 = vadd.f32 %v5599, %v5920
        %v6108 = vadd.f32 %v5607, %v5922
        %v6109 = vadd.f32 %v5606, %v5924
        %v6110 = vadd.f32 %v5608, %v5926
        %v6111 = vadd.f32 %v5616, %v5928
        %v6112 = vadd.f32 %v5624, %v5930
        %v6113 = vadd.f32 %v5623, %v5932
        %v6114 = vadd.f32 %v5625, %v5934
        %v6115 = vadd.f32 %v5633, %v5936
        %v6116 = vadd.f32 %v5641, %v5938
        %v6117 = vadd.f32 %v5640, %v5940
        %v6118 = vadd.f32 %v5642, %v5942
        %v6119 = vadd.f32 %v5650, %v5944
        %v6120 = vadd.f32 %v5658, %v5946
        %v6121 = vadd.f32 %v5657, %v5948
        %v6122 = vadd.f32 %v5659, %v5950
        %v6123 = vadd.f32 %v5667, %v5952
        %v6124 = vadd.f32 %v5675, %v5954
        %v6125 = vadd.f32 %v5674, %v5956
        %v6126 = vadd.f32 %v5676, %v5958
        %v6127 = vadd.f32 %v5684, %v5960
        %v6128 = vadd.f32 %v5692, %v5962
        %v6129 = vadd.f32 %v5691, %v5964
        %v6130 = vadd.f32 %v5693, %v5966
        %v6131 = vadd.f32 %v5701, %v5968
        %v6132 = vadd.f32 %v5709, %v5970
        %v6133 = vadd.f32 %v5708, %v5972
        %v6134 = vadd.f32 %v5710, %v5974
        %v6135 = vadd.f32 %v5718, %v5976
        %v6136 = vadd.f32 %v5726, %v5978
        %v6137 = vadd.f32 %v5725, %v5980
        %v6138 = vadd.f32 %v5727, %v5982
        %v6139 = vadd.f32 %v5735, %v5984
        %v6140 = vadd.f32 %v5743, %v5986
        %v6141 = vadd.f32 %v5742, %v5988
        %v6142 = vadd.f32 %v5744, %v5990
        %v6143 = vadd.f32 %v5752, %v5992
        %v6144 = vadd.f32 %v5760, %v5994
        %v6145 = vadd.f32 %v5759, %v5996
        %v6146 = vadd.f32 %v5761, %v5998
        %v6147 = vadd.f32 %v5769, %v6000
        %v6148 = vadd.f32 %v5777, %v6002
        %v6149 = vadd.f32 %v5776, %v6004
        %v6150 = vadd.f32 %v5778, %v6006
        %v6151 = vadd.f32 %v5786, %v6008
        %v6152 = vadd.f32 %v5794, %v6010
        %v6153 = vadd.f32 %v5793, %v6012
        %v6154 = vadd.f32 %v5795, %v6014
        %v6155 = vadd.f32 %v5803, %v6016
        %v6156 = vadd.f32 %v5811, %v6018
        %v6157 = vadd.f32 %v5810, %v6020
        %v6158 = vadd.f32 %v5812, %v6022
        %v6159 = vadd.f32 %v5820, %v6024
        %v6160 = vadd.f32 %v5828, %v6026
        %v6161 = vadd.f32 %v5827, %v6028
        %v6162 = vadd.f32 %v5829, %v6030
        %v6163 = vadd.f32 %v5837, %v6032
        %v6164 = vadd.f32 %v5845, %v6034
        %v6165 = vadd.f32 %v5844, %v6036
        %v6166 = vadd.f32 %v5846, %v6038
        %v6167 = vmul.f32 %v6103, 0.25
        %v6168 = vmul.f32 %v6104, 0.25
        %v6169 = vmul.f32 %v6105, 0.25
        %v6170 = vmul.f32 %v6106, 0.25
        %v6171 = vmul.f32 %v6107, 0.25
        %v6172 = vmul.f32 %v6108, 0.25
        %v6173 = vmul.f32 %v6109, 0.25
        %v6174 = vmul.f32 %v6110, 0.25
        %v6175 = vmul.f32 %v6111, 0.25
        %v6176 = vmul.f32 %v6112, 0.25
        %v6177 = vmul.f32 %v6113, 0.25
        %v6178 = vmul.f32 %v6114, 0.25
        %v6179 = vmul.f32 %v6115, 0.25
        %v6180 = vmul.f32 %v6116, 0.25
        %v6181 = vmul.f32 %v6117, 0.25
        %v6182 = vmul.f32 %v6118, 0.25
        %v6183 = vmul.f32 %v6119, 0.25
        %v6184 = vmul.f32 %v6120, 0.25
        %v6185 = vmul.f32 %v6121, 0.25
        %v6186 = vmul.f32 %v6122, 0.25
        %v6187 = vmul.f32 %v6123, 0.25
        %v6188 = vmul.f32 %v6124, 0.25
        %v6189 = vmul.f32 %v6125, 0.25
        %v6190 = vmul.f32 %v6126, 0.25
        %v6191 = vmul.f32 %v6127, 0.25
        %v6192 = vmul.f32 %v6128, 0.25
        %v6193 = vmul.f32 %v6129, 0.25
        %v6194 = vmul.f32 %v6130, 0.25
        %v6195 = vmul.f32 %v6131, 0.25
        %v6196 = vmul.f32 %v6132, 0.25
        %v6197 = vmul.f32 %v6133, 0.25
        %v6198 = vmul.f32 %v6134, 0.25
        %v6199 = vmul.f32 %v6135, 0.25
        %v6200 = vmul.f32 %v6136, 0.25
        %v6201 = vmul.f32 %v6137, 0.25
        %v6202 = vmul.f32 %v6138, 0.25
        %v6203 = vmul.f32 %v6139, 0.25
        %v6204 = vmul.f32 %v6140, 0.25
        %v6205 = vmul.f32 %v6141, 0.25
        %v6206 = vmul.f32 %v6142, 0.25
        %v6207 = vmul.f32 %v6143, 0.25
        %v6208 = vmul.f32 %v6144, 0.25
        %v6209 = vmul.f32 %v6145, 0.25
        %v6210 = vmul.f32 %v6146, 0.25
        %v6211 = vmul.f32 %v6147, 0.25
        %v6212 = vmul.f32 %v6148, 0.25
        %v6213 = vmul.f32 %v6149, 0.25
        %v6214 = vmul.f32 %v6150, 0.25
        %v6215 = vmul.f32 %v6151, 0.25
        %v6216 = vmul.f32 %v6152, 0.25
        %v6217 = vmul.f32 %v6153, 0.25
        %v6218 = vmul.f32 %v6154, 0.25
        %v6219 = vmul.f32 %v6155, 0.25
        %v6220 = vmul.f32 %v6156, 0.25
        %v6221 = vmul.f32 %v6157, 0.25
        %v6222 = vmul.f32 %v6158, 0.25
        %v6223 = vmul.f32 %v6159, 0.25
        %v6224 = vmul.f32 %v6160, 0.25
        %v6225 = vmul.f32 %v6161, 0.25
        %v6226 = vmul.f32 %v6162, 0.25
        %v6227 = vmul.f32 %v6163, 0.25
        %v6228 = vmul.f32 %v6164, 0.25
        %v6229 = vmul.f32 %v6165, 0.25
        %v6230 = vmul.f32 %v6166, 0.25
        %v6295 = vlaneseq
        %v6296 = vshrl.u32 %v6295, 7
        %v6297 = vsub.s32 0, %v6296
        %v6298 = vrot.slane %v6167, %v6297
        %v6299 = vlaneseq
        %v6300 = vshrl.u32 %v6299, 7
        %v6301 = vsub.s32 0, %v6300
        %v6302 = vrot.slane %v6168, %v6301
        %v6303 = vlaneseq
        %v6304 = vshrl.u32 %v6303, 7
        %v6305 = vsub.s32 0, %v6304
        %v6306 = vrot.slane %v6169, %v6305
        %v6307 = vlaneseq
        %v6308 = vshrl.u32 %v6307, 7
        %v6309 = vsub.s32 0, %v6308
        %v6310 = vrot.slane %v6170, %v6309
        %v6311 = vlaneseq
        %v6312 = vshrl.u32 %v6311, 7
        %v6313 = vsub.s32 0, %v6312
        %v6314 = vrot.slane %v6171, %v6313
        %v6315 = vlaneseq
        %v6316 = vshrl.u32 %v6315, 7
        %v6317 = vsub.s32 0, %v6316
        %v6318 = vrot.slane %v6172, %v6317
        %v6319 = vlaneseq
        %v6320 = vshrl.u32 %v6319, 7
        %v6321 = vsub.s32 0, %v6320
        %v6322 = vrot.slane %v6173, %v6321
        %v6323 = vlaneseq
        %v6324 = vshrl.u32 %v6323, 7
        %v6325 = vsub.s32 0, %v6324
        %v6326 = vrot.slane %v6174, %v6325
        %v6327 = vlaneseq
        %v6328 = vshrl.u32 %v6327, 7
        %v6329 = vsub.s32 0, %v6328
        %v6330 = vrot.slane %v6175, %v6329
        %v6331 = vlaneseq
        %v6332 = vshrl.u32 %v6331, 7
        %v6333 = vsub.s32 0, %v6332
        %v6334 = vrot.slane %v6176, %v6333
        %v6335 = vlaneseq
        %v6336 = vshrl.u32 %v6335, 7
        %v6337 = vsub.s32 0, %v6336
        %v6338 = vrot.slane %v6177, %v6337
        %v6339 = vlaneseq
        %v6340 = vshrl.u32 %v6339, 7
        %v6341 = vsub.s32 0, %v6340
        %v6342 = vrot.slane %v6178, %v6341
        %v6343 = vlaneseq
        %v6344 = vshrl.u32 %v6343, 7
        %v6345 = vsub.s32 0, %v6344
        %v6346 = vrot.slane %v6179, %v6345
        %v6347 = vlaneseq
        %v6348 = vshrl.u32 %v6347, 7
        %v6349 = vsub.s32 0, %v6348
        %v6350 = vrot.slane %v6180, %v6349
        %v6351 = vlaneseq
        %v6352 = vshrl.u32 %v6351, 7
        %v6353 = vsub.s32 0, %v6352
        %v6354 = vrot.slane %v6181, %v6353
        %v6355 = vlaneseq
        %v6356 = vshrl.u32 %v6355, 7
        %v6357 = vsub.s32 0, %v6356
        %v6358 = vrot.slane %v6182, %v6357
        %v6359 = vlaneseq
        %v6360 = vshrl.u32 %v6359, 7
        %v6361 = vsub.s32 0, %v6360
        %v6362 = vrot.slane %v6183, %v6361
        %v6363 = vlaneseq
        %v6364 = vshrl.u32 %v6363, 7
        %v6365 = vsub.s32 0, %v6364
        %v6366 = vrot.slane %v6184, %v6365
        %v6367 = vlaneseq
        %v6368 = vshrl.u32 %v6367, 7
        %v6369 = vsub.s32 0, %v6368
        %v6370 = vrot.slane %v6185, %v6369
        %v6371 = vlaneseq
        %v6372 = vshrl.u32 %v6371, 7
        %v6373 = vsub.s32 0, %v6372
        %v6374 = vrot.slane %v6186, %v6373
        %v6375 = vlaneseq
        %v6376 = vshrl.u32 %v6375, 7
        %v6377 = vsub.s32 0, %v6376
        %v6378 = vrot.slane %v6187, %v6377
        %v6379 = vlaneseq
        %v6380 = vshrl.u32 %v6379, 7
        %v6381 = vsub.s32 0, %v6380
        %v6382 = vrot.slane %v6188, %v6381
        %v6383 = vlaneseq
        %v6384 = vshrl.u32 %v6383, 7
        %v6385 = vsub.s32 0, %v6384
        %v6386 = vrot.slane %v6189, %v6385
        %v6387 = vlaneseq
        %v6388 = vshrl.u32 %v6387, 7
        %v6389 = vsub.s32 0, %v6388
        %v6390 = vrot.slane %v6190, %v6389
        %v6391 = vlaneseq
        %v6392 = vshrl.u32 %v6391, 7
        %v6393 = vsub.s32 0, %v6392
        %v6394 = vrot.slane %v6191, %v6393
        %v6395 = vlaneseq
        %v6396 = vshrl.u32 %v6395, 7
        %v6397 = vsub.s32 0, %v6396
        %v6398 = vrot.slane %v6192, %v6397
        %v6399 = vlaneseq
        %v6400 = vshrl.u32 %v6399, 7
        %v6401 = vsub.s32 0, %v6400
        %v6402 = vrot.slane %v6193, %v6401
        %v6403 = vlaneseq
        %v6404 = vshrl.u32 %v6403, 7
        %v6405 = vsub.s32 0, %v6404
        %v6406 = vrot.slane %v6194, %v6405
        %v6407 = vlaneseq
        %v6408 = vshrl.u32 %v6407, 7
        %v6409 = vsub.s32 0, %v6408
        %v6410 = vrot.slane %v6195, %v6409
        %v6411 = vlaneseq
        %v6412 = vshrl.u32 %v6411, 7
        %v6413 = vsub.s32 0, %v6412
        %v6414 = vrot.slane %v6196, %v6413
        %v6415 = vlaneseq
        %v6416 = vshrl.u32 %v6415, 7
        %v6417 = vsub.s32 0, %v6416
        %v6418 = vrot.slane %v6197, %v6417
        %v6419 = vlaneseq
        %v6420 = vshrl.u32 %v6419, 7
        %v6421 = vsub.s32 0, %v6420
        %v6422 = vrot.slane %v6198, %v6421
        %v6423 = vlaneseq
        %v6424 = vshrl.u32 %v6423, 7
        %v6425 = vsub.s32 0, %v6424
        %v6426 = vrot.slane %v6199, %v6425
        %v6427 = vlaneseq
        %v6428 = vshrl.u32 %v6427, 7
        %v6429 = vsub.s32 0, %v6428
        %v6430 = vrot.slane %v6200, %v6429
        %v6431 = vlaneseq
        %v6432 = vshrl.u32 %v6431, 7
        %v6433 = vsub.s32 0, %v6432
        %v6434 = vrot.slane %v6201, %v6433
        %v6435 = vlaneseq
        %v6436 = vshrl.u32 %v6435, 7
        %v6437 = vsub.s32 0, %v6436
        %v6438 = vrot.slane %v6202, %v6437
        %v6439 = vlaneseq
        %v6440 = vshrl.u32 %v6439, 7
        %v6441 = vsub.s32 0, %v6440
        %v6442 = vrot.slane %v6203, %v6441
        %v6443 = vlaneseq
        %v6444 = vshrl.u32 %v6443, 7
        %v6445 = vsub.s32 0, %v6444
        %v6446 = vrot.slane %v6204, %v6445
        %v6447 = vlaneseq
        %v6448 = vshrl.u32 %v6447, 7
        %v6449 = vsub.s32 0, %v6448
        %v6450 = vrot.slane %v6205, %v6449
        %v6451 = vlaneseq
        %v6452 = vshrl.u32 %v6451, 7
        %v6453 = vsub.s32 0, %v6452
        %v6454 = vrot.slane %v6206, %v6453
        %v6455 = vlaneseq
        %v6456 = vshrl.u32 %v6455, 7
        %v6457 = vsub.s32 0, %v6456
        %v6458 = vrot.slane %v6207, %v6457
        %v6459 = vlaneseq
        %v6460 = vshrl.u32 %v6459, 7
        %v6461 = vsub.s32 0, %v6460
        %v6462 = vrot.slane %v6208, %v6461
        %v6463 = vlaneseq
        %v6464 = vshrl.u32 %v6463, 7
        %v6465 = vsub.s32 0, %v6464
        %v6466 = vrot.slane %v6209, %v6465
        %v6467 = vlaneseq
        %v6468 = vshrl.u32 %v6467, 7
        %v6469 = vsub.s32 0, %v6468
        %v6470 = vrot.slane %v6210, %v6469
        %v6471 = vlaneseq
        %v6472 = vshrl.u32 %v6471, 7
        %v6473 = vsub.s32 0, %v6472
        %v6474 = vrot.slane %v6211, %v6473
        %v6475 = vlaneseq
        %v6476 = vshrl.u32 %v6475, 7
        %v6477 = vsub.s32 0, %v6476
        %v6478 = vrot.slane %v6212, %v6477
        %v6479 = vlaneseq
        %v6480 = vshrl.u32 %v6479, 7
        %v6481 = vsub.s32 0, %v6480
        %v6482 = vrot.slane %v6213, %v6481
        %v6483 = vlaneseq
        %v6484 = vshrl.u32 %v6483, 7
        %v6485 = vsub.s32 0, %v6484
        %v6486 = vrot.slane %v6214, %v6485
        %v6487 = vlaneseq
        %v6488 = vshrl.u32 %v6487, 7
        %v6489 = vsub.s32 0, %v6488
        %v6490 = vrot.slane %v6215, %v6489
        %v6491 = vlaneseq
        %v6492 = vshrl.u32 %v6491, 7
        %v6493 = vsub.s32 0, %v6492
        %v6494 = vrot.slane %v6216, %v6493
        %v6495 = vlaneseq
        %v6496 = vshrl.u32 %v6495, 7
        %v6497 = vsub.s32 0, %v6496
        %v6498 = vrot.slane %v6217, %v6497
        %v6499 = vlaneseq
        %v6500 = vshrl.u32 %v6499, 7
        %v6501 = vsub.s32 0, %v6500
        %v6502 = vrot.slane %v6218, %v6501
        %v6503 = vlaneseq
        %v6504 = vshrl.u32 %v6503, 7
        %v6505 = vsub.s32 0, %v6504
        %v6506 = vrot.slane %v6219, %v6505
        %v6507 = vlaneseq
        %v6508 = vshrl.u32 %v6507, 7
        %v6509 = vsub.s32 0, %v6508
        %v6510 = vrot.slane %v6220, %v6509
        %v6511 = vlaneseq
        %v6512 = vshrl.u32 %v6511, 7
        %v6513 = vsub.s32 0, %v6512
        %v6514 = vrot.slane %v6221, %v6513
        %v6515 = vlaneseq
        %v6516 = vshrl.u32 %v6515, 7
        %v6517 = vsub.s32 0, %v6516
        %v6518 = vrot.slane %v6222, %v6517
        %v6519 = vlaneseq
        %v6520 = vshrl.u32 %v6519, 7
        %v6521 = vsub.s32 0, %v6520
        %v6522 = vrot.slane %v6223, %v6521
        %v6523 = vlaneseq
        %v6524 = vshrl.u32 %v6523, 7
        %v6525 = vsub.s32 0, %v6524
        %v6526 = vrot.slane %v6224, %v6525
        %v6527 = vlaneseq
        %v6528 = vshrl.u32 %v6527, 7
        %v6529 = vsub.s32 0, %v6528
        %v6530 = vrot.slane %v6225, %v6529
        %v6531 = vlaneseq
        %v6532 = vshrl.u32 %v6531, 7
        %v6533 = vsub.s32 0, %v6532
        %v6534 = vrot.slane %v6226, %v6533
        %v6535 = vlaneseq
        %v6536 = vshrl.u32 %v6535, 7
        %v6537 = vsub.s32 0, %v6536
        %v6538 = vrot.slane %v6227, %v6537
        %v6539 = vlaneseq
        %v6540 = vshrl.u32 %v6539, 7
        %v6541 = vsub.s32 0, %v6540
        %v6542 = vrot.slane %v6228, %v6541
        %v6543 = vlaneseq
        %v6544 = vshrl.u32 %v6543, 7
        %v6545 = vsub.s32 0, %v6544
        %v6546 = vrot.slane %v6229, %v6545
        %v6547 = vlaneseq
        %v6548 = vshrl.u32 %v6547, 7
        %v6549 = vsub.s32 0, %v6548
        %v6550 = vrot.slane %v6230, %v6549
        %vm6551 = vcmask 1041409
        %v6552 = vsel %vm6551, %v6302, %v6298
        %vm6553 = vcmask 1042434
        %v6554 = vsel %vm6553, %v6306, %v6552
        %vm6555 = vcmask 1043459
        %v6556 = vsel %vm6555, %v6310, %v6554
        %vm6557 = vcmask 1044484
        %v6558 = vsel %vm6557, %v6314, %v6556
        %vm6559 = vcmask 1045509
        %v6560 = vsel %vm6559, %v6318, %v6558
        %vm6561 = vcmask 1046534
        %v6562 = vsel %vm6561, %v6322, %v6560
        %vm6563 = vcmask 1047559
        %v6564 = vsel %vm6563, %v6326, %v6562
        %v6565 = vsel %vm6551, %v6334, %v6330
        %v6566 = vsel %vm6553, %v6338, %v6565
        %v6567 = vsel %vm6555, %v6342, %v6566
        %v6568 = vsel %vm6557, %v6346, %v6567
        %v6569 = vsel %vm6559, %v6350, %v6568
        %v6570 = vsel %vm6561, %v6354, %v6569
        %v6571 = vsel %vm6563, %v6358, %v6570
        %v6572 = vsel %vm6551, %v6366, %v6362
        %v6573 = vsel %vm6553, %v6370, %v6572
        %v6574 = vsel %vm6555, %v6374, %v6573
        %v6575 = vsel %vm6557, %v6378, %v6574
        %v6576 = vsel %vm6559, %v6382, %v6575
        %v6577 = vsel %vm6561, %v6386, %v6576
        %v6578 = vsel %vm6563, %v6390, %v6577
        %v6579 = vsel %vm6551, %v6398, %v6394
        %v6580 = vsel %vm6553, %v6402, %v6579
        %v6581 = vsel %vm6555, %v6406, %v6580
        %v6582 = vsel %vm6557, %v6410, %v6581
        %v6583 = vsel %vm6559, %v6414, %v6582
        %v6584 = vsel %vm6561, %v6418, %v6583
        %v6585 = vsel %vm6563, %v6422, %v6584
        %v6586 = vsel %vm6551, %v6430, %v6426
        %v6587 = vsel %vm6553, %v6434, %v6586
        %v6588 = vsel %vm6555, %v6438, %v6587
        %v6589 = vsel %vm6557, %v6442, %v6588
        %v6590 = vsel %vm6559, %v6446, %v6589
        %v6591 = vsel %vm6561, %v6450, %v6590
        %v6592 = vsel %vm6563, %v6454, %v6591
        %v6593 = vsel %vm6551, %v6462, %v6458
        %v6594 = vsel %vm6553, %v6466, %v6593
        %v6595 = vsel %vm6555, %v6470, %v6594
        %v6596 = vsel %vm6557, %v6474, %v6595
        %v6597 = vsel %vm6559, %v6478, %v6596
        %v6598 = vsel %vm6561, %v6482, %v6597
        %v6599 = vsel %vm6563, %v6486, %v6598
        %v6600 = vsel %vm6551, %v6494, %v6490
        %v6601 = vsel %vm6553, %v6498, %v6600
        %v6602 = vsel %vm6555, %v6502, %v6601
        %v6603 = vsel %vm6557, %v6506, %v6602
        %v6604 = vsel %vm6559, %v6510, %v6603
        %v6605 = vsel %vm6561, %v6514, %v6604
        %v6606 = vsel %vm6563, %v6518, %v6605
        %v6607 = vsel %vm6551, %v6526, %v6522
        %v6608 = vsel %vm6553, %v6530, %v6607
        %v6609 = vsel %vm6555, %v6534, %v6608
        %v6610 = vsel %vm6557, %v6538, %v6609
        %v6611 = vsel %vm6559, %v6542, %v6610
        %v6612 = vsel %vm6561, %v6546, %v6611
        %v6613 = vsel %vm6563, %v6550, %v6612
        %6622 = vst.msk [vmem:[%s377] sm:$0xff] %vm379, %v6564
        %6623 = vst.msk [vmem:[%s377 + $0x8] sm:$0xff] %vm379, %v6571
        %6624 = vst.msk [vmem:[%s377 + $0x10] sm:$0xff] %vm379, %v6578
        %6625 = vst.msk [vmem:[%s377 + $0x18] sm:$0xff] %vm379, %v6585
        %6626 = vst.msk [vmem:[%s377 + $0x20] sm:$0xff] %vm379, %v6592
        %6627 = vst.msk [vmem:[%s377 + $0x28] sm:$0xff] %vm379, %v6599
        %6628 = vst.msk [vmem:[%s377 + $0x30] sm:$0xff] %vm379, %v6606
        %6629 = vst.msk [vmem:[%s377 + $0x38] sm:$0xff] %vm379, %v6613
        %s6630 = sand.u32 %s187, 1
        %s6631 = scalar_lea.sflag [#allocation9], %s6630
        %s6632 = sand.u32 %s187, 1
        %s6633 = smul.addr %s6632, 64
        %s6634 = scalar_lea.vmem [#allocation19], %s6633
        // Predicated region
        $region77: #{my_cnn_forward.1} parent=47 // pred_check
          %p6635 = pneg %p197
        $region78: #{my_cnn_forward.1} parent=47 // pred_check_branch
          %6637 = sbr.rel (%p6635) target = $region80
        $region79: #{my_cnn_forward.1} parent=47 // pred_region
          %s6639 = ssub.s32 1024, 1024
          %6640 = vsyncadd %s6631, %s6639
          %s6641 = smul.addr %s27, 8
          %s6642 = smul.addr %s6641, 128
          %s6643 = scalar_lea.hbm %s7, %s6642
          %s6644 = sshll.u32 %s6634, 4
          %s6645 = int_to_ptr.vmem [resolvable:$true] %s6644
          %6650 = dma.vmem_to_hbm [thread:$0]  %s6645, 1024, %s6643, %s6631, 128, 128, 8
        $region80: #{my_cnn_forward.1} parent=47 // pred_fallthru
          _
      $region48: #{my_cnn_forward.1} parent=5 // pred_fallthru
        _
      %p6651 = scmp.le.s32.totalorder 2, %s22
      // Predicated region
      $region81: #{my_cnn_forward.1} parent=5 // pred_check
        %p6652 = pneg %p6651
      $region82: #{my_cnn_forward.1} parent=5 // pred_check_branch
        %6654 = sbr.rel (%p6652) target = $region84
      $region83: #{my_cnn_forward.1} parent=5 // pred_region
        %s6655 = ssub.s32 %s22, 2
        // Predicated region
        $region85: #{my_cnn_forward.1} parent=83 // pred_check
          %p6656 = pneg %p203
        $region86: #{my_cnn_forward.1} parent=83 // pred_check_branch
          %6658 = sbr.rel (%p6656) target = $region88
        $region87: #{my_cnn_forward.1} parent=83 // pred_region
          %s6659 = sand.u32 %s188, 1
          %s6660 = scalar_lea.sflag [#allocation9], %s6659
          %s6661 = sand.u32 %s188, 1
          %s6662 = smul.addr %s6661, 64
          %s6663 = scalar_lea.vmem [#allocation19], %s6662
          %6664 = dma.done %s6660, 1024
        $region88: #{my_cnn_forward.1} parent=83 // pred_fallthru
          _
      $region84: #{my_cnn_forward.1} parent=5 // pred_fallthru
        _
    $region6: #{my_cnn_forward.1} parent=1 // loop_footer
      %s26 = sadd.s32 1, %s22
    $region7: #{my_cnn_forward.1} parent=1 // loop_footer_branch
      %21 = sbr.rel target = $region3
    $region8: #{my_cnn_forward.1} parent=1 // loop_exit
      _
    %6665 = vsyncpa [#allocation8], 1
    %s6666 = scalar_lea.sflag [#allocation8], 1
    %6667 = vsyncpa %s6666, 1
    %6668 = vsyncpa [#allocation11], 1
    %6669 = vsyncpa [#allocation14], 1
    %6670 = vsyncpa [#allocation17], 1
    %6671 = vsyncpa [#allocation9], 1
    %s6672 = scalar_lea.sflag [#allocation9], 1
    %6673 = vsyncpa %s6672, 1

</llo_original>
